<compile_context>
chip_gen: v7x
topology: tpu7x:2x2x1
jax: 0.10.0
libtpu: 0.0.40
codegen_flags: <defaults>
</compile_context>

<pallas_src>
import functools
import math

import jax
import jax.numpy as jnp
from jax.experimental import pallas as pl
from jax.experimental.pallas import tpu as pltpu


_LN_EPS = 1e-5
# MXU operand dtype (accumulation is always f32 via preferred_element_type).
_MM_DTYPE = jnp.bfloat16
# Above the 16 MiB (v5e) / 32 MiB (v6e, v7x) scoped defaults, below v7x 64 MiB physical.
_VMEM_LIMIT = 48 * 1024 * 1024

_LAYER_PARAMS = pltpu.CompilerParams(        # row axis carries the K/V scratch -> arbitrary
    dimension_semantics=("parallel", "arbitrary"), vmem_limit_bytes=_VMEM_LIMIT)
_ROWPAR_PARAMS = pltpu.CompilerParams(       # no carried state -> both axes parallel
    dimension_semantics=("parallel", "parallel"), vmem_limit_bytes=_VMEM_LIMIT)


# --------------------------------------------------------------------------
# In-kernel math helpers
# --------------------------------------------------------------------------
def _mm(a, b):
    return jnp.dot(a.astype(_MM_DTYPE), b.astype(_MM_DTYPE),
                   preferred_element_type=jnp.float32)


def _qkT(q, k):
    # q @ k.T without materializing the transpose (contract last dims on the MXU).
    return jax.lax.dot_general(
        q.astype(_MM_DTYPE), k.astype(_MM_DTYPE),
        dimension_numbers=(((1,), (1,)), ((), ())),
        preferred_element_type=jnp.float32)


def _gelu(y):
    # TODO(synk): torch uses erf-gelu; tanh approximation (negligible numeric delta).
    return 0.5 * y * (1.0 + jnp.tanh(0.7978845608028654 * (y + 0.044715 * y * y * y)))


def _layer_norm(h, g, b):
    mu = jnp.mean(h, axis=-1, keepdims=True)
    var = jnp.mean((h - mu) ** 2, axis=-1, keepdims=True)
    return (h - mu) * jax.lax.rsqrt(var + _LN_EPS) * g + b


def _mha_into(out_scr, q, k, v, *, n_heads, causal, q_offset):
    """Per-head softmax attention; each head's (Lq, Dh) output is written into its lane
    slot of out_scr (Lq, D) so the output projection afterwards is a single full-width
    K=D matmul (full MXU fill) instead of per-head K=Dh matmuls.

    q: (Lq, D) f32; k, v: (Lk, D) (bf16 K/V cache scratch). Softmax stats stay f32.
    """
    lq, d = q.shape
    lk = k.shape[0]
    dh = d // n_heads
    scale = 1.0 / math.sqrt(dh)
    if causal:
        qi = jax.lax.broadcasted_iota(jnp.int32, (lq, lk), 0) + q_offset
        ki = jax.lax.broadcasted_iota(jnp.int32, (lq, lk), 1)
        keep = ki <= qi
    # TODO(synk): static unroll keeps Dh(<128)-wide lane slices of q/k/v; a head-major
    # (H, L, Dh) batched dot_general layout would remove the per-head relayouts.
    for h in range(n_heads):
        sl = slice(h * dh, (h + 1) * dh)
        s = _qkT(q[:, sl], k[:, sl]) * scale
        if causal:
            s = jnp.where(keep, s, jnp.float32(-1e30))      # finite mask: no inf-inf NaNs
        m = jnp.max(s, axis=-1, keepdims=True)
        p = jnp.exp(s - m)
        inv_l = pl.reciprocal(jnp.sum(p, axis=-1, keepdims=True), approx=True)
        out_scr[:, sl] = (_mm(p, v[:, sl]) * inv_l).astype(out_scr.dtype)


# --------------------------------------------------------------------------
# Fused Pallas kernels (one per transformer layer / embedding / head)
# --------------------------------------------------------------------------
def _enc_layer_kernel(xf_ref, x_ref,
                      wq_ref, bq_ref, wk_ref, bk_ref, wv_ref, bv_ref,
                      wo_ref, bo_ref, g1_ref, gb1_ref,
                      w1_ref, b1_ref, w2_ref, b2_ref, g2_ref, gb2_ref,
                      o_ref,
                      k_scr, v_scr, a_scr, *, n_heads):
    qt = pl.program_id(1)

    @pl.when(qt == 0)                                        # K/V once per batch index
    def _():
        xf = xf_ref[...]
        k_scr[...] = (_mm(xf, wk_ref[...]) + bk_ref[...]).astype(k_scr.dtype)
        v_scr[...] = (_mm(xf, wv_ref[...]) + bv_ref[...]).astype(v_scr.dtype)

    x = x_ref[...]                                           # (tq, D) query/residual tile
    q = _mm(x, wq_ref[...]) + bq_ref[...]
    _mha_into(a_scr, q, k_scr[...], v_scr[...],
              n_heads=n_heads, causal=False, q_offset=0)
    attn = _mm(a_scr[...], wo_ref[...]) + bo_ref[...]        # one full-width Wo matmul
    h = _layer_norm(x + attn, g1_ref[...], gb1_ref[...])
    y = _gelu(_mm(h, w1_ref[...]) + b1_ref[...])             # (tq, d_ff) stays in VMEM
    y = _mm(y, w2_ref[...]) + b2_ref[...]
    o_ref[...] = _layer_norm(h + y, g2_ref[...], gb2_ref[...]).astype(o_ref.dtype)


def _dec_layer_kernel(xf_ref, x_ref, enc_ref,
                      swq_ref, sbq_ref, swk_ref, sbk_ref, swv_ref, sbv_ref,
                      swo_ref, sbo_ref, sg_ref, sb_ref,
                      cwq_ref, cbq_ref, cwk_ref, cbk_ref, cwv_ref, cbv_ref,
                      cwo_ref, cbo_ref, cg_ref, cb_ref,
                      w1_ref, b1_ref, w2_ref, b2_ref, fg_ref, fb_ref,
                      o_ref,
                      ks_scr, vs_scr, kc_scr, vc_scr, a_scr, *, n_heads, tq):
    qt = pl.program_id(1)

    @pl.when(qt == 0)                                        # self + cross K/V once per b
    def _():
        xf = xf_ref[...]
        ks_scr[...] = (_mm(xf, swk_ref[...]) + sbk_ref[...]).astype(ks_scr.dtype)
        vs_scr[...] = (_mm(xf, swv_ref[...]) + sbv_ref[...]).astype(vs_scr.dtype)
        e = enc_ref[...]
        kc_scr[...] = (_mm(e, cwk_ref[...]) + cbk_ref[...]).astype(kc_scr.dtype)
        vc_scr[...] = (_mm(e, cwv_ref[...]) + cbv_ref[...]).astype(vc_scr.dtype)

    x = x_ref[...]                                           # (tq, D)
    # causal (masked) self-attention
    q = _mm(x, swq_ref[...]) + sbq_ref[...]
    _mha_into(a_scr, q, ks_scr[...], vs_scr[...],
              n_heads=n_heads, causal=True, q_offset=qt * tq)
    h = _layer_norm(x + _mm(a_scr[...], swo_ref[...]) + sbo_ref[...],
                    sg_ref[...], sb_ref[...])
    # cross attention over the encoder memory
    q2 = _mm(h, cwq_ref[...]) + cbq_ref[...]
    _mha_into(a_scr, q2, kc_scr[...], vc_scr[...],
              n_heads=n_heads, causal=False, q_offset=0)
    h2 = _layer_norm(h + _mm(a_scr[...], cwo_ref[...]) + cbo_ref[...],
                     cg_ref[...], cb_ref[...])
    # position-wise FFN
    y = _gelu(_mm(h2, w1_ref[...]) + b1_ref[...])
    y = _mm(y, w2_ref[...]) + b2_ref[...]
    o_ref[...] = _layer_norm(h2 + y, fg_ref[...], fb_ref[...]).astype(o_ref.dtype)


def _embed_kernel(xw_ref, xm_ref, tokw_ref, markw_ref, pos_ref, o_ref):
    o = (_mm(xw_ref[...], tokw_ref[...])
         + _mm(xm_ref[...], markw_ref[...])
         + pos_ref[...])
    o_ref[...] = o.astype(o_ref.dtype)


def _ln_proj_kernel(x_ref, g_ref, b_ref, w_ref, bw_ref, o_ref):
    xn = _layer_norm(x_ref[...], g_ref[...], b_ref[...])
    o_ref[...] = (_mm(xn, w_ref[...]) + bw_ref[...]).astype(o_ref.dtype)


# --------------------------------------------------------------------------
# pallas_call wrappers
# --------------------------------------------------------------------------
def _row_tile(L, max_tile=128):
    """Largest row tile <= max_tile that evenly divides L (full L for short sequences)."""
    if L <= max_tile:
        return L
    if L % max_tile == 0:
        return max_tile
    return L   # TODO(synk): pad ragged production lengths to a multiple of 128


def _tile_spec(tq, W):
    # (b, rt)-indexed (tq, W) row tile of a (B, L, W) array; batch dim squeezed.
    return pl.BlockSpec((None, tq, W), lambda b, rt: (b, rt, 0))


def _full_spec(L, W):
    # full (L, W) slab per batch index, constant across row tiles.
    return pl.BlockSpec((None, L, W), lambda b, rt: (b, 0, 0))


def _resident(a):
    # full-array block, constant index map -> stays resident in VMEM across grid steps.
    return pl.BlockSpec(a.shape, lambda b, rt: (0,) * a.ndim)


def _row(v):
    return v.reshape(1, -1)


def encoder_layer(x, p, n_heads):
    B, L, D = x.shape
    tq = _row_tile(L)
    a, f = p["attn"], p["ffn"]
    args = [x, x,
            a["wq"], _row(a["bq"]), a["wk"], _row(a["bk"]), a["wv"], _row(a["bv"]),
            a["wo"], _row(a["bo"]), _row(a["ln_g"]), _row(a["ln_b"]),
            f["w1"], _row(f["b1"]), f["w2"], _row(f["b2"]),
            _row(f["ln_g"]), _row(f["ln_b"])]
    in_specs = [_full_spec(L, D), _tile_spec(tq, D)] + [_resident(t) for t in args[2:]]
    return pl.pallas_call(
        functools.partial(_enc_layer_kernel, n_heads=n_heads),
        grid=(B, L // tq),
        out_shape=jax.ShapeDtypeStruct((B, L, D), x.dtype),
        in_specs=in_specs,
        out_specs=_tile_spec(tq, D),
        scratch_shapes=[pltpu.VMEM((L, D), _MM_DTYPE),     # K cache
                        pltpu.VMEM((L, D), _MM_DTYPE),     # V cache
                        pltpu.VMEM((tq, D), jnp.float32)], # merged per-head attn out
        compiler_params=_LAYER_PARAMS,
    )(*args)


def decoder_layer(x, enc, p, n_heads):
    B, Ld, D = x.shape
    Le = enc.shape[1]
    tq = _row_tile(Ld)
    sa, ca, f = p["self_attn"], p["cross_attn"], p["ffn"]
    args = [x, x, enc,
            sa["wq"], _row(sa["bq"]), sa["wk"], _row(sa["bk"]), sa["wv"], _row(sa["bv"]),
            sa["wo"], _row(sa["bo"]), _row(sa["ln_g"]), _row(sa["ln_b"]),
            ca["wq"], _row(ca["bq"]), ca["wk"], _row(ca["bk"]), ca["wv"], _row(ca["bv"]),
            ca["wo"], _row(ca["bo"]), _row(ca["ln_g"]), _row(ca["ln_b"]),
            f["w1"], _row(f["b1"]), f["w2"], _row(f["b2"]),
            _row(f["ln_g"]), _row(f["ln_b"])]
    in_specs = ([_full_spec(Ld, D), _tile_spec(tq, D), _full_spec(Le, D)]
                + [_resident(t) for t in args[3:]])
    return pl.pallas_call(
        functools.partial(_dec_layer_kernel, n_heads=n_heads, tq=tq),
        grid=(B, Ld // tq),
        out_shape=jax.ShapeDtypeStruct((B, Ld, D), x.dtype),
        in_specs=in_specs,
        out_specs=_tile_spec(tq, D),
        scratch_shapes=[pltpu.VMEM((Ld, D), _MM_DTYPE),    # self-attn K cache
                        pltpu.VMEM((Ld, D), _MM_DTYPE),    # self-attn V cache
                        pltpu.VMEM((Le, D), _MM_DTYPE),    # cross-attn K cache
                        pltpu.VMEM((Le, D), _MM_DTYPE),    # cross-attn V cache
                        pltpu.VMEM((tq, D), jnp.float32)], # merged per-head attn out
        compiler_params=_LAYER_PARAMS,
    )(*args)


def data_embedding(x, x_mark, p):
    """TokenEmbedding (circular conv1d k=3, no bias) + sinusoidal pos + temporal proj,
    fused into one kernel; the im2col window build is cheap JAX glue."""
    B, L, C = x.shape
    D = p["tok_w"].shape[1]
    Cm = x_mark.shape[-1]
    tq = _row_tile(L)
    x_pad = jnp.concatenate([x[:, -1:], x, x[:, :1]], axis=1)
    x_win = jnp.concatenate(
        [x_pad[:, 0:L], x_pad[:, 1:L + 1], x_pad[:, 2:L + 2]], axis=-1)   # (B, L, 3C)
    pos = p["pos"][:L]
    return pl.pallas_call(
        _embed_kernel,
        grid=(B, L // tq),
        out_shape=jax.ShapeDtypeStruct((B, L, D), x.dtype),
        in_specs=[_tile_spec(tq, 3 * C), _tile_spec(tq, Cm),
                  _resident(p["tok_w"]), _resident(p["mark_w"]),
                  pl.BlockSpec((tq, D), lambda b, rt: (rt, 0))],
        out_specs=_tile_spec(tq, D),
        compiler_params=_ROWPAR_PARAMS,
    )(x_win, x_mark, p["tok_w"], p["mark_w"], pos)


def ln_projection(x, g, b, w, bw):
    """Final decoder LayerNorm fused with the output projection.

    The projection weight/bias are zero-padded to a 128-lane output width so all stores
    are lane-dense (no masked vst penalty); the wrapper slices back to c_out."""
    B, L, D = x.shape
    c_out = w.shape[1]
    n_pad = max(128, pl.cdiv(c_out, 128) * 128)
    w_pad = jnp.zeros((D, n_pad), w.dtype).at[:, :c_out].set(w)
    bw_pad = jnp.zeros((1, n_pad), jnp.float32).at[:, :c_out].set(bw.reshape(1, -1))
    tq = _row_tile(L)
    out = pl.pallas_call(
        _ln_proj_kernel,
        grid=(B, L // tq),
        out_shape=jax.ShapeDtypeStruct((B, L, n_pad), x.dtype),
        in_specs=[_tile_spec(tq, D), _resident(_row(g)), _resident(_row(b)),
                  _resident(w_pad), _resident(bw_pad)],
        out_specs=_tile_spec(tq, n_pad),
        compiler_params=_ROWPAR_PARAMS,
    )(x, _row(g), _row(b), w_pad, bw_pad)
    return out[..., :c_out]


# --------------------------------------------------------------------------
# Model forward
# --------------------------------------------------------------------------
def denseformer_forward(params, x_enc, x_mark_enc, x_dec, x_mark_dec,
                        n_heads, pred_len):
    enc = data_embedding(x_enc, x_mark_enc, params["enc_emb"])
    for lp in params["enc_layers"]:
        enc = encoder_layer(enc, lp, n_heads)
    dec = data_embedding(x_dec, x_mark_dec, params["dec_emb"])
    for lp in params["dec_layers"]:
        dec = decoder_layer(dec, enc, lp, n_heads)
    out = ln_projection(dec, params["dec_norm_g"], params["dec_norm_b"],
                        params["proj_w"], params["proj_b"])
    return out[:, -pred_len:, :]


# --------------------------------------------------------------------------
# Deterministic parameter initialization
# --------------------------------------------------------------------------
def _sinusoid_pe(max_len, d_model):
    position = jnp.arange(max_len, dtype=jnp.float32)[:, None]
    div = jnp.exp(jnp.arange(0, d_model, 2, dtype=jnp.float32)
                  * (-math.log(10000.0) / d_model))
    pe = jnp.zeros((max_len, d_model), jnp.float32)
    pe = pe.at[:, 0::2].set(jnp.sin(position * div))
    pe = pe.at[:, 1::2].set(jnp.cos(position * div))
    return pe


def init_params(key, *, enc_in, dec_in, c_out, d_model, e_layers, d_layers,
                d_ff, mark_dim, max_len=256):
    keys = iter(jax.random.split(key, 1024))

    def w(shape, scale=0.05):
        # matmul weights stored in bf16 (halves weight DMA + VMEM); accum stays f32
        return (scale * jax.random.normal(next(keys), shape)).astype(_MM_DTYPE)

    def zeros(shape):
        return jnp.zeros(shape, jnp.float32)

    def ones(shape):
        return jnp.ones(shape, jnp.float32)

    def attn_p():
        return dict(wq=w((d_model, d_model)), bq=zeros((d_model,)),
                    wk=w((d_model, d_model)), bk=zeros((d_model,)),
                    wv=w((d_model, d_model)), bv=zeros((d_model,)),
                    wo=w((d_model, d_model)), bo=zeros((d_model,)),
                    ln_g=ones((d_model,)), ln_b=zeros((d_model,)))

    def ffn_p():
        return dict(w1=w((d_model, d_ff)), b1=zeros((d_ff,)),
                    w2=w((d_ff, d_model)), b2=zeros((d_model,)),
                    ln_g=ones((d_model,)), ln_b=zeros((d_model,)))

    def emb_p(c_in):
        return dict(tok_w=w((3 * c_in, d_model)),
                    mark_w=w((mark_dim, d_model)),
                    pos=_sinusoid_pe(max_len, d_model))

    return dict(
        enc_emb=emb_p(enc_in),
        dec_emb=emb_p(dec_in),
        enc_layers=[dict(attn=attn_p(), ffn=ffn_p()) for _ in range(e_layers)],
        dec_layers=[dict(self_attn=attn_p(), cross_attn=attn_p(), ffn=ffn_p())
                    for _ in range(d_layers)],
        dec_norm_g=ones((d_model,)), dec_norm_b=zeros((d_model,)),
        proj_w=w((d_model, c_out)), proj_b=zeros((c_out,)),
    )


# --------------------------------------------------------------------------
if __name__ == "__main__":
    # small shapes consistent with the module signature
    B = 2
    enc_in = dec_in = c_out = 4
    seq_len, label_len, pred_len = 16, 8, 8
    d_model, n_heads, e_layers, d_layers, d_ff = 32, 4, 2, 1, 32
    mark_dim = 4  # freq='h' time features

    key = jax.random.PRNGKey(0)
    kp, k1, k2, k3, k4 = jax.random.split(key, 5)
    params = init_params(kp, enc_in=enc_in, dec_in=dec_in, c_out=c_out,
                         d_model=d_model, e_layers=e_layers, d_layers=d_layers,
                         d_ff=d_ff, mark_dim=mark_dim)

    dec_len = label_len + pred_len
    x_enc = jax.random.normal(k1, (B, seq_len, enc_in), jnp.float32)
    x_mark_enc = jax.random.normal(k2, (B, seq_len, mark_dim), jnp.float32)
    x_dec = jax.random.normal(k3, (B, dec_len, dec_in), jnp.float32)
    x_mark_dec = jax.random.normal(k4, (B, dec_len, mark_dim), jnp.float32)

    fwd = jax.jit(functools.partial(denseformer_forward,
                                    n_heads=n_heads, pred_len=pred_len))
    out = fwd(params, x_enc, x_mark_enc, x_dec, x_mark_dec)
    out = jax.block_until_ready(out)
    assert out.shape == (B, pred_len, c_out), out.shape
    assert bool(jnp.all(jnp.isfinite(out)))
    print("KERNEL_OK")
</pallas_src>

<mosaic_0001>
module attributes {stable_mosaic.version = 11 : i64} {
  func.func @_embed_kernel(%arg0: i32, %arg1: i32, %arg2: memref<1x16x12xf32, #tpu.memory_space<vmem>>, %arg3: memref<1x16x4xf32, #tpu.memory_space<vmem>>, %arg4: memref<12x32xbf16, #tpu.memory_space<vmem>>, %arg5: memref<4x32xbf16, #tpu.memory_space<vmem>>, %arg6: memref<16x32xf32, #tpu.memory_space<vmem>>, %arg7: memref<1x16x32xf32, #tpu.memory_space<vmem>>) attributes {dimension_semantics = [#tpu.dimension_semantics<parallel>, #tpu.dimension_semantics<parallel>], iteration_bounds = array<i64: 2, 1>, scalar_prefetch = 0 : i64, scratch_operands = 0 : i64, tpu.core_type = #tpu.core_type<tc>, window_params = [{transform_indices = @transform_0, window_bounds = array<i64: 1, 16, 12>}, {transform_indices = @transform_1, window_bounds = array<i64: 1, 16, 4>}, {pipeline_mode = #tpu.pipeline_mode<synchronous>, transform_indices = @transform_2, window_bounds = array<i64: 12, 32>}, {pipeline_mode = #tpu.pipeline_mode<synchronous>, transform_indices = @transform_3, window_bounds = array<i64: 4, 32>}, {transform_indices = @transform_4, window_bounds = array<i64: 16, 32>}, {transform_indices = @transform_5, window_bounds = array<i64: 1, 16, 32>}]} {
    %c0 = arith.constant 0 : index
    %c0_0 = arith.constant 0 : index
    %c0_1 = arith.constant 0 : index
    %0 = vector.load %arg2[%c0, %c0_0, %c0_1] : memref<1x16x12xf32, #tpu.memory_space<vmem>>, vector<1x16x12xf32>
    %1 = vector.shape_cast %0 : vector<1x16x12xf32> to vector<16x12xf32>
    %c0_2 = arith.constant 0 : index
    %c0_3 = arith.constant 0 : index
    %2 = vector.load %arg4[%c0_2, %c0_3] : memref<12x32xbf16, #tpu.memory_space<vmem>>, vector<12x32xbf16>
    %3 = arith.truncf %1 : vector<16x12xf32> to vector<16x12xbf16>
    %cst = arith.constant dense<0.000000e+00> : vector<16x32xf32>
    %4 = tpu.matmul %3, %2, %cst {dimension_numbers = #tpu.dot_dimension_numbers<[1], [0], [0], [1], [0, 0, 1, 1], [], []>} : vector<16x12xbf16>, vector<12x32xbf16>, vector<16x32xf32> -> vector<16x32xf32>
    %c0_4 = arith.constant 0 : index
    %c0_5 = arith.constant 0 : index
    %c0_6 = arith.constant 0 : index
    %5 = vector.load %arg3[%c0_4, %c0_5, %c0_6] : memref<1x16x4xf32, #tpu.memory_space<vmem>>, vector<1x16x4xf32>
    %6 = vector.shape_cast %5 : vector<1x16x4xf32> to vector<16x4xf32>
    %c0_7 = arith.constant 0 : index
    %c0_8 = arith.constant 0 : index
    %7 = vector.load %arg5[%c0_7, %c0_8] : memref<4x32xbf16, #tpu.memory_space<vmem>>, vector<4x32xbf16>
    %8 = arith.truncf %6 : vector<16x4xf32> to vector<16x4xbf16>
    %cst_9 = arith.constant dense<0.000000e+00> : vector<16x32xf32>
    %9 = tpu.matmul %8, %7, %cst_9 {dimension_numbers = #tpu.dot_dimension_numbers<[1], [0], [0], [1], [0, 0, 1, 1], [], []>} : vector<16x4xbf16>, vector<4x32xbf16>, vector<16x32xf32> -> vector<16x32xf32>
    %10 = arith.addf %4, %9 : vector<16x32xf32>
    %c0_10 = arith.constant 0 : index
    %c0_11 = arith.constant 0 : index
    %11 = vector.load %arg6[%c0_10, %c0_11] : memref<16x32xf32, #tpu.memory_space<vmem>>, vector<16x32xf32>
    %12 = arith.addf %10, %11 : vector<16x32xf32>
    %c0_12 = arith.constant 0 : index
    %c0_13 = arith.constant 0 : index
    %c0_14 = arith.constant 0 : index
    %13 = vector.load %arg7[%c0_12, %c0_13, %c0_14] : memref<1x16x32xf32, #tpu.memory_space<vmem>>, vector<1x16x32xf32>
    %14 = vector.shape_cast %13 : vector<1x16x32xf32> to vector<16x32xf32>
    %15 = vector.shape_cast %12 : vector<16x32xf32> to vector<1x16x32xf32>
    tpu.vector_store %arg7[%c0_12, %c0_13, %c0_14], %15 {strides = array<i32>} : memref<1x16x32xf32, #tpu.memory_space<vmem>>, vector<1x16x32xf32>,
    return
  }
  func.func @transform_0(%arg0: i32, %arg1: i32) -> (i32, i32, i32) {
    %c0_i32 = arith.constant 0 : i32
    %c0_i32_0 = arith.constant 0 : i32
    return %arg0, %arg1, %c0_i32 : i32, i32, i32
  }
  func.func @transform_1(%arg0: i32, %arg1: i32) -> (i32, i32, i32) {
    %c0_i32 = arith.constant 0 : i32
    %c0_i32_0 = arith.constant 0 : i32
    return %arg0, %arg1, %c0_i32 : i32, i32, i32
  }
  func.func @transform_2(%arg0: i32, %arg1: i32) -> (i32, i32) {
    %c0_i32 = arith.constant 0 : i32
    %c0_i32_0 = arith.constant 0 : i32
    %c0_i32_1 = arith.constant 0 : i32
    return %c0_i32, %c0_i32_0 : i32, i32
  }
  func.func @transform_3(%arg0: i32, %arg1: i32) -> (i32, i32) {
    %c0_i32 = arith.constant 0 : i32
    %c0_i32_0 = arith.constant 0 : i32
    %c0_i32_1 = arith.constant 0 : i32
    return %c0_i32, %c0_i32_0 : i32, i32
  }
  func.func @transform_4(%arg0: i32, %arg1: i32) -> (i32, i32) {
    %c0_i32 = arith.constant 0 : i32
    %c0_i32_0 = arith.constant 0 : i32
    return %arg1, %c0_i32 : i32, i32
  }
  func.func @transform_5(%arg0: i32, %arg1: i32) -> (i32, i32, i32) {
    %c0_i32 = arith.constant 0 : i32
    %c0_i32_0 = arith.constant 0 : i32
    return %arg0, %arg1, %c0_i32 : i32, i32, i32
  }
}

module attributes {stable_mosaic.version = 11 : i64} {
  func.func @_enc_layer_kernel(%arg0: i32, %arg1: i32, %arg2: memref<1x16x32xf32, #tpu.memory_space<vmem>>, %arg3: memref<1x16x32xf32, #tpu.memory_space<vmem>>, %arg4: memref<32x32xbf16, #tpu.memory_space<vmem>>, %arg5: memref<1x32xf32, #tpu.memory_space<vmem>>, %arg6: memref<32x32xbf16, #tpu.memory_space<vmem>>, %arg7: memref<1x32xf32, #tpu.memory_space<vmem>>, %arg8: memref<32x32xbf16, #tpu.memory_space<vmem>>, %arg9: memref<1x32xf32, #tpu.memory_space<vmem>>, %arg10: memref<32x32xbf16, #tpu.memory_space<vmem>>, %arg11: memref<1x32xf32, #tpu.memory_space<vmem>>, %arg12: memref<1x32xf32, #tpu.memory_space<vmem>>, %arg13: memref<1x32xf32, #tpu.memory_space<vmem>>, %arg14: memref<32x32xbf16, #tpu.memory_space<vmem>>, %arg15: memref<1x32xf32, #tpu.memory_space<vmem>>, %arg16: memref<32x32xbf16, #tpu.memory_space<vmem>>, %arg17: memref<1x32xf32, #tpu.memory_space<vmem>>, %arg18: memref<1x32xf32, #tpu.memory_space<vmem>>, %arg19: memref<1x32xf32, #tpu.memory_space<vmem>>, %arg20: memref<1x16x32xf32, #tpu.memory_space<vmem>>, %arg21: memref<16x32xbf16, #tpu.memory_space<vmem>>, %arg22: memref<16x32xbf16, #tpu.memory_space<vmem>>, %arg23: memref<16x32xf32, #tpu.memory_space<vmem>>) attributes {dimension_semantics = [#tpu.dimension_semantics<parallel>, #tpu.dimension_semantics<arbitrary>], iteration_bounds = array<i64: 2, 1>, scalar_prefetch = 0 : i64, scratch_operands = 3 : i64, tpu.core_type = #tpu.core_type<tc>, window_params = [{transform_indices = @transform_0, window_bounds = array<i64: 1, 16, 32>}, {transform_indices = @transform_1, window_bounds = array<i64: 1, 16, 32>}, {pipeline_mode = #tpu.pipeline_mode<synchronous>, transform_indices = @transform_2, window_bounds = array<i64: 32, 32>}, {pipeline_mode = #tpu.pipeline_mode<synchronous>, transform_indices = @transform_3, window_bounds = array<i64: 1, 32>}, {pipeline_mode = #tpu.pipeline_mode<synchronous>, transform_indices = @transform_4, window_bounds = array<i64: 32, 32>}, {pipeline_mode = #tpu.pipeline_mode<synchronous>, transform_indices = @transform_5, window_bounds = array<i64: 1, 32>}, {pipeline_mode = #tpu.pipeline_mode<synchronous>, transform_indices = @transform_6, window_bounds = array<i64: 32, 32>}, {pipeline_mode = #tpu.pipeline_mode<synchronous>, transform_indices = @transform_7, window_bounds = array<i64: 1, 32>}, {pipeline_mode = #tpu.pipeline_mode<synchronous>, transform_indices = @transform_8, window_bounds = array<i64: 32, 32>}, {pipeline_mode = #tpu.pipeline_mode<synchronous>, transform_indices = @transform_9, window_bounds = array<i64: 1, 32>}, {pipeline_mode = #tpu.pipeline_mode<synchronous>, transform_indices = @transform_10, window_bounds = array<i64: 1, 32>}, {pipeline_mode = #tpu.pipeline_mode<synchronous>, transform_indices = @transform_11, window_bounds = array<i64: 1, 32>}, {pipeline_mode = #tpu.pipeline_mode<synchronous>, transform_indices = @transform_12, window_bounds = array<i64: 32, 32>}, {pipeline_mode = #tpu.pipeline_mode<synchronous>, transform_indices = @transform_13, window_bounds = array<i64: 1, 32>}, {pipeline_mode = #tpu.pipeline_mode<synchronous>, transform_indices = @transform_14, window_bounds = array<i64: 32, 32>}, {pipeline_mode = #tpu.pipeline_mode<synchronous>, transform_indices = @transform_15, window_bounds = array<i64: 1, 32>}, {pipeline_mode = #tpu.pipeline_mode<synchronous>, transform_indices = @transform_16, window_bounds = array<i64: 1, 32>}, {pipeline_mode = #tpu.pipeline_mode<synchronous>, transform_indices = @transform_17, window_bounds = array<i64: 1, 32>}, {transform_indices = @transform_18, window_bounds = array<i64: 1, 16, 32>}]} {
    %c0_i32 = arith.constant 0 : i32
    %0 = arith.cmpi eq, %arg1, %c0_i32 : i32
    %1 = arith.extui %0 : i1 to i32
    %c0_i32_0 = arith.constant 0 : i32
    %2 = arith.cmpi ne, %1, %c0_i32_0 : i32
    scf.if %2 {
      %c0_78 = arith.constant 0 : index
      %c0_79 = arith.constant 0 : index
      %c0_80 = arith.constant 0 : index
      %178 = vector.load %arg2[%c0_78, %c0_79, %c0_80] : memref<1x16x32xf32, #tpu.memory_space<vmem>>, vector<1x16x32xf32>
      %179 = vector.shape_cast %178 : vector<1x16x32xf32> to vector<16x32xf32>
      %c0_81 = arith.constant 0 : index
      %c0_82 = arith.constant 0 : index
      %180 = vector.load %arg6[%c0_81, %c0_82] : memref<32x32xbf16, #tpu.memory_space<vmem>>, vector<32x32xbf16>
      %181 = arith.truncf %179 : vector<16x32xf32> to vector<16x32xbf16>
      %cst_83 = arith.constant dense<0.000000e+00> : vector<16x32xf32>
      %182 = tpu.matmul %181, %180, %cst_83 {dimension_numbers = #tpu.dot_dimension_numbers<[1], [0], [0], [1], [0, 0, 1, 1], [], []>} : vector<16x32xbf16>, vector<32x32xbf16>, vector<16x32xf32> -> vector<16x32xf32>
      %c0_84 = arith.constant 0 : index
      %c0_85 = arith.constant 0 : index
      %183 = vector.load %arg7[%c0_84, %c0_85] : memref<1x32xf32, #tpu.memory_space<vmem>>, vector<1x32xf32>
      %184 = vector.broadcast %183 : vector<1x32xf32> to vector<16x32xf32>
      %185 = arith.addf %182, %184 : vector<16x32xf32>
      %186 = arith.truncf %185 : vector<16x32xf32> to vector<16x32xbf16>
      %c0_86 = arith.constant 0 : index
      %c0_87 = arith.constant 0 : index
      %187 = vector.load %arg21[%c0_86, %c0_87] : memref<16x32xbf16, #tpu.memory_space<vmem>>, vector<16x32xbf16>
      tpu.vector_store %arg21[%c0_86, %c0_87], %186 {strides = array<i32>} : memref<16x32xbf16, #tpu.memory_space<vmem>>, vector<16x32xbf16>,
      %c0_88 = arith.constant 0 : index
      %c0_89 = arith.constant 0 : index
      %188 = vector.load %arg8[%c0_88, %c0_89] : memref<32x32xbf16, #tpu.memory_space<vmem>>, vector<32x32xbf16>
      %189 = arith.truncf %179 : vector<16x32xf32> to vector<16x32xbf16>
      %cst_90 = arith.constant dense<0.000000e+00> : vector<16x32xf32>
      %190 = tpu.matmul %189, %188, %cst_90 {dimension_numbers = #tpu.dot_dimension_numbers<[1], [0], [0], [1], [0, 0, 1, 1], [], []>} : vector<16x32xbf16>, vector<32x32xbf16>, vector<16x32xf32> -> vector<16x32xf32>
      %c0_91 = arith.constant 0 : index
      %c0_92 = arith.constant 0 : index
      %191 = vector.load %arg9[%c0_91, %c0_92] : memref<1x32xf32, #tpu.memory_space<vmem>>, vector<1x32xf32>
      %192 = vector.broadcast %191 : vector<1x32xf32> to vector<16x32xf32>
      %193 = arith.addf %190, %192 : vector<16x32xf32>
      %194 = arith.truncf %193 : vector<16x32xf32> to vector<16x32xbf16>
      %c0_93 = arith.constant 0 : index
      %c0_94 = arith.constant 0 : index
      %195 = vector.load %arg22[%c0_93, %c0_94] : memref<16x32xbf16, #tpu.memory_space<vmem>>, vector<16x32xbf16>
      tpu.vector_store %arg22[%c0_93, %c0_94], %194 {strides = array<i32>} : memref<16x32xbf16, #tpu.memory_space<vmem>>, vector<16x32xbf16>,
    } else {
    }
    %c0 = arith.constant 0 : index
    %c0_1 = arith.constant 0 : index
    %c0_2 = arith.constant 0 : index
    %3 = vector.load %arg3[%c0, %c0_1, %c0_2] : memref<1x16x32xf32, #tpu.memory_space<vmem>>, vector<1x16x32xf32>
    %4 = vector.shape_cast %3 : vector<1x16x32xf32> to vector<16x32xf32>
    %c0_3 = arith.constant 0 : index
    %c0_4 = arith.constant 0 : index
    %5 = vector.load %arg4[%c0_3, %c0_4] : memref<32x32xbf16, #tpu.memory_space<vmem>>, vector<32x32xbf16>
    %6 = arith.truncf %4 : vector<16x32xf32> to vector<16x32xbf16>
    %cst = arith.constant dense<0.000000e+00> : vector<16x32xf32>
    %7 = tpu.matmul %6, %5, %cst {dimension_numbers = #tpu.dot_dimension_numbers<[1], [0], [0], [1], [0, 0, 1, 1], [], []>} : vector<16x32xbf16>, vector<32x32xbf16>, vector<16x32xf32> -> vector<16x32xf32>
    %c0_5 = arith.constant 0 : index
    %c0_6 = arith.constant 0 : index
    %8 = vector.load %arg5[%c0_5, %c0_6] : memref<1x32xf32, #tpu.memory_space<vmem>>, vector<1x32xf32>
    %9 = vector.broadcast %8 : vector<1x32xf32> to vector<16x32xf32>
    %10 = arith.addf %7, %9 : vector<16x32xf32>
    %c0_7 = arith.constant 0 : index
    %c0_8 = arith.constant 0 : index
    %11 = vector.load %arg21[%c0_7, %c0_8] : memref<16x32xbf16, #tpu.memory_space<vmem>>, vector<16x32xbf16>
    %c0_9 = arith.constant 0 : index
    %c0_10 = arith.constant 0 : index
    %12 = vector.load %arg22[%c0_9, %c0_10] : memref<16x32xbf16, #tpu.memory_space<vmem>>, vector<16x32xbf16>
    %13 = vector.extract_strided_slice %10 {offsets = [0, 0], sizes = [16, 8], strides = [1, 1]} : vector<16x32xf32> to vector<16x8xf32>
    %14 = vector.extract_strided_slice %11 {offsets = [0, 0], sizes = [16, 8], strides = [1, 1]} : vector<16x32xbf16> to vector<16x8xbf16>
    %15 = arith.truncf %13 : vector<16x8xf32> to vector<16x8xbf16>
    %cst_11 = arith.constant dense<0.000000e+00> : vector<16x16xf32>
    %16 = tpu.matmul %15, %14, %cst_11 {dimension_numbers = #tpu.dot_dimension_numbers<[1], [1], [0], [0], [0, 0, 1, 0], [], []>} : vector<16x8xbf16>, vector<16x8xbf16>, vector<16x16xf32> -> vector<16x16xf32>
    %cst_12 = arith.constant 0.353553385 : f32
    %17 = vector.broadcast %cst_12 : f32 to vector<16x16xf32>
    %18 = arith.mulf %16, %17 : vector<16x16xf32>
    %cst_13 = arith.constant dense<0xFF800000> : vector<16xf32>
    %19 = vector.multi_reduction <maximumf>, %18, %cst_13 [1] : vector<16x16xf32> to vector<16xf32>
    %20 = vector.shape_cast %19 : vector<16xf32> to vector<16x1xf32>
    %21 = vector.broadcast %20 : vector<16x1xf32> to vector<16x16xf32>
    %22 = arith.subf %18, %21 : vector<16x16xf32>
    %23 = math.exp %22 : vector<16x16xf32>
    %cst_14 = arith.constant dense<0.000000e+00> : vector<16xf32>
    %24 = vector.multi_reduction <add>, %23, %cst_14 [1] : vector<16x16xf32> to vector<16xf32>
    %25 = vector.shape_cast %24 : vector<16xf32> to vector<16x1xf32>
    %26 = tpu.reciprocal %25 {approx = true} : vector<16x1xf32> -> vector<16x1xf32>
    %27 = vector.extract_strided_slice %12 {offsets = [0, 0], sizes = [16, 8], strides = [1, 1]} : vector<16x32xbf16> to vector<16x8xbf16>
    %28 = arith.truncf %23 : vector<16x16xf32> to vector<16x16xbf16>
    %cst_15 = arith.constant dense<0.000000e+00> : vector<16x8xf32>
    %29 = tpu.matmul %28, %27, %cst_15 {dimension_numbers = #tpu.dot_dimension_numbers<[1], [0], [0], [1], [0, 0, 1, 1], [], []>} : vector<16x16xbf16>, vector<16x8xbf16>, vector<16x8xf32> -> vector<16x8xf32>
    %30 = vector.broadcast %26 : vector<16x1xf32> to vector<16x8xf32>
    %31 = arith.mulf %29, %30 : vector<16x8xf32>
    %c0_16 = arith.constant 0 : index
    %c0_17 = arith.constant 0 : index
    %32 = vector.load %arg23[%c0_16, %c0_17] : memref<16x32xf32, #tpu.memory_space<vmem>>, vector<16x8xf32>
    tpu.vector_store %arg23[%c0_16, %c0_17], %31 {strides = array<i32>} : memref<16x32xf32, #tpu.memory_space<vmem>>, vector<16x8xf32>,
    %33 = vector.extract_strided_slice %10 {offsets = [0, 8], sizes = [16, 8], strides = [1, 1]} : vector<16x32xf32> to vector<16x8xf32>
    %34 = vector.extract_strided_slice %11 {offsets = [0, 8], sizes = [16, 8], strides = [1, 1]} : vector<16x32xbf16> to vector<16x8xbf16>
    %35 = arith.truncf %33 : vector<16x8xf32> to vector<16x8xbf16>
    %cst_18 = arith.constant dense<0.000000e+00> : vector<16x16xf32>
    %36 = tpu.matmul %35, %34, %cst_18 {dimension_numbers = #tpu.dot_dimension_numbers<[1], [1], [0], [0], [0, 0, 1, 0], [], []>} : vector<16x8xbf16>, vector<16x8xbf16>, vector<16x16xf32> -> vector<16x16xf32>
    %cst_19 = arith.constant 0.353553385 : f32
    %37 = vector.broadcast %cst_19 : f32 to vector<16x16xf32>
    %38 = arith.mulf %36, %37 : vector<16x16xf32>
    %cst_20 = arith.constant dense<0xFF800000> : vector<16xf32>
    %39 = vector.multi_reduction <maximumf>, %38, %cst_20 [1] : vector<16x16xf32> to vector<16xf32>
    %40 = vector.shape_cast %39 : vector<16xf32> to vector<16x1xf32>
    %41 = vector.broadcast %40 : vector<16x1xf32> to vector<16x16xf32>
    %42 = arith.subf %38, %41 : vector<16x16xf32>
    %43 = math.exp %42 : vector<16x16xf32>
    %cst_21 = arith.constant dense<0.000000e+00> : vector<16xf32>
    %44 = vector.multi_reduction <add>, %43, %cst_21 [1] : vector<16x16xf32> to vector<16xf32>
    %45 = vector.shape_cast %44 : vector<16xf32> to vector<16x1xf32>
    %46 = tpu.reciprocal %45 {approx = true} : vector<16x1xf32> -> vector<16x1xf32>
    %47 = vector.extract_strided_slice %12 {offsets = [0, 8], sizes = [16, 8], strides = [1, 1]} : vector<16x32xbf16> to vector<16x8xbf16>
    %48 = arith.truncf %43 : vector<16x16xf32> to vector<16x16xbf16>
    %cst_22 = arith.constant dense<0.000000e+00> : vector<16x8xf32>
    %49 = tpu.matmul %48, %47, %cst_22 {dimension_numbers = #tpu.dot_dimension_numbers<[1], [0], [0], [1], [0, 0, 1, 1], [], []>} : vector<16x16xbf16>, vector<16x8xbf16>, vector<16x8xf32> -> vector<16x8xf32>
    %50 = vector.broadcast %46 : vector<16x1xf32> to vector<16x8xf32>
    %51 = arith.mulf %49, %50 : vector<16x8xf32>
    %c0_23 = arith.constant 0 : index
    %c8 = arith.constant 8 : index
    %52 = vector.load %arg23[%c0_23, %c8] : memref<16x32xf32, #tpu.memory_space<vmem>>, vector<16x8xf32>
    tpu.vector_store %arg23[%c0_23, %c8], %51 {strides = array<i32>} : memref<16x32xf32, #tpu.memory_space<vmem>>, vector<16x8xf32>,
    %53 = vector.extract_strided_slice %10 {offsets = [0, 16], sizes = [16, 8], strides = [1, 1]} : vector<16x32xf32> to vector<16x8xf32>
    %54 = vector.extract_strided_slice %11 {offsets = [0, 16], sizes = [16, 8], strides = [1, 1]} : vector<16x32xbf16> to vector<16x8xbf16>
    %55 = arith.truncf %53 : vector<16x8xf32> to vector<16x8xbf16>
    %cst_24 = arith.constant dense<0.000000e+00> : vector<16x16xf32>
    %56 = tpu.matmul %55, %54, %cst_24 {dimension_numbers = #tpu.dot_dimension_numbers<[1], [1], [0], [0], [0, 0, 1, 0], [], []>} : vector<16x8xbf16>, vector<16x8xbf16>, vector<16x16xf32> -> vector<16x16xf32>
    %cst_25 = arith.constant 0.353553385 : f32
    %57 = vector.broadcast %cst_25 : f32 to vector<16x16xf32>
    %58 = arith.mulf %56, %57 : vector<16x16xf32>
    %cst_26 = arith.constant dense<0xFF800000> : vector<16xf32>
    %59 = vector.multi_reduction <maximumf>, %58, %cst_26 [1] : vector<16x16xf32> to vector<16xf32>
    %60 = vector.shape_cast %59 : vector<16xf32> to vector<16x1xf32>
    %61 = vector.broadcast %60 : vector<16x1xf32> to vector<16x16xf32>
    %62 = arith.subf %58, %61 : vector<16x16xf32>
    %63 = math.exp %62 : vector<16x16xf32>
    %cst_27 = arith.constant dense<0.000000e+00> : vector<16xf32>
    %64 = vector.multi_reduction <add>, %63, %cst_27 [1] : vector<16x16xf32> to vector<16xf32>
    %65 = vector.shape_cast %64 : vector<16xf32> to vector<16x1xf32>
    %66 = tpu.reciprocal %65 {approx = true} : vector<16x1xf32> -> vector<16x1xf32>
    %67 = vector.extract_strided_slice %12 {offsets = [0, 16], sizes = [16, 8], strides = [1, 1]} : vector<16x32xbf16> to vector<16x8xbf16>
    %68 = arith.truncf %63 : vector<16x16xf32> to vector<16x16xbf16>
    %cst_28 = arith.constant dense<0.000000e+00> : vector<16x8xf32>
    %69 = tpu.matmul %68, %67, %cst_28 {dimension_numbers = #tpu.dot_dimension_numbers<[1], [0], [0], [1], [0, 0, 1, 1], [], []>} : vector<16x16xbf16>, vector<16x8xbf16>, vector<16x8xf32> -> vector<16x8xf32>
    %70 = vector.broadcast %66 : vector<16x1xf32> to vector<16x8xf32>
    %71 = arith.mulf %69, %70 : vector<16x8xf32>
    %c0_29 = arith.constant 0 : index
    %c16 = arith.constant 16 : index
    %72 = vector.load %arg23[%c0_29, %c16] : memref<16x32xf32, #tpu.memory_space<vmem>>, vector<16x8xf32>
    tpu.vector_store %arg23[%c0_29, %c16], %71 {strides = array<i32>} : memref<16x32xf32, #tpu.memory_space<vmem>>, vector<16x8xf32>,
    %73 = vector.extract_strided_slice %10 {offsets = [0, 24], sizes = [16, 8], strides = [1, 1]} : vector<16x32xf32> to vector<16x8xf32>
    %74 = vector.extract_strided_slice %11 {offsets = [0, 24], sizes = [16, 8], strides = [1, 1]} : vector<16x32xbf16> to vector<16x8xbf16>
    %75 = arith.truncf %73 : vector<16x8xf32> to vector<16x8xbf16>
    %cst_30 = arith.constant dense<0.000000e+00> : vector<16x16xf32>
    %76 = tpu.matmul %75, %74, %cst_30 {dimension_numbers = #tpu.dot_dimension_numbers<[1], [1], [0], [0], [0, 0, 1, 0], [], []>} : vector<16x8xbf16>, vector<16x8xbf16>, vector<16x16xf32> -> vector<16x16xf32>
    %cst_31 = arith.constant 0.353553385 : f32
    %77 = vector.broadcast %cst_31 : f32 to vector<16x16xf32>
    %78 = arith.mulf %76, %77 : vector<16x16xf32>
    %cst_32 = arith.constant dense<0xFF800000> : vector<16xf32>
    %79 = vector.multi_reduction <maximumf>, %78, %cst_32 [1] : vector<16x16xf32> to vector<16xf32>
    %80 = vector.shape_cast %79 : vector<16xf32> to vector<16x1xf32>
    %81 = vector.broadcast %80 : vector<16x1xf32> to vector<16x16xf32>
    %82 = arith.subf %78, %81 : vector<16x16xf32>
    %83 = math.exp %82 : vector<16x16xf32>
    %cst_33 = arith.constant dense<0.000000e+00> : vector<16xf32>
    %84 = vector.multi_reduction <add>, %83, %cst_33 [1] : vector<16x16xf32> to vector<16xf32>
    %85 = vector.shape_cast %84 : vector<16xf32> to vector<16x1xf32>
    %86 = tpu.reciprocal %85 {approx = true} : vector<16x1xf32> -> vector<16x1xf32>
    %87 = vector.extract_strided_slice %12 {offsets = [0, 24], sizes = [16, 8], strides = [1, 1]} : vector<16x32xbf16> to vector<16x8xbf16>
    %88 = arith.truncf %83 : vector<16x16xf32> to vector<16x16xbf16>
    %cst_34 = arith.constant dense<0.000000e+00> : vector<16x8xf32>
    %89 = tpu.matmul %88, %87, %cst_34 {dimension_numbers = #tpu.dot_dimension_numbers<[1], [0], [0], [1], [0, 0, 1, 1], [], []>} : vector<16x16xbf16>, vector<16x8xbf16>, vector<16x8xf32> -> vector<16x8xf32>
    %90 = vector.broadcast %86 : vector<16x1xf32> to vector<16x8xf32>
    %91 = arith.mulf %89, %90 : vector<16x8xf32>
    %c0_35 = arith.constant 0 : index
    %c24 = arith.constant 24 : index
    %92 = vector.load %arg23[%c0_35, %c24] : memref<16x32xf32, #tpu.memory_space<vmem>>, vector<16x8xf32>
    tpu.vector_store %arg23[%c0_35, %c24], %91 {strides = array<i32>} : memref<16x32xf32, #tpu.memory_space<vmem>>, vector<16x8xf32>,
    %c0_36 = arith.constant 0 : index
    %c0_37 = arith.constant 0 : index
    %93 = vector.load %arg23[%c0_36, %c0_37] : memref<16x32xf32, #tpu.memory_space<vmem>>, vector<16x32xf32>
    %c0_38 = arith.constant 0 : index
    %c0_39 = arith.constant 0 : index
    %94 = vector.load %arg10[%c0_38, %c0_39] : memref<32x32xbf16, #tpu.memory_space<vmem>>, vector<32x32xbf16>
    %95 = arith.truncf %93 : vector<16x32xf32> to vector<16x32xbf16>
    %cst_40 = arith.constant dense<0.000000e+00> : vector<16x32xf32>
    %96 = tpu.matmul %95, %94, %cst_40 {dimension_numbers = #tpu.dot_dimension_numbers<[1], [0], [0], [1], [0, 0, 1, 1], [], []>} : vector<16x32xbf16>, vector<32x32xbf16>, vector<16x32xf32> -> vector<16x32xf32>
    %c0_41 = arith.constant 0 : index
    %c0_42 = arith.constant 0 : index
    %97 = vector.load %arg11[%c0_41, %c0_42] : memref<1x32xf32, #tpu.memory_space<vmem>>, vector<1x32xf32>
    %98 = vector.broadcast %97 : vector<1x32xf32> to vector<16x32xf32>
    %99 = arith.addf %96, %98 : vector<16x32xf32>
    %100 = arith.addf %4, %99 : vector<16x32xf32>
    %c0_43 = arith.constant 0 : index
    %c0_44 = arith.constant 0 : index
    %101 = vector.load %arg12[%c0_43, %c0_44] : memref<1x32xf32, #tpu.memory_space<vmem>>, vector<1x32xf32>
    %c0_45 = arith.constant 0 : index
    %c0_46 = arith.constant 0 : index
    %102 = vector.load %arg13[%c0_45, %c0_46] : memref<1x32xf32, #tpu.memory_space<vmem>>, vector<1x32xf32>
    %cst_47 = arith.constant dense<0.000000e+00> : vector<16xf32>
    %103 = vector.multi_reduction <add>, %100, %cst_47 [1] : vector<16x32xf32> to vector<16xf32>
    %104 = vector.shape_cast %103 : vector<16xf32> to vector<16x1xf32>
    %cst_48 = arith.constant 3.200000e+01 : f32
    %105 = vector.broadcast %cst_48 : f32 to vector<16x1xf32>
    %106 = arith.divf %104, %105 : vector<16x1xf32>
    %107 = vector.broadcast %106 : vector<16x1xf32> to vector<16x32xf32>
    %108 = arith.subf %100, %107 : vector<16x32xf32>
    %109 = arith.mulf %108, %108 : vector<16x32xf32>
    %cst_49 = arith.constant dense<0.000000e+00> : vector<16xf32>
    %110 = vector.multi_reduction <add>, %109, %cst_49 [1] : vector<16x32xf32> to vector<16xf32>
    %111 = vector.shape_cast %110 : vector<16xf32> to vector<16x1xf32>
    %cst_50 = arith.constant 3.200000e+01 : f32
    %112 = vector.broadcast %cst_50 : f32 to vector<16x1xf32>
    %113 = arith.divf %111, %112 : vector<16x1xf32>
    %114 = vector.broadcast %106 : vector<16x1xf32> to vector<16x32xf32>
    %115 = arith.subf %100, %114 : vector<16x32xf32>
    %cst_51 = arith.constant 9.99999974E-6 : f32
    %116 = vector.broadcast %cst_51 : f32 to vector<16x1xf32>
    %117 = arith.addf %113, %116 : vector<16x1xf32>
    %118 = math.rsqrt %117 : vector<16x1xf32>
    %119 = vector.broadcast %118 : vector<16x1xf32> to vector<16x32xf32>
    %120 = arith.mulf %115, %119 : vector<16x32xf32>
    %121 = vector.broadcast %101 : vector<1x32xf32> to vector<16x32xf32>
    %122 = arith.mulf %120, %121 : vector<16x32xf32>
    %123 = vector.broadcast %102 : vector<1x32xf32> to vector<16x32xf32>
    %124 = arith.addf %122, %123 : vector<16x32xf32>
    %c0_52 = arith.constant 0 : index
    %c0_53 = arith.constant 0 : index
    %125 = vector.load %arg14[%c0_52, %c0_53] : memref<32x32xbf16, #tpu.memory_space<vmem>>, vector<32x32xbf16>
    %126 = arith.truncf %124 : vector<16x32xf32> to vector<16x32xbf16>
    %cst_54 = arith.constant dense<0.000000e+00> : vector<16x32xf32>
    %127 = tpu.matmul %126, %125, %cst_54 {dimension_numbers = #tpu.dot_dimension_numbers<[1], [0], [0], [1], [0, 0, 1, 1], [], []>} : vector<16x32xbf16>, vector<32x32xbf16>, vector<16x32xf32> -> vector<16x32xf32>
    %c0_55 = arith.constant 0 : index
    %c0_56 = arith.constant 0 : index
    %128 = vector.load %arg15[%c0_55, %c0_56] : memref<1x32xf32, #tpu.memory_space<vmem>>, vector<1x32xf32>
    %129 = vector.broadcast %128 : vector<1x32xf32> to vector<16x32xf32>
    %130 = arith.addf %127, %129 : vector<16x32xf32>
    %cst_57 = arith.constant 5.000000e-01 : f32
    %131 = vector.broadcast %cst_57 : f32 to vector<16x32xf32>
    %132 = arith.mulf %131, %130 : vector<16x32xf32>
    %cst_58 = arith.constant 4.471500e-02 : f32
    %133 = vector.broadcast %cst_58 : f32 to vector<16x32xf32>
    %134 = arith.mulf %133, %130 : vector<16x32xf32>
    %135 = arith.mulf %134, %130 : vector<16x32xf32>
    %136 = arith.mulf %135, %130 : vector<16x32xf32>
    %137 = arith.addf %130, %136 : vector<16x32xf32>
    %cst_59 = arith.constant 0.797884583 : f32
    %138 = vector.broadcast %cst_59 : f32 to vector<16x32xf32>
    %139 = arith.mulf %138, %137 : vector<16x32xf32>
    %140 = math.tanh %139 : vector<16x32xf32>
    %cst_60 = arith.constant 1.000000e+00 : f32
    %141 = vector.broadcast %cst_60 : f32 to vector<16x32xf32>
    %142 = arith.addf %141, %140 : vector<16x32xf32>
    %143 = arith.mulf %132, %142 : vector<16x32xf32>
    %c0_61 = arith.constant 0 : index
    %c0_62 = arith.constant 0 : index
    %144 = vector.load %arg16[%c0_61, %c0_62] : memref<32x32xbf16, #tpu.memory_space<vmem>>, vector<32x32xbf16>
    %145 = arith.truncf %143 : vector<16x32xf32> to vector<16x32xbf16>
    %cst_63 = arith.constant dense<0.000000e+00> : vector<16x32xf32>
    %146 = tpu.matmul %145, %144, %cst_63 {dimension_numbers = #tpu.dot_dimension_numbers<[1], [0], [0], [1], [0, 0, 1, 1], [], []>} : vector<16x32xbf16>, vector<32x32xbf16>, vector<16x32xf32> -> vector<16x32xf32>
    %c0_64 = arith.constant 0 : index
    %c0_65 = arith.constant 0 : index
    %147 = vector.load %arg17[%c0_64, %c0_65] : memref<1x32xf32, #tpu.memory_space<vmem>>, vector<1x32xf32>
    %148 = vector.broadcast %147 : vector<1x32xf32> to vector<16x32xf32>
    %149 = arith.addf %146, %148 : vector<16x32xf32>
    %150 = arith.addf %124, %149 : vector<16x32xf32>
    %c0_66 = arith.constant 0 : index
    %c0_67 = arith.constant 0 : index
    %151 = vector.load %arg18[%c0_66, %c0_67] : memref<1x32xf32, #tpu.memory_space<vmem>>, vector<1x32xf32>
    %c0_68 = arith.constant 0 : index
    %c0_69 = arith.constant 0 : index
    %152 = vector.load %arg19[%c0_68, %c0_69] : memref<1x32xf32, #tpu.memory_space<vmem>>, vector<1x32xf32>
    %cst_70 = arith.constant dense<0.000000e+00> : vector<16xf32>
    %153 = vector.multi_reduction <add>, %150, %cst_70 [1] : vector<16x32xf32> to vector<16xf32>
    %154 = vector.shape_cast %153 : vector<16xf32> to vector<16x1xf32>
    %cst_71 = arith.constant 3.200000e+01 : f32
    %155 = vector.broadcast %cst_71 : f32 to vector<16x1xf32>
    %156 = arith.divf %154, %155 : vector<16x1xf32>
    %157 = vector.broadcast %156 : vector<16x1xf32> to vector<16x32xf32>
    %158 = arith.subf %150, %157 : vector<16x32xf32>
    %159 = arith.mulf %158, %158 : vector<16x32xf32>
    %cst_72 = arith.constant dense<0.000000e+00> : vector<16xf32>
    %160 = vector.multi_reduction <add>, %159, %cst_72 [1] : vector<16x32xf32> to vector<16xf32>
    %161 = vector.shape_cast %160 : vector<16xf32> to vector<16x1xf32>
    %cst_73 = arith.constant 3.200000e+01 : f32
    %162 = vector.broadcast %cst_73 : f32 to vector<16x1xf32>
    %163 = arith.divf %161, %162 : vector<16x1xf32>
    %164 = vector.broadcast %156 : vector<16x1xf32> to vector<16x32xf32>
    %165 = arith.subf %150, %164 : vector<16x32xf32>
    %cst_74 = arith.constant 9.99999974E-6 : f32
    %166 = vector.broadcast %cst_74 : f32 to vector<16x1xf32>
    %167 = arith.addf %163, %166 : vector<16x1xf32>
    %168 = math.rsqrt %167 : vector<16x1xf32>
    %169 = vector.broadcast %168 : vector<16x1xf32> to vector<16x32xf32>
    %170 = arith.mulf %165, %169 : vector<16x32xf32>
    %171 = vector.broadcast %151 : vector<1x32xf32> to vector<16x32xf32>
    %172 = arith.mulf %170, %171 : vector<16x32xf32>
    %173 = vector.broadcast %152 : vector<1x32xf32> to vector<16x32xf32>
    %174 = arith.addf %172, %173 : vector<16x32xf32>
    %c0_75 = arith.constant 0 : index
    %c0_76 = arith.constant 0 : index
    %c0_77 = arith.constant 0 : index
    %175 = vector.load %arg20[%c0_75, %c0_76, %c0_77] : memref<1x16x32xf32, #tpu.memory_space<vmem>>, vector<1x16x32xf32>
    %176 = vector.shape_cast %175 : vector<1x16x32xf32> to vector<16x32xf32>
    %177 = vector.shape_cast %174 : vector<16x32xf32> to vector<1x16x32xf32>
    tpu.vector_store %arg20[%c0_75, %c0_76, %c0_77], %177 {strides = array<i32>} : memref<1x16x32xf32, #tpu.memory_space<vmem>>, vector<1x16x32xf32>,
    return
  }
  func.func @transform_0(%arg0: i32, %arg1: i32) -> (i32, i32, i32) {
    %c0_i32 = arith.constant 0 : i32
    %c0_i32_0 = arith.constant 0 : i32
    %c0_i32_1 = arith.constant 0 : i32
    return %arg0, %c0_i32, %c0_i32_0 : i32, i32, i32
  }
  func.func @transform_1(%arg0: i32, %arg1: i32) -> (i32, i32, i32) {
    %c0_i32 = arith.constant 0 : i32
    %c0_i32_0 = arith.constant 0 : i32
    return %arg0, %arg1, %c0_i32 : i32, i32, i32
  }
  func.func @transform_2(%arg0: i32, %arg1: i32) -> (i32, i32) {
    %c0_i32 = arith.constant 0 : i32
    %c0_i32_0 = arith.constant 0 : i32
    %c0_i32_1 = arith.constant 0 : i32
    return %c0_i32, %c0_i32_0 : i32, i32
  }
  func.func @transform_3(%arg0: i32, %arg1: i32) -> (i32, i32) {
    %c0_i32 = arith.constant 0 : i32
    %c0_i32_0 = arith.constant 0 : i32
    %c0_i32_1 = arith.constant 0 : i32
    return %c0_i32, %c0_i32_0 : i32, i32
  }
  func.func @transform_4(%arg0: i32, %arg1: i32) -> (i32, i32) {
    %c0_i32 = arith.constant 0 : i32
    %c0_i32_0 = arith.constant 0 : i32
    %c0_i32_1 = arith.constant 0 : i32
    return %c0_i32, %c0_i32_0 : i32, i32
  }
  func.func @transform_5(%arg0: i32, %arg1: i32) -> (i32, i32) {
    %c0_i32 = arith.constant 0 : i32
    %c0_i32_0 = arith.constant 0 : i32
    %c0_i32_1 = arith.constant 0 : i32
    return %c0_i32, %c0_i32_0 : i32, i32
  }
  func.func @transform_6(%arg0: i32, %arg1: i32) -> (i32, i32) {
    %c0_i32 = arith.constant 0 : i32
    %c0_i32_0 = arith.constant 0 : i32
    %c0_i32_1 = arith.constant 0 : i32
    return %c0_i32, %c0_i32_0 : i32, i32
  }
  func.func @transform_7(%arg0: i32, %arg1: i32) -> (i32, i32) {
    %c0_i32 = arith.constant 0 : i32
    %c0_i32_0 = arith.constant 0 : i32
    %c0_i32_1 = arith.constant 0 : i32
    return %c0_i32, %c0_i32_0 : i32, i32
  }
  func.func @transform_8(%arg0: i32, %arg1: i32) -> (i32, i32) {
    %c0_i32 = arith.constant 0 : i32
    %c0_i32_0 = arith.constant 0 : i32
    %c0_i32_1 = arith.constant 0 : i32
    return %c0_i32, %c0_i32_0 : i32, i32
  }
  func.func @transform_9(%arg0: i32, %arg1: i32) -> (i32, i32) {
    %c0_i32 = arith.constant 0 : i32
    %c0_i32_0 = arith.constant 0 : i32
    %c0_i32_1 = arith.constant 0 : i32
    return %c0_i32, %c0_i32_0 : i32, i32
  }
  func.func @transform_10(%arg0: i32, %arg1: i32) -> (i32, i32) {
    %c0_i32 = arith.constant 0 : i32
    %c0_i32_0 = arith.constant 0 : i32
    %c0_i32_1 = arith.constant 0 : i32
    return %c0_i32, %c0_i32_0 : i32, i32
  }
  func.func @transform_11(%arg0: i32, %arg1: i32) -> (i32, i32) {
    %c0_i32 = arith.constant 0 : i32
    %c0_i32_0 = arith.constant 0 : i32
    %c0_i32_1 = arith.constant 0 : i32
    return %c0_i32, %c0_i32_0 : i32, i32
  }
  func.func @transform_12(%arg0: i32, %arg1: i32) -> (i32, i32) {
    %c0_i32 = arith.constant 0 : i32
    %c0_i32_0 = arith.constant 0 : i32
    %c0_i32_1 = arith.constant 0 : i32
    return %c0_i32, %c0_i32_0 : i32, i32
  }
  func.func @transform_13(%arg0: i32, %arg1: i32) -> (i32, i32) {
    %c0_i32 = arith.constant 0 : i32
    %c0_i32_0 = arith.constant 0 : i32
    %c0_i32_1 = arith.constant 0 : i32
    return %c0_i32, %c0_i32_0 : i32, i32
  }
  func.func @transform_14(%arg0: i32, %arg1: i32) -> (i32, i32) {
    %c0_i32 = arith.constant 0 : i32
    %c0_i32_0 = arith.constant 0 : i32
    %c0_i32_1 = arith.constant 0 : i32
    return %c0_i32, %c0_i32_0 : i32, i32
  }
  func.func @transform_15(%arg0: i32, %arg1: i32) -> (i32, i32) {
    %c0_i32 = arith.constant 0 : i32
    %c0_i32_0 = arith.constant 0 : i32
    %c0_i32_1 = arith.constant 0 : i32
    return %c0_i32, %c0_i32_0 : i32, i32
  }
  func.func @transform_16(%arg0: i32, %arg1: i32) -> (i32, i32) {
    %c0_i32 = arith.constant 0 : i32
    %c0_i32_0 = arith.constant 0 : i32
    %c0_i32_1 = arith.constant 0 : i32
    return %c0_i32, %c0_i32_0 : i32, i32
  }
  func.func @transform_17(%arg0: i32, %arg1: i32) -> (i32, i32) {
    %c0_i32 = arith.constant 0 : i32
    %c0_i32_0 = arith.constant 0 : i32
    %c0_i32_1 = arith.constant 0 : i32
    return %c0_i32, %c0_i32_0 : i32, i32
  }
  func.func @transform_18(%arg0: i32, %arg1: i32) -> (i32, i32, i32) {
    %c0_i32 = arith.constant 0 : i32
    %c0_i32_0 = arith.constant 0 : i32
    return %arg0, %arg1, %c0_i32 : i32, i32, i32
  }
}

module attributes {stable_mosaic.version = 11 : i64} {
  func.func @_dec_layer_kernel(%arg0: i32, %arg1: i32, %arg2: memref<1x16x32xf32, #tpu.memory_space<vmem>>, %arg3: memref<1x16x32xf32, #tpu.memory_space<vmem>>, %arg4: memref<1x16x32xf32, #tpu.memory_space<vmem>>, %arg5: memref<32x32xbf16, #tpu.memory_space<vmem>>, %arg6: memref<1x32xf32, #tpu.memory_space<vmem>>, %arg7: memref<32x32xbf16, #tpu.memory_space<vmem>>, %arg8: memref<1x32xf32, #tpu.memory_space<vmem>>, %arg9: memref<32x32xbf16, #tpu.memory_space<vmem>>, %arg10: memref<1x32xf32, #tpu.memory_space<vmem>>, %arg11: memref<32x32xbf16, #tpu.memory_space<vmem>>, %arg12: memref<1x32xf32, #tpu.memory_space<vmem>>, %arg13: memref<1x32xf32, #tpu.memory_space<vmem>>, %arg14: memref<1x32xf32, #tpu.memory_space<vmem>>, %arg15: memref<32x32xbf16, #tpu.memory_space<vmem>>, %arg16: memref<1x32xf32, #tpu.memory_space<vmem>>, %arg17: memref<32x32xbf16, #tpu.memory_space<vmem>>, %arg18: memref<1x32xf32, #tpu.memory_space<vmem>>, %arg19: memref<32x32xbf16, #tpu.memory_space<vmem>>, %arg20: memref<1x32xf32, #tpu.memory_space<vmem>>, %arg21: memref<32x32xbf16, #tpu.memory_space<vmem>>, %arg22: memref<1x32xf32, #tpu.memory_space<vmem>>, %arg23: memref<1x32xf32, #tpu.memory_space<vmem>>, %arg24: memref<1x32xf32, #tpu.memory_space<vmem>>, %arg25: memref<32x32xbf16, #tpu.memory_space<vmem>>, %arg26: memref<1x32xf32, #tpu.memory_space<vmem>>, %arg27: memref<32x32xbf16, #tpu.memory_space<vmem>>, %arg28: memref<1x32xf32, #tpu.memory_space<vmem>>, %arg29: memref<1x32xf32, #tpu.memory_space<vmem>>, %arg30: memref<1x32xf32, #tpu.memory_space<vmem>>, %arg31: memref<1x16x32xf32, #tpu.memory_space<vmem>>, %arg32: memref<16x32xbf16, #tpu.memory_space<vmem>>, %arg33: memref<16x32xbf16, #tpu.memory_space<vmem>>, %arg34: memref<16x32xbf16, #tpu.memory_space<vmem>>, %arg35: memref<16x32xbf16, #tpu.memory_space<vmem>>, %arg36: memref<16x32xf32, #tpu.memory_space<vmem>>) attributes {dimension_semantics = [#tpu.dimension_semantics<parallel>, #tpu.dimension_semantics<arbitrary>], iteration_bounds = array<i64: 2, 1>, scalar_prefetch = 0 : i64, scratch_operands = 5 : i64, tpu.core_type = #tpu.core_type<tc>, window_params = [{transform_indices = @transform_0, window_bounds = array<i64: 1, 16, 32>}, {transform_indices = @transform_1, window_bounds = array<i64: 1, 16, 32>}, {transform_indices = @transform_2, window_bounds = array<i64: 1, 16, 32>}, {pipeline_mode = #tpu.pipeline_mode<synchronous>, transform_indices = @transform_3, window_bounds = array<i64: 32, 32>}, {pipeline_mode = #tpu.pipeline_mode<synchronous>, transform_indices = @transform_4, window_bounds = array<i64: 1, 32>}, {pipeline_mode = #tpu.pipeline_mode<synchronous>, transform_indices = @transform_5, window_bounds = array<i64: 32, 32>}, {pipeline_mode = #tpu.pipeline_mode<synchronous>, transform_indices = @transform_6, window_bounds = array<i64: 1, 32>}, {pipeline_mode = #tpu.pipeline_mode<synchronous>, transform_indices = @transform_7, window_bounds = array<i64: 32, 32>}, {pipeline_mode = #tpu.pipeline_mode<synchronous>, transform_indices = @transform_8, window_bounds = array<i64: 1, 32>}, {pipeline_mode = #tpu.pipeline_mode<synchronous>, transform_indices = @transform_9, window_bounds = array<i64: 32, 32>}, {pipeline_mode = #tpu.pipeline_mode<synchronous>, transform_indices = @transform_10, window_bounds = array<i64: 1, 32>}, {pipeline_mode = #tpu.pipeline_mode<synchronous>, transform_indices = @transform_11, window_bounds = array<i64: 1, 32>}, {pipeline_mode = #tpu.pipeline_mode<synchronous>, transform_indices = @transform_12, window_bounds = array<i64: 1, 32>}, {pipeline_mode = #tpu.pipeline_mode<synchronous>, transform_indices = @transform_13, window_bounds = array<i64: 32, 32>}, {pipeline_mode = #tpu.pipeline_mode<synchronous>, transform_indices = @transform_14, window_bounds = array<i64: 1, 32>}, {pipeline_mode = #tpu.pipeline_mode<synchronous>, transform_indices = @transform_15, window_bounds = array<i64: 32, 32>}, {pipeline_mode = #tpu.pipeline_mode<synchronous>, transform_indices = @transform_16, window_bounds = array<i64: 1, 32>}, {pipeline_mode = #tpu.pipeline_mode<synchronous>, transform_indices = @transform_17, window_bounds = array<i64: 32, 32>}, {pipeline_mode = #tpu.pipeline_mode<synchronous>, transform_indices = @transform_18, window_bounds = array<i64: 1, 32>}, {pipeline_mode = #tpu.pipeline_mode<synchronous>, transform_indices = @transform_19, window_bounds = array<i64: 32, 32>}, {pipeline_mode = #tpu.pipeline_mode<synchronous>, transform_indices = @transform_20, window_bounds = array<i64: 1, 32>}, {pipeline_mode = #tpu.pipeline_mode<synchronous>, transform_indices = @transform_21, window_bounds = array<i64: 1, 32>}, {pipeline_mode = #tpu.pipeline_mode<synchronous>, transform_indices = @transform_22, window_bounds = array<i64: 1, 32>}, {pipeline_mode = #tpu.pipeline_mode<synchronous>, transform_indices = @transform_23, window_bounds = array<i64: 32, 32>}, {pipeline_mode = #tpu.pipeline_mode<synchronous>, transform_indices = @transform_24, window_bounds = array<i64: 1, 32>}, {pipeline_mode = #tpu.pipeline_mode<synchronous>, transform_indices = @transform_25, window_bounds = array<i64: 32, 32>}, {pipeline_mode = #tpu.pipeline_mode<synchronous>, transform_indices = @transform_26, window_bounds = array<i64: 1, 32>}, {pipeline_mode = #tpu.pipeline_mode<synchronous>, transform_indices = @transform_27, window_bounds = array<i64: 1, 32>}, {pipeline_mode = #tpu.pipeline_mode<synchronous>, transform_indices = @transform_28, window_bounds = array<i64: 1, 32>}, {transform_indices = @transform_29, window_bounds = array<i64: 1, 16, 32>}]} {
    %c0_i32 = arith.constant 0 : i32
    %0 = arith.cmpi eq, %arg1, %c0_i32 : i32
    %1 = arith.extui %0 : i1 to i32
    %c0_i32_0 = arith.constant 0 : i32
    %2 = arith.cmpi ne, %1, %c0_i32_0 : i32
    scf.if %2 {
      %c0_135 = arith.constant 0 : index
      %c0_136 = arith.constant 0 : index
      %c0_137 = arith.constant 0 : index
      %312 = vector.load %arg2[%c0_135, %c0_136, %c0_137] : memref<1x16x32xf32, #tpu.memory_space<vmem>>, vector<1x16x32xf32>
      %313 = vector.shape_cast %312 : vector<1x16x32xf32> to vector<16x32xf32>
      %c0_138 = arith.constant 0 : index
      %c0_139 = arith.constant 0 : index
      %314 = vector.load %arg7[%c0_138, %c0_139] : memref<32x32xbf16, #tpu.memory_space<vmem>>, vector<32x32xbf16>
      %315 = arith.truncf %313 : vector<16x32xf32> to vector<16x32xbf16>
      %cst_140 = arith.constant dense<0.000000e+00> : vector<16x32xf32>
      %316 = tpu.matmul %315, %314, %cst_140 {dimension_numbers = #tpu.dot_dimension_numbers<[1], [0], [0], [1], [0, 0, 1, 1], [], []>} : vector<16x32xbf16>, vector<32x32xbf16>, vector<16x32xf32> -> vector<16x32xf32>
      %c0_141 = arith.constant 0 : index
      %c0_142 = arith.constant 0 : index
      %317 = vector.load %arg8[%c0_141, %c0_142] : memref<1x32xf32, #tpu.memory_space<vmem>>, vector<1x32xf32>
      %318 = vector.broadcast %317 : vector<1x32xf32> to vector<16x32xf32>
      %319 = arith.addf %316, %318 : vector<16x32xf32>
      %320 = arith.truncf %319 : vector<16x32xf32> to vector<16x32xbf16>
      %c0_143 = arith.constant 0 : index
      %c0_144 = arith.constant 0 : index
      %321 = vector.load %arg32[%c0_143, %c0_144] : memref<16x32xbf16, #tpu.memory_space<vmem>>, vector<16x32xbf16>
      tpu.vector_store %arg32[%c0_143, %c0_144], %320 {strides = array<i32>} : memref<16x32xbf16, #tpu.memory_space<vmem>>, vector<16x32xbf16>,
      %c0_145 = arith.constant 0 : index
      %c0_146 = arith.constant 0 : index
      %322 = vector.load %arg9[%c0_145, %c0_146] : memref<32x32xbf16, #tpu.memory_space<vmem>>, vector<32x32xbf16>
      %323 = arith.truncf %313 : vector<16x32xf32> to vector<16x32xbf16>
      %cst_147 = arith.constant dense<0.000000e+00> : vector<16x32xf32>
      %324 = tpu.matmul %323, %322, %cst_147 {dimension_numbers = #tpu.dot_dimension_numbers<[1], [0], [0], [1], [0, 0, 1, 1], [], []>} : vector<16x32xbf16>, vector<32x32xbf16>, vector<16x32xf32> -> vector<16x32xf32>
      %c0_148 = arith.constant 0 : index
      %c0_149 = arith.constant 0 : index
      %325 = vector.load %arg10[%c0_148, %c0_149] : memref<1x32xf32, #tpu.memory_space<vmem>>, vector<1x32xf32>
      %326 = vector.broadcast %325 : vector<1x32xf32> to vector<16x32xf32>
      %327 = arith.addf %324, %326 : vector<16x32xf32>
      %328 = arith.truncf %327 : vector<16x32xf32> to vector<16x32xbf16>
      %c0_150 = arith.constant 0 : index
      %c0_151 = arith.constant 0 : index
      %329 = vector.load %arg33[%c0_150, %c0_151] : memref<16x32xbf16, #tpu.memory_space<vmem>>, vector<16x32xbf16>
      tpu.vector_store %arg33[%c0_150, %c0_151], %328 {strides = array<i32>} : memref<16x32xbf16, #tpu.memory_space<vmem>>, vector<16x32xbf16>,
      %c0_152 = arith.constant 0 : index
      %c0_153 = arith.constant 0 : index
      %c0_154 = arith.constant 0 : index
      %330 = vector.load %arg4[%c0_152, %c0_153, %c0_154] : memref<1x16x32xf32, #tpu.memory_space<vmem>>, vector<1x16x32xf32>
      %331 = vector.shape_cast %330 : vector<1x16x32xf32> to vector<16x32xf32>
      %c0_155 = arith.constant 0 : index
      %c0_156 = arith.constant 0 : index
      %332 = vector.load %arg17[%c0_155, %c0_156] : memref<32x32xbf16, #tpu.memory_space<vmem>>, vector<32x32xbf16>
      %333 = arith.truncf %331 : vector<16x32xf32> to vector<16x32xbf16>
      %cst_157 = arith.constant dense<0.000000e+00> : vector<16x32xf32>
      %334 = tpu.matmul %333, %332, %cst_157 {dimension_numbers = #tpu.dot_dimension_numbers<[1], [0], [0], [1], [0, 0, 1, 1], [], []>} : vector<16x32xbf16>, vector<32x32xbf16>, vector<16x32xf32> -> vector<16x32xf32>
      %c0_158 = arith.constant 0 : index
      %c0_159 = arith.constant 0 : index
      %335 = vector.load %arg18[%c0_158, %c0_159] : memref<1x32xf32, #tpu.memory_space<vmem>>, vector<1x32xf32>
      %336 = vector.broadcast %335 : vector<1x32xf32> to vector<16x32xf32>
      %337 = arith.addf %334, %336 : vector<16x32xf32>
      %338 = arith.truncf %337 : vector<16x32xf32> to vector<16x32xbf16>
      %c0_160 = arith.constant 0 : index
      %c0_161 = arith.constant 0 : index
      %339 = vector.load %arg34[%c0_160, %c0_161] : memref<16x32xbf16, #tpu.memory_space<vmem>>, vector<16x32xbf16>
      tpu.vector_store %arg34[%c0_160, %c0_161], %338 {strides = array<i32>} : memref<16x32xbf16, #tpu.memory_space<vmem>>, vector<16x32xbf16>,
      %c0_162 = arith.constant 0 : index
      %c0_163 = arith.constant 0 : index
      %340 = vector.load %arg19[%c0_162, %c0_163] : memref<32x32xbf16, #tpu.memory_space<vmem>>, vector<32x32xbf16>
      %341 = arith.truncf %331 : vector<16x32xf32> to vector<16x32xbf16>
      %cst_164 = arith.constant dense<0.000000e+00> : vector<16x32xf32>
      %342 = tpu.matmul %341, %340, %cst_164 {dimension_numbers = #tpu.dot_dimension_numbers<[1], [0], [0], [1], [0, 0, 1, 1], [], []>} : vector<16x32xbf16>, vector<32x32xbf16>, vector<16x32xf32> -> vector<16x32xf32>
      %c0_165 = arith.constant 0 : index
      %c0_166 = arith.constant 0 : index
      %343 = vector.load %arg20[%c0_165, %c0_166] : memref<1x32xf32, #tpu.memory_space<vmem>>, vector<1x32xf32>
      %344 = vector.broadcast %343 : vector<1x32xf32> to vector<16x32xf32>
      %345 = arith.addf %342, %344 : vector<16x32xf32>
      %346 = arith.truncf %345 : vector<16x32xf32> to vector<16x32xbf16>
      %c0_167 = arith.constant 0 : index
      %c0_168 = arith.constant 0 : index
      %347 = vector.load %arg35[%c0_167, %c0_168] : memref<16x32xbf16, #tpu.memory_space<vmem>>, vector<16x32xbf16>
      tpu.vector_store %arg35[%c0_167, %c0_168], %346 {strides = array<i32>} : memref<16x32xbf16, #tpu.memory_space<vmem>>, vector<16x32xbf16>,
    } else {
    }
    %c0 = arith.constant 0 : index
    %c0_1 = arith.constant 0 : index
    %c0_2 = arith.constant 0 : index
    %3 = vector.load %arg3[%c0, %c0_1, %c0_2] : memref<1x16x32xf32, #tpu.memory_space<vmem>>, vector<1x16x32xf32>
    %4 = vector.shape_cast %3 : vector<1x16x32xf32> to vector<16x32xf32>
    %c0_3 = arith.constant 0 : index
    %c0_4 = arith.constant 0 : index
    %5 = vector.load %arg5[%c0_3, %c0_4] : memref<32x32xbf16, #tpu.memory_space<vmem>>, vector<32x32xbf16>
    %6 = arith.truncf %4 : vector<16x32xf32> to vector<16x32xbf16>
    %cst = arith.constant dense<0.000000e+00> : vector<16x32xf32>
    %7 = tpu.matmul %6, %5, %cst {dimension_numbers = #tpu.dot_dimension_numbers<[1], [0], [0], [1], [0, 0, 1, 1], [], []>} : vector<16x32xbf16>, vector<32x32xbf16>, vector<16x32xf32> -> vector<16x32xf32>
    %c0_5 = arith.constant 0 : index
    %c0_6 = arith.constant 0 : index
    %8 = vector.load %arg6[%c0_5, %c0_6] : memref<1x32xf32, #tpu.memory_space<vmem>>, vector<1x32xf32>
    %9 = vector.broadcast %8 : vector<1x32xf32> to vector<16x32xf32>
    %10 = arith.addf %7, %9 : vector<16x32xf32>
    %c0_7 = arith.constant 0 : index
    %c0_8 = arith.constant 0 : index
    %11 = vector.load %arg32[%c0_7, %c0_8] : memref<16x32xbf16, #tpu.memory_space<vmem>>, vector<16x32xbf16>
    %c0_9 = arith.constant 0 : index
    %c0_10 = arith.constant 0 : index
    %12 = vector.load %arg33[%c0_9, %c0_10] : memref<16x32xbf16, #tpu.memory_space<vmem>>, vector<16x32xbf16>
    %c16_i32 = arith.constant 16 : i32
    %13 = arith.muli %arg1, %c16_i32 : i32
    %14 = tpu.iota {dimensions = array<i32: 0>} : vector<16x16xi32>
    %15 = vector.broadcast %13 : i32 to vector<16x16xi32>
    %16 = arith.addi %14, %15 : vector<16x16xi32>
    %17 = tpu.iota {dimensions = array<i32: 1>} : vector<16x16xi32>
    %18 = arith.cmpi sle, %17, %16 : vector<16x16xi32>
    %19 = vector.extract_strided_slice %10 {offsets = [0, 0], sizes = [16, 8], strides = [1, 1]} : vector<16x32xf32> to vector<16x8xf32>
    %20 = vector.extract_strided_slice %11 {offsets = [0, 0], sizes = [16, 8], strides = [1, 1]} : vector<16x32xbf16> to vector<16x8xbf16>
    %21 = arith.truncf %19 : vector<16x8xf32> to vector<16x8xbf16>
    %cst_11 = arith.constant dense<0.000000e+00> : vector<16x16xf32>
    %22 = tpu.matmul %21, %20, %cst_11 {dimension_numbers = #tpu.dot_dimension_numbers<[1], [1], [0], [0], [0, 0, 1, 0], [], []>} : vector<16x8xbf16>, vector<16x8xbf16>, vector<16x16xf32> -> vector<16x16xf32>
    %cst_12 = arith.constant 0.353553385 : f32
    %23 = vector.broadcast %cst_12 : f32 to vector<16x16xf32>
    %24 = arith.mulf %22, %23 : vector<16x16xf32>
    %cst_13 = arith.constant -1.000000e+30 : f32
    %25 = vector.broadcast %cst_13 : f32 to vector<16x16xf32>
    %26 = arith.select %18, %24, %25 : vector<16x16xi1>, vector<16x16xf32>
    %cst_14 = arith.constant dense<0xFF800000> : vector<16xf32>
    %27 = vector.multi_reduction <maximumf>, %26, %cst_14 [1] : vector<16x16xf32> to vector<16xf32>
    %28 = vector.shape_cast %27 : vector<16xf32> to vector<16x1xf32>
    %29 = vector.broadcast %28 : vector<16x1xf32> to vector<16x16xf32>
    %30 = arith.subf %26, %29 : vector<16x16xf32>
    %31 = math.exp %30 : vector<16x16xf32>
    %cst_15 = arith.constant dense<0.000000e+00> : vector<16xf32>
    %32 = vector.multi_reduction <add>, %31, %cst_15 [1] : vector<16x16xf32> to vector<16xf32>
    %33 = vector.shape_cast %32 : vector<16xf32> to vector<16x1xf32>
    %34 = tpu.reciprocal %33 {approx = true} : vector<16x1xf32> -> vector<16x1xf32>
    %35 = vector.extract_strided_slice %12 {offsets = [0, 0], sizes = [16, 8], strides = [1, 1]} : vector<16x32xbf16> to vector<16x8xbf16>
    %36 = arith.truncf %31 : vector<16x16xf32> to vector<16x16xbf16>
    %cst_16 = arith.constant dense<0.000000e+00> : vector<16x8xf32>
    %37 = tpu.matmul %36, %35, %cst_16 {dimension_numbers = #tpu.dot_dimension_numbers<[1], [0], [0], [1], [0, 0, 1, 1], [], []>} : vector<16x16xbf16>, vector<16x8xbf16>, vector<16x8xf32> -> vector<16x8xf32>
    %38 = vector.broadcast %34 : vector<16x1xf32> to vector<16x8xf32>
    %39 = arith.mulf %37, %38 : vector<16x8xf32>
    %c0_17 = arith.constant 0 : index
    %c0_18 = arith.constant 0 : index
    %40 = vector.load %arg36[%c0_17, %c0_18] : memref<16x32xf32, #tpu.memory_space<vmem>>, vector<16x8xf32>
    tpu.vector_store %arg36[%c0_17, %c0_18], %39 {strides = array<i32>} : memref<16x32xf32, #tpu.memory_space<vmem>>, vector<16x8xf32>,
    %41 = vector.extract_strided_slice %10 {offsets = [0, 8], sizes = [16, 8], strides = [1, 1]} : vector<16x32xf32> to vector<16x8xf32>
    %42 = vector.extract_strided_slice %11 {offsets = [0, 8], sizes = [16, 8], strides = [1, 1]} : vector<16x32xbf16> to vector<16x8xbf16>
    %43 = arith.truncf %41 : vector<16x8xf32> to vector<16x8xbf16>
    %cst_19 = arith.constant dense<0.000000e+00> : vector<16x16xf32>
    %44 = tpu.matmul %43, %42, %cst_19 {dimension_numbers = #tpu.dot_dimension_numbers<[1], [1], [0], [0], [0, 0, 1, 0], [], []>} : vector<16x8xbf16>, vector<16x8xbf16>, vector<16x16xf32> -> vector<16x16xf32>
    %cst_20 = arith.constant 0.353553385 : f32
    %45 = vector.broadcast %cst_20 : f32 to vector<16x16xf32>
    %46 = arith.mulf %44, %45 : vector<16x16xf32>
    %cst_21 = arith.constant -1.000000e+30 : f32
    %47 = vector.broadcast %cst_21 : f32 to vector<16x16xf32>
    %48 = arith.select %18, %46, %47 : vector<16x16xi1>, vector<16x16xf32>
    %cst_22 = arith.constant dense<0xFF800000> : vector<16xf32>
    %49 = vector.multi_reduction <maximumf>, %48, %cst_22 [1] : vector<16x16xf32> to vector<16xf32>
    %50 = vector.shape_cast %49 : vector<16xf32> to vector<16x1xf32>
    %51 = vector.broadcast %50 : vector<16x1xf32> to vector<16x16xf32>
    %52 = arith.subf %48, %51 : vector<16x16xf32>
    %53 = math.exp %52 : vector<16x16xf32>
    %cst_23 = arith.constant dense<0.000000e+00> : vector<16xf32>
    %54 = vector.multi_reduction <add>, %53, %cst_23 [1] : vector<16x16xf32> to vector<16xf32>
    %55 = vector.shape_cast %54 : vector<16xf32> to vector<16x1xf32>
    %56 = tpu.reciprocal %55 {approx = true} : vector<16x1xf32> -> vector<16x1xf32>
    %57 = vector.extract_strided_slice %12 {offsets = [0, 8], sizes = [16, 8], strides = [1, 1]} : vector<16x32xbf16> to vector<16x8xbf16>
    %58 = arith.truncf %53 : vector<16x16xf32> to vector<16x16xbf16>
    %cst_24 = arith.constant dense<0.000000e+00> : vector<16x8xf32>
    %59 = tpu.matmul %58, %57, %cst_24 {dimension_numbers = #tpu.dot_dimension_numbers<[1], [0], [0], [1], [0, 0, 1, 1], [], []>} : vector<16x16xbf16>, vector<16x8xbf16>, vector<16x8xf32> -> vector<16x8xf32>
    %60 = vector.broadcast %56 : vector<16x1xf32> to vector<16x8xf32>
    %61 = arith.mulf %59, %60 : vector<16x8xf32>
    %c0_25 = arith.constant 0 : index
    %c8 = arith.constant 8 : index
    %62 = vector.load %arg36[%c0_25, %c8] : memref<16x32xf32, #tpu.memory_space<vmem>>, vector<16x8xf32>
    tpu.vector_store %arg36[%c0_25, %c8], %61 {strides = array<i32>} : memref<16x32xf32, #tpu.memory_space<vmem>>, vector<16x8xf32>,
    %63 = vector.extract_strided_slice %10 {offsets = [0, 16], sizes = [16, 8], strides = [1, 1]} : vector<16x32xf32> to vector<16x8xf32>
    %64 = vector.extract_strided_slice %11 {offsets = [0, 16], sizes = [16, 8], strides = [1, 1]} : vector<16x32xbf16> to vector<16x8xbf16>
    %65 = arith.truncf %63 : vector<16x8xf32> to vector<16x8xbf16>
    %cst_26 = arith.constant dense<0.000000e+00> : vector<16x16xf32>
    %66 = tpu.matmul %65, %64, %cst_26 {dimension_numbers = #tpu.dot_dimension_numbers<[1], [1], [0], [0], [0, 0, 1, 0], [], []>} : vector<16x8xbf16>, vector<16x8xbf16>, vector<16x16xf32> -> vector<16x16xf32>
    %cst_27 = arith.constant 0.353553385 : f32
    %67 = vector.broadcast %cst_27 : f32 to vector<16x16xf32>
    %68 = arith.mulf %66, %67 : vector<16x16xf32>
    %cst_28 = arith.constant -1.000000e+30 : f32
    %69 = vector.broadcast %cst_28 : f32 to vector<16x16xf32>
    %70 = arith.select %18, %68, %69 : vector<16x16xi1>, vector<16x16xf32>
    %cst_29 = arith.constant dense<0xFF800000> : vector<16xf32>
    %71 = vector.multi_reduction <maximumf>, %70, %cst_29 [1] : vector<16x16xf32> to vector<16xf32>
    %72 = vector.shape_cast %71 : vector<16xf32> to vector<16x1xf32>
    %73 = vector.broadcast %72 : vector<16x1xf32> to vector<16x16xf32>
    %74 = arith.subf %70, %73 : vector<16x16xf32>
    %75 = math.exp %74 : vector<16x16xf32>
    %cst_30 = arith.constant dense<0.000000e+00> : vector<16xf32>
    %76 = vector.multi_reduction <add>, %75, %cst_30 [1] : vector<16x16xf32> to vector<16xf32>
    %77 = vector.shape_cast %76 : vector<16xf32> to vector<16x1xf32>
    %78 = tpu.reciprocal %77 {approx = true} : vector<16x1xf32> -> vector<16x1xf32>
    %79 = vector.extract_strided_slice %12 {offsets = [0, 16], sizes = [16, 8], strides = [1, 1]} : vector<16x32xbf16> to vector<16x8xbf16>
    %80 = arith.truncf %75 : vector<16x16xf32> to vector<16x16xbf16>
    %cst_31 = arith.constant dense<0.000000e+00> : vector<16x8xf32>
    %81 = tpu.matmul %80, %79, %cst_31 {dimension_numbers = #tpu.dot_dimension_numbers<[1], [0], [0], [1], [0, 0, 1, 1], [], []>} : vector<16x16xbf16>, vector<16x8xbf16>, vector<16x8xf32> -> vector<16x8xf32>
    %82 = vector.broadcast %78 : vector<16x1xf32> to vector<16x8xf32>
    %83 = arith.mulf %81, %82 : vector<16x8xf32>
    %c0_32 = arith.constant 0 : index
    %c16 = arith.constant 16 : index
    %84 = vector.load %arg36[%c0_32, %c16] : memref<16x32xf32, #tpu.memory_space<vmem>>, vector<16x8xf32>
    tpu.vector_store %arg36[%c0_32, %c16], %83 {strides = array<i32>} : memref<16x32xf32, #tpu.memory_space<vmem>>, vector<16x8xf32>,
    %85 = vector.extract_strided_slice %10 {offsets = [0, 24], sizes = [16, 8], strides = [1, 1]} : vector<16x32xf32> to vector<16x8xf32>
    %86 = vector.extract_strided_slice %11 {offsets = [0, 24], sizes = [16, 8], strides = [1, 1]} : vector<16x32xbf16> to vector<16x8xbf16>
    %87 = arith.truncf %85 : vector<16x8xf32> to vector<16x8xbf16>
    %cst_33 = arith.constant dense<0.000000e+00> : vector<16x16xf32>
    %88 = tpu.matmul %87, %86, %cst_33 {dimension_numbers = #tpu.dot_dimension_numbers<[1], [1], [0], [0], [0, 0, 1, 0], [], []>} : vector<16x8xbf16>, vector<16x8xbf16>, vector<16x16xf32> -> vector<16x16xf32>
    %cst_34 = arith.constant 0.353553385 : f32
    %89 = vector.broadcast %cst_34 : f32 to vector<16x16xf32>
    %90 = arith.mulf %88, %89 : vector<16x16xf32>
    %cst_35 = arith.constant -1.000000e+30 : f32
    %91 = vector.broadcast %cst_35 : f32 to vector<16x16xf32>
    %92 = arith.select %18, %90, %91 : vector<16x16xi1>, vector<16x16xf32>
    %cst_36 = arith.constant dense<0xFF800000> : vector<16xf32>
    %93 = vector.multi_reduction <maximumf>, %92, %cst_36 [1] : vector<16x16xf32> to vector<16xf32>
    %94 = vector.shape_cast %93 : vector<16xf32> to vector<16x1xf32>
    %95 = vector.broadcast %94 : vector<16x1xf32> to vector<16x16xf32>
    %96 = arith.subf %92, %95 : vector<16x16xf32>
    %97 = math.exp %96 : vector<16x16xf32>
    %cst_37 = arith.constant dense<0.000000e+00> : vector<16xf32>
    %98 = vector.multi_reduction <add>, %97, %cst_37 [1] : vector<16x16xf32> to vector<16xf32>
    %99 = vector.shape_cast %98 : vector<16xf32> to vector<16x1xf32>
    %100 = tpu.reciprocal %99 {approx = true} : vector<16x1xf32> -> vector<16x1xf32>
    %101 = vector.extract_strided_slice %12 {offsets = [0, 24], sizes = [16, 8], strides = [1, 1]} : vector<16x32xbf16> to vector<16x8xbf16>
    %102 = arith.truncf %97 : vector<16x16xf32> to vector<16x16xbf16>
    %cst_38 = arith.constant dense<0.000000e+00> : vector<16x8xf32>
    %103 = tpu.matmul %102, %101, %cst_38 {dimension_numbers = #tpu.dot_dimension_numbers<[1], [0], [0], [1], [0, 0, 1, 1], [], []>} : vector<16x16xbf16>, vector<16x8xbf16>, vector<16x8xf32> -> vector<16x8xf32>
    %104 = vector.broadcast %100 : vector<16x1xf32> to vector<16x8xf32>
    %105 = arith.mulf %103, %104 : vector<16x8xf32>
    %c0_39 = arith.constant 0 : index
    %c24 = arith.constant 24 : index
    %106 = vector.load %arg36[%c0_39, %c24] : memref<16x32xf32, #tpu.memory_space<vmem>>, vector<16x8xf32>
    tpu.vector_store %arg36[%c0_39, %c24], %105 {strides = array<i32>} : memref<16x32xf32, #tpu.memory_space<vmem>>, vector<16x8xf32>,
    %c0_40 = arith.constant 0 : index
    %c0_41 = arith.constant 0 : index
    %107 = vector.load %arg36[%c0_40, %c0_41] : memref<16x32xf32, #tpu.memory_space<vmem>>, vector<16x32xf32>
    %c0_42 = arith.constant 0 : index
    %c0_43 = arith.constant 0 : index
    %108 = vector.load %arg11[%c0_42, %c0_43] : memref<32x32xbf16, #tpu.memory_space<vmem>>, vector<32x32xbf16>
    %109 = arith.truncf %107 : vector<16x32xf32> to vector<16x32xbf16>
    %cst_44 = arith.constant dense<0.000000e+00> : vector<16x32xf32>
    %110 = tpu.matmul %109, %108, %cst_44 {dimension_numbers = #tpu.dot_dimension_numbers<[1], [0], [0], [1], [0, 0, 1, 1], [], []>} : vector<16x32xbf16>, vector<32x32xbf16>, vector<16x32xf32> -> vector<16x32xf32>
    %111 = arith.addf %4, %110 : vector<16x32xf32>
    %c0_45 = arith.constant 0 : index
    %c0_46 = arith.constant 0 : index
    %112 = vector.load %arg12[%c0_45, %c0_46] : memref<1x32xf32, #tpu.memory_space<vmem>>, vector<1x32xf32>
    %113 = vector.broadcast %112 : vector<1x32xf32> to vector<16x32xf32>
    %114 = arith.addf %111, %113 : vector<16x32xf32>
    %c0_47 = arith.constant 0 : index
    %c0_48 = arith.constant 0 : index
    %115 = vector.load %arg13[%c0_47, %c0_48] : memref<1x32xf32, #tpu.memory_space<vmem>>, vector<1x32xf32>
    %c0_49 = arith.constant 0 : index
    %c0_50 = arith.constant 0 : index
    %116 = vector.load %arg14[%c0_49, %c0_50] : memref<1x32xf32, #tpu.memory_space<vmem>>, vector<1x32xf32>
    %cst_51 = arith.constant dense<0.000000e+00> : vector<16xf32>
    %117 = vector.multi_reduction <add>, %114, %cst_51 [1] : vector<16x32xf32> to vector<16xf32>
    %118 = vector.shape_cast %117 : vector<16xf32> to vector<16x1xf32>
    %cst_52 = arith.constant 3.200000e+01 : f32
    %119 = vector.broadcast %cst_52 : f32 to vector<16x1xf32>
    %120 = arith.divf %118, %119 : vector<16x1xf32>
    %121 = vector.broadcast %120 : vector<16x1xf32> to vector<16x32xf32>
    %122 = arith.subf %114, %121 : vector<16x32xf32>
    %123 = arith.mulf %122, %122 : vector<16x32xf32>
    %cst_53 = arith.constant dense<0.000000e+00> : vector<16xf32>
    %124 = vector.multi_reduction <add>, %123, %cst_53 [1] : vector<16x32xf32> to vector<16xf32>
    %125 = vector.shape_cast %124 : vector<16xf32> to vector<16x1xf32>
    %cst_54 = arith.constant 3.200000e+01 : f32
    %126 = vector.broadcast %cst_54 : f32 to vector<16x1xf32>
    %127 = arith.divf %125, %126 : vector<16x1xf32>
    %128 = vector.broadcast %120 : vector<16x1xf32> to vector<16x32xf32>
    %129 = arith.subf %114, %128 : vector<16x32xf32>
    %cst_55 = arith.constant 9.99999974E-6 : f32
    %130 = vector.broadcast %cst_55 : f32 to vector<16x1xf32>
    %131 = arith.addf %127, %130 : vector<16x1xf32>
    %132 = math.rsqrt %131 : vector<16x1xf32>
    %133 = vector.broadcast %132 : vector<16x1xf32> to vector<16x32xf32>
    %134 = arith.mulf %129, %133 : vector<16x32xf32>
    %135 = vector.broadcast %115 : vector<1x32xf32> to vector<16x32xf32>
    %136 = arith.mulf %134, %135 : vector<16x32xf32>
    %137 = vector.broadcast %116 : vector<1x32xf32> to vector<16x32xf32>
    %138 = arith.addf %136, %137 : vector<16x32xf32>
    %c0_56 = arith.constant 0 : index
    %c0_57 = arith.constant 0 : index
    %139 = vector.load %arg15[%c0_56, %c0_57] : memref<32x32xbf16, #tpu.memory_space<vmem>>, vector<32x32xbf16>
    %140 = arith.truncf %138 : vector<16x32xf32> to vector<16x32xbf16>
    %cst_58 = arith.constant dense<0.000000e+00> : vector<16x32xf32>
    %141 = tpu.matmul %140, %139, %cst_58 {dimension_numbers = #tpu.dot_dimension_numbers<[1], [0], [0], [1], [0, 0, 1, 1], [], []>} : vector<16x32xbf16>, vector<32x32xbf16>, vector<16x32xf32> -> vector<16x32xf32>
    %c0_59 = arith.constant 0 : index
    %c0_60 = arith.constant 0 : index
    %142 = vector.load %arg16[%c0_59, %c0_60] : memref<1x32xf32, #tpu.memory_space<vmem>>, vector<1x32xf32>
    %143 = vector.broadcast %142 : vector<1x32xf32> to vector<16x32xf32>
    %144 = arith.addf %141, %143 : vector<16x32xf32>
    %c0_61 = arith.constant 0 : index
    %c0_62 = arith.constant 0 : index
    %145 = vector.load %arg34[%c0_61, %c0_62] : memref<16x32xbf16, #tpu.memory_space<vmem>>, vector<16x32xbf16>
    %c0_63 = arith.constant 0 : index
    %c0_64 = arith.constant 0 : index
    %146 = vector.load %arg35[%c0_63, %c0_64] : memref<16x32xbf16, #tpu.memory_space<vmem>>, vector<16x32xbf16>
    %147 = vector.extract_strided_slice %144 {offsets = [0, 0], sizes = [16, 8], strides = [1, 1]} : vector<16x32xf32> to vector<16x8xf32>
    %148 = vector.extract_strided_slice %145 {offsets = [0, 0], sizes = [16, 8], strides = [1, 1]} : vector<16x32xbf16> to vector<16x8xbf16>
    %149 = arith.truncf %147 : vector<16x8xf32> to vector<16x8xbf16>
    %cst_65 = arith.constant dense<0.000000e+00> : vector<16x16xf32>
    %150 = tpu.matmul %149, %148, %cst_65 {dimension_numbers = #tpu.dot_dimension_numbers<[1], [1], [0], [0], [0, 0, 1, 0], [], []>} : vector<16x8xbf16>, vector<16x8xbf16>, vector<16x16xf32> -> vector<16x16xf32>
    %cst_66 = arith.constant 0.353553385 : f32
    %151 = vector.broadcast %cst_66 : f32 to vector<16x16xf32>
    %152 = arith.mulf %150, %151 : vector<16x16xf32>
    %cst_67 = arith.constant dense<0xFF800000> : vector<16xf32>
    %153 = vector.multi_reduction <maximumf>, %152, %cst_67 [1] : vector<16x16xf32> to vector<16xf32>
    %154 = vector.shape_cast %153 : vector<16xf32> to vector<16x1xf32>
    %155 = vector.broadcast %154 : vector<16x1xf32> to vector<16x16xf32>
    %156 = arith.subf %152, %155 : vector<16x16xf32>
    %157 = math.exp %156 : vector<16x16xf32>
    %cst_68 = arith.constant dense<0.000000e+00> : vector<16xf32>
    %158 = vector.multi_reduction <add>, %157, %cst_68 [1] : vector<16x16xf32> to vector<16xf32>
    %159 = vector.shape_cast %158 : vector<16xf32> to vector<16x1xf32>
    %160 = tpu.reciprocal %159 {approx = true} : vector<16x1xf32> -> vector<16x1xf32>
    %161 = vector.extract_strided_slice %146 {offsets = [0, 0], sizes = [16, 8], strides = [1, 1]} : vector<16x32xbf16> to vector<16x8xbf16>
    %162 = arith.truncf %157 : vector<16x16xf32> to vector<16x16xbf16>
    %cst_69 = arith.constant dense<0.000000e+00> : vector<16x8xf32>
    %163 = tpu.matmul %162, %161, %cst_69 {dimension_numbers = #tpu.dot_dimension_numbers<[1], [0], [0], [1], [0, 0, 1, 1], [], []>} : vector<16x16xbf16>, vector<16x8xbf16>, vector<16x8xf32> -> vector<16x8xf32>
    %164 = vector.broadcast %160 : vector<16x1xf32> to vector<16x8xf32>
    %165 = arith.mulf %163, %164 : vector<16x8xf32>
    %c0_70 = arith.constant 0 : index
    %c0_71 = arith.constant 0 : index
    %166 = vector.load %arg36[%c0_70, %c0_71] : memref<16x32xf32, #tpu.memory_space<vmem>>, vector<16x8xf32>
    tpu.vector_store %arg36[%c0_70, %c0_71], %165 {strides = array<i32>} : memref<16x32xf32, #tpu.memory_space<vmem>>, vector<16x8xf32>,
    %167 = vector.extract_strided_slice %144 {offsets = [0, 8], sizes = [16, 8], strides = [1, 1]} : vector<16x32xf32> to vector<16x8xf32>
    %168 = vector.extract_strided_slice %145 {offsets = [0, 8], sizes = [16, 8], strides = [1, 1]} : vector<16x32xbf16> to vector<16x8xbf16>
    %169 = arith.truncf %167 : vector<16x8xf32> to vector<16x8xbf16>
    %cst_72 = arith.constant dense<0.000000e+00> : vector<16x16xf32>
    %170 = tpu.matmul %169, %168, %cst_72 {dimension_numbers = #tpu.dot_dimension_numbers<[1], [1], [0], [0], [0, 0, 1, 0], [], []>} : vector<16x8xbf16>, vector<16x8xbf16>, vector<16x16xf32> -> vector<16x16xf32>
    %cst_73 = arith.constant 0.353553385 : f32
    %171 = vector.broadcast %cst_73 : f32 to vector<16x16xf32>
    %172 = arith.mulf %170, %171 : vector<16x16xf32>
    %cst_74 = arith.constant dense<0xFF800000> : vector<16xf32>
    %173 = vector.multi_reduction <maximumf>, %172, %cst_74 [1] : vector<16x16xf32> to vector<16xf32>
    %174 = vector.shape_cast %173 : vector<16xf32> to vector<16x1xf32>
    %175 = vector.broadcast %174 : vector<16x1xf32> to vector<16x16xf32>
    %176 = arith.subf %172, %175 : vector<16x16xf32>
    %177 = math.exp %176 : vector<16x16xf32>
    %cst_75 = arith.constant dense<0.000000e+00> : vector<16xf32>
    %178 = vector.multi_reduction <add>, %177, %cst_75 [1] : vector<16x16xf32> to vector<16xf32>
    %179 = vector.shape_cast %178 : vector<16xf32> to vector<16x1xf32>
    %180 = tpu.reciprocal %179 {approx = true} : vector<16x1xf32> -> vector<16x1xf32>
    %181 = vector.extract_strided_slice %146 {offsets = [0, 8], sizes = [16, 8], strides = [1, 1]} : vector<16x32xbf16> to vector<16x8xbf16>
    %182 = arith.truncf %177 : vector<16x16xf32> to vector<16x16xbf16>
    %cst_76 = arith.constant dense<0.000000e+00> : vector<16x8xf32>
    %183 = tpu.matmul %182, %181, %cst_76 {dimension_numbers = #tpu.dot_dimension_numbers<[1], [0], [0], [1], [0, 0, 1, 1], [], []>} : vector<16x16xbf16>, vector<16x8xbf16>, vector<16x8xf32> -> vector<16x8xf32>
    %184 = vector.broadcast %180 : vector<16x1xf32> to vector<16x8xf32>
    %185 = arith.mulf %183, %184 : vector<16x8xf32>
    %c0_77 = arith.constant 0 : index
    %c8_78 = arith.constant 8 : index
    %186 = vector.load %arg36[%c0_77, %c8_78] : memref<16x32xf32, #tpu.memory_space<vmem>>, vector<16x8xf32>
    tpu.vector_store %arg36[%c0_77, %c8_78], %185 {strides = array<i32>} : memref<16x32xf32, #tpu.memory_space<vmem>>, vector<16x8xf32>,
    %187 = vector.extract_strided_slice %144 {offsets = [0, 16], sizes = [16, 8], strides = [1, 1]} : vector<16x32xf32> to vector<16x8xf32>
    %188 = vector.extract_strided_slice %145 {offsets = [0, 16], sizes = [16, 8], strides = [1, 1]} : vector<16x32xbf16> to vector<16x8xbf16>
    %189 = arith.truncf %187 : vector<16x8xf32> to vector<16x8xbf16>
    %cst_79 = arith.constant dense<0.000000e+00> : vector<16x16xf32>
    %190 = tpu.matmul %189, %188, %cst_79 {dimension_numbers = #tpu.dot_dimension_numbers<[1], [1], [0], [0], [0, 0, 1, 0], [], []>} : vector<16x8xbf16>, vector<16x8xbf16>, vector<16x16xf32> -> vector<16x16xf32>
    %cst_80 = arith.constant 0.353553385 : f32
    %191 = vector.broadcast %cst_80 : f32 to vector<16x16xf32>
    %192 = arith.mulf %190, %191 : vector<16x16xf32>
    %cst_81 = arith.constant dense<0xFF800000> : vector<16xf32>
    %193 = vector.multi_reduction <maximumf>, %192, %cst_81 [1] : vector<16x16xf32> to vector<16xf32>
    %194 = vector.shape_cast %193 : vector<16xf32> to vector<16x1xf32>
    %195 = vector.broadcast %194 : vector<16x1xf32> to vector<16x16xf32>
    %196 = arith.subf %192, %195 : vector<16x16xf32>
    %197 = math.exp %196 : vector<16x16xf32>
    %cst_82 = arith.constant dense<0.000000e+00> : vector<16xf32>
    %198 = vector.multi_reduction <add>, %197, %cst_82 [1] : vector<16x16xf32> to vector<16xf32>
    %199 = vector.shape_cast %198 : vector<16xf32> to vector<16x1xf32>
    %200 = tpu.reciprocal %199 {approx = true} : vector<16x1xf32> -> vector<16x1xf32>
    %201 = vector.extract_strided_slice %146 {offsets = [0, 16], sizes = [16, 8], strides = [1, 1]} : vector<16x32xbf16> to vector<16x8xbf16>
    %202 = arith.truncf %197 : vector<16x16xf32> to vector<16x16xbf16>
    %cst_83 = arith.constant dense<0.000000e+00> : vector<16x8xf32>
    %203 = tpu.matmul %202, %201, %cst_83 {dimension_numbers = #tpu.dot_dimension_numbers<[1], [0], [0], [1], [0, 0, 1, 1], [], []>} : vector<16x16xbf16>, vector<16x8xbf16>, vector<16x8xf32> -> vector<16x8xf32>
    %204 = vector.broadcast %200 : vector<16x1xf32> to vector<16x8xf32>
    %205 = arith.mulf %203, %204 : vector<16x8xf32>
    %c0_84 = arith.constant 0 : index
    %c16_85 = arith.constant 16 : index
    %206 = vector.load %arg36[%c0_84, %c16_85] : memref<16x32xf32, #tpu.memory_space<vmem>>, vector<16x8xf32>
    tpu.vector_store %arg36[%c0_84, %c16_85], %205 {strides = array<i32>} : memref<16x32xf32, #tpu.memory_space<vmem>>, vector<16x8xf32>,
    %207 = vector.extract_strided_slice %144 {offsets = [0, 24], sizes = [16, 8], strides = [1, 1]} : vector<16x32xf32> to vector<16x8xf32>
    %208 = vector.extract_strided_slice %145 {offsets = [0, 24], sizes = [16, 8], strides = [1, 1]} : vector<16x32xbf16> to vector<16x8xbf16>
    %209 = arith.truncf %207 : vector<16x8xf32> to vector<16x8xbf16>
    %cst_86 = arith.constant dense<0.000000e+00> : vector<16x16xf32>
    %210 = tpu.matmul %209, %208, %cst_86 {dimension_numbers = #tpu.dot_dimension_numbers<[1], [1], [0], [0], [0, 0, 1, 0], [], []>} : vector<16x8xbf16>, vector<16x8xbf16>, vector<16x16xf32> -> vector<16x16xf32>
    %cst_87 = arith.constant 0.353553385 : f32
    %211 = vector.broadcast %cst_87 : f32 to vector<16x16xf32>
    %212 = arith.mulf %210, %211 : vector<16x16xf32>
    %cst_88 = arith.constant dense<0xFF800000> : vector<16xf32>
    %213 = vector.multi_reduction <maximumf>, %212, %cst_88 [1] : vector<16x16xf32> to vector<16xf32>
    %214 = vector.shape_cast %213 : vector<16xf32> to vector<16x1xf32>
    %215 = vector.broadcast %214 : vector<16x1xf32> to vector<16x16xf32>
    %216 = arith.subf %212, %215 : vector<16x16xf32>
    %217 = math.exp %216 : vector<16x16xf32>
    %cst_89 = arith.constant dense<0.000000e+00> : vector<16xf32>
    %218 = vector.multi_reduction <add>, %217, %cst_89 [1] : vector<16x16xf32> to vector<16xf32>
    %219 = vector.shape_cast %218 : vector<16xf32> to vector<16x1xf32>
    %220 = tpu.reciprocal %219 {approx = true} : vector<16x1xf32> -> vector<16x1xf32>
    %221 = vector.extract_strided_slice %146 {offsets = [0, 24], sizes = [16, 8], strides = [1, 1]} : vector<16x32xbf16> to vector<16x8xbf16>
    %222 = arith.truncf %217 : vector<16x16xf32> to vector<16x16xbf16>
    %cst_90 = arith.constant dense<0.000000e+00> : vector<16x8xf32>
    %223 = tpu.matmul %222, %221, %cst_90 {dimension_numbers = #tpu.dot_dimension_numbers<[1], [0], [0], [1], [0, 0, 1, 1], [], []>} : vector<16x16xbf16>, vector<16x8xbf16>, vector<16x8xf32> -> vector<16x8xf32>
    %224 = vector.broadcast %220 : vector<16x1xf32> to vector<16x8xf32>
    %225 = arith.mulf %223, %224 : vector<16x8xf32>
    %c0_91 = arith.constant 0 : index
    %c24_92 = arith.constant 24 : index
    %226 = vector.load %arg36[%c0_91, %c24_92] : memref<16x32xf32, #tpu.memory_space<vmem>>, vector<16x8xf32>
    tpu.vector_store %arg36[%c0_91, %c24_92], %225 {strides = array<i32>} : memref<16x32xf32, #tpu.memory_space<vmem>>, vector<16x8xf32>,
    %c0_93 = arith.constant 0 : index
    %c0_94 = arith.constant 0 : index
    %227 = vector.load %arg36[%c0_93, %c0_94] : memref<16x32xf32, #tpu.memory_space<vmem>>, vector<16x32xf32>
    %c0_95 = arith.constant 0 : index
    %c0_96 = arith.constant 0 : index
    %228 = vector.load %arg21[%c0_95, %c0_96] : memref<32x32xbf16, #tpu.memory_space<vmem>>, vector<32x32xbf16>
    %229 = arith.truncf %227 : vector<16x32xf32> to vector<16x32xbf16>
    %cst_97 = arith.constant dense<0.000000e+00> : vector<16x32xf32>
    %230 = tpu.matmul %229, %228, %cst_97 {dimension_numbers = #tpu.dot_dimension_numbers<[1], [0], [0], [1], [0, 0, 1, 1], [], []>} : vector<16x32xbf16>, vector<32x32xbf16>, vector<16x32xf32> -> vector<16x32xf32>
    %231 = arith.addf %138, %230 : vector<16x32xf32>
    %c0_98 = arith.constant 0 : index
    %c0_99 = arith.constant 0 : index
    %232 = vector.load %arg22[%c0_98, %c0_99] : memref<1x32xf32, #tpu.memory_space<vmem>>, vector<1x32xf32>
    %233 = vector.broadcast %232 : vector<1x32xf32> to vector<16x32xf32>
    %234 = arith.addf %231, %233 : vector<16x32xf32>
    %c0_100 = arith.constant 0 : index
    %c0_101 = arith.constant 0 : index
    %235 = vector.load %arg23[%c0_100, %c0_101] : memref<1x32xf32, #tpu.memory_space<vmem>>, vector<1x32xf32>
    %c0_102 = arith.constant 0 : index
    %c0_103 = arith.constant 0 : index
    %236 = vector.load %arg24[%c0_102, %c0_103] : memref<1x32xf32, #tpu.memory_space<vmem>>, vector<1x32xf32>
    %cst_104 = arith.constant dense<0.000000e+00> : vector<16xf32>
    %237 = vector.multi_reduction <add>, %234, %cst_104 [1] : vector<16x32xf32> to vector<16xf32>
    %238 = vector.shape_cast %237 : vector<16xf32> to vector<16x1xf32>
    %cst_105 = arith.constant 3.200000e+01 : f32
    %239 = vector.broadcast %cst_105 : f32 to vector<16x1xf32>
    %240 = arith.divf %238, %239 : vector<16x1xf32>
    %241 = vector.broadcast %240 : vector<16x1xf32> to vector<16x32xf32>
    %242 = arith.subf %234, %241 : vector<16x32xf32>
    %243 = arith.mulf %242, %242 : vector<16x32xf32>
    %cst_106 = arith.constant dense<0.000000e+00> : vector<16xf32>
    %244 = vector.multi_reduction <add>, %243, %cst_106 [1] : vector<16x32xf32> to vector<16xf32>
    %245 = vector.shape_cast %244 : vector<16xf32> to vector<16x1xf32>
    %cst_107 = arith.constant 3.200000e+01 : f32
    %246 = vector.broadcast %cst_107 : f32 to vector<16x1xf32>
    %247 = arith.divf %245, %246 : vector<16x1xf32>
    %248 = vector.broadcast %240 : vector<16x1xf32> to vector<16x32xf32>
    %249 = arith.subf %234, %248 : vector<16x32xf32>
    %cst_108 = arith.constant 9.99999974E-6 : f32
    %250 = vector.broadcast %cst_108 : f32 to vector<16x1xf32>
    %251 = arith.addf %247, %250 : vector<16x1xf32>
    %252 = math.rsqrt %251 : vector<16x1xf32>
    %253 = vector.broadcast %252 : vector<16x1xf32> to vector<16x32xf32>
    %254 = arith.mulf %249, %253 : vector<16x32xf32>
    %255 = vector.broadcast %235 : vector<1x32xf32> to vector<16x32xf32>
    %256 = arith.mulf %254, %255 : vector<16x32xf32>
    %257 = vector.broadcast %236 : vector<1x32xf32> to vector<16x32xf32>
    %258 = arith.addf %256, %257 : vector<16x32xf32>
    %c0_109 = arith.constant 0 : index
    %c0_110 = arith.constant 0 : index
    %259 = vector.load %arg25[%c0_109, %c0_110] : memref<32x32xbf16, #tpu.memory_space<vmem>>, vector<32x32xbf16>
    %260 = arith.truncf %258 : vector<16x32xf32> to vector<16x32xbf16>
    %cst_111 = arith.constant dense<0.000000e+00> : vector<16x32xf32>
    %261 = tpu.matmul %260, %259, %cst_111 {dimension_numbers = #tpu.dot_dimension_numbers<[1], [0], [0], [1], [0, 0, 1, 1], [], []>} : vector<16x32xbf16>, vector<32x32xbf16>, vector<16x32xf32> -> vector<16x32xf32>
    %c0_112 = arith.constant 0 : index
    %c0_113 = arith.constant 0 : index
    %262 = vector.load %arg26[%c0_112, %c0_113] : memref<1x32xf32, #tpu.memory_space<vmem>>, vector<1x32xf32>
    %263 = vector.broadcast %262 : vector<1x32xf32> to vector<16x32xf32>
    %264 = arith.addf %261, %263 : vector<16x32xf32>
    %cst_114 = arith.constant 5.000000e-01 : f32
    %265 = vector.broadcast %cst_114 : f32 to vector<16x32xf32>
    %266 = arith.mulf %265, %264 : vector<16x32xf32>
    %cst_115 = arith.constant 4.471500e-02 : f32
    %267 = vector.broadcast %cst_115 : f32 to vector<16x32xf32>
    %268 = arith.mulf %267, %264 : vector<16x32xf32>
    %269 = arith.mulf %268, %264 : vector<16x32xf32>
    %270 = arith.mulf %269, %264 : vector<16x32xf32>
    %271 = arith.addf %264, %270 : vector<16x32xf32>
    %cst_116 = arith.constant 0.797884583 : f32
    %272 = vector.broadcast %cst_116 : f32 to vector<16x32xf32>
    %273 = arith.mulf %272, %271 : vector<16x32xf32>
    %274 = math.tanh %273 : vector<16x32xf32>
    %cst_117 = arith.constant 1.000000e+00 : f32
    %275 = vector.broadcast %cst_117 : f32 to vector<16x32xf32>
    %276 = arith.addf %275, %274 : vector<16x32xf32>
    %277 = arith.mulf %266, %276 : vector<16x32xf32>
    %c0_118 = arith.constant 0 : index
    %c0_119 = arith.constant 0 : index
    %278 = vector.load %arg27[%c0_118, %c0_119] : memref<32x32xbf16, #tpu.memory_space<vmem>>, vector<32x32xbf16>
    %279 = arith.truncf %277 : vector<16x32xf32> to vector<16x32xbf16>
    %cst_120 = arith.constant dense<0.000000e+00> : vector<16x32xf32>
    %280 = tpu.matmul %279, %278, %cst_120 {dimension_numbers = #tpu.dot_dimension_numbers<[1], [0], [0], [1], [0, 0, 1, 1], [], []>} : vector<16x32xbf16>, vector<32x32xbf16>, vector<16x32xf32> -> vector<16x32xf32>
    %c0_121 = arith.constant 0 : index
    %c0_122 = arith.constant 0 : index
    %281 = vector.load %arg28[%c0_121, %c0_122] : memref<1x32xf32, #tpu.memory_space<vmem>>, vector<1x32xf32>
    %282 = vector.broadcast %281 : vector<1x32xf32> to vector<16x32xf32>
    %283 = arith.addf %280, %282 : vector<16x32xf32>
    %284 = arith.addf %258, %283 : vector<16x32xf32>
    %c0_123 = arith.constant 0 : index
    %c0_124 = arith.constant 0 : index
    %285 = vector.load %arg29[%c0_123, %c0_124] : memref<1x32xf32, #tpu.memory_space<vmem>>, vector<1x32xf32>
    %c0_125 = arith.constant 0 : index
    %c0_126 = arith.constant 0 : index
    %286 = vector.load %arg30[%c0_125, %c0_126] : memref<1x32xf32, #tpu.memory_space<vmem>>, vector<1x32xf32>
    %cst_127 = arith.constant dense<0.000000e+00> : vector<16xf32>
    %287 = vector.multi_reduction <add>, %284, %cst_127 [1] : vector<16x32xf32> to vector<16xf32>
    %288 = vector.shape_cast %287 : vector<16xf32> to vector<16x1xf32>
    %cst_128 = arith.constant 3.200000e+01 : f32
    %289 = vector.broadcast %cst_128 : f32 to vector<16x1xf32>
    %290 = arith.divf %288, %289 : vector<16x1xf32>
    %291 = vector.broadcast %290 : vector<16x1xf32> to vector<16x32xf32>
    %292 = arith.subf %284, %291 : vector<16x32xf32>
    %293 = arith.mulf %292, %292 : vector<16x32xf32>
    %cst_129 = arith.constant dense<0.000000e+00> : vector<16xf32>
    %294 = vector.multi_reduction <add>, %293, %cst_129 [1] : vector<16x32xf32> to vector<16xf32>
    %295 = vector.shape_cast %294 : vector<16xf32> to vector<16x1xf32>
    %cst_130 = arith.constant 3.200000e+01 : f32
    %296 = vector.broadcast %cst_130 : f32 to vector<16x1xf32>
    %297 = arith.divf %295, %296 : vector<16x1xf32>
    %298 = vector.broadcast %290 : vector<16x1xf32> to vector<16x32xf32>
    %299 = arith.subf %284, %298 : vector<16x32xf32>
    %cst_131 = arith.constant 9.99999974E-6 : f32
    %300 = vector.broadcast %cst_131 : f32 to vector<16x1xf32>
    %301 = arith.addf %297, %300 : vector<16x1xf32>
    %302 = math.rsqrt %301 : vector<16x1xf32>
    %303 = vector.broadcast %302 : vector<16x1xf32> to vector<16x32xf32>
    %304 = arith.mulf %299, %303 : vector<16x32xf32>
    %305 = vector.broadcast %285 : vector<1x32xf32> to vector<16x32xf32>
    %306 = arith.mulf %304, %305 : vector<16x32xf32>
    %307 = vector.broadcast %286 : vector<1x32xf32> to vector<16x32xf32>
    %308 = arith.addf %306, %307 : vector<16x32xf32>
    %c0_132 = arith.constant 0 : index
    %c0_133 = arith.constant 0 : index
    %c0_134 = arith.constant 0 : index
    %309 = vector.load %arg31[%c0_132, %c0_133, %c0_134] : memref<1x16x32xf32, #tpu.memory_space<vmem>>, vector<1x16x32xf32>
    %310 = vector.shape_cast %309 : vector<1x16x32xf32> to vector<16x32xf32>
    %311 = vector.shape_cast %308 : vector<16x32xf32> to vector<1x16x32xf32>
    tpu.vector_store %arg31[%c0_132, %c0_133, %c0_134], %311 {strides = array<i32>} : memref<1x16x32xf32, #tpu.memory_space<vmem>>, vector<1x16x32xf32>,
    return
  }
  func.func @transform_0(%arg0: i32, %arg1: i32) -> (i32, i32, i32) {
    %c0_i32 = arith.constant 0 : i32
    %c0_i32_0 = arith.constant 0 : i32
    %c0_i32_1 = arith.constant 0 : i32
    return %arg0, %c0_i32, %c0_i32_0 : i32, i32, i32
  }
  func.func @transform_1(%arg0: i32, %arg1: i32) -> (i32, i32, i32) {
    %c0_i32 = arith.constant 0 : i32
    %c0_i32_0 = arith.constant 0 : i32
    return %arg0, %arg1, %c0_i32 : i32, i32, i32
  }
  func.func @transform_2(%arg0: i32, %arg1: i32) -> (i32, i32, i32) {
    %c0_i32 = arith.constant 0 : i32
    %c0_i32_0 = arith.constant 0 : i32
    %c0_i32_1 = arith.constant 0 : i32
    return %arg0, %c0_i32, %c0_i32_0 : i32, i32, i32
  }
  func.func @transform_3(%arg0: i32, %arg1: i32) -> (i32, i32) {
    %c0_i32 = arith.constant 0 : i32
    %c0_i32_0 = arith.constant 0 : i32
    %c0_i32_1 = arith.constant 0 : i32
    return %c0_i32, %c0_i32_0 : i32, i32
  }
  func.func @transform_4(%arg0: i32, %arg1: i32) -> (i32, i32) {
    %c0_i32 = arith.constant 0 : i32
    %c0_i32_0 = arith.constant 0 : i32
    %c0_i32_1 = arith.constant 0 : i32
    return %c0_i32, %c0_i32_0 : i32, i32
  }
  func.func @transform_5(%arg0: i32, %arg1: i32) -> (i32, i32) {
    %c0_i32 = arith.constant 0 : i32
    %c0_i32_0 = arith.constant 0 : i32
    %c0_i32_1 = arith.constant 0 : i32
    return %c0_i32, %c0_i32_0 : i32, i32
  }
  func.func @transform_6(%arg0: i32, %arg1: i32) -> (i32, i32) {
    %c0_i32 = arith.constant 0 : i32
    %c0_i32_0 = arith.constant 0 : i32
    %c0_i32_1 = arith.constant 0 : i32
    return %c0_i32, %c0_i32_0 : i32, i32
  }
  func.func @transform_7(%arg0: i32, %arg1: i32) -> (i32, i32) {
    %c0_i32 = arith.constant 0 : i32
    %c0_i32_0 = arith.constant 0 : i32
    %c0_i32_1 = arith.constant 0 : i32
    return %c0_i32, %c0_i32_0 : i32, i32
  }
  func.func @transform_8(%arg0: i32, %arg1: i32) -> (i32, i32) {
    %c0_i32 = arith.constant 0 : i32
    %c0_i32_0 = arith.constant 0 : i32
    %c0_i32_1 = arith.constant 0 : i32
    return %c0_i32, %c0_i32_0 : i32, i32
  }
  func.func @transform_9(%arg0: i32, %arg1: i32) -> (i32, i32) {
    %c0_i32 = arith.constant 0 : i32
    %c0_i32_0 = arith.constant 0 : i32
    %c0_i32_1 = arith.constant 0 : i32
    return %c0_i32, %c0_i32_0 : i32, i32
  }
  func.func @transform_10(%arg0: i32, %arg1: i32) -> (i32, i32) {
    %c0_i32 = arith.constant 0 : i32
    %c0_i32_0 = arith.constant 0 : i32
    %c0_i32_1 = arith.constant 0 : i32
    return %c0_i32, %c0_i32_0 : i32, i32
  }
  func.func @transform_11(%arg0: i32, %arg1: i32) -> (i32, i32) {
    %c0_i32 = arith.constant 0 : i32
    %c0_i32_0 = arith.constant 0 : i32
    %c0_i32_1 = arith.constant 0 : i32
    return %c0_i32, %c0_i32_0 : i32, i32
  }
  func.func @transform_12(%arg0: i32, %arg1: i32) -> (i32, i32) {
    %c0_i32 = arith.constant 0 : i32
    %c0_i32_0 = arith.constant 0 : i32
    %c0_i32_1 = arith.constant 0 : i32
    return %c0_i32, %c0_i32_0 : i32, i32
  }
  func.func @transform_13(%arg0: i32, %arg1: i32) -> (i32, i32) {
    %c0_i32 = arith.constant 0 : i32
    %c0_i32_0 = arith.constant 0 : i32
    %c0_i32_1 = arith.constant 0 : i32
    return %c0_i32, %c0_i32_0 : i32, i32
  }
  func.func @transform_14(%arg0: i32, %arg1: i32) -> (i32, i32) {
    %c0_i32 = arith.constant 0 : i32
    %c0_i32_0 = arith.constant 0 : i32
    %c0_i32_1 = arith.constant 0 : i32
    return %c0_i32, %c0_i32_0 : i32, i32
  }
  func.func @transform_15(%arg0: i32, %arg1: i32) -> (i32, i32) {
    %c0_i32 = arith.constant 0 : i32
    %c0_i32_0 = arith.constant 0 : i32
    %c0_i32_1 = arith.constant 0 : i32
    return %c0_i32, %c0_i32_0 : i32, i32
  }
  func.func @transform_16(%arg0: i32, %arg1: i32) -> (i32, i32) {
    %c0_i32 = arith.constant 0 : i32
    %c0_i32_0 = arith.constant 0 : i32
    %c0_i32_1 = arith.constant 0 : i32
    return %c0_i32, %c0_i32_0 : i32, i32
  }
  func.func @transform_17(%arg0: i32, %arg1: i32) -> (i32, i32) {
    %c0_i32 = arith.constant 0 : i32
    %c0_i32_0 = arith.constant 0 : i32
    %c0_i32_1 = arith.constant 0 : i32
    return %c0_i32, %c0_i32_0 : i32, i32
  }
  func.func @transform_18(%arg0: i32, %arg1: i32) -> (i32, i32) {
    %c0_i32 = arith.constant 0 : i32
    %c0_i32_0 = arith.constant 0 : i32
    %c0_i32_1 = arith.constant 0 : i32
    return %c0_i32, %c0_i32_0 : i32, i32
  }
  func.func @transform_19(%arg0: i32, %arg1: i32) -> (i32, i32) {
    %c0_i32 = arith.constant 0 : i32
    %c0_i32_0 = arith.constant 0 : i32
    %c0_i32_1 = arith.constant 0 : i32
    return %c0_i32, %c0_i32_0 : i32, i32
  }
  func.func @transform_20(%arg0: i32, %arg1: i32) -> (i32, i32) {
    %c0_i32 = arith.constant 0 : i32
    %c0_i32_0 = arith.constant 0 : i32
    %c0_i32_1 = arith.constant 0 : i32
    return %c0_i32, %c0_i32_0 : i32, i32
  }
  func.func @transform_21(%arg0: i32, %arg1: i32) -> (i32, i32) {
    %c0_i32 = arith.constant 0 : i32
    %c0_i32_0 = arith.constant 0 : i32
    %c0_i32_1 = arith.constant 0 : i32
    return %c0_i32, %c0_i32_0 : i32, i32
  }
  func.func @transform_22(%arg0: i32, %arg1: i32) -> (i32, i32) {
    %c0_i32 = arith.constant 0 : i32
    %c0_i32_0 = arith.constant 0 : i32
    %c0_i32_1 = arith.constant 0 : i32
    return %c0_i32, %c0_i32_0 : i32, i32
  }
  func.func @transform_23(%arg0: i32, %arg1: i32) -> (i32, i32) {
    %c0_i32 = arith.constant 0 : i32
    %c0_i32_0 = arith.constant 0 : i32
    %c0_i32_1 = arith.constant 0 : i32
    return %c0_i32, %c0_i32_0 : i32, i32
  }
  func.func @transform_24(%arg0: i32, %arg1: i32) -> (i32, i32) {
    %c0_i32 = arith.constant 0 : i32
    %c0_i32_0 = arith.constant 0 : i32
    %c0_i32_1 = arith.constant 0 : i32
    return %c0_i32, %c0_i32_0 : i32, i32
  }
  func.func @transform_25(%arg0: i32, %arg1: i32) -> (i32, i32) {
    %c0_i32 = arith.constant 0 : i32
    %c0_i32_0 = arith.constant 0 : i32
    %c0_i32_1 = arith.constant 0 : i32
    return %c0_i32, %c0_i32_0 : i32, i32
  }
  func.func @transform_26(%arg0: i32, %arg1: i32) -> (i32, i32) {
    %c0_i32 = arith.constant 0 : i32
    %c0_i32_0 = arith.constant 0 : i32
    %c0_i32_1 = arith.constant 0 : i32
    return %c0_i32, %c0_i32_0 : i32, i32
  }
  func.func @transform_27(%arg0: i32, %arg1: i32) -> (i32, i32) {
    %c0_i32 = arith.constant 0 : i32
    %c0_i32_0 = arith.constant 0 : i32
    %c0_i32_1 = arith.constant 0 : i32
    return %c0_i32, %c0_i32_0 : i32, i32
  }
  func.func @transform_28(%arg0: i32, %arg1: i32) -> (i32, i32) {
    %c0_i32 = arith.constant 0 : i32
    %c0_i32_0 = arith.constant 0 : i32
    %c0_i32_1 = arith.constant 0 : i32
    return %c0_i32, %c0_i32_0 : i32, i32
  }
  func.func @transform_29(%arg0: i32, %arg1: i32) -> (i32, i32, i32) {
    %c0_i32 = arith.constant 0 : i32
    %c0_i32_0 = arith.constant 0 : i32
    return %arg0, %arg1, %c0_i32 : i32, i32, i32
  }
}

module attributes {stable_mosaic.version = 11 : i64} {
  func.func @_ln_proj_kernel(%arg0: i32, %arg1: i32, %arg2: memref<1x16x32xf32, #tpu.memory_space<vmem>>, %arg3: memref<1x32xf32, #tpu.memory_space<vmem>>, %arg4: memref<1x32xf32, #tpu.memory_space<vmem>>, %arg5: memref<32x128xbf16, #tpu.memory_space<vmem>>, %arg6: memref<1x128xf32, #tpu.memory_space<vmem>>, %arg7: memref<1x16x128xf32, #tpu.memory_space<vmem>>) attributes {dimension_semantics = [#tpu.dimension_semantics<parallel>, #tpu.dimension_semantics<parallel>], iteration_bounds = array<i64: 2, 1>, scalar_prefetch = 0 : i64, scratch_operands = 0 : i64, tpu.core_type = #tpu.core_type<tc>, window_params = [{transform_indices = @transform_0, window_bounds = array<i64: 1, 16, 32>}, {pipeline_mode = #tpu.pipeline_mode<synchronous>, transform_indices = @transform_1, window_bounds = array<i64: 1, 32>}, {pipeline_mode = #tpu.pipeline_mode<synchronous>, transform_indices = @transform_2, window_bounds = array<i64: 1, 32>}, {pipeline_mode = #tpu.pipeline_mode<synchronous>, transform_indices = @transform_3, window_bounds = array<i64: 32, 128>}, {pipeline_mode = #tpu.pipeline_mode<synchronous>, transform_indices = @transform_4, window_bounds = array<i64: 1, 128>}, {transform_indices = @transform_5, window_bounds = array<i64: 1, 16, 128>}]} {
    %c0 = arith.constant 0 : index
    %c0_0 = arith.constant 0 : index
    %c0_1 = arith.constant 0 : index
    %0 = vector.load %arg2[%c0, %c0_0, %c0_1] : memref<1x16x32xf32, #tpu.memory_space<vmem>>, vector<1x16x32xf32>
    %1 = vector.shape_cast %0 : vector<1x16x32xf32> to vector<16x32xf32>
    %c0_2 = arith.constant 0 : index
    %c0_3 = arith.constant 0 : index
    %2 = vector.load %arg3[%c0_2, %c0_3] : memref<1x32xf32, #tpu.memory_space<vmem>>, vector<1x32xf32>
    %c0_4 = arith.constant 0 : index
    %c0_5 = arith.constant 0 : index
    %3 = vector.load %arg4[%c0_4, %c0_5] : memref<1x32xf32, #tpu.memory_space<vmem>>, vector<1x32xf32>
    %cst = arith.constant dense<0.000000e+00> : vector<16xf32>
    %4 = vector.multi_reduction <add>, %1, %cst [1] : vector<16x32xf32> to vector<16xf32>
    %5 = vector.shape_cast %4 : vector<16xf32> to vector<16x1xf32>
    %cst_6 = arith.constant 3.200000e+01 : f32
    %6 = vector.broadcast %cst_6 : f32 to vector<16x1xf32>
    %7 = arith.divf %5, %6 : vector<16x1xf32>
    %8 = vector.broadcast %7 : vector<16x1xf32> to vector<16x32xf32>
    %9 = arith.subf %1, %8 : vector<16x32xf32>
    %10 = arith.mulf %9, %9 : vector<16x32xf32>
    %cst_7 = arith.constant dense<0.000000e+00> : vector<16xf32>
    %11 = vector.multi_reduction <add>, %10, %cst_7 [1] : vector<16x32xf32> to vector<16xf32>
    %12 = vector.shape_cast %11 : vector<16xf32> to vector<16x1xf32>
    %cst_8 = arith.constant 3.200000e+01 : f32
    %13 = vector.broadcast %cst_8 : f32 to vector<16x1xf32>
    %14 = arith.divf %12, %13 : vector<16x1xf32>
    %15 = vector.broadcast %7 : vector<16x1xf32> to vector<16x32xf32>
    %16 = arith.subf %1, %15 : vector<16x32xf32>
    %cst_9 = arith.constant 9.99999974E-6 : f32
    %17 = vector.broadcast %cst_9 : f32 to vector<16x1xf32>
    %18 = arith.addf %14, %17 : vector<16x1xf32>
    %19 = math.rsqrt %18 : vector<16x1xf32>
    %20 = vector.broadcast %19 : vector<16x1xf32> to vector<16x32xf32>
    %21 = arith.mulf %16, %20 : vector<16x32xf32>
    %22 = vector.broadcast %2 : vector<1x32xf32> to vector<16x32xf32>
    %23 = arith.mulf %21, %22 : vector<16x32xf32>
    %24 = vector.broadcast %3 : vector<1x32xf32> to vector<16x32xf32>
    %25 = arith.addf %23, %24 : vector<16x32xf32>
    %c0_10 = arith.constant 0 : index
    %c0_11 = arith.constant 0 : index
    %26 = vector.load %arg5[%c0_10, %c0_11] : memref<32x128xbf16, #tpu.memory_space<vmem>>, vector<32x128xbf16>
    %27 = arith.truncf %25 : vector<16x32xf32> to vector<16x32xbf16>
    %cst_12 = arith.constant dense<0.000000e+00> : vector<16x128xf32>
    %28 = tpu.matmul %27, %26, %cst_12 {dimension_numbers = #tpu.dot_dimension_numbers<[1], [0], [0], [1], [0, 0, 1, 1], [], []>} : vector<16x32xbf16>, vector<32x128xbf16>, vector<16x128xf32> -> vector<16x128xf32>
    %c0_13 = arith.constant 0 : index
    %c0_14 = arith.constant 0 : index
    %29 = vector.load %arg6[%c0_13, %c0_14] : memref<1x128xf32, #tpu.memory_space<vmem>>, vector<1x128xf32>
    %30 = vector.broadcast %29 : vector<1x128xf32> to vector<16x128xf32>
    %31 = arith.addf %28, %30 : vector<16x128xf32>
    %c0_15 = arith.constant 0 : index
    %c0_16 = arith.constant 0 : index
    %c0_17 = arith.constant 0 : index
    %32 = vector.load %arg7[%c0_15, %c0_16, %c0_17] : memref<1x16x128xf32, #tpu.memory_space<vmem>>, vector<1x16x128xf32>
    %33 = vector.shape_cast %32 : vector<1x16x128xf32> to vector<16x128xf32>
    %34 = vector.shape_cast %31 : vector<16x128xf32> to vector<1x16x128xf32>
    tpu.vector_store %arg7[%c0_15, %c0_16, %c0_17], %34 {strides = array<i32>} : memref<1x16x128xf32, #tpu.memory_space<vmem>>, vector<1x16x128xf32>,
    return
  }
  func.func @transform_0(%arg0: i32, %arg1: i32) -> (i32, i32, i32) {
    %c0_i32 = arith.constant 0 : i32
    %c0_i32_0 = arith.constant 0 : i32
    return %arg0, %arg1, %c0_i32 : i32, i32, i32
  }
  func.func @transform_1(%arg0: i32, %arg1: i32) -> (i32, i32) {
    %c0_i32 = arith.constant 0 : i32
    %c0_i32_0 = arith.constant 0 : i32
    %c0_i32_1 = arith.constant 0 : i32
    return %c0_i32, %c0_i32_0 : i32, i32
  }
  func.func @transform_2(%arg0: i32, %arg1: i32) -> (i32, i32) {
    %c0_i32 = arith.constant 0 : i32
    %c0_i32_0 = arith.constant 0 : i32
    %c0_i32_1 = arith.constant 0 : i32
    return %c0_i32, %c0_i32_0 : i32, i32
  }
  func.func @transform_3(%arg0: i32, %arg1: i32) -> (i32, i32) {
    %c0_i32 = arith.constant 0 : i32
    %c0_i32_0 = arith.constant 0 : i32
    %c0_i32_1 = arith.constant 0 : i32
    return %c0_i32, %c0_i32_0 : i32, i32
  }
  func.func @transform_4(%arg0: i32, %arg1: i32) -> (i32, i32) {
    %c0_i32 = arith.constant 0 : i32
    %c0_i32_0 = arith.constant 0 : i32
    %c0_i32_1 = arith.constant 0 : i32
    return %c0_i32, %c0_i32_0 : i32, i32
  }
  func.func @transform_5(%arg0: i32, %arg1: i32) -> (i32, i32, i32) {
    %c0_i32 = arith.constant 0 : i32
    %c0_i32_0 = arith.constant 0 : i32
    return %arg0, %arg1, %c0_i32 : i32, i32, i32
  }
}

</mosaic_0001>

<llo_original>
// kernel: denseformer_forward.6
$region0: #{denseformer_forward.6}
  #allocation0 [shape = 'u32[]', space=smem, size = 0x4, offset = 0x4, fixed_abs, tag = 'smem constant byte address 0x4 - core index']
  #allocation1 [shape = 'u32[144,128]{1,0:T(1,128)}', space=vmem, size = 0x12000, scoped, tag = 'internal scratch']
  %s0 = inlined_call_operand.vmem [shape: f32[2,16,12], index: 0, kind: input, shape index: {}]
  %s1 = inlined_call_operand.vmem [shape: f32[2,16,4], index: 1, kind: input, shape index: {}]
  %s2 = inlined_call_operand.vmem [shape: bf16[12,32], index: 2, kind: input, shape index: {}]
  %s3 = inlined_call_operand.vmem [shape: bf16[4,32], index: 3, kind: input, shape index: {}]
  %s4 = inlined_call_operand.vmem [shape: f32[16,32], index: 4, kind: input, shape index: {}]
  %s5 = inlined_call_operand.vmem [shape: f32[2,16,32], index: 5, kind: output, shape index: {}]
  %s6 = sld [smem:[#allocation0]]
  $region53: #{denseformer_forward.6} parent=0
    _
  %s8 = ssub.s32 1, %s6
  %s9 = scalar_select 0, %s8, %s6
  loop: start=0, step=1, limit=4
  $region2: #{denseformer_forward.6} parent=0 // loop_pre_header
    _
  $region3: #{denseformer_forward.6} parent=0 // loop_header
    %s11 = sphi 0, %s15
    %p12 = scmp.ge.s32.totalorder %s11, 4
    %s18 = sphi 0, %s30
    %s19 = sphi 0, %s26
    %s20 = sphi 0, %s18
    %s21 = sphi 0, %s19
    %s22 = sphi 0, %s20
    %s23 = sphi 0, %s21
    %s35 = sphi 0, %s37
    %s38 = sphi 0, %s35
    %s39 = sphi 0, %s38
    %s55 = sphi 0, %s39
    %s63 = sphi 0, %s65
    %s66 = sphi 0, %s63
    %s67 = sphi 0, %s66
    %s83 = sphi 0, %s67
    %s87 = sphi 0, %s87
    %s89 = sphi 0, %s87
    %s90 = sphi 0, %s89
    %s104 = sphi 0, %s90
    %s108 = sphi 0, %s108
    %s110 = sphi 0, %s108
    %s111 = sphi 0, %s110
    %s125 = sphi 0, %s111
    %s131 = sphi 0, %s133
    %s134 = sphi 0, %s131
    %s135 = sphi 0, %s134
    %s151 = sphi 0, %s135
    %s159 = sphi 0, %s161
    %s162 = sphi 0, %s159
    %s163 = sphi 0, %s162
    %s179 = sphi 0, %s163
  $region4: #{denseformer_forward.6} parent=0 // loop_header_branch
    %14 = sbr.rel (%p12) target = $region8
  $region5: #{denseformer_forward.6} parent=0 // loop_body
    %s16 = ssub.s32 %s11, 1
    %s17 = ssub.s32 %s11, 2
    %s24 = sadd.s32 1, %s19
    %p25 = scmp.ge.s32.totalorder %s24, 1
    %s26 = scalar_select %p25, 0, %s24
    %s27 = sadd.s32 1, %s18
    %s28 = scalar_select %p25, %s27, %s18
    %p29 = scmp.ge.s32.totalorder %s28, 2
    %s30 = scalar_select %p29, 0, %s28
    %s31 = ssub.s32 %s18, %s30
    %s32 = ssub.s32 %s19, %s26
    %s33 = sor.u32 %s31, %s32
    %p34 = scmp.eq.s32.totalorder %s33, 0
    %s36 = sadd.s32 %s35, 1
    %s37 = scalar_select %p34, %s35, %s36
    %p40 = pneg %p34
    %p41 = scmp.eq.s32.totalorder %s11, 1
    %p42 = por %p40, %p41
    %p43 = scmp.ne.s32.totalorder %s35, %s38
    %p44 = scmp.eq.s32.totalorder %s11, 0
    %p45 = por %p43, %p44
    %p46 = scmp.ne.s32.totalorder %s35, %s38
    %p47 = scmp.eq.s32.totalorder %s16, 1
    %p48 = por %p46, %p47
    %p49 = scmp.ne.s32.totalorder %s38, %s39
    %p50 = scmp.eq.s32.totalorder %s16, 0
    %p51 = por %p49, %p50
    %p52 = scmp.ne.s32.totalorder %s38, %s39
    %p53 = scmp.eq.s32.totalorder %s17, 1
    %p54 = por %p52, %p53
    %p56 = scmp.ne.s32.totalorder %s39, %s55
    %p57 = scmp.eq.s32.totalorder %s17, 0
    %p58 = por %p56, %p57
    %s59 = ssub.s32 %s18, %s30
    %s60 = ssub.s32 %s19, %s26
    %s61 = sor.u32 %s59, %s60
    %p62 = scmp.eq.s32.totalorder %s61, 0
    %s64 = sadd.s32 %s63, 1
    %s65 = scalar_select %p62, %s63, %s64
    %p68 = pneg %p62
    %p69 = scmp.eq.s32.totalorder %s11, 1
    %p70 = por %p68, %p69
    %p71 = scmp.ne.s32.totalorder %s63, %s66
    %p72 = scmp.eq.s32.totalorder %s11, 0
    %p73 = por %p71, %p72
    %p74 = scmp.ne.s32.totalorder %s63, %s66
    %p75 = scmp.eq.s32.totalorder %s16, 1
    %p76 = por %p74, %p75
    %p77 = scmp.ne.s32.totalorder %s66, %s67
    %p78 = scmp.eq.s32.totalorder %s16, 0
    %p79 = por %p77, %p78
    %p80 = scmp.ne.s32.totalorder %s66, %s67
    %p81 = scmp.eq.s32.totalorder %s17, 1
    %p82 = por %p80, %p81
    %p84 = scmp.ne.s32.totalorder %s67, %s83
    %p85 = scmp.eq.s32.totalorder %s17, 0
    %p86 = por %p84, %p85
    %s88 = sadd.s32 %s87, 1
    %p91 = scmp.eq.s32.totalorder %s11, 1
    %p92 = scmp.ne.s32.totalorder %s87, %s89
    %p93 = scmp.eq.s32.totalorder %s11, 0
    %p94 = por %p92, %p93
    %p95 = scmp.ne.s32.totalorder %s87, %s89
    %p96 = scmp.eq.s32.totalorder %s16, 1
    %p97 = por %p95, %p96
    %p98 = scmp.ne.s32.totalorder %s89, %s90
    %p99 = scmp.eq.s32.totalorder %s16, 0
    %p100 = por %p98, %p99
    %p101 = scmp.ne.s32.totalorder %s89, %s90
    %p102 = scmp.eq.s32.totalorder %s17, 1
    %p103 = por %p101, %p102
    %p105 = scmp.ne.s32.totalorder %s90, %s104
    %p106 = scmp.eq.s32.totalorder %s17, 0
    %p107 = por %p105, %p106
    %s109 = sadd.s32 %s108, 1
    %p112 = scmp.eq.s32.totalorder %s11, 1
    %p113 = scmp.ne.s32.totalorder %s108, %s110
    %p114 = scmp.eq.s32.totalorder %s11, 0
    %p115 = por %p113, %p114
    %p116 = scmp.ne.s32.totalorder %s108, %s110
    %p117 = scmp.eq.s32.totalorder %s16, 1
    %p118 = por %p116, %p117
    %p119 = scmp.ne.s32.totalorder %s110, %s111
    %p120 = scmp.eq.s32.totalorder %s16, 0
    %p121 = por %p119, %p120
    %p122 = scmp.ne.s32.totalorder %s110, %s111
    %p123 = scmp.eq.s32.totalorder %s17, 1
    %p124 = por %p122, %p123
    %p126 = scmp.ne.s32.totalorder %s111, %s125
    %p127 = scmp.eq.s32.totalorder %s17, 0
    %p128 = por %p126, %p127
    %s129 = ssub.s32 %s19, %s26
    %p130 = scmp.eq.s32.totalorder %s129, 0
    %s132 = sadd.s32 %s131, 1
    %s133 = scalar_select %p130, %s131, %s132
    %p136 = pneg %p130
    %p137 = scmp.eq.s32.totalorder %s11, 1
    %p138 = por %p136, %p137
    %p139 = scmp.ne.s32.totalorder %s131, %s134
    %p140 = scmp.eq.s32.totalorder %s11, 0
    %p141 = por %p139, %p140
    %p142 = scmp.ne.s32.totalorder %s131, %s134
    %p143 = scmp.eq.s32.totalorder %s16, 1
    %p144 = por %p142, %p143
    %p145 = scmp.ne.s32.totalorder %s134, %s135
    %p146 = scmp.eq.s32.totalorder %s16, 0
    %p147 = por %p145, %p146
    %p148 = scmp.ne.s32.totalorder %s134, %s135
    %p149 = scmp.eq.s32.totalorder %s17, 1
    %p150 = por %p148, %p149
    %p152 = scmp.ne.s32.totalorder %s135, %s151
    %p153 = scmp.eq.s32.totalorder %s17, 0
    %p154 = por %p152, %p153
    %s155 = ssub.s32 %s18, %s30
    %s156 = ssub.s32 %s19, %s26
    %s157 = sor.u32 %s155, %s156
    %p158 = scmp.eq.s32.totalorder %s157, 0
    %s160 = sadd.s32 %s159, 1
    %s161 = scalar_select %p158, %s159, %s160
    %p164 = pneg %p158
    %p165 = scmp.eq.s32.totalorder %s11, 1
    %p166 = por %p164, %p165
    %p167 = scmp.ne.s32.totalorder %s159, %s162
    %p168 = scmp.eq.s32.totalorder %s11, 0
    %p169 = por %p167, %p168
    %p170 = scmp.ne.s32.totalorder %s159, %s162
    %p171 = scmp.eq.s32.totalorder %s16, 1
    %p172 = por %p170, %p171
    %p173 = scmp.ne.s32.totalorder %s162, %s163
    %p174 = scmp.eq.s32.totalorder %s16, 0
    %p175 = por %p173, %p174
    %p176 = scmp.ne.s32.totalorder %s162, %s163
    %p177 = scmp.eq.s32.totalorder %s17, 1
    %p178 = por %p176, %p177
    %p180 = scmp.ne.s32.totalorder %s163, %s179
    %p181 = scmp.eq.s32.totalorder %s17, 0
    %p182 = por %p180, %p181
    %p183 = scmp.le.s32.totalorder 1, %s11
    %p184 = scmp.lt.s32.totalorder %s11, 3
    %p185 = pnand %p183, %p184
    %p186 = pneg %p185
    // Predicated region
    $region9: #{denseformer_forward.6} parent=5 // pred_check
      _
    $region10: #{denseformer_forward.6} parent=5 // pred_check_branch
      %188 = sbr.rel (%p185) target = $region12
    $region11: #{denseformer_forward.6} parent=5 // pred_region
      %s189 = ssub.s32 %s11, 1
      // Predicated region
      $region13: #{denseformer_forward.6} parent=11 // pred_check
        %p190 = pneg %p100
      $region14: #{denseformer_forward.6} parent=11 // pred_check_branch
        %192 = sbr.rel (%p190) target = $region16
      $region15: #{denseformer_forward.6} parent=11 // pred_region
        _
      $region16: #{denseformer_forward.6} parent=11 // pred_fallthru
        _
      // Predicated region
      $region17: #{denseformer_forward.6} parent=11 // pred_check
        %p193 = pneg %p121
      $region18: #{denseformer_forward.6} parent=11 // pred_check_branch
        %195 = sbr.rel (%p193) target = $region20
      $region19: #{denseformer_forward.6} parent=11 // pred_region
        _
      $region20: #{denseformer_forward.6} parent=11 // pred_fallthru
        _
      // Predicated region
      $region21: #{denseformer_forward.6} parent=11 // pred_check
        %p196 = pneg %p147
      $region22: #{denseformer_forward.6} parent=11 // pred_check_branch
        %198 = sbr.rel (%p196) target = $region24
      $region23: #{denseformer_forward.6} parent=11 // pred_region
        %s199 = smul.u32 2, %s21
        %p200 = scmp.lt.s32.totalorder %s199, 1
        %s201 = scalar_select %p200, %s199, 1
        %s202 = smul.addr %s201, 8
        %s203 = scalar_lea.vmem %s4, %s202
        %s204 = smul.u32 2, %s21
      $region24: #{denseformer_forward.6} parent=11 // pred_fallthru
        _
    $region12: #{denseformer_forward.6} parent=5 // pred_fallthru
      _
    %p205 = scmp.lt.s32.totalorder %s11, 2
    // Predicated region
    $region25: #{denseformer_forward.6} parent=5 // pred_check
      %p206 = pneg %p205
    $region26: #{denseformer_forward.6} parent=5 // pred_check_branch
      %208 = sbr.rel (%p206) target = $region28
    $region27: #{denseformer_forward.6} parent=5 // pred_region
      // Predicated region
      $region29: #{denseformer_forward.6} parent=27 // pred_check
        %p209 = pneg %p45
      $region30: #{denseformer_forward.6} parent=27 // pred_check_branch
        %211 = sbr.rel (%p209) target = $region32
      $region31: #{denseformer_forward.6} parent=27 // pred_region
        %s212 = smul.u32 2, %s19
        %p213 = scmp.lt.s32.totalorder %s18, 1
        %s214 = scalar_select %p213, %s18, 1
        %p215 = scmp.lt.s32.totalorder %s212, 1
        %s216 = scalar_select %p215, %s212, 1
        %s217 = smul.addr %s214, 2
        %s218 = sadd.s32 %s216, %s217
        %s219 = smul.addr %s218, 8
        %s220 = scalar_lea.vmem %s0, %s219
        %s221 = smul.u32 2, %s19
      $region32: #{denseformer_forward.6} parent=27 // pred_fallthru
        _
      // Predicated region
      $region33: #{denseformer_forward.6} parent=27 // pred_check
        %p222 = pneg %p73
      $region34: #{denseformer_forward.6} parent=27 // pred_check_branch
        %224 = sbr.rel (%p222) target = $region36
      $region35: #{denseformer_forward.6} parent=27 // pred_region
        %s225 = smul.u32 2, %s19
        %p226 = scmp.lt.s32.totalorder %s18, 1
        %s227 = scalar_select %p226, %s18, 1
        %p228 = scmp.lt.s32.totalorder %s225, 1
        %s229 = scalar_select %p228, %s225, 1
        %s230 = smul.addr %s227, 2
        %s231 = sadd.s32 %s229, %s230
        %s232 = smul.addr %s231, 8
        %s233 = scalar_lea.vmem %s1, %s232
        %s234 = smul.u32 2, %s19
      $region36: #{denseformer_forward.6} parent=27 // pred_fallthru
        _
    $region28: #{denseformer_forward.6} parent=5 // pred_fallthru
      _
    %p235 = scmp.le.s32.totalorder 1, %s11
    %p236 = scmp.lt.s32.totalorder %s11, 3
    %p237 = pnand %p235, %p236
    %p238 = pneg %p237
    // Predicated region
    $region37: #{denseformer_forward.6} parent=5 // pred_check
      _
    $region38: #{denseformer_forward.6} parent=5 // pred_check_branch
      %240 = sbr.rel (%p237) target = $region40
    $region39: #{denseformer_forward.6} parent=5 // pred_region
      %s241 = ssub.s32 %s11, 1
      %s242 = smul.u32 2, %s21
      %p243 = scmp.lt.s32.totalorder %s20, 1
      %s244 = scalar_select %p243, %s20, 1
      %p245 = scmp.lt.s32.totalorder %s242, 1
      %s246 = scalar_select %p245, %s242, 1
      %s247 = smul.addr %s244, 2
      %s248 = sadd.s32 %s246, %s247
      %s249 = smul.addr %s248, 8
      %s250 = scalar_lea.vmem %s0, %s249
      %p251 = pneg %p51
      %p252 = pneg %p48
      %s253 = smul.u32 2, %s21
      %p254 = scmp.lt.s32.totalorder %s20, 1
      %s255 = scalar_select %p254, %s20, 1
      %p256 = scmp.lt.s32.totalorder %s253, 1
      %s257 = scalar_select %p256, %s253, 1
      %s258 = smul.addr %s255, 2
      %s259 = sadd.s32 %s257, %s258
      %s260 = smul.addr %s259, 8
      %s261 = scalar_lea.vmem %s1, %s260
      %p262 = pneg %p79
      %p263 = pneg %p76
      %p264 = pneg %p100
      %p265 = pneg %p97
      %p266 = pneg %p121
      %p267 = pneg %p118
      %s268 = smul.u32 2, %s21
      %p269 = scmp.lt.s32.totalorder %s268, 1
      %s270 = scalar_select %p269, %s268, 1
      %s271 = smul.addr %s270, 8
      %s272 = scalar_lea.vmem %s4, %s271
      %p273 = pneg %p147
      %p274 = pneg %p144
      %p275 = pneg %p175
      %p276 = pneg %p172
      %s277 = smul.u32 2, %s21
      %p278 = scmp.lt.s32.totalorder %s20, 1
      %s279 = scalar_select %p278, %s20, 1
      %p280 = scmp.lt.s32.totalorder %s277, 1
      %s281 = scalar_select %p280, %s277, 1
      %s282 = smul.addr %s279, 2
      %s283 = sadd.s32 %s281, %s282
      %s284 = smul.addr %s283, 8
      %s285 = scalar_lea.vmem %s5, %s284
      %s286 = smul.u32 2, %s21
      %p287 = scmp.lt.s32.totalorder %s20, 1
      %s288 = scalar_select %p287, %s20, 1
      %p289 = scmp.lt.s32.totalorder %s286, 1
      %s290 = scalar_select %p289, %s286, 1
      %s291 = smul.addr %s288, 2
      %s292 = sadd.s32 %s290, %s291
      %s293 = smul.addr %s292, 8
      %s294 = scalar_lea.vmem %s0, %s293
      %s295 = smul.u32 2, %s21
      %s296 = smul.u32 2, %s21
      %p297 = scmp.lt.s32.totalorder %s20, 1
      %s298 = scalar_select %p297, %s20, 1
      %p299 = scmp.lt.s32.totalorder %s296, 1
      %s300 = scalar_select %p299, %s296, 1
      %s301 = smul.addr %s298, 2
      %s302 = sadd.s32 %s300, %s301
      %s303 = smul.addr %s302, 8
      %s304 = scalar_lea.vmem %s1, %s303
      %s305 = smul.u32 2, %s21
      %s306 = smul.u32 2, %s21
      %p307 = scmp.lt.s32.totalorder %s306, 1
      %s308 = scalar_select %p307, %s306, 1
      %s309 = smul.addr %s308, 8
      %s310 = scalar_lea.vmem %s4, %s309
      %s311 = smul.u32 2, %s21
      %s312 = smul.u32 2, %s21
      %p313 = scmp.lt.s32.totalorder %s20, 1
      %s314 = scalar_select %p313, %s20, 1
      %p315 = scmp.lt.s32.totalorder %s312, 1
      %s316 = scalar_select %p315, %s312, 1
      %s317 = smul.addr %s314, 2
      %s318 = sadd.s32 %s316, %s317
      %s319 = smul.addr %s318, 8
      %s320 = scalar_lea.vmem %s5, %s319
      %s321 = smul.u32 2, %s21
      %v323 = vld [vmem:[%s294] sm:$0xff]
      %v324 = vld [vmem:[%s294 + $0x8] sm:$0xff]
      %v325 = vld [vmem:[%s2] sm:$0xf]
      %v326 = vld [vmem:[%s2 + $0x4] sm:$0x3]
      %v327 = vpack.c.bf16 %v324, %v323
      %v328 = vld [vmem:[%s304] sm:$0xff]
      %v329 = vld [vmem:[%s304 + $0x8] sm:$0xff]
      %v330 = vld [vmem:[%s3] sm:$0x3]
      %v331 = vpack.c.bf16 %v329, %v328
      %vm332 = vcmask 31744
      %v334 = vsel %vm332, %v331, 0
      %vm336 = vcmask 1041408
      %v338 = vsel %vm336, %v330, 0
      %340 = vmatprep.subr.bf16.mxu0 0
      %341 = vmatpush1.bf16.msra.mxu0 %v338
      %342 = vmatprep.subr.bf16.mxu0 0
      %343 = vmatpush1.bf16.msra.mxu0 0
      %344 = vmatprep.subr.bf16.mxu0 0
      %345 = vmatpush1.bf16.msra.mxu0 0
      %346 = vmatprep.subr.bf16.mxu0 0
      %347 = vmatpush1.bf16.msra.mxu0 0
      %348 = vmatprep.subr.bf16.mxu0 0
      %349 = vmatpush1.bf16.msra.mxu0 0
      %350 = vmatprep.subr.bf16.mxu0 0
      %351 = vmatpush1.bf16.msra.mxu0 0
      %352 = vmatprep.subr.bf16.mxu0 0
      %353 = vmatpush1.bf16.msra.mxu0 0
      %354 = vmatprep.subr.bf16.mxu0 0
      %355 = vmatpush1.bf16.msra.mxu0 0
      %356 = vmatprep.subr.bf16.mxu0 0
      %357 = vmatpush1.bf16.msra.mxu0 0
      %358 = vmatprep.subr.bf16.mxu0 0
      %359 = vmatpush1.bf16.msra.mxu0 0
      %360 = vmatprep.subr.bf16.mxu0 0
      %361 = vmatpush1.bf16.msra.mxu0 0
      %362 = vmatprep.subr.bf16.mxu0 0
      %363 = vmatpush1.bf16.msra.mxu0 0
      %364 = vmatprep.subr.bf16.mxu0 0
      %365 = vmatpush1.bf16.msra.mxu0 0
      %366 = vmatprep.subr.bf16.mxu0 0
      %367 = vmatpush1.bf16.msra.mxu0 0
      %368 = vmatprep.subr.bf16.mxu0 0
      %369 = vmatpush1.bf16.msra.mxu0 0
      %370 = vmatprep.subr.bf16.mxu0 0
      %371 = vmatpush1.bf16.msra.mxu0 0
      %372 = vmatprep.mubr.bf16.mxu0 0
      %373 = vmatmul.mubr.bf16.gmra.mrb[0].mxu0 %v334
      %v374 = vpop.f32.mrb[0].mxu0
      %v375 = vadd.f32 0.0, %v374
      %v376 = vpop.f32.mrb[0].mxu0
      %v377 = vpop.f32.mrb[0].mxu0
      %v378 = vadd.f32 0.0, %v377
      %v379 = vpop.f32.mrb[0].mxu0
      %380 = vdwg.mxu0
      %v383 = vunpack.c.l.b16 %v325
      %v384 = vunpack.c.l.b16 %v326
      %v385 = vpack.c.b16 %v384, %v383
      %vm386 = vcmask 97280
      %v388 = vsel %vm386, %v327, 0
      %vm390 = vcmask 1045504
      %v392 = vsel %vm390, %v385, 0
      %394 = vmatprep.subr.bf16.mxu0 0
      %395 = vmatpush1.bf16.msra.mxu0 %v392
      %396 = vmatprep.subr.bf16.mxu0 0
      %397 = vmatpush1.bf16.msra.mxu0 0
      %398 = vmatprep.subr.bf16.mxu0 0
      %399 = vmatpush1.bf16.msra.mxu0 0
      %400 = vmatprep.subr.bf16.mxu0 0
      %401 = vmatpush1.bf16.msra.mxu0 0
      %402 = vmatprep.subr.bf16.mxu0 0
      %403 = vmatpush1.bf16.msra.mxu0 0
      %404 = vmatprep.subr.bf16.mxu0 0
      %405 = vmatpush1.bf16.msra.mxu0 0
      %406 = vmatprep.subr.bf16.mxu0 0
      %407 = vmatpush1.bf16.msra.mxu0 0
      %408 = vmatprep.subr.bf16.mxu0 0
      %409 = vmatpush1.bf16.msra.mxu0 0
      %410 = vmatprep.subr.bf16.mxu0 0
      %411 = vmatpush1.bf16.msra.mxu0 0
      %412 = vmatprep.subr.bf16.mxu0 0
      %413 = vmatpush1.bf16.msra.mxu0 0
      %414 = vmatprep.subr.bf16.mxu0 0
      %415 = vmatpush1.bf16.msra.mxu0 0
      %416 = vmatprep.subr.bf16.mxu0 0
      %417 = vmatpush1.bf16.msra.mxu0 0
      %418 = vmatprep.subr.bf16.mxu0 0
      %419 = vmatpush1.bf16.msra.mxu0 0
      %420 = vmatprep.subr.bf16.mxu0 0
      %421 = vmatpush1.bf16.msra.mxu0 0
      %422 = vmatprep.subr.bf16.mxu0 0
      %423 = vmatpush1.bf16.msra.mxu0 0
      %424 = vmatprep.subr.bf16.mxu0 0
      %425 = vmatpush1.bf16.msra.mxu0 0
      %426 = vmatprep.mubr.bf16.mxu0 0
      %427 = vmatmul.mubr.bf16.gmra.mrb[0].mxu0 %v388
      %v428 = vpop.f32.mrb[0].mxu0
      %v429 = vadd.f32 %v375, %v428
      %v430 = vpop.f32.mrb[0].mxu0
      %v431 = vpop.f32.mrb[0].mxu0
      %v432 = vadd.f32 %v378, %v431
      %v433 = vpop.f32.mrb[0].mxu0
      %434 = vdwg.mxu0
      %v435 = vld [vmem:[%s310] sm:$0xff]
      %v436 = vld [vmem:[%s310 + $0x8] sm:$0xff]
      %v437 = vadd.f32 %v429, %v435
      %v438 = vadd.f32 %v432, %v436
      %vm439 = vcmask 261120
      %440 = vst.msk [vmem:[%s320] sm:$0xff] %vm439, %v437
      %441 = vst.msk [vmem:[%s320 + $0x8] sm:$0xff] %vm439, %v438
      %s442 = smul.u32 2, %s21
      %p443 = scmp.lt.s32.totalorder %s20, 1
      %s444 = scalar_select %p443, %s20, 1
      %p445 = scmp.lt.s32.totalorder %s442, 1
      %s446 = scalar_select %p445, %s442, 1
      %s447 = smul.addr %s444, 2
      %s448 = sadd.s32 %s446, %s447
      %s449 = smul.addr %s448, 8
      %s450 = scalar_lea.vmem %s5, %s449
      // Predicated region
      $region41: #{denseformer_forward.6} parent=39 // pred_check
        %p451 = pneg %p172
      $region42: #{denseformer_forward.6} parent=39 // pred_check_branch
        %453 = sbr.rel (%p451) target = $region44
      $region43: #{denseformer_forward.6} parent=39 // pred_region
        %s454 = smul.u32 2, %s21
      $region44: #{denseformer_forward.6} parent=39 // pred_fallthru
        _
    $region40: #{denseformer_forward.6} parent=5 // pred_fallthru
      _
    %p455 = scmp.le.s32.totalorder 2, %s11
    // Predicated region
    $region45: #{denseformer_forward.6} parent=5 // pred_check
      %p456 = pneg %p455
    $region46: #{denseformer_forward.6} parent=5 // pred_check_branch
      %458 = sbr.rel (%p456) target = $region48
    $region47: #{denseformer_forward.6} parent=5 // pred_region
      %s459 = ssub.s32 %s11, 2
      // Predicated region
      $region49: #{denseformer_forward.6} parent=47 // pred_check
        %p460 = pneg %p178
      $region50: #{denseformer_forward.6} parent=47 // pred_check_branch
        %462 = sbr.rel (%p460) target = $region52
      $region51: #{denseformer_forward.6} parent=47 // pred_region
        %s463 = smul.u32 2, %s23
        %p464 = scmp.lt.s32.totalorder %s22, 1
        %s465 = scalar_select %p464, %s22, 1
        %p466 = scmp.lt.s32.totalorder %s463, 1
        %s467 = scalar_select %p466, %s463, 1
        %s468 = smul.addr %s465, 2
        %s469 = sadd.s32 %s467, %s468
        %s470 = smul.addr %s469, 8
        %s471 = scalar_lea.vmem %s5, %s470
      $region52: #{denseformer_forward.6} parent=47 // pred_fallthru
        _
    $region48: #{denseformer_forward.6} parent=5 // pred_fallthru
      _
  $region6: #{denseformer_forward.6} parent=0 // loop_footer
    %s15 = sadd.s32 1, %s11
  $region7: #{denseformer_forward.6} parent=0 // loop_footer_branch
    %10 = sbr.rel target = $region3
  $region8: #{denseformer_forward.6} parent=0 // loop_exit
    _

// kernel: denseformer_forward.11
$region0: #{denseformer_forward.11}
  #allocation0 [shape = 'u32[]', space=smem, size = 0x4, offset = 0x4, fixed_abs, tag = 'smem constant byte address 0x4 - core index']
  #allocation1 [shape = 'u32[144,128]{1,0:T(1,128)}', space=vmem, size = 0x12000, scoped, tag = 'internal scratch']
  %s0 = inlined_call_operand.vmem [shape: f32[2,16,32], index: 0, kind: input, shape index: {}]
  %s1 = inlined_call_operand.vmem [shape: f32[1,32], index: 1, kind: input, shape index: {}]
  %s2 = inlined_call_operand.vmem [shape: f32[1,32], index: 2, kind: input, shape index: {}]
  %s3 = inlined_call_operand.vmem [shape: bf16[32,128], index: 3, kind: input, shape index: {}]
  %s4 = inlined_call_operand.vmem [shape: f32[1,128], index: 4, kind: input, shape index: {}]
  %s5 = inlined_call_operand.vmem [shape: f32[2,16,128], index: 5, kind: output, shape index: {}]
  %s6 = sld [smem:[#allocation0]]
  $region53: #{denseformer_forward.11} parent=0
    _
  %s8 = ssub.s32 1, %s6
  %s9 = scalar_select 0, %s8, %s6
  loop: start=0, step=1, limit=4
  $region2: #{denseformer_forward.11} parent=0 // loop_pre_header
    _
  $region3: #{denseformer_forward.11} parent=0 // loop_header
    %s11 = sphi 0, %s15
    %p12 = scmp.ge.s32.totalorder %s11, 4
    %s18 = sphi 0, %s30
    %s19 = sphi 0, %s26
    %s20 = sphi 0, %s18
    %s21 = sphi 0, %s19
    %s22 = sphi 0, %s20
    %s23 = sphi 0, %s21
    %s35 = sphi 0, %s37
    %s38 = sphi 0, %s35
    %s39 = sphi 0, %s38
    %s55 = sphi 0, %s39
    %s59 = sphi 0, %s59
    %s61 = sphi 0, %s59
    %s62 = sphi 0, %s61
    %s76 = sphi 0, %s62
    %s80 = sphi 0, %s80
    %s82 = sphi 0, %s80
    %s83 = sphi 0, %s82
    %s97 = sphi 0, %s83
    %s101 = sphi 0, %s101
    %s103 = sphi 0, %s101
    %s104 = sphi 0, %s103
    %s118 = sphi 0, %s104
    %s122 = sphi 0, %s122
    %s124 = sphi 0, %s122
    %s125 = sphi 0, %s124
    %s139 = sphi 0, %s125
    %s147 = sphi 0, %s149
    %s150 = sphi 0, %s147
    %s151 = sphi 0, %s150
    %s167 = sphi 0, %s151
  $region4: #{denseformer_forward.11} parent=0 // loop_header_branch
    %14 = sbr.rel (%p12) target = $region8
  $region5: #{denseformer_forward.11} parent=0 // loop_body
    %s16 = ssub.s32 %s11, 1
    %s17 = ssub.s32 %s11, 2
    %s24 = sadd.s32 1, %s19
    %p25 = scmp.ge.s32.totalorder %s24, 1
    %s26 = scalar_select %p25, 0, %s24
    %s27 = sadd.s32 1, %s18
    %s28 = scalar_select %p25, %s27, %s18
    %p29 = scmp.ge.s32.totalorder %s28, 2
    %s30 = scalar_select %p29, 0, %s28
    %s31 = ssub.s32 %s18, %s30
    %s32 = ssub.s32 %s19, %s26
    %s33 = sor.u32 %s31, %s32
    %p34 = scmp.eq.s32.totalorder %s33, 0
    %s36 = sadd.s32 %s35, 1
    %s37 = scalar_select %p34, %s35, %s36
    %p40 = pneg %p34
    %p41 = scmp.eq.s32.totalorder %s11, 1
    %p42 = por %p40, %p41
    %p43 = scmp.ne.s32.totalorder %s35, %s38
    %p44 = scmp.eq.s32.totalorder %s11, 0
    %p45 = por %p43, %p44
    %p46 = scmp.ne.s32.totalorder %s35, %s38
    %p47 = scmp.eq.s32.totalorder %s16, 1
    %p48 = por %p46, %p47
    %p49 = scmp.ne.s32.totalorder %s38, %s39
    %p50 = scmp.eq.s32.totalorder %s16, 0
    %p51 = por %p49, %p50
    %p52 = scmp.ne.s32.totalorder %s38, %s39
    %p53 = scmp.eq.s32.totalorder %s17, 1
    %p54 = por %p52, %p53
    %p56 = scmp.ne.s32.totalorder %s39, %s55
    %p57 = scmp.eq.s32.totalorder %s17, 0
    %p58 = por %p56, %p57
    %s60 = sadd.s32 %s59, 1
    %p63 = scmp.eq.s32.totalorder %s11, 1
    %p64 = scmp.ne.s32.totalorder %s59, %s61
    %p65 = scmp.eq.s32.totalorder %s11, 0
    %p66 = por %p64, %p65
    %p67 = scmp.ne.s32.totalorder %s59, %s61
    %p68 = scmp.eq.s32.totalorder %s16, 1
    %p69 = por %p67, %p68
    %p70 = scmp.ne.s32.totalorder %s61, %s62
    %p71 = scmp.eq.s32.totalorder %s16, 0
    %p72 = por %p70, %p71
    %p73 = scmp.ne.s32.totalorder %s61, %s62
    %p74 = scmp.eq.s32.totalorder %s17, 1
    %p75 = por %p73, %p74
    %p77 = scmp.ne.s32.totalorder %s62, %s76
    %p78 = scmp.eq.s32.totalorder %s17, 0
    %p79 = por %p77, %p78
    %s81 = sadd.s32 %s80, 1
    %p84 = scmp.eq.s32.totalorder %s11, 1
    %p85 = scmp.ne.s32.totalorder %s80, %s82
    %p86 = scmp.eq.s32.totalorder %s11, 0
    %p87 = por %p85, %p86
    %p88 = scmp.ne.s32.totalorder %s80, %s82
    %p89 = scmp.eq.s32.totalorder %s16, 1
    %p90 = por %p88, %p89
    %p91 = scmp.ne.s32.totalorder %s82, %s83
    %p92 = scmp.eq.s32.totalorder %s16, 0
    %p93 = por %p91, %p92
    %p94 = scmp.ne.s32.totalorder %s82, %s83
    %p95 = scmp.eq.s32.totalorder %s17, 1
    %p96 = por %p94, %p95
    %p98 = scmp.ne.s32.totalorder %s83, %s97
    %p99 = scmp.eq.s32.totalorder %s17, 0
    %p100 = por %p98, %p99
    %s102 = sadd.s32 %s101, 1
    %p105 = scmp.eq.s32.totalorder %s11, 1
    %p106 = scmp.ne.s32.totalorder %s101, %s103
    %p107 = scmp.eq.s32.totalorder %s11, 0
    %p108 = por %p106, %p107
    %p109 = scmp.ne.s32.totalorder %s101, %s103
    %p110 = scmp.eq.s32.totalorder %s16, 1
    %p111 = por %p109, %p110
    %p112 = scmp.ne.s32.totalorder %s103, %s104
    %p113 = scmp.eq.s32.totalorder %s16, 0
    %p114 = por %p112, %p113
    %p115 = scmp.ne.s32.totalorder %s103, %s104
    %p116 = scmp.eq.s32.totalorder %s17, 1
    %p117 = por %p115, %p116
    %p119 = scmp.ne.s32.totalorder %s104, %s118
    %p120 = scmp.eq.s32.totalorder %s17, 0
    %p121 = por %p119, %p120
    %s123 = sadd.s32 %s122, 1
    %p126 = scmp.eq.s32.totalorder %s11, 1
    %p127 = scmp.ne.s32.totalorder %s122, %s124
    %p128 = scmp.eq.s32.totalorder %s11, 0
    %p129 = por %p127, %p128
    %p130 = scmp.ne.s32.totalorder %s122, %s124
    %p131 = scmp.eq.s32.totalorder %s16, 1
    %p132 = por %p130, %p131
    %p133 = scmp.ne.s32.totalorder %s124, %s125
    %p134 = scmp.eq.s32.totalorder %s16, 0
    %p135 = por %p133, %p134
    %p136 = scmp.ne.s32.totalorder %s124, %s125
    %p137 = scmp.eq.s32.totalorder %s17, 1
    %p138 = por %p136, %p137
    %p140 = scmp.ne.s32.totalorder %s125, %s139
    %p141 = scmp.eq.s32.totalorder %s17, 0
    %p142 = por %p140, %p141
    %s143 = ssub.s32 %s18, %s30
    %s144 = ssub.s32 %s19, %s26
    %s145 = sor.u32 %s143, %s144
    %p146 = scmp.eq.s32.totalorder %s145, 0
    %s148 = sadd.s32 %s147, 1
    %s149 = scalar_select %p146, %s147, %s148
    %p152 = pneg %p146
    %p153 = scmp.eq.s32.totalorder %s11, 1
    %p154 = por %p152, %p153
    %p155 = scmp.ne.s32.totalorder %s147, %s150
    %p156 = scmp.eq.s32.totalorder %s11, 0
    %p157 = por %p155, %p156
    %p158 = scmp.ne.s32.totalorder %s147, %s150
    %p159 = scmp.eq.s32.totalorder %s16, 1
    %p160 = por %p158, %p159
    %p161 = scmp.ne.s32.totalorder %s150, %s151
    %p162 = scmp.eq.s32.totalorder %s16, 0
    %p163 = por %p161, %p162
    %p164 = scmp.ne.s32.totalorder %s150, %s151
    %p165 = scmp.eq.s32.totalorder %s17, 1
    %p166 = por %p164, %p165
    %p168 = scmp.ne.s32.totalorder %s151, %s167
    %p169 = scmp.eq.s32.totalorder %s17, 0
    %p170 = por %p168, %p169
    %p171 = scmp.le.s32.totalorder 1, %s11
    %p172 = scmp.lt.s32.totalorder %s11, 3
    %p173 = pnand %p171, %p172
    %p174 = pneg %p173
    // Predicated region
    $region9: #{denseformer_forward.11} parent=5 // pred_check
      _
    $region10: #{denseformer_forward.11} parent=5 // pred_check_branch
      %176 = sbr.rel (%p173) target = $region12
    $region11: #{denseformer_forward.11} parent=5 // pred_region
      %s177 = ssub.s32 %s11, 1
      // Predicated region
      $region13: #{denseformer_forward.11} parent=11 // pred_check
        %p178 = pneg %p72
      $region14: #{denseformer_forward.11} parent=11 // pred_check_branch
        %180 = sbr.rel (%p178) target = $region16
      $region15: #{denseformer_forward.11} parent=11 // pred_region
        _
      $region16: #{denseformer_forward.11} parent=11 // pred_fallthru
        _
      // Predicated region
      $region17: #{denseformer_forward.11} parent=11 // pred_check
        %p181 = pneg %p93
      $region18: #{denseformer_forward.11} parent=11 // pred_check_branch
        %183 = sbr.rel (%p181) target = $region20
      $region19: #{denseformer_forward.11} parent=11 // pred_region
        _
      $region20: #{denseformer_forward.11} parent=11 // pred_fallthru
        _
      // Predicated region
      $region21: #{denseformer_forward.11} parent=11 // pred_check
        %p184 = pneg %p114
      $region22: #{denseformer_forward.11} parent=11 // pred_check_branch
        %186 = sbr.rel (%p184) target = $region24
      $region23: #{denseformer_forward.11} parent=11 // pred_region
        _
      $region24: #{denseformer_forward.11} parent=11 // pred_fallthru
        _
      // Predicated region
      $region25: #{denseformer_forward.11} parent=11 // pred_check
        %p187 = pneg %p135
      $region26: #{denseformer_forward.11} parent=11 // pred_check_branch
        %189 = sbr.rel (%p187) target = $region28
      $region27: #{denseformer_forward.11} parent=11 // pred_region
        _
      $region28: #{denseformer_forward.11} parent=11 // pred_fallthru
        _
    $region12: #{denseformer_forward.11} parent=5 // pred_fallthru
      _
    %p190 = scmp.lt.s32.totalorder %s11, 2
    // Predicated region
    $region29: #{denseformer_forward.11} parent=5 // pred_check
      %p191 = pneg %p190
    $region30: #{denseformer_forward.11} parent=5 // pred_check_branch
      %193 = sbr.rel (%p191) target = $region32
    $region31: #{denseformer_forward.11} parent=5 // pred_region
      // Predicated region
      $region33: #{denseformer_forward.11} parent=31 // pred_check
        %p194 = pneg %p45
      $region34: #{denseformer_forward.11} parent=31 // pred_check_branch
        %196 = sbr.rel (%p194) target = $region36
      $region35: #{denseformer_forward.11} parent=31 // pred_region
        %s197 = smul.u32 2, %s19
        %p198 = scmp.lt.s32.totalorder %s18, 1
        %s199 = scalar_select %p198, %s18, 1
        %p200 = scmp.lt.s32.totalorder %s197, 1
        %s201 = scalar_select %p200, %s197, 1
        %s202 = smul.addr %s199, 2
        %s203 = sadd.s32 %s201, %s202
        %s204 = smul.addr %s203, 8
        %s205 = scalar_lea.vmem %s0, %s204
        %s206 = smul.u32 2, %s19
      $region36: #{denseformer_forward.11} parent=31 // pred_fallthru
        _
    $region32: #{denseformer_forward.11} parent=5 // pred_fallthru
      _
    %p207 = scmp.le.s32.totalorder 1, %s11
    %p208 = scmp.lt.s32.totalorder %s11, 3
    %p209 = pnand %p207, %p208
    %p210 = pneg %p209
    // Predicated region
    $region37: #{denseformer_forward.11} parent=5 // pred_check
      _
    $region38: #{denseformer_forward.11} parent=5 // pred_check_branch
      %212 = sbr.rel (%p209) target = $region40
    $region39: #{denseformer_forward.11} parent=5 // pred_region
      %s213 = ssub.s32 %s11, 1
      %s214 = smul.u32 2, %s21
      %p215 = scmp.lt.s32.totalorder %s20, 1
      %s216 = scalar_select %p215, %s20, 1
      %p217 = scmp.lt.s32.totalorder %s214, 1
      %s218 = scalar_select %p217, %s214, 1
      %s219 = smul.addr %s216, 2
      %s220 = sadd.s32 %s218, %s219
      %s221 = smul.addr %s220, 8
      %s222 = scalar_lea.vmem %s0, %s221
      %p223 = pneg %p51
      %p224 = pneg %p48
      %p225 = pneg %p72
      %p226 = pneg %p69
      %p227 = pneg %p93
      %p228 = pneg %p90
      %p229 = pneg %p114
      %p230 = pneg %p111
      %p231 = pneg %p135
      %p232 = pneg %p132
      %p233 = pneg %p163
      %p234 = pneg %p160
      %s235 = smul.u32 2, %s21
      %p236 = scmp.lt.s32.totalorder %s20, 1
      %s237 = scalar_select %p236, %s20, 1
      %p238 = scmp.lt.s32.totalorder %s235, 1
      %s239 = scalar_select %p238, %s235, 1
      %s240 = smul.addr %s237, 2
      %s241 = sadd.s32 %s239, %s240
      %s242 = smul.addr %s241, 8
      %s243 = scalar_lea.vmem %s5, %s242
      %s244 = smul.u32 2, %s21
      %p245 = scmp.lt.s32.totalorder %s20, 1
      %s246 = scalar_select %p245, %s20, 1
      %p247 = scmp.lt.s32.totalorder %s244, 1
      %s248 = scalar_select %p247, %s244, 1
      %s249 = smul.addr %s246, 2
      %s250 = sadd.s32 %s248, %s249
      %s251 = smul.addr %s250, 8
      %s252 = scalar_lea.vmem %s0, %s251
      %s253 = smul.u32 2, %s21
      %s254 = smul.u32 2, %s21
      %p255 = scmp.lt.s32.totalorder %s20, 1
      %s256 = scalar_select %p255, %s20, 1
      %p257 = scmp.lt.s32.totalorder %s254, 1
      %s258 = scalar_select %p257, %s254, 1
      %s259 = smul.addr %s256, 2
      %s260 = sadd.s32 %s258, %s259
      %s261 = smul.addr %s260, 8
      %s262 = scalar_lea.vmem %s5, %s261
      %s263 = smul.u32 2, %s21
      %v265 = vld [vmem:[%s252] sm:$0xff]
      %v266 = vld [vmem:[%s252 + $0x8] sm:$0xff]
      %v267 = vld [vmem:[%s1] sm:$0x1]
      %v268 = vld [vmem:[%s2] sm:$0x1]
      %vm269 = vcmask 261120
      %v270 = vsel %vm269, %v265, 0.0
      %271 = vadd.xlane.f32.xlu0 %v270
      %v272 = vpop.xlane.xlu0 %271
      %v273 = vsel %vm269, %v266, 0.0
      %274 = vadd.xlane.f32.xlu0 %v273
      %v275 = vpop.xlane.xlu0 %274
      %v276 = vrcp.pop 32.0
      %v277 = vmul.f32 %v272, %v276
      %v278 = vmul.f32 %v275, %v276
      %v279 = vsub.f32 %v265, %v277
      %v280 = vsub.f32 %v266, %v278
      %v281 = vmul.f32 %v279, %v279
      %v282 = vmul.f32 %v280, %v280
      %v283 = vsel %vm269, %v281, 0.0
      %284 = vadd.xlane.f32.xlu0 %v283
      %v285 = vpop.xlane.xlu0 %284
      %v286 = vsel %vm269, %v282, 0.0
      %287 = vadd.xlane.f32.xlu0 %v286
      %v288 = vpop.xlane.xlu0 %287
      %v289 = vmul.f32 %v285, %v276
      %v290 = vmul.f32 %v288, %v276
      %v291 = vadd.f32 %v289, 1e-05
      %v292 = vadd.f32 %v290, 1e-05
      %v293 = vrsqrt.pop %v291
      %v294 = vrsqrt.pop %v292
      %v295 = vmul.f32 %v279, %v293
      %v296 = vmul.f32 %v280, %v294
      %v298 = vlaneseq
      %v299 = vshrl.u32 %v298, 7
      %v300 = vsub.s32 0, %v299
      %v301 = vrot.slane %v267, %v300
      %v303 = vmul.f32 %v295, %v301
      %v304 = vmul.f32 %v296, %v301
      %v306 = vlaneseq
      %v307 = vshrl.u32 %v306, 7
      %v308 = vsub.s32 0, %v307
      %v309 = vrot.slane %v268, %v308
      %v311 = vadd.f32 %v303, %v309
      %v312 = vadd.f32 %v304, %v309
      %v313 = vld [vmem:[%s3] sm:$0xf]
      %v314 = vld [vmem:[%s3 + $0x4] sm:$0xf]
      %v315 = vld [vmem:[%s3 + $0x8] sm:$0xf]
      %v316 = vld [vmem:[%s3 + $0xc] sm:$0xf]
      %v317 = vpack.c.bf16 %v312, %v311
      %v318 = vld [vmem:[%s4] sm:$0x1]
      %v320 = vlaneseq
      %v321 = vshrl.u32 %v320, 7
      %v322 = vsub.s32 0, %v321
      %v323 = vrot.slane %v318, %v322
      %v329 = vunpack.c.l.b16 %v313
      %v330 = vunpack.c.l.b16 %v314
      %v331 = vunpack.c.l.b16 %v315
      %v332 = vunpack.c.l.b16 %v316
      %v333 = vpack.c.b16 %v330, %v329
      %v334 = vpack.c.b16 %v332, %v331
      %v338 = vsel %vm269, %v317, 0
      %340 = vmatprep.subr.bf16.mxu0 0
      %341 = vmatpush1.bf16.msra.mxu0 %v333
      %342 = vmatprep.subr.bf16.mxu0 0
      %343 = vmatpush1.bf16.msra.mxu0 %v334
      %344 = vmatprep.subr.bf16.mxu0 0
      %345 = vmatpush1.bf16.msra.mxu0 0
      %346 = vmatprep.subr.bf16.mxu0 0
      %347 = vmatpush1.bf16.msra.mxu0 0
      %348 = vmatprep.subr.bf16.mxu0 0
      %349 = vmatpush1.bf16.msra.mxu0 0
      %350 = vmatprep.subr.bf16.mxu0 0
      %351 = vmatpush1.bf16.msra.mxu0 0
      %352 = vmatprep.subr.bf16.mxu0 0
      %353 = vmatpush1.bf16.msra.mxu0 0
      %354 = vmatprep.subr.bf16.mxu0 0
      %355 = vmatpush1.bf16.msra.mxu0 0
      %356 = vmatprep.subr.bf16.mxu0 0
      %357 = vmatpush1.bf16.msra.mxu0 0
      %358 = vmatprep.subr.bf16.mxu0 0
      %359 = vmatpush1.bf16.msra.mxu0 0
      %360 = vmatprep.subr.bf16.mxu0 0
      %361 = vmatpush1.bf16.msra.mxu0 0
      %362 = vmatprep.subr.bf16.mxu0 0
      %363 = vmatpush1.bf16.msra.mxu0 0
      %364 = vmatprep.subr.bf16.mxu0 0
      %365 = vmatpush1.bf16.msra.mxu0 0
      %366 = vmatprep.subr.bf16.mxu0 0
      %367 = vmatpush1.bf16.msra.mxu0 0
      %368 = vmatprep.subr.bf16.mxu0 0
      %369 = vmatpush1.bf16.msra.mxu0 0
      %370 = vmatprep.subr.bf16.mxu0 0
      %371 = vmatpush1.bf16.msra.mxu0 0
      %372 = vmatprep.mubr.bf16.mxu0 0
      %373 = vmatmul.mubr.bf16.gmra.mrb[0].mxu0 %v338
      %v374 = vpop.f32.mrb[0].mxu0
      %v375 = vadd.f32 %v323, %v374
      %v376 = vpop.f32.mrb[0].mxu0
      %v377 = vpop.f32.mrb[0].mxu0
      %v378 = vadd.f32 %v323, %v377
      %v379 = vpop.f32.mrb[0].mxu0
      %380 = vdwg.mxu0
      %381 = vst [vmem:[%s262] sm:$0xff] %v375
      %382 = vst [vmem:[%s262 + $0x8] sm:$0xff] %v378
      %s383 = smul.u32 2, %s21
      %p384 = scmp.lt.s32.totalorder %s20, 1
      %s385 = scalar_select %p384, %s20, 1
      %p386 = scmp.lt.s32.totalorder %s383, 1
      %s387 = scalar_select %p386, %s383, 1
      %s388 = smul.addr %s385, 2
      %s389 = sadd.s32 %s387, %s388
      %s390 = smul.addr %s389, 8
      %s391 = scalar_lea.vmem %s5, %s390
      // Predicated region
      $region41: #{denseformer_forward.11} parent=39 // pred_check
        %p392 = pneg %p160
      $region42: #{denseformer_forward.11} parent=39 // pred_check_branch
        %394 = sbr.rel (%p392) target = $region44
      $region43: #{denseformer_forward.11} parent=39 // pred_region
        %s395 = smul.u32 2, %s21
      $region44: #{denseformer_forward.11} parent=39 // pred_fallthru
        _
    $region40: #{denseformer_forward.11} parent=5 // pred_fallthru
      _
    %p396 = scmp.le.s32.totalorder 2, %s11
    // Predicated region
    $region45: #{denseformer_forward.11} parent=5 // pred_check
      %p397 = pneg %p396
    $region46: #{denseformer_forward.11} parent=5 // pred_check_branch
      %399 = sbr.rel (%p397) target = $region48
    $region47: #{denseformer_forward.11} parent=5 // pred_region
      %s400 = ssub.s32 %s11, 2
      // Predicated region
      $region49: #{denseformer_forward.11} parent=47 // pred_check
        %p401 = pneg %p166
      $region50: #{denseformer_forward.11} parent=47 // pred_check_branch
        %403 = sbr.rel (%p401) target = $region52
      $region51: #{denseformer_forward.11} parent=47 // pred_region
        %s404 = smul.u32 2, %s23
        %p405 = scmp.lt.s32.totalorder %s22, 1
        %s406 = scalar_select %p405, %s22, 1
        %p407 = scmp.lt.s32.totalorder %s404, 1
        %s408 = scalar_select %p407, %s404, 1
        %s409 = smul.addr %s406, 2
        %s410 = sadd.s32 %s408, %s409
        %s411 = smul.addr %s410, 8
        %s412 = scalar_lea.vmem %s5, %s411
      $region52: #{denseformer_forward.11} parent=47 // pred_fallthru
        _
    $region48: #{denseformer_forward.11} parent=5 // pred_fallthru
      _
  $region6: #{denseformer_forward.11} parent=0 // loop_footer
    %s15 = sadd.s32 1, %s11
  $region7: #{denseformer_forward.11} parent=0 // loop_footer_branch
    %10 = sbr.rel target = $region3
  $region8: #{denseformer_forward.11} parent=0 // loop_exit
    _

// kernel: denseformer_forward.7
$region0: #{denseformer_forward.7}
  #allocation0 [shape = 'u32[]', space=smem, size = 0x4, offset = 0x4, fixed_abs, tag = 'smem constant byte address 0x4 - core index']
  #allocation1 [shape = 'u32[144,128]{1,0:T(1,128)}', space=vmem, size = 0x12000, scoped, tag = 'internal scratch']
  #allocation2 [shape = 'bf16[16,32]{1,0:T(16,128)(2,1)}', space=vmem, size = 0x1000, scoped, tag = 'scratch operand']
  #allocation3 [shape = 'bf16[16,32]{1,0:T(16,128)(2,1)}', space=vmem, size = 0x1000, scoped, tag = 'scratch operand']
  #allocation4 [shape = 'f32[16,32]{1,0:T(8,128)}', space=vmem, size = 0x2000, scoped, tag = 'scratch operand']
  %s0 = inlined_call_operand.vmem [shape: f32[2,16,32], index: 0, kind: input, shape index: {}, may-alias: {0,1}]
  %s1 = inlined_call_operand.vmem [shape: f32[2,16,32], index: 1, kind: input, shape index: {}, may-alias: {0,1}]
  %s2 = inlined_call_operand.vmem [shape: bf16[32,32], index: 2, kind: input, shape index: {}]
  %s3 = inlined_call_operand.vmem [shape: f32[1,32], index: 3, kind: input, shape index: {}]
  %s4 = inlined_call_operand.vmem [shape: bf16[32,32], index: 4, kind: input, shape index: {}]
  %s5 = inlined_call_operand.vmem [shape: f32[1,32], index: 5, kind: input, shape index: {}]
  %s6 = inlined_call_operand.vmem [shape: bf16[32,32], index: 6, kind: input, shape index: {}]
  %s7 = inlined_call_operand.vmem [shape: f32[1,32], index: 7, kind: input, shape index: {}]
  %s8 = inlined_call_operand.vmem [shape: bf16[32,32], index: 8, kind: input, shape index: {}]
  %s9 = inlined_call_operand.vmem [shape: f32[1,32], index: 9, kind: input, shape index: {}]
  %s10 = inlined_call_operand.vmem [shape: f32[1,32], index: 10, kind: input, shape index: {}]
  %s11 = inlined_call_operand.vmem [shape: f32[1,32], index: 11, kind: input, shape index: {}]
  %s12 = inlined_call_operand.vmem [shape: bf16[32,32], index: 12, kind: input, shape index: {}]
  %s13 = inlined_call_operand.vmem [shape: f32[1,32], index: 13, kind: input, shape index: {}]
  %s14 = inlined_call_operand.vmem [shape: bf16[32,32], index: 14, kind: input, shape index: {}]
  %s15 = inlined_call_operand.vmem [shape: f32[1,32], index: 15, kind: input, shape index: {}]
  %s16 = inlined_call_operand.vmem [shape: f32[1,32], index: 16, kind: input, shape index: {}]
  %s17 = inlined_call_operand.vmem [shape: f32[1,32], index: 17, kind: input, shape index: {}]
  %s18 = inlined_call_operand.vmem [shape: f32[2,16,32], index: 18, kind: output, shape index: {}]
  %s19 = sld [smem:[#allocation0]]
  $region109: #{denseformer_forward.7} parent=0
    _
  %s21 = ssub.s32 1, %s19
  %s22 = scalar_select 0, %s21, %s19
  loop: start=0, step=1, limit=4
  $region2: #{denseformer_forward.7} parent=0 // loop_pre_header
    _
  $region3: #{denseformer_forward.7} parent=0 // loop_header
    %s24 = sphi 0, %s28
    %p25 = scmp.ge.s32.totalorder %s24, 4
    %s31 = sphi 0, %s43
    %s32 = sphi 0, %s39
    %s33 = sphi 0, %s31
    %s34 = sphi 0, %s32
    %s35 = sphi 0, %s33
    %s36 = sphi 0, %s34
    %s46 = sphi 0, %s48
    %s49 = sphi 0, %s46
    %s50 = sphi 0, %s49
    %s66 = sphi 0, %s50
    %s74 = sphi 0, %s76
    %s77 = sphi 0, %s74
    %s78 = sphi 0, %s77
    %s94 = sphi 0, %s78
    %s98 = sphi 0, %s98
    %s100 = sphi 0, %s98
    %s101 = sphi 0, %s100
    %s115 = sphi 0, %s101
    %s119 = sphi 0, %s119
    %s121 = sphi 0, %s119
    %s122 = sphi 0, %s121
    %s136 = sphi 0, %s122
    %s140 = sphi 0, %s140
    %s142 = sphi 0, %s140
    %s143 = sphi 0, %s142
    %s157 = sphi 0, %s143
    %s161 = sphi 0, %s161
    %s163 = sphi 0, %s161
    %s164 = sphi 0, %s163
    %s178 = sphi 0, %s164
    %s182 = sphi 0, %s182
    %s184 = sphi 0, %s182
    %s185 = sphi 0, %s184
    %s199 = sphi 0, %s185
    %s203 = sphi 0, %s203
    %s205 = sphi 0, %s203
    %s206 = sphi 0, %s205
    %s220 = sphi 0, %s206
    %s224 = sphi 0, %s224
    %s226 = sphi 0, %s224
    %s227 = sphi 0, %s226
    %s241 = sphi 0, %s227
    %s245 = sphi 0, %s245
    %s247 = sphi 0, %s245
    %s248 = sphi 0, %s247
    %s262 = sphi 0, %s248
    %s266 = sphi 0, %s266
    %s268 = sphi 0, %s266
    %s269 = sphi 0, %s268
    %s283 = sphi 0, %s269
    %s287 = sphi 0, %s287
    %s289 = sphi 0, %s287
    %s290 = sphi 0, %s289
    %s304 = sphi 0, %s290
    %s308 = sphi 0, %s308
    %s310 = sphi 0, %s308
    %s311 = sphi 0, %s310
    %s325 = sphi 0, %s311
    %s329 = sphi 0, %s329
    %s331 = sphi 0, %s329
    %s332 = sphi 0, %s331
    %s346 = sphi 0, %s332
    %s350 = sphi 0, %s350
    %s352 = sphi 0, %s350
    %s353 = sphi 0, %s352
    %s367 = sphi 0, %s353
    %s371 = sphi 0, %s371
    %s373 = sphi 0, %s371
    %s374 = sphi 0, %s373
    %s388 = sphi 0, %s374
    %s392 = sphi 0, %s392
    %s394 = sphi 0, %s392
    %s395 = sphi 0, %s394
    %s409 = sphi 0, %s395
    %s413 = sphi 0, %s413
    %s415 = sphi 0, %s413
    %s416 = sphi 0, %s415
    %s430 = sphi 0, %s416
    %s438 = sphi 0, %s440
    %s441 = sphi 0, %s438
    %s442 = sphi 0, %s441
    %s458 = sphi 0, %s442
  $region4: #{denseformer_forward.7} parent=0 // loop_header_branch
    %27 = sbr.rel (%p25) target = $region8
  $region5: #{denseformer_forward.7} parent=0 // loop_body
    %s29 = ssub.s32 %s24, 1
    %s30 = ssub.s32 %s24, 2
    %s37 = sadd.s32 1, %s32
    %p38 = scmp.ge.s32.totalorder %s37, 1
    %s39 = scalar_select %p38, 0, %s37
    %s40 = sadd.s32 1, %s31
    %s41 = scalar_select %p38, %s40, %s31
    %p42 = scmp.ge.s32.totalorder %s41, 2
    %s43 = scalar_select %p42, 0, %s41
    %s44 = ssub.s32 %s31, %s43
    %p45 = scmp.eq.s32.totalorder %s44, 0
    %s47 = sadd.s32 %s46, 1
    %s48 = scalar_select %p45, %s46, %s47
    %p51 = pneg %p45
    %p52 = scmp.eq.s32.totalorder %s24, 1
    %p53 = por %p51, %p52
    %p54 = scmp.ne.s32.totalorder %s46, %s49
    %p55 = scmp.eq.s32.totalorder %s24, 0
    %p56 = por %p54, %p55
    %p57 = scmp.ne.s32.totalorder %s46, %s49
    %p58 = scmp.eq.s32.totalorder %s29, 1
    %p59 = por %p57, %p58
    %p60 = scmp.ne.s32.totalorder %s49, %s50
    %p61 = scmp.eq.s32.totalorder %s29, 0
    %p62 = por %p60, %p61
    %p63 = scmp.ne.s32.totalorder %s49, %s50
    %p64 = scmp.eq.s32.totalorder %s30, 1
    %p65 = por %p63, %p64
    %p67 = scmp.ne.s32.totalorder %s50, %s66
    %p68 = scmp.eq.s32.totalorder %s30, 0
    %p69 = por %p67, %p68
    %s70 = ssub.s32 %s31, %s43
    %s71 = ssub.s32 %s32, %s39
    %s72 = sor.u32 %s70, %s71
    %p73 = scmp.eq.s32.totalorder %s72, 0
    %s75 = sadd.s32 %s74, 1
    %s76 = scalar_select %p73, %s74, %s75
    %p79 = pneg %p73
    %p80 = scmp.eq.s32.totalorder %s24, 1
    %p81 = por %p79, %p80
    %p82 = scmp.ne.s32.totalorder %s74, %s77
    %p83 = scmp.eq.s32.totalorder %s24, 0
    %p84 = por %p82, %p83
    %p85 = scmp.ne.s32.totalorder %s74, %s77
    %p86 = scmp.eq.s32.totalorder %s29, 1
    %p87 = por %p85, %p86
    %p88 = scmp.ne.s32.totalorder %s77, %s78
    %p89 = scmp.eq.s32.totalorder %s29, 0
    %p90 = por %p88, %p89
    %p91 = scmp.ne.s32.totalorder %s77, %s78
    %p92 = scmp.eq.s32.totalorder %s30, 1
    %p93 = por %p91, %p92
    %p95 = scmp.ne.s32.totalorder %s78, %s94
    %p96 = scmp.eq.s32.totalorder %s30, 0
    %p97 = por %p95, %p96
    %s99 = sadd.s32 %s98, 1
    %p102 = scmp.eq.s32.totalorder %s24, 1
    %p103 = scmp.ne.s32.totalorder %s98, %s100
    %p104 = scmp.eq.s32.totalorder %s24, 0
    %p105 = por %p103, %p104
    %p106 = scmp.ne.s32.totalorder %s98, %s100
    %p107 = scmp.eq.s32.totalorder %s29, 1
    %p108 = por %p106, %p107
    %p109 = scmp.ne.s32.totalorder %s100, %s101
    %p110 = scmp.eq.s32.totalorder %s29, 0
    %p111 = por %p109, %p110
    %p112 = scmp.ne.s32.totalorder %s100, %s101
    %p113 = scmp.eq.s32.totalorder %s30, 1
    %p114 = por %p112, %p113
    %p116 = scmp.ne.s32.totalorder %s101, %s115
    %p117 = scmp.eq.s32.totalorder %s30, 0
    %p118 = por %p116, %p117
    %s120 = sadd.s32 %s119, 1
    %p123 = scmp.eq.s32.totalorder %s24, 1
    %p124 = scmp.ne.s32.totalorder %s119, %s121
    %p125 = scmp.eq.s32.totalorder %s24, 0
    %p126 = por %p124, %p125
    %p127 = scmp.ne.s32.totalorder %s119, %s121
    %p128 = scmp.eq.s32.totalorder %s29, 1
    %p129 = por %p127, %p128
    %p130 = scmp.ne.s32.totalorder %s121, %s122
    %p131 = scmp.eq.s32.totalorder %s29, 0
    %p132 = por %p130, %p131
    %p133 = scmp.ne.s32.totalorder %s121, %s122
    %p134 = scmp.eq.s32.totalorder %s30, 1
    %p135 = por %p133, %p134
    %p137 = scmp.ne.s32.totalorder %s122, %s136
    %p138 = scmp.eq.s32.totalorder %s30, 0
    %p139 = por %p137, %p138
    %s141 = sadd.s32 %s140, 1
    %p144 = scmp.eq.s32.totalorder %s24, 1
    %p145 = scmp.ne.s32.totalorder %s140, %s142
    %p146 = scmp.eq.s32.totalorder %s24, 0
    %p147 = por %p145, %p146
    %p148 = scmp.ne.s32.totalorder %s140, %s142
    %p149 = scmp.eq.s32.totalorder %s29, 1
    %p150 = por %p148, %p149
    %p151 = scmp.ne.s32.totalorder %s142, %s143
    %p152 = scmp.eq.s32.totalorder %s29, 0
    %p153 = por %p151, %p152
    %p154 = scmp.ne.s32.totalorder %s142, %s143
    %p155 = scmp.eq.s32.totalorder %s30, 1
    %p156 = por %p154, %p155
    %p158 = scmp.ne.s32.totalorder %s143, %s157
    %p159 = scmp.eq.s32.totalorder %s30, 0
    %p160 = por %p158, %p159
    %s162 = sadd.s32 %s161, 1
    %p165 = scmp.eq.s32.totalorder %s24, 1
    %p166 = scmp.ne.s32.totalorder %s161, %s163
    %p167 = scmp.eq.s32.totalorder %s24, 0
    %p168 = por %p166, %p167
    %p169 = scmp.ne.s32.totalorder %s161, %s163
    %p170 = scmp.eq.s32.totalorder %s29, 1
    %p171 = por %p169, %p170
    %p172 = scmp.ne.s32.totalorder %s163, %s164
    %p173 = scmp.eq.s32.totalorder %s29, 0
    %p174 = por %p172, %p173
    %p175 = scmp.ne.s32.totalorder %s163, %s164
    %p176 = scmp.eq.s32.totalorder %s30, 1
    %p177 = por %p175, %p176
    %p179 = scmp.ne.s32.totalorder %s164, %s178
    %p180 = scmp.eq.s32.totalorder %s30, 0
    %p181 = por %p179, %p180
    %s183 = sadd.s32 %s182, 1
    %p186 = scmp.eq.s32.totalorder %s24, 1
    %p187 = scmp.ne.s32.totalorder %s182, %s184
    %p188 = scmp.eq.s32.totalorder %s24, 0
    %p189 = por %p187, %p188
    %p190 = scmp.ne.s32.totalorder %s182, %s184
    %p191 = scmp.eq.s32.totalorder %s29, 1
    %p192 = por %p190, %p191
    %p193 = scmp.ne.s32.totalorder %s184, %s185
    %p194 = scmp.eq.s32.totalorder %s29, 0
    %p195 = por %p193, %p194
    %p196 = scmp.ne.s32.totalorder %s184, %s185
    %p197 = scmp.eq.s32.totalorder %s30, 1
    %p198 = por %p196, %p197
    %p200 = scmp.ne.s32.totalorder %s185, %s199
    %p201 = scmp.eq.s32.totalorder %s30, 0
    %p202 = por %p200, %p201
    %s204 = sadd.s32 %s203, 1
    %p207 = scmp.eq.s32.totalorder %s24, 1
    %p208 = scmp.ne.s32.totalorder %s203, %s205
    %p209 = scmp.eq.s32.totalorder %s24, 0
    %p210 = por %p208, %p209
    %p211 = scmp.ne.s32.totalorder %s203, %s205
    %p212 = scmp.eq.s32.totalorder %s29, 1
    %p213 = por %p211, %p212
    %p214 = scmp.ne.s32.totalorder %s205, %s206
    %p215 = scmp.eq.s32.totalorder %s29, 0
    %p216 = por %p214, %p215
    %p217 = scmp.ne.s32.totalorder %s205, %s206
    %p218 = scmp.eq.s32.totalorder %s30, 1
    %p219 = por %p217, %p218
    %p221 = scmp.ne.s32.totalorder %s206, %s220
    %p222 = scmp.eq.s32.totalorder %s30, 0
    %p223 = por %p221, %p222
    %s225 = sadd.s32 %s224, 1
    %p228 = scmp.eq.s32.totalorder %s24, 1
    %p229 = scmp.ne.s32.totalorder %s224, %s226
    %p230 = scmp.eq.s32.totalorder %s24, 0
    %p231 = por %p229, %p230
    %p232 = scmp.ne.s32.totalorder %s224, %s226
    %p233 = scmp.eq.s32.totalorder %s29, 1
    %p234 = por %p232, %p233
    %p235 = scmp.ne.s32.totalorder %s226, %s227
    %p236 = scmp.eq.s32.totalorder %s29, 0
    %p237 = por %p235, %p236
    %p238 = scmp.ne.s32.totalorder %s226, %s227
    %p239 = scmp.eq.s32.totalorder %s30, 1
    %p240 = por %p238, %p239
    %p242 = scmp.ne.s32.totalorder %s227, %s241
    %p243 = scmp.eq.s32.totalorder %s30, 0
    %p244 = por %p242, %p243
    %s246 = sadd.s32 %s245, 1
    %p249 = scmp.eq.s32.totalorder %s24, 1
    %p250 = scmp.ne.s32.totalorder %s245, %s247
    %p251 = scmp.eq.s32.totalorder %s24, 0
    %p252 = por %p250, %p251
    %p253 = scmp.ne.s32.totalorder %s245, %s247
    %p254 = scmp.eq.s32.totalorder %s29, 1
    %p255 = por %p253, %p254
    %p256 = scmp.ne.s32.totalorder %s247, %s248
    %p257 = scmp.eq.s32.totalorder %s29, 0
    %p258 = por %p256, %p257
    %p259 = scmp.ne.s32.totalorder %s247, %s248
    %p260 = scmp.eq.s32.totalorder %s30, 1
    %p261 = por %p259, %p260
    %p263 = scmp.ne.s32.totalorder %s248, %s262
    %p264 = scmp.eq.s32.totalorder %s30, 0
    %p265 = por %p263, %p264
    %s267 = sadd.s32 %s266, 1
    %p270 = scmp.eq.s32.totalorder %s24, 1
    %p271 = scmp.ne.s32.totalorder %s266, %s268
    %p272 = scmp.eq.s32.totalorder %s24, 0
    %p273 = por %p271, %p272
    %p274 = scmp.ne.s32.totalorder %s266, %s268
    %p275 = scmp.eq.s32.totalorder %s29, 1
    %p276 = por %p274, %p275
    %p277 = scmp.ne.s32.totalorder %s268, %s269
    %p278 = scmp.eq.s32.totalorder %s29, 0
    %p279 = por %p277, %p278
    %p280 = scmp.ne.s32.totalorder %s268, %s269
    %p281 = scmp.eq.s32.totalorder %s30, 1
    %p282 = por %p280, %p281
    %p284 = scmp.ne.s32.totalorder %s269, %s283
    %p285 = scmp.eq.s32.totalorder %s30, 0
    %p286 = por %p284, %p285
    %s288 = sadd.s32 %s287, 1
    %p291 = scmp.eq.s32.totalorder %s24, 1
    %p292 = scmp.ne.s32.totalorder %s287, %s289
    %p293 = scmp.eq.s32.totalorder %s24, 0
    %p294 = por %p292, %p293
    %p295 = scmp.ne.s32.totalorder %s287, %s289
    %p296 = scmp.eq.s32.totalorder %s29, 1
    %p297 = por %p295, %p296
    %p298 = scmp.ne.s32.totalorder %s289, %s290
    %p299 = scmp.eq.s32.totalorder %s29, 0
    %p300 = por %p298, %p299
    %p301 = scmp.ne.s32.totalorder %s289, %s290
    %p302 = scmp.eq.s32.totalorder %s30, 1
    %p303 = por %p301, %p302
    %p305 = scmp.ne.s32.totalorder %s290, %s304
    %p306 = scmp.eq.s32.totalorder %s30, 0
    %p307 = por %p305, %p306
    %s309 = sadd.s32 %s308, 1
    %p312 = scmp.eq.s32.totalorder %s24, 1
    %p313 = scmp.ne.s32.totalorder %s308, %s310
    %p314 = scmp.eq.s32.totalorder %s24, 0
    %p315 = por %p313, %p314
    %p316 = scmp.ne.s32.totalorder %s308, %s310
    %p317 = scmp.eq.s32.totalorder %s29, 1
    %p318 = por %p316, %p317
    %p319 = scmp.ne.s32.totalorder %s310, %s311
    %p320 = scmp.eq.s32.totalorder %s29, 0
    %p321 = por %p319, %p320
    %p322 = scmp.ne.s32.totalorder %s310, %s311
    %p323 = scmp.eq.s32.totalorder %s30, 1
    %p324 = por %p322, %p323
    %p326 = scmp.ne.s32.totalorder %s311, %s325
    %p327 = scmp.eq.s32.totalorder %s30, 0
    %p328 = por %p326, %p327
    %s330 = sadd.s32 %s329, 1
    %p333 = scmp.eq.s32.totalorder %s24, 1
    %p334 = scmp.ne.s32.totalorder %s329, %s331
    %p335 = scmp.eq.s32.totalorder %s24, 0
    %p336 = por %p334, %p335
    %p337 = scmp.ne.s32.totalorder %s329, %s331
    %p338 = scmp.eq.s32.totalorder %s29, 1
    %p339 = por %p337, %p338
    %p340 = scmp.ne.s32.totalorder %s331, %s332
    %p341 = scmp.eq.s32.totalorder %s29, 0
    %p342 = por %p340, %p341
    %p343 = scmp.ne.s32.totalorder %s331, %s332
    %p344 = scmp.eq.s32.totalorder %s30, 1
    %p345 = por %p343, %p344
    %p347 = scmp.ne.s32.totalorder %s332, %s346
    %p348 = scmp.eq.s32.totalorder %s30, 0
    %p349 = por %p347, %p348
    %s351 = sadd.s32 %s350, 1
    %p354 = scmp.eq.s32.totalorder %s24, 1
    %p355 = scmp.ne.s32.totalorder %s350, %s352
    %p356 = scmp.eq.s32.totalorder %s24, 0
    %p357 = por %p355, %p356
    %p358 = scmp.ne.s32.totalorder %s350, %s352
    %p359 = scmp.eq.s32.totalorder %s29, 1
    %p360 = por %p358, %p359
    %p361 = scmp.ne.s32.totalorder %s352, %s353
    %p362 = scmp.eq.s32.totalorder %s29, 0
    %p363 = por %p361, %p362
    %p364 = scmp.ne.s32.totalorder %s352, %s353
    %p365 = scmp.eq.s32.totalorder %s30, 1
    %p366 = por %p364, %p365
    %p368 = scmp.ne.s32.totalorder %s353, %s367
    %p369 = scmp.eq.s32.totalorder %s30, 0
    %p370 = por %p368, %p369
    %s372 = sadd.s32 %s371, 1
    %p375 = scmp.eq.s32.totalorder %s24, 1
    %p376 = scmp.ne.s32.totalorder %s371, %s373
    %p377 = scmp.eq.s32.totalorder %s24, 0
    %p378 = por %p376, %p377
    %p379 = scmp.ne.s32.totalorder %s371, %s373
    %p380 = scmp.eq.s32.totalorder %s29, 1
    %p381 = por %p379, %p380
    %p382 = scmp.ne.s32.totalorder %s373, %s374
    %p383 = scmp.eq.s32.totalorder %s29, 0
    %p384 = por %p382, %p383
    %p385 = scmp.ne.s32.totalorder %s373, %s374
    %p386 = scmp.eq.s32.totalorder %s30, 1
    %p387 = por %p385, %p386
    %p389 = scmp.ne.s32.totalorder %s374, %s388
    %p390 = scmp.eq.s32.totalorder %s30, 0
    %p391 = por %p389, %p390
    %s393 = sadd.s32 %s392, 1
    %p396 = scmp.eq.s32.totalorder %s24, 1
    %p397 = scmp.ne.s32.totalorder %s392, %s394
    %p398 = scmp.eq.s32.totalorder %s24, 0
    %p399 = por %p397, %p398
    %p400 = scmp.ne.s32.totalorder %s392, %s394
    %p401 = scmp.eq.s32.totalorder %s29, 1
    %p402 = por %p400, %p401
    %p403 = scmp.ne.s32.totalorder %s394, %s395
    %p404 = scmp.eq.s32.totalorder %s29, 0
    %p405 = por %p403, %p404
    %p406 = scmp.ne.s32.totalorder %s394, %s395
    %p407 = scmp.eq.s32.totalorder %s30, 1
    %p408 = por %p406, %p407
    %p410 = scmp.ne.s32.totalorder %s395, %s409
    %p411 = scmp.eq.s32.totalorder %s30, 0
    %p412 = por %p410, %p411
    %s414 = sadd.s32 %s413, 1
    %p417 = scmp.eq.s32.totalorder %s24, 1
    %p418 = scmp.ne.s32.totalorder %s413, %s415
    %p419 = scmp.eq.s32.totalorder %s24, 0
    %p420 = por %p418, %p419
    %p421 = scmp.ne.s32.totalorder %s413, %s415
    %p422 = scmp.eq.s32.totalorder %s29, 1
    %p423 = por %p421, %p422
    %p424 = scmp.ne.s32.totalorder %s415, %s416
    %p425 = scmp.eq.s32.totalorder %s29, 0
    %p426 = por %p424, %p425
    %p427 = scmp.ne.s32.totalorder %s415, %s416
    %p428 = scmp.eq.s32.totalorder %s30, 1
    %p429 = por %p427, %p428
    %p431 = scmp.ne.s32.totalorder %s416, %s430
    %p432 = scmp.eq.s32.totalorder %s30, 0
    %p433 = por %p431, %p432
    %s434 = ssub.s32 %s31, %s43
    %s435 = ssub.s32 %s32, %s39
    %s436 = sor.u32 %s434, %s435
    %p437 = scmp.eq.s32.totalorder %s436, 0
    %s439 = sadd.s32 %s438, 1
    %s440 = scalar_select %p437, %s438, %s439
    %p443 = pneg %p437
    %p444 = scmp.eq.s32.totalorder %s24, 1
    %p445 = por %p443, %p444
    %p446 = scmp.ne.s32.totalorder %s438, %s441
    %p447 = scmp.eq.s32.totalorder %s24, 0
    %p448 = por %p446, %p447
    %p449 = scmp.ne.s32.totalorder %s438, %s441
    %p450 = scmp.eq.s32.totalorder %s29, 1
    %p451 = por %p449, %p450
    %p452 = scmp.ne.s32.totalorder %s441, %s442
    %p453 = scmp.eq.s32.totalorder %s29, 0
    %p454 = por %p452, %p453
    %p455 = scmp.ne.s32.totalorder %s441, %s442
    %p456 = scmp.eq.s32.totalorder %s30, 1
    %p457 = por %p455, %p456
    %p459 = scmp.ne.s32.totalorder %s442, %s458
    %p460 = scmp.eq.s32.totalorder %s30, 0
    %p461 = por %p459, %p460
    %p462 = scmp.le.s32.totalorder 1, %s24
    %p463 = scmp.lt.s32.totalorder %s24, 3
    %p464 = pnand %p462, %p463
    %p465 = pneg %p464
    // Predicated region
    $region9: #{denseformer_forward.7} parent=5 // pred_check
      _
    $region10: #{denseformer_forward.7} parent=5 // pred_check_branch
      %467 = sbr.rel (%p464) target = $region12
    $region11: #{denseformer_forward.7} parent=5 // pred_region
      %s468 = ssub.s32 %s24, 1
      // Predicated region
      $region13: #{denseformer_forward.7} parent=11 // pred_check
        %p469 = pneg %p111
      $region14: #{denseformer_forward.7} parent=11 // pred_check_branch
        %471 = sbr.rel (%p469) target = $region16
      $region15: #{denseformer_forward.7} parent=11 // pred_region
        _
      $region16: #{denseformer_forward.7} parent=11 // pred_fallthru
        _
      // Predicated region
      $region17: #{denseformer_forward.7} parent=11 // pred_check
        %p472 = pneg %p132
      $region18: #{denseformer_forward.7} parent=11 // pred_check_branch
        %474 = sbr.rel (%p472) target = $region20
      $region19: #{denseformer_forward.7} parent=11 // pred_region
        _
      $region20: #{denseformer_forward.7} parent=11 // pred_fallthru
        _
      // Predicated region
      $region21: #{denseformer_forward.7} parent=11 // pred_check
        %p475 = pneg %p153
      $region22: #{denseformer_forward.7} parent=11 // pred_check_branch
        %477 = sbr.rel (%p475) target = $region24
      $region23: #{denseformer_forward.7} parent=11 // pred_region
        _
      $region24: #{denseformer_forward.7} parent=11 // pred_fallthru
        _
      // Predicated region
      $region25: #{denseformer_forward.7} parent=11 // pred_check
        %p478 = pneg %p174
      $region26: #{denseformer_forward.7} parent=11 // pred_check_branch
        %480 = sbr.rel (%p478) target = $region28
      $region27: #{denseformer_forward.7} parent=11 // pred_region
        _
      $region28: #{denseformer_forward.7} parent=11 // pred_fallthru
        _
      // Predicated region
      $region29: #{denseformer_forward.7} parent=11 // pred_check
        %p481 = pneg %p195
      $region30: #{denseformer_forward.7} parent=11 // pred_check_branch
        %483 = sbr.rel (%p481) target = $region32
      $region31: #{denseformer_forward.7} parent=11 // pred_region
        _
      $region32: #{denseformer_forward.7} parent=11 // pred_fallthru
        _
      // Predicated region
      $region33: #{denseformer_forward.7} parent=11 // pred_check
        %p484 = pneg %p216
      $region34: #{denseformer_forward.7} parent=11 // pred_check_branch
        %486 = sbr.rel (%p484) target = $region36
      $region35: #{denseformer_forward.7} parent=11 // pred_region
        _
      $region36: #{denseformer_forward.7} parent=11 // pred_fallthru
        _
      // Predicated region
      $region37: #{denseformer_forward.7} parent=11 // pred_check
        %p487 = pneg %p237
      $region38: #{denseformer_forward.7} parent=11 // pred_check_branch
        %489 = sbr.rel (%p487) target = $region40
      $region39: #{denseformer_forward.7} parent=11 // pred_region
        _
      $region40: #{denseformer_forward.7} parent=11 // pred_fallthru
        _
      // Predicated region
      $region41: #{denseformer_forward.7} parent=11 // pred_check
        %p490 = pneg %p258
      $region42: #{denseformer_forward.7} parent=11 // pred_check_branch
        %492 = sbr.rel (%p490) target = $region44
      $region43: #{denseformer_forward.7} parent=11 // pred_region
        _
      $region44: #{denseformer_forward.7} parent=11 // pred_fallthru
        _
      // Predicated region
      $region45: #{denseformer_forward.7} parent=11 // pred_check
        %p493 = pneg %p279
      $region46: #{denseformer_forward.7} parent=11 // pred_check_branch
        %495 = sbr.rel (%p493) target = $region48
      $region47: #{denseformer_forward.7} parent=11 // pred_region
        _
      $region48: #{denseformer_forward.7} parent=11 // pred_fallthru
        _
      // Predicated region
      $region49: #{denseformer_forward.7} parent=11 // pred_check
        %p496 = pneg %p300
      $region50: #{denseformer_forward.7} parent=11 // pred_check_branch
        %498 = sbr.rel (%p496) target = $region52
      $region51: #{denseformer_forward.7} parent=11 // pred_region
        _
      $region52: #{denseformer_forward.7} parent=11 // pred_fallthru
        _
      // Predicated region
      $region53: #{denseformer_forward.7} parent=11 // pred_check
        %p499 = pneg %p321
      $region54: #{denseformer_forward.7} parent=11 // pred_check_branch
        %501 = sbr.rel (%p499) target = $region56
      $region55: #{denseformer_forward.7} parent=11 // pred_region
        _
      $region56: #{denseformer_forward.7} parent=11 // pred_fallthru
        _
      // Predicated region
      $region57: #{denseformer_forward.7} parent=11 // pred_check
        %p502 = pneg %p342
      $region58: #{denseformer_forward.7} parent=11 // pred_check_branch
        %504 = sbr.rel (%p502) target = $region60
      $region59: #{denseformer_forward.7} parent=11 // pred_region
        _
      $region60: #{denseformer_forward.7} parent=11 // pred_fallthru
        _
      // Predicated region
      $region61: #{denseformer_forward.7} parent=11 // pred_check
        %p505 = pneg %p363
      $region62: #{denseformer_forward.7} parent=11 // pred_check_branch
        %507 = sbr.rel (%p505) target = $region64
      $region63: #{denseformer_forward.7} parent=11 // pred_region
        _
      $region64: #{denseformer_forward.7} parent=11 // pred_fallthru
        _
      // Predicated region
      $region65: #{denseformer_forward.7} parent=11 // pred_check
        %p508 = pneg %p384
      $region66: #{denseformer_forward.7} parent=11 // pred_check_branch
        %510 = sbr.rel (%p508) target = $region68
      $region67: #{denseformer_forward.7} parent=11 // pred_region
        _
      $region68: #{denseformer_forward.7} parent=11 // pred_fallthru
        _
      // Predicated region
      $region69: #{denseformer_forward.7} parent=11 // pred_check
        %p511 = pneg %p405
      $region70: #{denseformer_forward.7} parent=11 // pred_check_branch
        %513 = sbr.rel (%p511) target = $region72
      $region71: #{denseformer_forward.7} parent=11 // pred_region
        _
      $region72: #{denseformer_forward.7} parent=11 // pred_fallthru
        _
      // Predicated region
      $region73: #{denseformer_forward.7} parent=11 // pred_check
        %p514 = pneg %p426
      $region74: #{denseformer_forward.7} parent=11 // pred_check_branch
        %516 = sbr.rel (%p514) target = $region76
      $region75: #{denseformer_forward.7} parent=11 // pred_region
        _
      $region76: #{denseformer_forward.7} parent=11 // pred_fallthru
        _
    $region12: #{denseformer_forward.7} parent=5 // pred_fallthru
      _
    %p517 = scmp.lt.s32.totalorder %s24, 2
    // Predicated region
    $region77: #{denseformer_forward.7} parent=5 // pred_check
      %p518 = pneg %p517
    $region78: #{denseformer_forward.7} parent=5 // pred_check_branch
      %520 = sbr.rel (%p518) target = $region80
    $region79: #{denseformer_forward.7} parent=5 // pred_region
      // Predicated region
      $region81: #{denseformer_forward.7} parent=79 // pred_check
        %p521 = pneg %p56
      $region82: #{denseformer_forward.7} parent=79 // pred_check_branch
        %523 = sbr.rel (%p521) target = $region84
      $region83: #{denseformer_forward.7} parent=79 // pred_region
        %p524 = scmp.lt.s32.totalorder %s31, 1
        %s525 = scalar_select %p524, %s31, 1
        %s526 = smul.addr %s525, 2
        %s527 = smul.addr %s526, 8
        %s528 = scalar_lea.vmem %s0, %s527
      $region84: #{denseformer_forward.7} parent=79 // pred_fallthru
        _
      // Predicated region
      $region85: #{denseformer_forward.7} parent=79 // pred_check
        %p529 = pneg %p84
      $region86: #{denseformer_forward.7} parent=79 // pred_check_branch
        %531 = sbr.rel (%p529) target = $region88
      $region87: #{denseformer_forward.7} parent=79 // pred_region
        %s532 = smul.u32 2, %s32
        %p533 = scmp.lt.s32.totalorder %s31, 1
        %s534 = scalar_select %p533, %s31, 1
        %p535 = scmp.lt.s32.totalorder %s532, 1
        %s536 = scalar_select %p535, %s532, 1
        %s537 = smul.addr %s534, 2
        %s538 = sadd.s32 %s536, %s537
        %s539 = smul.addr %s538, 8
        %s540 = scalar_lea.vmem %s1, %s539
        %s541 = smul.u32 2, %s32
      $region88: #{denseformer_forward.7} parent=79 // pred_fallthru
        _
    $region80: #{denseformer_forward.7} parent=5 // pred_fallthru
      _
    %p542 = scmp.le.s32.totalorder 1, %s24
    %p543 = scmp.lt.s32.totalorder %s24, 3
    %p544 = pnand %p542, %p543
    %p545 = pneg %p544
    // Predicated region
    $region89: #{denseformer_forward.7} parent=5 // pred_check
      _
    $region90: #{denseformer_forward.7} parent=5 // pred_check_branch
      %547 = sbr.rel (%p544) target = $region92
    $region91: #{denseformer_forward.7} parent=5 // pred_region
      %s548 = ssub.s32 %s24, 1
      %p549 = scmp.lt.s32.totalorder %s33, 1
      %s550 = scalar_select %p549, %s33, 1
      %s551 = smul.addr %s550, 2
      %s552 = smul.addr %s551, 8
      %s553 = scalar_lea.vmem %s0, %s552
      %p554 = pneg %p62
      %p555 = pneg %p59
      %s556 = smul.u32 2, %s34
      %p557 = scmp.lt.s32.totalorder %s33, 1
      %s558 = scalar_select %p557, %s33, 1
      %p559 = scmp.lt.s32.totalorder %s556, 1
      %s560 = scalar_select %p559, %s556, 1
      %s561 = smul.addr %s558, 2
      %s562 = sadd.s32 %s560, %s561
      %s563 = smul.addr %s562, 8
      %s564 = scalar_lea.vmem %s1, %s563
      %p565 = pneg %p90
      %p566 = pneg %p87
      %p567 = pneg %p111
      %p568 = pneg %p108
      %p569 = pneg %p132
      %p570 = pneg %p129
      %p571 = pneg %p153
      %p572 = pneg %p150
      %p573 = pneg %p174
      %p574 = pneg %p171
      %p575 = pneg %p195
      %p576 = pneg %p192
      %p577 = pneg %p216
      %p578 = pneg %p213
      %p579 = pneg %p237
      %p580 = pneg %p234
      %p581 = pneg %p258
      %p582 = pneg %p255
      %p583 = pneg %p279
      %p584 = pneg %p276
      %p585 = pneg %p300
      %p586 = pneg %p297
      %p587 = pneg %p321
      %p588 = pneg %p318
      %p589 = pneg %p342
      %p590 = pneg %p339
      %p591 = pneg %p363
      %p592 = pneg %p360
      %p593 = pneg %p384
      %p594 = pneg %p381
      %p595 = pneg %p405
      %p596 = pneg %p402
      %p597 = pneg %p426
      %p598 = pneg %p423
      %p599 = pneg %p454
      %p600 = pneg %p451
      %s601 = smul.u32 2, %s34
      %p602 = scmp.lt.s32.totalorder %s33, 1
      %s603 = scalar_select %p602, %s33, 1
      %p604 = scmp.lt.s32.totalorder %s601, 1
      %s605 = scalar_select %p604, %s601, 1
      %s606 = smul.addr %s603, 2
      %s607 = sadd.s32 %s605, %s606
      %s608 = smul.addr %s607, 8
      %s609 = scalar_lea.vmem %s18, %s608
      %p610 = scmp.lt.s32.totalorder %s33, 1
      %s611 = scalar_select %p610, %s33, 1
      %s612 = smul.addr %s611, 2
      %s613 = smul.addr %s612, 8
      %s614 = scalar_lea.vmem %s0, %s613
      %s615 = smul.u32 2, %s34
      %p616 = scmp.lt.s32.totalorder %s33, 1
      %s617 = scalar_select %p616, %s33, 1
      %p618 = scmp.lt.s32.totalorder %s615, 1
      %s619 = scalar_select %p618, %s615, 1
      %s620 = smul.addr %s617, 2
      %s621 = sadd.s32 %s619, %s620
      %s622 = smul.addr %s621, 8
      %s623 = scalar_lea.vmem %s1, %s622
      %s624 = smul.u32 2, %s34
      %s625 = smul.u32 2, %s34
      %p626 = scmp.lt.s32.totalorder %s33, 1
      %s627 = scalar_select %p626, %s33, 1
      %p628 = scmp.lt.s32.totalorder %s625, 1
      %s629 = scalar_select %p628, %s625, 1
      %s630 = smul.addr %s627, 2
      %s631 = sadd.s32 %s629, %s630
      %s632 = smul.addr %s631, 8
      %s633 = scalar_lea.vmem %s18, %s632
      %s634 = smul.u32 2, %s34
      %p636 = scmp.eq.s32.totalorder %s34, 0
      // Predicated region
      $region93: #{denseformer_forward.7} parent=91 // pred_check
        %p637 = pneg %p636
      $region94: #{denseformer_forward.7} parent=91 // pred_check_branch
        %639 = sbr.rel (%p637) target = $region96
      $region95: #{denseformer_forward.7} parent=91 // pred_region
        %v640 = vld [vmem:[%s614] sm:$0xff]
        %v641 = vld [vmem:[%s614 + $0x8] sm:$0xff]
        %v642 = vld [vmem:[%s4] sm:$0xf]
        %v643 = vld [vmem:[%s4 + $0x4] sm:$0xf]
        %v644 = vld [vmem:[%s4 + $0x8] sm:$0xf]
        %v645 = vld [vmem:[%s4 + $0xc] sm:$0xf]
        %v646 = vpack.c.bf16 %v641, %v640
        %v647 = vld [vmem:[%s5] sm:$0x1]
        %v649 = vlaneseq
        %v650 = vshrl.u32 %v649, 7
        %v651 = vsub.s32 0, %v650
        %v652 = vrot.slane %v647, %v651
        %v658 = vunpack.c.l.b16 %v642
        %v659 = vunpack.c.l.b16 %v643
        %v660 = vunpack.c.l.b16 %v644
        %v661 = vunpack.c.l.b16 %v645
        %v662 = vpack.c.b16 %v659, %v658
        %v663 = vpack.c.b16 %v661, %v660
        %vm666 = vcmask 261120
        %v668 = vsel %vm666, %v646, 0
        %670 = vmatprep.subr.bf16.mxu0 0
        %671 = vmatpush1.bf16.msra.mxu0 %v662
        %672 = vmatprep.subr.bf16.mxu0 0
        %673 = vmatpush1.bf16.msra.mxu0 %v663
        %674 = vmatprep.subr.bf16.mxu0 0
        %675 = vmatpush1.bf16.msra.mxu0 0
        %676 = vmatprep.subr.bf16.mxu0 0
        %677 = vmatpush1.bf16.msra.mxu0 0
        %678 = vmatprep.subr.bf16.mxu0 0
        %679 = vmatpush1.bf16.msra.mxu0 0
        %680 = vmatprep.subr.bf16.mxu0 0
        %681 = vmatpush1.bf16.msra.mxu0 0
        %682 = vmatprep.subr.bf16.mxu0 0
        %683 = vmatpush1.bf16.msra.mxu0 0
        %684 = vmatprep.subr.bf16.mxu0 0
        %685 = vmatpush1.bf16.msra.mxu0 0
        %686 = vmatprep.subr.bf16.mxu0 0
        %687 = vmatpush1.bf16.msra.mxu0 0
        %688 = vmatprep.subr.bf16.mxu0 0
        %689 = vmatpush1.bf16.msra.mxu0 0
        %690 = vmatprep.subr.bf16.mxu0 0
        %691 = vmatpush1.bf16.msra.mxu0 0
        %692 = vmatprep.subr.bf16.mxu0 0
        %693 = vmatpush1.bf16.msra.mxu0 0
        %694 = vmatprep.subr.bf16.mxu0 0
        %695 = vmatpush1.bf16.msra.mxu0 0
        %696 = vmatprep.subr.bf16.mxu0 0
        %697 = vmatpush1.bf16.msra.mxu0 0
        %698 = vmatprep.subr.bf16.mxu0 0
        %699 = vmatpush1.bf16.msra.mxu0 0
        %700 = vmatprep.subr.bf16.mxu0 0
        %701 = vmatpush1.bf16.msra.mxu0 0
        %702 = vmatprep.mubr.bf16.mxu0 0
        %703 = vmatmul.mubr.bf16.gmra.mrb[0].mxu0 %v668
        %v704 = vpop.f32.mrb[0].mxu0
        %v705 = vadd.f32 %v652, %v704
        %v706 = vpop.f32.mrb[0].mxu0
        %v707 = vpop.f32.mrb[0].mxu0
        %v708 = vadd.f32 %v652, %v707
        %v709 = vpop.f32.mrb[0].mxu0
        %710 = vdwg.mxu0
        %v711 = vpack.c.bf16 %v708, %v705
        %712 = vst.msk [vmem:[#allocation2] sm:$0xff] %vm666, %v711
        %v713 = vld [vmem:[%s6] sm:$0xf]
        %v714 = vld [vmem:[%s6 + $0x4] sm:$0xf]
        %v715 = vld [vmem:[%s6 + $0x8] sm:$0xf]
        %v716 = vld [vmem:[%s6 + $0xc] sm:$0xf]
        %v717 = vld [vmem:[%s7] sm:$0x1]
        %v719 = vlaneseq
        %v720 = vshrl.u32 %v719, 7
        %v721 = vsub.s32 0, %v720
        %v722 = vrot.slane %v717, %v721
        %v728 = vunpack.c.l.b16 %v713
        %v729 = vunpack.c.l.b16 %v714
        %v730 = vunpack.c.l.b16 %v715
        %v731 = vunpack.c.l.b16 %v716
        %v732 = vpack.c.b16 %v729, %v728
        %v733 = vpack.c.b16 %v731, %v730
        %736 = vmatprep.subr.bf16.mxu0 0
        %737 = vmatpush1.bf16.msra.mxu0 %v732
        %738 = vmatprep.subr.bf16.mxu0 0
        %739 = vmatpush1.bf16.msra.mxu0 %v733
        %740 = vmatprep.subr.bf16.mxu0 0
        %741 = vmatpush1.bf16.msra.mxu0 0
        %742 = vmatprep.subr.bf16.mxu0 0
        %743 = vmatpush1.bf16.msra.mxu0 0
        %744 = vmatprep.subr.bf16.mxu0 0
        %745 = vmatpush1.bf16.msra.mxu0 0
        %746 = vmatprep.subr.bf16.mxu0 0
        %747 = vmatpush1.bf16.msra.mxu0 0
        %748 = vmatprep.subr.bf16.mxu0 0
        %749 = vmatpush1.bf16.msra.mxu0 0
        %750 = vmatprep.subr.bf16.mxu0 0
        %751 = vmatpush1.bf16.msra.mxu0 0
        %752 = vmatprep.subr.bf16.mxu0 0
        %753 = vmatpush1.bf16.msra.mxu0 0
        %754 = vmatprep.subr.bf16.mxu0 0
        %755 = vmatpush1.bf16.msra.mxu0 0
        %756 = vmatprep.subr.bf16.mxu0 0
        %757 = vmatpush1.bf16.msra.mxu0 0
        %758 = vmatprep.subr.bf16.mxu0 0
        %759 = vmatpush1.bf16.msra.mxu0 0
        %760 = vmatprep.subr.bf16.mxu0 0
        %761 = vmatpush1.bf16.msra.mxu0 0
        %762 = vmatprep.subr.bf16.mxu0 0
        %763 = vmatpush1.bf16.msra.mxu0 0
        %764 = vmatprep.subr.bf16.mxu0 0
        %765 = vmatpush1.bf16.msra.mxu0 0
        %766 = vmatprep.subr.bf16.mxu0 0
        %767 = vmatpush1.bf16.msra.mxu0 0
        %768 = vmatprep.mubr.bf16.mxu0 0
        %769 = vmatmul.mubr.bf16.gmra.mrb[0].mxu0 %v668
        %v770 = vpop.f32.mrb[0].mxu0
        %v771 = vadd.f32 %v722, %v770
        %v772 = vpop.f32.mrb[0].mxu0
        %v773 = vpop.f32.mrb[0].mxu0
        %v774 = vadd.f32 %v722, %v773
        %v775 = vpop.f32.mrb[0].mxu0
        %776 = vdwg.mxu0
        %v777 = vpack.c.bf16 %v774, %v771
        %778 = vst.msk [vmem:[#allocation3] sm:$0xff] %vm666, %v777
      $region96: #{denseformer_forward.7} parent=91 // pred_fallthru
        _
      %v779 = vld [vmem:[%s623] sm:$0xff]
      %v780 = vld [vmem:[%s623 + $0x8] sm:$0xff]
      %v781 = vld [vmem:[%s2] sm:$0xf]
      %v782 = vld [vmem:[%s2 + $0x4] sm:$0xf]
      %v783 = vld [vmem:[%s2 + $0x8] sm:$0xf]
      %v784 = vld [vmem:[%s2 + $0xc] sm:$0xf]
      %v785 = vpack.c.bf16 %v780, %v779
      %v786 = vld [vmem:[%s3] sm:$0x1]
      %v788 = vlaneseq
      %v789 = vshrl.u32 %v788, 7
      %v790 = vsub.s32 0, %v789
      %v791 = vrot.slane %v786, %v790
      %v797 = vunpack.c.l.b16 %v781
      %v798 = vunpack.c.l.b16 %v782
      %v799 = vunpack.c.l.b16 %v783
      %v800 = vunpack.c.l.b16 %v784
      %v801 = vpack.c.b16 %v798, %v797
      %v802 = vpack.c.b16 %v800, %v799
      %vm805 = vcmask 261120
      %v807 = vsel %vm805, %v785, 0
      %809 = vmatprep.subr.bf16.mxu0 0
      %810 = vmatpush1.bf16.msra.mxu0 %v801
      %811 = vmatprep.subr.bf16.mxu0 0
      %812 = vmatpush1.bf16.msra.mxu0 %v802
      %813 = vmatprep.subr.bf16.mxu0 0
      %814 = vmatpush1.bf16.msra.mxu0 0
      %815 = vmatprep.subr.bf16.mxu0 0
      %816 = vmatpush1.bf16.msra.mxu0 0
      %817 = vmatprep.subr.bf16.mxu0 0
      %818 = vmatpush1.bf16.msra.mxu0 0
      %819 = vmatprep.subr.bf16.mxu0 0
      %820 = vmatpush1.bf16.msra.mxu0 0
      %821 = vmatprep.subr.bf16.mxu0 0
      %822 = vmatpush1.bf16.msra.mxu0 0
      %823 = vmatprep.subr.bf16.mxu0 0
      %824 = vmatpush1.bf16.msra.mxu0 0
      %825 = vmatprep.subr.bf16.mxu0 0
      %826 = vmatpush1.bf16.msra.mxu0 0
      %827 = vmatprep.subr.bf16.mxu0 0
      %828 = vmatpush1.bf16.msra.mxu0 0
      %829 = vmatprep.subr.bf16.mxu0 0
      %830 = vmatpush1.bf16.msra.mxu0 0
      %831 = vmatprep.subr.bf16.mxu0 0
      %832 = vmatpush1.bf16.msra.mxu0 0
      %833 = vmatprep.subr.bf16.mxu0 0
      %834 = vmatpush1.bf16.msra.mxu0 0
      %835 = vmatprep.subr.bf16.mxu0 0
      %836 = vmatpush1.bf16.msra.mxu0 0
      %837 = vmatprep.subr.bf16.mxu0 0
      %838 = vmatpush1.bf16.msra.mxu0 0
      %839 = vmatprep.subr.bf16.mxu0 0
      %840 = vmatpush1.bf16.msra.mxu0 0
      %841 = vmatprep.mubr.bf16.mxu0 0
      %842 = vmatmul.mubr.bf16.gmra.mrb[0].mxu0 %v807
      %v843 = vpop.f32.mrb[0].mxu0
      %v844 = vadd.f32 %v791, %v843
      %v845 = vpop.f32.mrb[0].mxu0
      %v846 = vpop.f32.mrb[0].mxu0
      %v847 = vadd.f32 %v791, %v846
      %v848 = vpop.f32.mrb[0].mxu0
      %849 = vdwg.mxu0
      %v850 = vld [vmem:[#allocation2] sm:$0xff]
      %v851 = vld [vmem:[#allocation3] sm:$0xff]
      %v852 = vpack.c.bf16 %v847, %v844
      %vm853 = vcmask 64512
      %v855 = vsel %vm853, %v852, 0
      %v858 = vsel %vm853, %v850, 0
      %860 = vmatprep.subr.bf16.mxu0 0
      %861 = vmatpush1.bf16.xpose.msra.mxu0 %v858
      %862 = vmatprep.subr.bf16.mxu0 0
      %863 = vmatpush1.bf16.xpose.msra.mxu0 0
      %864 = vmatprep.subr.bf16.mxu0 0
      %865 = vmatpush1.bf16.xpose.msra.mxu0 0
      %866 = vmatprep.subr.bf16.mxu0 0
      %867 = vmatpush1.bf16.xpose.msra.mxu0 0
      %868 = vmatprep.subr.bf16.mxu0 0
      %869 = vmatpush1.bf16.xpose.msra.mxu0 0
      %870 = vmatprep.subr.bf16.mxu0 0
      %871 = vmatpush1.bf16.xpose.msra.mxu0 0
      %872 = vmatprep.subr.bf16.mxu0 0
      %873 = vmatpush1.bf16.xpose.msra.mxu0 0
      %874 = vmatprep.subr.bf16.mxu0 0
      %875 = vmatpush1.bf16.xpose.msra.mxu0 0
      %876 = vmatprep.subr.bf16.mxu0 0
      %877 = vmatpush1.bf16.xpose.msra.mxu0 0
      %878 = vmatprep.subr.bf16.mxu0 0
      %879 = vmatpush1.bf16.xpose.msra.mxu0 0
      %880 = vmatprep.subr.bf16.mxu0 0
      %881 = vmatpush1.bf16.xpose.msra.mxu0 0
      %882 = vmatprep.subr.bf16.mxu0 0
      %883 = vmatpush1.bf16.xpose.msra.mxu0 0
      %884 = vmatprep.subr.bf16.mxu0 0
      %885 = vmatpush1.bf16.xpose.msra.mxu0 0
      %886 = vmatprep.subr.bf16.mxu0 0
      %887 = vmatpush1.bf16.xpose.msra.mxu0 0
      %888 = vmatprep.subr.bf16.mxu0 0
      %889 = vmatpush1.bf16.xpose.msra.mxu0 0
      %890 = vmatprep.subr.bf16.mxu0 0
      %891 = vmatpush1.bf16.xpose.msra.mxu0 0
      %892 = vmatprep.mubr.bf16.mxu0 0
      %893 = vmatmul.mubr.bf16.gmra.mrb[0].mxu0 %v855
      %v894 = vpop.f32.mrb[0].mxu0
      %v895 = vadd.f32 0.0, %v894
      %v896 = vpop.f32.mrb[0].mxu0
      %v897 = vpop.f32.mrb[0].mxu0
      %v898 = vadd.f32 0.0, %v897
      %v899 = vpop.f32.mrb[0].mxu0
      %900 = vdwg.mxu0
      %v901 = vmul.f32 %v895, 0.35355338
      %v902 = vmul.f32 %v898, 0.35355338
      %vm903 = vcmask 130048
      %v904 = vsel %vm903, %v901, -inf
      %905 = vmax.xlane.f32.xlu0 %v904
      %v906 = vpop.xlane.xlu0 %905
      %v907 = vsel %vm903, %v902, -inf
      %908 = vmax.xlane.f32.xlu0 %v907
      %v909 = vpop.xlane.xlu0 %908
      %v910 = vsub.f32 %v901, %v906
      %v911 = vsub.f32 %v902, %v909
      %v912 = vmul.f32 %v910, 1.442695
      %v913 = vpow.pop %v912
      %v914 = vmul.f32 %v911, 1.442695
      %v915 = vpow.pop %v914
      %v916 = vsel %vm903, %v913, 0.0
      %917 = vadd.xlane.f32.xlu0 %v916
      %v918 = vpop.xlane.xlu0 %917
      %v919 = vsel %vm903, %v915, 0.0
      %920 = vadd.xlane.f32.xlu0 %v919
      %v921 = vpop.xlane.xlu0 %920
      %v922 = vrcp.pop %v918
      %v923 = vrcp.pop %v921
      %v924 = vpack.c.bf16 %v915, %v913
      %v926 = vsel %vm903, %v924, 0
      %928 = vmatprep.subr.bf16.mxu0 0
      %929 = vmatpush1.bf16.msra.mxu0 %v851
      %930 = vmatprep.subr.bf16.mxu0 0
      %931 = vmatpush1.bf16.msra.mxu0 0
      %932 = vmatprep.subr.bf16.mxu0 0
      %933 = vmatpush1.bf16.msra.mxu0 0
      %934 = vmatprep.subr.bf16.mxu0 0
      %935 = vmatpush1.bf16.msra.mxu0 0
      %936 = vmatprep.subr.bf16.mxu0 0
      %937 = vmatpush1.bf16.msra.mxu0 0
      %938 = vmatprep.subr.bf16.mxu0 0
      %939 = vmatpush1.bf16.msra.mxu0 0
      %940 = vmatprep.subr.bf16.mxu0 0
      %941 = vmatpush1.bf16.msra.mxu0 0
      %942 = vmatprep.subr.bf16.mxu0 0
      %943 = vmatpush1.bf16.msra.mxu0 0
      %944 = vmatprep.subr.bf16.mxu0 0
      %945 = vmatpush1.bf16.msra.mxu0 0
      %946 = vmatprep.subr.bf16.mxu0 0
      %947 = vmatpush1.bf16.msra.mxu0 0
      %948 = vmatprep.subr.bf16.mxu0 0
      %949 = vmatpush1.bf16.msra.mxu0 0
      %950 = vmatprep.subr.bf16.mxu0 0
      %951 = vmatpush1.bf16.msra.mxu0 0
      %952 = vmatprep.subr.bf16.mxu0 0
      %953 = vmatpush1.bf16.msra.mxu0 0
      %954 = vmatprep.subr.bf16.mxu0 0
      %955 = vmatpush1.bf16.msra.mxu0 0
      %956 = vmatprep.subr.bf16.mxu0 0
      %957 = vmatpush1.bf16.msra.mxu0 0
      %958 = vmatprep.subr.bf16.mxu0 0
      %959 = vmatpush1.bf16.msra.mxu0 0
      %960 = vmatprep.mubr.bf16.mxu0 0
      %961 = vmatmul.mubr.bf16.gmra.mrb[0].mxu0 %v926
      %v962 = vpop.f32.mrb[0].mxu0
      %v963 = vadd.f32 0.0, %v962
      %v964 = vpop.f32.mrb[0].mxu0
      %v965 = vpop.f32.mrb[0].mxu0
      %v966 = vadd.f32 0.0, %v965
      %v967 = vpop.f32.mrb[0].mxu0
      %968 = vdwg.mxu0
      %v969 = vmul.f32 %v963, %v922
      %v970 = vmul.f32 %v966, %v923
      %971 = vst.msk [vmem:[#allocation4] sm:$0xff] %vm853, %v969
      %972 = vst.msk [vmem:[#allocation4 + $0x8] sm:$0xff] %vm853, %v970
      %974 = vrot.lane.b32.xlu0 %v852, 120
      %v975 = vpop.permute.xlu0 %974
      %977 = vrot.lane.b32.xlu0 %v850, 120
      %v978 = vpop.permute.xlu0 %977
      %v980 = vsel %vm853, %v975, 0
      %v983 = vsel %vm853, %v978, 0
      %985 = vmatprep.subr.bf16.mxu0 0
      %986 = vmatpush1.bf16.xpose.msra.mxu0 %v983
      %987 = vmatprep.subr.bf16.mxu0 0
      %988 = vmatpush1.bf16.xpose.msra.mxu0 0
      %989 = vmatprep.subr.bf16.mxu0 0
      %990 = vmatpush1.bf16.xpose.msra.mxu0 0
      %991 = vmatprep.subr.bf16.mxu0 0
      %992 = vmatpush1.bf16.xpose.msra.mxu0 0
      %993 = vmatprep.subr.bf16.mxu0 0
      %994 = vmatpush1.bf16.xpose.msra.mxu0 0
      %995 = vmatprep.subr.bf16.mxu0 0
      %996 = vmatpush1.bf16.xpose.msra.mxu0 0
      %997 = vmatprep.subr.bf16.mxu0 0
      %998 = vmatpush1.bf16.xpose.msra.mxu0 0
      %999 = vmatprep.subr.bf16.mxu0 0
      %1000 = vmatpush1.bf16.xpose.msra.mxu0 0
      %1001 = vmatprep.subr.bf16.mxu0 0
      %1002 = vmatpush1.bf16.xpose.msra.mxu0 0
      %1003 = vmatprep.subr.bf16.mxu0 0
      %1004 = vmatpush1.bf16.xpose.msra.mxu0 0
      %1005 = vmatprep.subr.bf16.mxu0 0
      %1006 = vmatpush1.bf16.xpose.msra.mxu0 0
      %1007 = vmatprep.subr.bf16.mxu0 0
      %1008 = vmatpush1.bf16.xpose.msra.mxu0 0
      %1009 = vmatprep.subr.bf16.mxu0 0
      %1010 = vmatpush1.bf16.xpose.msra.mxu0 0
      %1011 = vmatprep.subr.bf16.mxu0 0
      %1012 = vmatpush1.bf16.xpose.msra.mxu0 0
      %1013 = vmatprep.subr.bf16.mxu0 0
      %1014 = vmatpush1.bf16.xpose.msra.mxu0 0
      %1015 = vmatprep.subr.bf16.mxu0 0
      %1016 = vmatpush1.bf16.xpose.msra.mxu0 0
      %1017 = vmatprep.mubr.bf16.mxu0 0
      %1018 = vmatmul.mubr.bf16.gmra.mrb[0].mxu0 %v980
      %v1019 = vpop.f32.mrb[0].mxu0
      %v1020 = vadd.f32 0.0, %v1019
      %v1021 = vpop.f32.mrb[0].mxu0
      %v1022 = vpop.f32.mrb[0].mxu0
      %v1023 = vadd.f32 0.0, %v1022
      %v1024 = vpop.f32.mrb[0].mxu0
      %1025 = vdwg.mxu0
      %v1026 = vmul.f32 %v1020, 0.35355338
      %v1027 = vmul.f32 %v1023, 0.35355338
      %v1028 = vsel %vm903, %v1026, -inf
      %1029 = vmax.xlane.f32.xlu0 %v1028
      %v1030 = vpop.xlane.xlu0 %1029
      %v1031 = vsel %vm903, %v1027, -inf
      %1032 = vmax.xlane.f32.xlu0 %v1031
      %v1033 = vpop.xlane.xlu0 %1032
      %v1034 = vsub.f32 %v1026, %v1030
      %v1035 = vsub.f32 %v1027, %v1033
      %v1036 = vmul.f32 %v1034, 1.442695
      %v1037 = vpow.pop %v1036
      %v1038 = vmul.f32 %v1035, 1.442695
      %v1039 = vpow.pop %v1038
      %v1040 = vsel %vm903, %v1037, 0.0
      %1041 = vadd.xlane.f32.xlu0 %v1040
      %v1042 = vpop.xlane.xlu0 %1041
      %v1043 = vsel %vm903, %v1039, 0.0
      %1044 = vadd.xlane.f32.xlu0 %v1043
      %v1045 = vpop.xlane.xlu0 %1044
      %v1046 = vrcp.pop %v1042
      %v1047 = vrcp.pop %v1045
      %v1048 = vpack.c.bf16 %v1039, %v1037
      %1050 = vrot.lane.b32.xlu0 %v851, 120
      %v1051 = vpop.permute.xlu0 %1050
      %v1054 = vsel %vm903, %v1048, 0
      %1056 = vmatprep.subr.bf16.mxu0 0
      %1057 = vmatpush1.bf16.msra.mxu0 %v1051
      %1058 = vmatprep.subr.bf16.mxu0 0
      %1059 = vmatpush1.bf16.msra.mxu0 0
      %1060 = vmatprep.subr.bf16.mxu0 0
      %1061 = vmatpush1.bf16.msra.mxu0 0
      %1062 = vmatprep.subr.bf16.mxu0 0
      %1063 = vmatpush1.bf16.msra.mxu0 0
      %1064 = vmatprep.subr.bf16.mxu0 0
      %1065 = vmatpush1.bf16.msra.mxu0 0
      %1066 = vmatprep.subr.bf16.mxu0 0
      %1067 = vmatpush1.bf16.msra.mxu0 0
      %1068 = vmatprep.subr.bf16.mxu0 0
      %1069 = vmatpush1.bf16.msra.mxu0 0
      %1070 = vmatprep.subr.bf16.mxu0 0
      %1071 = vmatpush1.bf16.msra.mxu0 0
      %1072 = vmatprep.subr.bf16.mxu0 0
      %1073 = vmatpush1.bf16.msra.mxu0 0
      %1074 = vmatprep.subr.bf16.mxu0 0
      %1075 = vmatpush1.bf16.msra.mxu0 0
      %1076 = vmatprep.subr.bf16.mxu0 0
      %1077 = vmatpush1.bf16.msra.mxu0 0
      %1078 = vmatprep.subr.bf16.mxu0 0
      %1079 = vmatpush1.bf16.msra.mxu0 0
      %1080 = vmatprep.subr.bf16.mxu0 0
      %1081 = vmatpush1.bf16.msra.mxu0 0
      %1082 = vmatprep.subr.bf16.mxu0 0
      %1083 = vmatpush1.bf16.msra.mxu0 0
      %1084 = vmatprep.subr.bf16.mxu0 0
      %1085 = vmatpush1.bf16.msra.mxu0 0
      %1086 = vmatprep.subr.bf16.mxu0 0
      %1087 = vmatpush1.bf16.msra.mxu0 0
      %1088 = vmatprep.mubr.bf16.mxu0 0
      %1089 = vmatmul.mubr.bf16.gmra.mrb[0].mxu0 %v1054
      %v1090 = vpop.f32.mrb[0].mxu0
      %v1091 = vadd.f32 0.0, %v1090
      %v1092 = vpop.f32.mrb[0].mxu0
      %v1093 = vpop.f32.mrb[0].mxu0
      %v1094 = vadd.f32 0.0, %v1093
      %v1095 = vpop.f32.mrb[0].mxu0
      %1096 = vdwg.mxu0
      %v1097 = vmul.f32 %v1091, %v1046
      %v1098 = vmul.f32 %v1094, %v1047
      %1101 = vrot.lane.b32.xlu0 %v1097, 8
      %v1102 = vpop.permute.xlu0 %1101
      %1103 = vrot.lane.b32.xlu0 %v1098, 8
      %v1104 = vpop.permute.xlu0 %1103
      %vm1107 = vcmask 130112
      %1108 = vst.msk [vmem:[#allocation4] sm:$0xff] %vm1107, %v1102
      %1109 = vst.msk [vmem:[#allocation4 + $0x8] sm:$0xff] %vm1107, %v1104
      %1110 = vrot.lane.b32.xlu0 %v852, 112
      %v1111 = vpop.permute.xlu0 %1110
      %1112 = vrot.lane.b32.xlu0 %v850, 112
      %v1113 = vpop.permute.xlu0 %1112
      %v1115 = vsel %vm853, %v1111, 0
      %v1118 = vsel %vm853, %v1113, 0
      %1120 = vmatprep.subr.bf16.mxu0 0
      %1121 = vmatpush1.bf16.xpose.msra.mxu0 %v1118
      %1122 = vmatprep.subr.bf16.mxu0 0
      %1123 = vmatpush1.bf16.xpose.msra.mxu0 0
      %1124 = vmatprep.subr.bf16.mxu0 0
      %1125 = vmatpush1.bf16.xpose.msra.mxu0 0
      %1126 = vmatprep.subr.bf16.mxu0 0
      %1127 = vmatpush1.bf16.xpose.msra.mxu0 0
      %1128 = vmatprep.subr.bf16.mxu0 0
      %1129 = vmatpush1.bf16.xpose.msra.mxu0 0
      %1130 = vmatprep.subr.bf16.mxu0 0
      %1131 = vmatpush1.bf16.xpose.msra.mxu0 0
      %1132 = vmatprep.subr.bf16.mxu0 0
      %1133 = vmatpush1.bf16.xpose.msra.mxu0 0
      %1134 = vmatprep.subr.bf16.mxu0 0
      %1135 = vmatpush1.bf16.xpose.msra.mxu0 0
      %1136 = vmatprep.subr.bf16.mxu0 0
      %1137 = vmatpush1.bf16.xpose.msra.mxu0 0
      %1138 = vmatprep.subr.bf16.mxu0 0
      %1139 = vmatpush1.bf16.xpose.msra.mxu0 0
      %1140 = vmatprep.subr.bf16.mxu0 0
      %1141 = vmatpush1.bf16.xpose.msra.mxu0 0
      %1142 = vmatprep.subr.bf16.mxu0 0
      %1143 = vmatpush1.bf16.xpose.msra.mxu0 0
      %1144 = vmatprep.subr.bf16.mxu0 0
      %1145 = vmatpush1.bf16.xpose.msra.mxu0 0
      %1146 = vmatprep.subr.bf16.mxu0 0
      %1147 = vmatpush1.bf16.xpose.msra.mxu0 0
      %1148 = vmatprep.subr.bf16.mxu0 0
      %1149 = vmatpush1.bf16.xpose.msra.mxu0 0
      %1150 = vmatprep.subr.bf16.mxu0 0
      %1151 = vmatpush1.bf16.xpose.msra.mxu0 0
      %1152 = vmatprep.mubr.bf16.mxu0 0
      %1153 = vmatmul.mubr.bf16.gmra.mrb[0].mxu0 %v1115
      %v1154 = vpop.f32.mrb[0].mxu0
      %v1155 = vadd.f32 0.0, %v1154
      %v1156 = vpop.f32.mrb[0].mxu0
      %v1157 = vpop.f32.mrb[0].mxu0
      %v1158 = vadd.f32 0.0, %v1157
      %v1159 = vpop.f32.mrb[0].mxu0
      %1160 = vdwg.mxu0
      %v1161 = vmul.f32 %v1155, 0.35355338
      %v1162 = vmul.f32 %v1158, 0.35355338
      %v1163 = vsel %vm903, %v1161, -inf
      %1164 = vmax.xlane.f32.xlu0 %v1163
      %v1165 = vpop.xlane.xlu0 %1164
      %v1166 = vsel %vm903, %v1162, -inf
      %1167 = vmax.xlane.f32.xlu0 %v1166
      %v1168 = vpop.xlane.xlu0 %1167
      %v1169 = vsub.f32 %v1161, %v1165
      %v1170 = vsub.f32 %v1162, %v1168
      %v1171 = vmul.f32 %v1169, 1.442695
      %v1172 = vpow.pop %v1171
      %v1173 = vmul.f32 %v1170, 1.442695
      %v1174 = vpow.pop %v1173
      %v1175 = vsel %vm903, %v1172, 0.0
      %1176 = vadd.xlane.f32.xlu0 %v1175
      %v1177 = vpop.xlane.xlu0 %1176
      %v1178 = vsel %vm903, %v1174, 0.0
      %1179 = vadd.xlane.f32.xlu0 %v1178
      %v1180 = vpop.xlane.xlu0 %1179
      %v1181 = vrcp.pop %v1177
      %v1182 = vrcp.pop %v1180
      %v1183 = vpack.c.bf16 %v1174, %v1172
      %1184 = vrot.lane.b32.xlu0 %v851, 112
      %v1185 = vpop.permute.xlu0 %1184
      %v1188 = vsel %vm903, %v1183, 0
      %1190 = vmatprep.subr.bf16.mxu0 0
      %1191 = vmatpush1.bf16.msra.mxu0 %v1185
      %1192 = vmatprep.subr.bf16.mxu0 0
      %1193 = vmatpush1.bf16.msra.mxu0 0
      %1194 = vmatprep.subr.bf16.mxu0 0
      %1195 = vmatpush1.bf16.msra.mxu0 0
      %1196 = vmatprep.subr.bf16.mxu0 0
      %1197 = vmatpush1.bf16.msra.mxu0 0
      %1198 = vmatprep.subr.bf16.mxu0 0
      %1199 = vmatpush1.bf16.msra.mxu0 0
      %1200 = vmatprep.subr.bf16.mxu0 0
      %1201 = vmatpush1.bf16.msra.mxu0 0
      %1202 = vmatprep.subr.bf16.mxu0 0
      %1203 = vmatpush1.bf16.msra.mxu0 0
      %1204 = vmatprep.subr.bf16.mxu0 0
      %1205 = vmatpush1.bf16.msra.mxu0 0
      %1206 = vmatprep.subr.bf16.mxu0 0
      %1207 = vmatpush1.bf16.msra.mxu0 0
      %1208 = vmatprep.subr.bf16.mxu0 0
      %1209 = vmatpush1.bf16.msra.mxu0 0
      %1210 = vmatprep.subr.bf16.mxu0 0
      %1211 = vmatpush1.bf16.msra.mxu0 0
      %1212 = vmatprep.subr.bf16.mxu0 0
      %1213 = vmatpush1.bf16.msra.mxu0 0
      %1214 = vmatprep.subr.bf16.mxu0 0
      %1215 = vmatpush1.bf16.msra.mxu0 0
      %1216 = vmatprep.subr.bf16.mxu0 0
      %1217 = vmatpush1.bf16.msra.mxu0 0
      %1218 = vmatprep.subr.bf16.mxu0 0
      %1219 = vmatpush1.bf16.msra.mxu0 0
      %1220 = vmatprep.subr.bf16.mxu0 0
      %1221 = vmatpush1.bf16.msra.mxu0 0
      %1222 = vmatprep.mubr.bf16.mxu0 0
      %1223 = vmatmul.mubr.bf16.gmra.mrb[0].mxu0 %v1188
      %v1224 = vpop.f32.mrb[0].mxu0
      %v1225 = vadd.f32 0.0, %v1224
      %v1226 = vpop.f32.mrb[0].mxu0
      %v1227 = vpop.f32.mrb[0].mxu0
      %v1228 = vadd.f32 0.0, %v1227
      %v1229 = vpop.f32.mrb[0].mxu0
      %1230 = vdwg.mxu0
      %v1231 = vmul.f32 %v1225, %v1181
      %v1232 = vmul.f32 %v1228, %v1182
      %1235 = vrot.lane.b32.xlu0 %v1231, 16
      %v1236 = vpop.permute.xlu0 %1235
      %1237 = vrot.lane.b32.xlu0 %v1232, 16
      %v1238 = vpop.permute.xlu0 %1237
      %vm1241 = vcmask 195712
      %1242 = vst.msk [vmem:[#allocation4] sm:$0xff] %vm1241, %v1236
      %1243 = vst.msk [vmem:[#allocation4 + $0x8] sm:$0xff] %vm1241, %v1238
      %1244 = vrot.lane.b32.xlu0 %v852, 104
      %v1245 = vpop.permute.xlu0 %1244
      %1246 = vrot.lane.b32.xlu0 %v850, 104
      %v1247 = vpop.permute.xlu0 %1246
      %v1249 = vsel %vm853, %v1245, 0
      %v1252 = vsel %vm853, %v1247, 0
      %1254 = vmatprep.subr.bf16.mxu0 0
      %1255 = vmatpush1.bf16.xpose.msra.mxu0 %v1252
      %1256 = vmatprep.subr.bf16.mxu0 0
      %1257 = vmatpush1.bf16.xpose.msra.mxu0 0
      %1258 = vmatprep.subr.bf16.mxu0 0
      %1259 = vmatpush1.bf16.xpose.msra.mxu0 0
      %1260 = vmatprep.subr.bf16.mxu0 0
      %1261 = vmatpush1.bf16.xpose.msra.mxu0 0
      %1262 = vmatprep.subr.bf16.mxu0 0
      %1263 = vmatpush1.bf16.xpose.msra.mxu0 0
      %1264 = vmatprep.subr.bf16.mxu0 0
      %1265 = vmatpush1.bf16.xpose.msra.mxu0 0
      %1266 = vmatprep.subr.bf16.mxu0 0
      %1267 = vmatpush1.bf16.xpose.msra.mxu0 0
      %1268 = vmatprep.subr.bf16.mxu0 0
      %1269 = vmatpush1.bf16.xpose.msra.mxu0 0
      %1270 = vmatprep.subr.bf16.mxu0 0
      %1271 = vmatpush1.bf16.xpose.msra.mxu0 0
      %1272 = vmatprep.subr.bf16.mxu0 0
      %1273 = vmatpush1.bf16.xpose.msra.mxu0 0
      %1274 = vmatprep.subr.bf16.mxu0 0
      %1275 = vmatpush1.bf16.xpose.msra.mxu0 0
      %1276 = vmatprep.subr.bf16.mxu0 0
      %1277 = vmatpush1.bf16.xpose.msra.mxu0 0
      %1278 = vmatprep.subr.bf16.mxu0 0
      %1279 = vmatpush1.bf16.xpose.msra.mxu0 0
      %1280 = vmatprep.subr.bf16.mxu0 0
      %1281 = vmatpush1.bf16.xpose.msra.mxu0 0
      %1282 = vmatprep.subr.bf16.mxu0 0
      %1283 = vmatpush1.bf16.xpose.msra.mxu0 0
      %1284 = vmatprep.subr.bf16.mxu0 0
      %1285 = vmatpush1.bf16.xpose.msra.mxu0 0
      %1286 = vmatprep.mubr.bf16.mxu0 0
      %1287 = vmatmul.mubr.bf16.gmra.mrb[0].mxu0 %v1249
      %v1288 = vpop.f32.mrb[0].mxu0
      %v1289 = vadd.f32 0.0, %v1288
      %v1290 = vpop.f32.mrb[0].mxu0
      %v1291 = vpop.f32.mrb[0].mxu0
      %v1292 = vadd.f32 0.0, %v1291
      %v1293 = vpop.f32.mrb[0].mxu0
      %1294 = vdwg.mxu0
      %v1295 = vmul.f32 %v1289, 0.35355338
      %v1296 = vmul.f32 %v1292, 0.35355338
      %v1297 = vsel %vm903, %v1295, -inf
      %1298 = vmax.xlane.f32.xlu0 %v1297
      %v1299 = vpop.xlane.xlu0 %1298
      %v1300 = vsel %vm903, %v1296, -inf
      %1301 = vmax.xlane.f32.xlu0 %v1300
      %v1302 = vpop.xlane.xlu0 %1301
      %v1303 = vsub.f32 %v1295, %v1299
      %v1304 = vsub.f32 %v1296, %v1302
      %v1305 = vmul.f32 %v1303, 1.442695
      %v1306 = vpow.pop %v1305
      %v1307 = vmul.f32 %v1304, 1.442695
      %v1308 = vpow.pop %v1307
      %v1309 = vsel %vm903, %v1306, 0.0
      %1310 = vadd.xlane.f32.xlu0 %v1309
      %v1311 = vpop.xlane.xlu0 %1310
      %v1312 = vsel %vm903, %v1308, 0.0
      %1313 = vadd.xlane.f32.xlu0 %v1312
      %v1314 = vpop.xlane.xlu0 %1313
      %v1315 = vrcp.pop %v1311
      %v1316 = vrcp.pop %v1314
      %v1317 = vpack.c.bf16 %v1308, %v1306
      %1318 = vrot.lane.b32.xlu0 %v851, 104
      %v1319 = vpop.permute.xlu0 %1318
      %v1322 = vsel %vm903, %v1317, 0
      %1324 = vmatprep.subr.bf16.mxu0 0
      %1325 = vmatpush1.bf16.msra.mxu0 %v1319
      %1326 = vmatprep.subr.bf16.mxu0 0
      %1327 = vmatpush1.bf16.msra.mxu0 0
      %1328 = vmatprep.subr.bf16.mxu0 0
      %1329 = vmatpush1.bf16.msra.mxu0 0
      %1330 = vmatprep.subr.bf16.mxu0 0
      %1331 = vmatpush1.bf16.msra.mxu0 0
      %1332 = vmatprep.subr.bf16.mxu0 0
      %1333 = vmatpush1.bf16.msra.mxu0 0
      %1334 = vmatprep.subr.bf16.mxu0 0
      %1335 = vmatpush1.bf16.msra.mxu0 0
      %1336 = vmatprep.subr.bf16.mxu0 0
      %1337 = vmatpush1.bf16.msra.mxu0 0
      %1338 = vmatprep.subr.bf16.mxu0 0
      %1339 = vmatpush1.bf16.msra.mxu0 0
      %1340 = vmatprep.subr.bf16.mxu0 0
      %1341 = vmatpush1.bf16.msra.mxu0 0
      %1342 = vmatprep.subr.bf16.mxu0 0
      %1343 = vmatpush1.bf16.msra.mxu0 0
      %1344 = vmatprep.subr.bf16.mxu0 0
      %1345 = vmatpush1.bf16.msra.mxu0 0
      %1346 = vmatprep.subr.bf16.mxu0 0
      %1347 = vmatpush1.bf16.msra.mxu0 0
      %1348 = vmatprep.subr.bf16.mxu0 0
      %1349 = vmatpush1.bf16.msra.mxu0 0
      %1350 = vmatprep.subr.bf16.mxu0 0
      %1351 = vmatpush1.bf16.msra.mxu0 0
      %1352 = vmatprep.subr.bf16.mxu0 0
      %1353 = vmatpush1.bf16.msra.mxu0 0
      %1354 = vmatprep.subr.bf16.mxu0 0
      %1355 = vmatpush1.bf16.msra.mxu0 0
      %1356 = vmatprep.mubr.bf16.mxu0 0
      %1357 = vmatmul.mubr.bf16.gmra.mrb[0].mxu0 %v1322
      %v1358 = vpop.f32.mrb[0].mxu0
      %v1359 = vadd.f32 0.0, %v1358
      %v1360 = vpop.f32.mrb[0].mxu0
      %v1361 = vpop.f32.mrb[0].mxu0
      %v1362 = vadd.f32 0.0, %v1361
      %v1363 = vpop.f32.mrb[0].mxu0
      %1364 = vdwg.mxu0
      %v1365 = vmul.f32 %v1359, %v1315
      %v1366 = vmul.f32 %v1362, %v1316
      %1369 = vrot.lane.b32.xlu0 %v1365, 24
      %v1370 = vpop.permute.xlu0 %1369
      %1371 = vrot.lane.b32.xlu0 %v1366, 24
      %v1372 = vpop.permute.xlu0 %1371
      %vm1375 = vcmask 261312
      %1376 = vst.msk [vmem:[#allocation4] sm:$0xff] %vm1375, %v1370
      %1377 = vst.msk [vmem:[#allocation4 + $0x8] sm:$0xff] %vm1375, %v1372
      %v1378 = vld [vmem:[#allocation4] sm:$0xff]
      %v1379 = vld [vmem:[#allocation4 + $0x8] sm:$0xff]
      %v1380 = vld [vmem:[%s8] sm:$0xf]
      %v1381 = vld [vmem:[%s8 + $0x4] sm:$0xf]
      %v1382 = vld [vmem:[%s8 + $0x8] sm:$0xf]
      %v1383 = vld [vmem:[%s8 + $0xc] sm:$0xf]
      %v1384 = vpack.c.bf16 %v1379, %v1378
      %v1385 = vld [vmem:[%s9] sm:$0x1]
      %v1387 = vlaneseq
      %v1388 = vshrl.u32 %v1387, 7
      %v1389 = vsub.s32 0, %v1388
      %v1390 = vrot.slane %v1385, %v1389
      %v1396 = vunpack.c.l.b16 %v1380
      %v1397 = vunpack.c.l.b16 %v1381
      %v1398 = vunpack.c.l.b16 %v1382
      %v1399 = vunpack.c.l.b16 %v1383
      %v1400 = vpack.c.b16 %v1397, %v1396
      %v1401 = vpack.c.b16 %v1399, %v1398
      %v1405 = vsel %vm805, %v1384, 0
      %1407 = vmatprep.subr.bf16.mxu0 0
      %1408 = vmatpush1.bf16.msra.mxu0 %v1400
      %1409 = vmatprep.subr.bf16.mxu0 0
      %1410 = vmatpush1.bf16.msra.mxu0 %v1401
      %1411 = vmatprep.subr.bf16.mxu0 0
      %1412 = vmatpush1.bf16.msra.mxu0 0
      %1413 = vmatprep.subr.bf16.mxu0 0
      %1414 = vmatpush1.bf16.msra.mxu0 0
      %1415 = vmatprep.subr.bf16.mxu0 0
      %1416 = vmatpush1.bf16.msra.mxu0 0
      %1417 = vmatprep.subr.bf16.mxu0 0
      %1418 = vmatpush1.bf16.msra.mxu0 0
      %1419 = vmatprep.subr.bf16.mxu0 0
      %1420 = vmatpush1.bf16.msra.mxu0 0
      %1421 = vmatprep.subr.bf16.mxu0 0
      %1422 = vmatpush1.bf16.msra.mxu0 0
      %1423 = vmatprep.subr.bf16.mxu0 0
      %1424 = vmatpush1.bf16.msra.mxu0 0
      %1425 = vmatprep.subr.bf16.mxu0 0
      %1426 = vmatpush1.bf16.msra.mxu0 0
      %1427 = vmatprep.subr.bf16.mxu0 0
      %1428 = vmatpush1.bf16.msra.mxu0 0
      %1429 = vmatprep.subr.bf16.mxu0 0
      %1430 = vmatpush1.bf16.msra.mxu0 0
      %1431 = vmatprep.subr.bf16.mxu0 0
      %1432 = vmatpush1.bf16.msra.mxu0 0
      %1433 = vmatprep.subr.bf16.mxu0 0
      %1434 = vmatpush1.bf16.msra.mxu0 0
      %1435 = vmatprep.subr.bf16.mxu0 0
      %1436 = vmatpush1.bf16.msra.mxu0 0
      %1437 = vmatprep.subr.bf16.mxu0 0
      %1438 = vmatpush1.bf16.msra.mxu0 0
      %1439 = vmatprep.mubr.bf16.mxu0 0
      %1440 = vmatmul.mubr.bf16.gmra.mrb[0].mxu0 %v1405
      %v1441 = vpop.f32.mrb[0].mxu0
      %v1442 = vadd.f32 %v1390, %v1441
      %v1443 = vpop.f32.mrb[0].mxu0
      %v1444 = vpop.f32.mrb[0].mxu0
      %v1445 = vadd.f32 %v1390, %v1444
      %v1446 = vpop.f32.mrb[0].mxu0
      %1447 = vdwg.mxu0
      %v1448 = vadd.f32 %v779, %v1442
      %v1449 = vadd.f32 %v780, %v1445
      %v1450 = vld [vmem:[%s10] sm:$0x1]
      %v1451 = vld [vmem:[%s11] sm:$0x1]
      %v1452 = vsel %vm805, %v1448, 0.0
      %1453 = vadd.xlane.f32.xlu0 %v1452
      %v1454 = vpop.xlane.xlu0 %1453
      %v1455 = vsel %vm805, %v1449, 0.0
      %1456 = vadd.xlane.f32.xlu0 %v1455
      %v1457 = vpop.xlane.xlu0 %1456
      %v1458 = vrcp.pop 32.0
      %v1459 = vmul.f32 %v1454, %v1458
      %v1460 = vmul.f32 %v1457, %v1458
      %v1461 = vsub.f32 %v1448, %v1459
      %v1462 = vsub.f32 %v1449, %v1460
      %v1463 = vmul.f32 %v1461, %v1461
      %v1464 = vmul.f32 %v1462, %v1462
      %v1465 = vsel %vm805, %v1463, 0.0
      %1466 = vadd.xlane.f32.xlu0 %v1465
      %v1467 = vpop.xlane.xlu0 %1466
      %v1468 = vsel %vm805, %v1464, 0.0
      %1469 = vadd.xlane.f32.xlu0 %v1468
      %v1470 = vpop.xlane.xlu0 %1469
      %v1471 = vmul.f32 %v1467, %v1458
      %v1472 = vmul.f32 %v1470, %v1458
      %v1473 = vadd.f32 %v1471, 1e-05
      %v1474 = vadd.f32 %v1472, 1e-05
      %v1475 = vrsqrt.pop %v1473
      %v1476 = vrsqrt.pop %v1474
      %v1477 = vmul.f32 %v1461, %v1475
      %v1478 = vmul.f32 %v1462, %v1476
      %v1480 = vlaneseq
      %v1481 = vshrl.u32 %v1480, 7
      %v1482 = vsub.s32 0, %v1481
      %v1483 = vrot.slane %v1450, %v1482
      %v1485 = vmul.f32 %v1477, %v1483
      %v1486 = vmul.f32 %v1478, %v1483
      %v1488 = vlaneseq
      %v1489 = vshrl.u32 %v1488, 7
      %v1490 = vsub.s32 0, %v1489
      %v1491 = vrot.slane %v1451, %v1490
      %v1493 = vadd.f32 %v1485, %v1491
      %v1494 = vadd.f32 %v1486, %v1491
      %v1495 = vld [vmem:[%s12] sm:$0xf]
      %v1496 = vld [vmem:[%s12 + $0x4] sm:$0xf]
      %v1497 = vld [vmem:[%s12 + $0x8] sm:$0xf]
      %v1498 = vld [vmem:[%s12 + $0xc] sm:$0xf]
      %v1499 = vpack.c.bf16 %v1494, %v1493
      %v1500 = vld [vmem:[%s13] sm:$0x1]
      %v1502 = vlaneseq
      %v1503 = vshrl.u32 %v1502, 7
      %v1504 = vsub.s32 0, %v1503
      %v1505 = vrot.slane %v1500, %v1504
      %v1511 = vunpack.c.l.b16 %v1495
      %v1512 = vunpack.c.l.b16 %v1496
      %v1513 = vunpack.c.l.b16 %v1497
      %v1514 = vunpack.c.l.b16 %v1498
      %v1515 = vpack.c.b16 %v1512, %v1511
      %v1516 = vpack.c.b16 %v1514, %v1513
      %v1520 = vsel %vm805, %v1499, 0
      %1522 = vmatprep.subr.bf16.mxu0 0
      %1523 = vmatpush1.bf16.msra.mxu0 %v1515
      %1524 = vmatprep.subr.bf16.mxu0 0
      %1525 = vmatpush1.bf16.msra.mxu0 %v1516
      %1526 = vmatprep.subr.bf16.mxu0 0
      %1527 = vmatpush1.bf16.msra.mxu0 0
      %1528 = vmatprep.subr.bf16.mxu0 0
      %1529 = vmatpush1.bf16.msra.mxu0 0
      %1530 = vmatprep.subr.bf16.mxu0 0
      %1531 = vmatpush1.bf16.msra.mxu0 0
      %1532 = vmatprep.subr.bf16.mxu0 0
      %1533 = vmatpush1.bf16.msra.mxu0 0
      %1534 = vmatprep.subr.bf16.mxu0 0
      %1535 = vmatpush1.bf16.msra.mxu0 0
      %1536 = vmatprep.subr.bf16.mxu0 0
      %1537 = vmatpush1.bf16.msra.mxu0 0
      %1538 = vmatprep.subr.bf16.mxu0 0
      %1539 = vmatpush1.bf16.msra.mxu0 0
      %1540 = vmatprep.subr.bf16.mxu0 0
      %1541 = vmatpush1.bf16.msra.mxu0 0
      %1542 = vmatprep.subr.bf16.mxu0 0
      %1543 = vmatpush1.bf16.msra.mxu0 0
      %1544 = vmatprep.subr.bf16.mxu0 0
      %1545 = vmatpush1.bf16.msra.mxu0 0
      %1546 = vmatprep.subr.bf16.mxu0 0
      %1547 = vmatpush1.bf16.msra.mxu0 0
      %1548 = vmatprep.subr.bf16.mxu0 0
      %1549 = vmatpush1.bf16.msra.mxu0 0
      %1550 = vmatprep.subr.bf16.mxu0 0
      %1551 = vmatpush1.bf16.msra.mxu0 0
      %1552 = vmatprep.subr.bf16.mxu0 0
      %1553 = vmatpush1.bf16.msra.mxu0 0
      %1554 = vmatprep.mubr.bf16.mxu0 0
      %1555 = vmatmul.mubr.bf16.gmra.mrb[0].mxu0 %v1520
      %v1556 = vpop.f32.mrb[0].mxu0
      %v1557 = vadd.f32 %v1505, %v1556
      %v1558 = vpop.f32.mrb[0].mxu0
      %v1559 = vpop.f32.mrb[0].mxu0
      %v1560 = vadd.f32 %v1505, %v1559
      %v1561 = vpop.f32.mrb[0].mxu0
      %1562 = vdwg.mxu0
      %v1563 = vmul.f32 %v1557, 0.5
      %v1564 = vmul.f32 %v1560, 0.5
      %v1565 = vmul.f32 %v1557, 0.044715
      %v1566 = vmul.f32 %v1560, 0.044715
      %v1567 = vmul.f32 %v1565, %v1557
      %v1568 = vmul.f32 %v1566, %v1560
      %v1569 = vmul.f32 %v1567, %v1557
      %v1570 = vmul.f32 %v1568, %v1560
      %v1571 = vadd.f32 %v1557, %v1569
      %v1572 = vadd.f32 %v1560, %v1570
      %v1573 = vmul.f32 %v1571, 0.7978846
      %v1574 = vmul.f32 %v1572, 0.7978846
      %v1575 = vtanh.pop %v1573
      %v1576 = vtanh.pop %v1574
      %v1577 = vadd.f32 %v1575, 1.0
      %v1578 = vadd.f32 %v1576, 1.0
      %v1579 = vmul.f32 %v1563, %v1577
      %v1580 = vmul.f32 %v1564, %v1578
      %v1581 = vld [vmem:[%s14] sm:$0xf]
      %v1582 = vld [vmem:[%s14 + $0x4] sm:$0xf]
      %v1583 = vld [vmem:[%s14 + $0x8] sm:$0xf]
      %v1584 = vld [vmem:[%s14 + $0xc] sm:$0xf]
      %v1585 = vpack.c.bf16 %v1580, %v1579
      %v1586 = vld [vmem:[%s15] sm:$0x1]
      %v1588 = vlaneseq
      %v1589 = vshrl.u32 %v1588, 7
      %v1590 = vsub.s32 0, %v1589
      %v1591 = vrot.slane %v1586, %v1590
      %v1597 = vunpack.c.l.b16 %v1581
      %v1598 = vunpack.c.l.b16 %v1582
      %v1599 = vunpack.c.l.b16 %v1583
      %v1600 = vunpack.c.l.b16 %v1584
      %v1601 = vpack.c.b16 %v1598, %v1597
      %v1602 = vpack.c.b16 %v1600, %v1599
      %v1606 = vsel %vm805, %v1585, 0
      %1608 = vmatprep.subr.bf16.mxu0 0
      %1609 = vmatpush1.bf16.msra.mxu0 %v1601
      %1610 = vmatprep.subr.bf16.mxu0 0
      %1611 = vmatpush1.bf16.msra.mxu0 %v1602
      %1612 = vmatprep.subr.bf16.mxu0 0
      %1613 = vmatpush1.bf16.msra.mxu0 0
      %1614 = vmatprep.subr.bf16.mxu0 0
      %1615 = vmatpush1.bf16.msra.mxu0 0
      %1616 = vmatprep.subr.bf16.mxu0 0
      %1617 = vmatpush1.bf16.msra.mxu0 0
      %1618 = vmatprep.subr.bf16.mxu0 0
      %1619 = vmatpush1.bf16.msra.mxu0 0
      %1620 = vmatprep.subr.bf16.mxu0 0
      %1621 = vmatpush1.bf16.msra.mxu0 0
      %1622 = vmatprep.subr.bf16.mxu0 0
      %1623 = vmatpush1.bf16.msra.mxu0 0
      %1624 = vmatprep.subr.bf16.mxu0 0
      %1625 = vmatpush1.bf16.msra.mxu0 0
      %1626 = vmatprep.subr.bf16.mxu0 0
      %1627 = vmatpush1.bf16.msra.mxu0 0
      %1628 = vmatprep.subr.bf16.mxu0 0
      %1629 = vmatpush1.bf16.msra.mxu0 0
      %1630 = vmatprep.subr.bf16.mxu0 0
      %1631 = vmatpush1.bf16.msra.mxu0 0
      %1632 = vmatprep.subr.bf16.mxu0 0
      %1633 = vmatpush1.bf16.msra.mxu0 0
      %1634 = vmatprep.subr.bf16.mxu0 0
      %1635 = vmatpush1.bf16.msra.mxu0 0
      %1636 = vmatprep.subr.bf16.mxu0 0
      %1637 = vmatpush1.bf16.msra.mxu0 0
      %1638 = vmatprep.subr.bf16.mxu0 0
      %1639 = vmatpush1.bf16.msra.mxu0 0
      %1640 = vmatprep.mubr.bf16.mxu0 0
      %1641 = vmatmul.mubr.bf16.gmra.mrb[0].mxu0 %v1606
      %v1642 = vpop.f32.mrb[0].mxu0
      %v1643 = vadd.f32 %v1591, %v1642
      %v1644 = vpop.f32.mrb[0].mxu0
      %v1645 = vpop.f32.mrb[0].mxu0
      %v1646 = vadd.f32 %v1591, %v1645
      %v1647 = vpop.f32.mrb[0].mxu0
      %1648 = vdwg.mxu0
      %v1649 = vadd.f32 %v1493, %v1643
      %v1650 = vadd.f32 %v1494, %v1646
      %v1651 = vld [vmem:[%s16] sm:$0x1]
      %v1652 = vld [vmem:[%s17] sm:$0x1]
      %v1653 = vsel %vm805, %v1649, 0.0
      %1654 = vadd.xlane.f32.xlu0 %v1653
      %v1655 = vpop.xlane.xlu0 %1654
      %v1656 = vsel %vm805, %v1650, 0.0
      %1657 = vadd.xlane.f32.xlu0 %v1656
      %v1658 = vpop.xlane.xlu0 %1657
      %v1659 = vmul.f32 %v1655, %v1458
      %v1660 = vmul.f32 %v1658, %v1458
      %v1661 = vsub.f32 %v1649, %v1659
      %v1662 = vsub.f32 %v1650, %v1660
      %v1663 = vmul.f32 %v1661, %v1661
      %v1664 = vmul.f32 %v1662, %v1662
      %v1665 = vsel %vm805, %v1663, 0.0
      %1666 = vadd.xlane.f32.xlu0 %v1665
      %v1667 = vpop.xlane.xlu0 %1666
      %v1668 = vsel %vm805, %v1664, 0.0
      %1669 = vadd.xlane.f32.xlu0 %v1668
      %v1670 = vpop.xlane.xlu0 %1669
      %v1671 = vmul.f32 %v1667, %v1458
      %v1672 = vmul.f32 %v1670, %v1458
      %v1673 = vadd.f32 %v1671, 1e-05
      %v1674 = vadd.f32 %v1672, 1e-05
      %v1675 = vrsqrt.pop %v1673
      %v1676 = vrsqrt.pop %v1674
      %v1677 = vmul.f32 %v1661, %v1675
      %v1678 = vmul.f32 %v1662, %v1676
      %v1680 = vlaneseq
      %v1681 = vshrl.u32 %v1680, 7
      %v1682 = vsub.s32 0, %v1681
      %v1683 = vrot.slane %v1651, %v1682
      %v1685 = vmul.f32 %v1677, %v1683
      %v1686 = vmul.f32 %v1678, %v1683
      %v1688 = vlaneseq
      %v1689 = vshrl.u32 %v1688, 7
      %v1690 = vsub.s32 0, %v1689
      %v1691 = vrot.slane %v1652, %v1690
      %v1693 = vadd.f32 %v1685, %v1691
      %v1694 = vadd.f32 %v1686, %v1691
      %1695 = vst.msk [vmem:[%s633] sm:$0xff] %vm805, %v1693
      %1696 = vst.msk [vmem:[%s633 + $0x8] sm:$0xff] %vm805, %v1694
      %s1697 = smul.u32 2, %s34
      %p1698 = scmp.lt.s32.totalorder %s33, 1
      %s1699 = scalar_select %p1698, %s33, 1
      %p1700 = scmp.lt.s32.totalorder %s1697, 1
      %s1701 = scalar_select %p1700, %s1697, 1
      %s1702 = smul.addr %s1699, 2
      %s1703 = sadd.s32 %s1701, %s1702
      %s1704 = smul.addr %s1703, 8
      %s1705 = scalar_lea.vmem %s18, %s1704
      // Predicated region
      $region97: #{denseformer_forward.7} parent=91 // pred_check
        %p1706 = pneg %p451
      $region98: #{denseformer_forward.7} parent=91 // pred_check_branch
        %1708 = sbr.rel (%p1706) target = $region100
      $region99: #{denseformer_forward.7} parent=91 // pred_region
        %s1709 = smul.u32 2, %s34
      $region100: #{denseformer_forward.7} parent=91 // pred_fallthru
        _
    $region92: #{denseformer_forward.7} parent=5 // pred_fallthru
      _
    %p1710 = scmp.le.s32.totalorder 2, %s24
    // Predicated region
    $region101: #{denseformer_forward.7} parent=5 // pred_check
      %p1711 = pneg %p1710
    $region102: #{denseformer_forward.7} parent=5 // pred_check_branch
      %1713 = sbr.rel (%p1711) target = $region104
    $region103: #{denseformer_forward.7} parent=5 // pred_region
      %s1714 = ssub.s32 %s24, 2
      // Predicated region
      $region105: #{denseformer_forward.7} parent=103 // pred_check
        %p1715 = pneg %p457
      $region106: #{denseformer_forward.7} parent=103 // pred_check_branch
        %1717 = sbr.rel (%p1715) target = $region108
      $region107: #{denseformer_forward.7} parent=103 // pred_region
        %s1718 = smul.u32 2, %s36
        %p1719 = scmp.lt.s32.totalorder %s35, 1
        %s1720 = scalar_select %p1719, %s35, 1
        %p1721 = scmp.lt.s32.totalorder %s1718, 1
        %s1722 = scalar_select %p1721, %s1718, 1
        %s1723 = smul.addr %s1720, 2
        %s1724 = sadd.s32 %s1722, %s1723
        %s1725 = smul.addr %s1724, 8
        %s1726 = scalar_lea.vmem %s18, %s1725
      $region108: #{denseformer_forward.7} parent=103 // pred_fallthru
        _
    $region104: #{denseformer_forward.7} parent=5 // pred_fallthru
      _
  $region6: #{denseformer_forward.7} parent=0 // loop_footer
    %s28 = sadd.s32 1, %s24
  $region7: #{denseformer_forward.7} parent=0 // loop_footer_branch
    %23 = sbr.rel target = $region3
  $region8: #{denseformer_forward.7} parent=0 // loop_exit
    _

// kernel: denseformer_forward.10
$region0: #{denseformer_forward.10}
  #allocation0 [shape = 'u32[]', space=smem, size = 0x4, offset = 0x4, fixed_abs, tag = 'smem constant byte address 0x4 - core index']
  #allocation1 [shape = 'u32[144,128]{1,0:T(1,128)}', space=vmem, size = 0x12000, scoped, tag = 'internal scratch']
  #allocation2 [shape = 'bf16[16,32]{1,0:T(16,128)(2,1)}', space=vmem, size = 0x1000, scoped, tag = 'scratch operand']
  #allocation3 [shape = 'bf16[16,32]{1,0:T(16,128)(2,1)}', space=vmem, size = 0x1000, scoped, tag = 'scratch operand']
  #allocation4 [shape = 'bf16[16,32]{1,0:T(16,128)(2,1)}', space=vmem, size = 0x1000, scoped, tag = 'scratch operand']
  #allocation5 [shape = 'bf16[16,32]{1,0:T(16,128)(2,1)}', space=vmem, size = 0x1000, scoped, tag = 'scratch operand']
  #allocation6 [shape = 'f32[16,32]{1,0:T(8,128)}', space=vmem, size = 0x2000, scoped, tag = 'scratch operand']
  %s0 = inlined_call_operand.smem [shape: u32[30], index: -1, kind: input, shape index: {}]
  %s1 = sld [smem:[%s0]]
  %s2 = scalar_lea.smem %s0, 1
  %s3 = sld [smem:[%s2]]
  %s4 = scalar_lea.smem %s0, 2
  %s5 = sld [smem:[%s4]]
  %s6 = scalar_lea.smem %s0, 3
  %s7 = sld [smem:[%s6]]
  %s8 = scalar_lea.smem %s0, 4
  %s9 = sld [smem:[%s8]]
  %s10 = scalar_lea.smem %s0, 5
  %s11 = sld [smem:[%s10]]
  %s12 = scalar_lea.smem %s0, 6
  %s13 = sld [smem:[%s12]]
  %s14 = scalar_lea.smem %s0, 7
  %s15 = sld [smem:[%s14]]
  %s16 = scalar_lea.smem %s0, 8
  %s17 = sld [smem:[%s16]]
  %s18 = scalar_lea.smem %s0, 9
  %s19 = sld [smem:[%s18]]
  %s20 = scalar_lea.smem %s0, 10
  %s21 = sld [smem:[%s20]]
  %s22 = scalar_lea.smem %s0, 11
  %s23 = sld [smem:[%s22]]
  %s24 = scalar_lea.smem %s0, 12
  %s25 = sld [smem:[%s24]]
  %s26 = scalar_lea.smem %s0, 13
  %s27 = sld [smem:[%s26]]
  %s28 = scalar_lea.smem %s0, 14
  %s29 = sld [smem:[%s28]]
  %s30 = scalar_lea.smem %s0, 15
  %s31 = sld [smem:[%s30]]
  %s32 = scalar_lea.smem %s0, 16
  %s33 = sld [smem:[%s32]]
  %s34 = scalar_lea.smem %s0, 17
  %s35 = sld [smem:[%s34]]
  %s36 = scalar_lea.smem %s0, 18
  %s37 = sld [smem:[%s36]]
  %s38 = scalar_lea.smem %s0, 19
  %s39 = sld [smem:[%s38]]
  %s40 = scalar_lea.smem %s0, 20
  %s41 = sld [smem:[%s40]]
  %s42 = scalar_lea.smem %s0, 21
  %s43 = sld [smem:[%s42]]
  %s44 = scalar_lea.smem %s0, 22
  %s45 = sld [smem:[%s44]]
  %s46 = scalar_lea.smem %s0, 23
  %s47 = sld [smem:[%s46]]
  %s48 = scalar_lea.smem %s0, 24
  %s49 = sld [smem:[%s48]]
  %s50 = scalar_lea.smem %s0, 25
  %s51 = sld [smem:[%s50]]
  %s52 = scalar_lea.smem %s0, 26
  %s53 = sld [smem:[%s52]]
  %s54 = scalar_lea.smem %s0, 27
  %s55 = sld [smem:[%s54]]
  %s56 = scalar_lea.smem %s0, 28
  %s57 = sld [smem:[%s56]]
  %s58 = scalar_lea.smem %s0, 29
  %s59 = sld [smem:[%s58]]
  %s60 = sld [smem:[#allocation0]]
  $region153: #{denseformer_forward.10} parent=0
    _
  %s62 = ssub.s32 1, %s60
  %s63 = scalar_select 0, %s62, %s60
  loop: start=0, step=1, limit=4
  $region2: #{denseformer_forward.10} parent=0 // loop_pre_header
    _
  $region3: #{denseformer_forward.10} parent=0 // loop_header
    %s65 = sphi 0, %s69
    %p66 = scmp.ge.s32.totalorder %s65, 4
    %s72 = sphi 0, %s84
    %s73 = sphi 0, %s80
    %s74 = sphi 0, %s72
    %s75 = sphi 0, %s73
    %s76 = sphi 0, %s74
    %s77 = sphi 0, %s75
    %s87 = sphi 0, %s89
    %s90 = sphi 0, %s87
    %s91 = sphi 0, %s90
    %s107 = sphi 0, %s91
    %s115 = sphi 0, %s117
    %s118 = sphi 0, %s115
    %s119 = sphi 0, %s118
    %s135 = sphi 0, %s119
    %s141 = sphi 0, %s143
    %s144 = sphi 0, %s141
    %s145 = sphi 0, %s144
    %s161 = sphi 0, %s145
    %s165 = sphi 0, %s165
    %s167 = sphi 0, %s165
    %s168 = sphi 0, %s167
    %s182 = sphi 0, %s168
    %s186 = sphi 0, %s186
    %s188 = sphi 0, %s186
    %s189 = sphi 0, %s188
    %s203 = sphi 0, %s189
    %s207 = sphi 0, %s207
    %s209 = sphi 0, %s207
    %s210 = sphi 0, %s209
    %s224 = sphi 0, %s210
    %s228 = sphi 0, %s228
    %s230 = sphi 0, %s228
    %s231 = sphi 0, %s230
    %s245 = sphi 0, %s231
    %s249 = sphi 0, %s249
    %s251 = sphi 0, %s249
    %s252 = sphi 0, %s251
    %s266 = sphi 0, %s252
    %s270 = sphi 0, %s270
    %s272 = sphi 0, %s270
    %s273 = sphi 0, %s272
    %s287 = sphi 0, %s273
    %s291 = sphi 0, %s291
    %s293 = sphi 0, %s291
    %s294 = sphi 0, %s293
    %s308 = sphi 0, %s294
    %s312 = sphi 0, %s312
    %s314 = sphi 0, %s312
    %s315 = sphi 0, %s314
    %s329 = sphi 0, %s315
    %s333 = sphi 0, %s333
    %s335 = sphi 0, %s333
    %s336 = sphi 0, %s335
    %s350 = sphi 0, %s336
    %s354 = sphi 0, %s354
    %s356 = sphi 0, %s354
    %s357 = sphi 0, %s356
    %s371 = sphi 0, %s357
    %s375 = sphi 0, %s375
    %s377 = sphi 0, %s375
    %s378 = sphi 0, %s377
    %s392 = sphi 0, %s378
    %s396 = sphi 0, %s396
    %s398 = sphi 0, %s396
    %s399 = sphi 0, %s398
    %s413 = sphi 0, %s399
    %s417 = sphi 0, %s417
    %s419 = sphi 0, %s417
    %s420 = sphi 0, %s419
    %s434 = sphi 0, %s420
    %s438 = sphi 0, %s438
    %s440 = sphi 0, %s438
    %s441 = sphi 0, %s440
    %s455 = sphi 0, %s441
    %s459 = sphi 0, %s459
    %s461 = sphi 0, %s459
    %s462 = sphi 0, %s461
    %s476 = sphi 0, %s462
    %s480 = sphi 0, %s480
    %s482 = sphi 0, %s480
    %s483 = sphi 0, %s482
    %s497 = sphi 0, %s483
    %s501 = sphi 0, %s501
    %s503 = sphi 0, %s501
    %s504 = sphi 0, %s503
    %s518 = sphi 0, %s504
    %s522 = sphi 0, %s522
    %s524 = sphi 0, %s522
    %s525 = sphi 0, %s524
    %s539 = sphi 0, %s525
    %s543 = sphi 0, %s543
    %s545 = sphi 0, %s543
    %s546 = sphi 0, %s545
    %s560 = sphi 0, %s546
    %s564 = sphi 0, %s564
    %s566 = sphi 0, %s564
    %s567 = sphi 0, %s566
    %s581 = sphi 0, %s567
    %s585 = sphi 0, %s585
    %s587 = sphi 0, %s585
    %s588 = sphi 0, %s587
    %s602 = sphi 0, %s588
    %s606 = sphi 0, %s606
    %s608 = sphi 0, %s606
    %s609 = sphi 0, %s608
    %s623 = sphi 0, %s609
    %s627 = sphi 0, %s627
    %s629 = sphi 0, %s627
    %s630 = sphi 0, %s629
    %s644 = sphi 0, %s630
    %s648 = sphi 0, %s648
    %s650 = sphi 0, %s648
    %s651 = sphi 0, %s650
    %s665 = sphi 0, %s651
    %s669 = sphi 0, %s669
    %s671 = sphi 0, %s669
    %s672 = sphi 0, %s671
    %s686 = sphi 0, %s672
    %s690 = sphi 0, %s690
    %s692 = sphi 0, %s690
    %s693 = sphi 0, %s692
    %s707 = sphi 0, %s693
    %s715 = sphi 0, %s717
    %s718 = sphi 0, %s715
    %s719 = sphi 0, %s718
    %s735 = sphi 0, %s719
  $region4: #{denseformer_forward.10} parent=0 // loop_header_branch
    %68 = sbr.rel (%p66) target = $region8
  $region5: #{denseformer_forward.10} parent=0 // loop_body
    %s70 = ssub.s32 %s65, 1
    %s71 = ssub.s32 %s65, 2
    %s78 = sadd.s32 1, %s73
    %p79 = scmp.ge.s32.totalorder %s78, 1
    %s80 = scalar_select %p79, 0, %s78
    %s81 = sadd.s32 1, %s72
    %s82 = scalar_select %p79, %s81, %s72
    %p83 = scmp.ge.s32.totalorder %s82, 2
    %s84 = scalar_select %p83, 0, %s82
    %s85 = ssub.s32 %s72, %s84
    %p86 = scmp.eq.s32.totalorder %s85, 0
    %s88 = sadd.s32 %s87, 1
    %s89 = scalar_select %p86, %s87, %s88
    %p92 = pneg %p86
    %p93 = scmp.eq.s32.totalorder %s65, 1
    %p94 = por %p92, %p93
    %p95 = scmp.ne.s32.totalorder %s87, %s90
    %p96 = scmp.eq.s32.totalorder %s65, 0
    %p97 = por %p95, %p96
    %p98 = scmp.ne.s32.totalorder %s87, %s90
    %p99 = scmp.eq.s32.totalorder %s70, 1
    %p100 = por %p98, %p99
    %p101 = scmp.ne.s32.totalorder %s90, %s91
    %p102 = scmp.eq.s32.totalorder %s70, 0
    %p103 = por %p101, %p102
    %p104 = scmp.ne.s32.totalorder %s90, %s91
    %p105 = scmp.eq.s32.totalorder %s71, 1
    %p106 = por %p104, %p105
    %p108 = scmp.ne.s32.totalorder %s91, %s107
    %p109 = scmp.eq.s32.totalorder %s71, 0
    %p110 = por %p108, %p109
    %s111 = ssub.s32 %s72, %s84
    %s112 = ssub.s32 %s73, %s80
    %s113 = sor.u32 %s111, %s112
    %p114 = scmp.eq.s32.totalorder %s113, 0
    %s116 = sadd.s32 %s115, 1
    %s117 = scalar_select %p114, %s115, %s116
    %p120 = pneg %p114
    %p121 = scmp.eq.s32.totalorder %s65, 1
    %p122 = por %p120, %p121
    %p123 = scmp.ne.s32.totalorder %s115, %s118
    %p124 = scmp.eq.s32.totalorder %s65, 0
    %p125 = por %p123, %p124
    %p126 = scmp.ne.s32.totalorder %s115, %s118
    %p127 = scmp.eq.s32.totalorder %s70, 1
    %p128 = por %p126, %p127
    %p129 = scmp.ne.s32.totalorder %s118, %s119
    %p130 = scmp.eq.s32.totalorder %s70, 0
    %p131 = por %p129, %p130
    %p132 = scmp.ne.s32.totalorder %s118, %s119
    %p133 = scmp.eq.s32.totalorder %s71, 1
    %p134 = por %p132, %p133
    %p136 = scmp.ne.s32.totalorder %s119, %s135
    %p137 = scmp.eq.s32.totalorder %s71, 0
    %p138 = por %p136, %p137
    %s139 = ssub.s32 %s72, %s84
    %p140 = scmp.eq.s32.totalorder %s139, 0
    %s142 = sadd.s32 %s141, 1
    %s143 = scalar_select %p140, %s141, %s142
    %p146 = pneg %p140
    %p147 = scmp.eq.s32.totalorder %s65, 1
    %p148 = por %p146, %p147
    %p149 = scmp.ne.s32.totalorder %s141, %s144
    %p150 = scmp.eq.s32.totalorder %s65, 0
    %p151 = por %p149, %p150
    %p152 = scmp.ne.s32.totalorder %s141, %s144
    %p153 = scmp.eq.s32.totalorder %s70, 1
    %p154 = por %p152, %p153
    %p155 = scmp.ne.s32.totalorder %s144, %s145
    %p156 = scmp.eq.s32.totalorder %s70, 0
    %p157 = por %p155, %p156
    %p158 = scmp.ne.s32.totalorder %s144, %s145
    %p159 = scmp.eq.s32.totalorder %s71, 1
    %p160 = por %p158, %p159
    %p162 = scmp.ne.s32.totalorder %s145, %s161
    %p163 = scmp.eq.s32.totalorder %s71, 0
    %p164 = por %p162, %p163
    %s166 = sadd.s32 %s165, 1
    %p169 = scmp.eq.s32.totalorder %s65, 1
    %p170 = scmp.ne.s32.totalorder %s165, %s167
    %p171 = scmp.eq.s32.totalorder %s65, 0
    %p172 = por %p170, %p171
    %p173 = scmp.ne.s32.totalorder %s165, %s167
    %p174 = scmp.eq.s32.totalorder %s70, 1
    %p175 = por %p173, %p174
    %p176 = scmp.ne.s32.totalorder %s167, %s168
    %p177 = scmp.eq.s32.totalorder %s70, 0
    %p178 = por %p176, %p177
    %p179 = scmp.ne.s32.totalorder %s167, %s168
    %p180 = scmp.eq.s32.totalorder %s71, 1
    %p181 = por %p179, %p180
    %p183 = scmp.ne.s32.totalorder %s168, %s182
    %p184 = scmp.eq.s32.totalorder %s71, 0
    %p185 = por %p183, %p184
    %s187 = sadd.s32 %s186, 1
    %p190 = scmp.eq.s32.totalorder %s65, 1
    %p191 = scmp.ne.s32.totalorder %s186, %s188
    %p192 = scmp.eq.s32.totalorder %s65, 0
    %p193 = por %p191, %p192
    %p194 = scmp.ne.s32.totalorder %s186, %s188
    %p195 = scmp.eq.s32.totalorder %s70, 1
    %p196 = por %p194, %p195
    %p197 = scmp.ne.s32.totalorder %s188, %s189
    %p198 = scmp.eq.s32.totalorder %s70, 0
    %p199 = por %p197, %p198
    %p200 = scmp.ne.s32.totalorder %s188, %s189
    %p201 = scmp.eq.s32.totalorder %s71, 1
    %p202 = por %p200, %p201
    %p204 = scmp.ne.s32.totalorder %s189, %s203
    %p205 = scmp.eq.s32.totalorder %s71, 0
    %p206 = por %p204, %p205
    %s208 = sadd.s32 %s207, 1
    %p211 = scmp.eq.s32.totalorder %s65, 1
    %p212 = scmp.ne.s32.totalorder %s207, %s209
    %p213 = scmp.eq.s32.totalorder %s65, 0
    %p214 = por %p212, %p213
    %p215 = scmp.ne.s32.totalorder %s207, %s209
    %p216 = scmp.eq.s32.totalorder %s70, 1
    %p217 = por %p215, %p216
    %p218 = scmp.ne.s32.totalorder %s209, %s210
    %p219 = scmp.eq.s32.totalorder %s70, 0
    %p220 = por %p218, %p219
    %p221 = scmp.ne.s32.totalorder %s209, %s210
    %p222 = scmp.eq.s32.totalorder %s71, 1
    %p223 = por %p221, %p222
    %p225 = scmp.ne.s32.totalorder %s210, %s224
    %p226 = scmp.eq.s32.totalorder %s71, 0
    %p227 = por %p225, %p226
    %s229 = sadd.s32 %s228, 1
    %p232 = scmp.eq.s32.totalorder %s65, 1
    %p233 = scmp.ne.s32.totalorder %s228, %s230
    %p234 = scmp.eq.s32.totalorder %s65, 0
    %p235 = por %p233, %p234
    %p236 = scmp.ne.s32.totalorder %s228, %s230
    %p237 = scmp.eq.s32.totalorder %s70, 1
    %p238 = por %p236, %p237
    %p239 = scmp.ne.s32.totalorder %s230, %s231
    %p240 = scmp.eq.s32.totalorder %s70, 0
    %p241 = por %p239, %p240
    %p242 = scmp.ne.s32.totalorder %s230, %s231
    %p243 = scmp.eq.s32.totalorder %s71, 1
    %p244 = por %p242, %p243
    %p246 = scmp.ne.s32.totalorder %s231, %s245
    %p247 = scmp.eq.s32.totalorder %s71, 0
    %p248 = por %p246, %p247
    %s250 = sadd.s32 %s249, 1
    %p253 = scmp.eq.s32.totalorder %s65, 1
    %p254 = scmp.ne.s32.totalorder %s249, %s251
    %p255 = scmp.eq.s32.totalorder %s65, 0
    %p256 = por %p254, %p255
    %p257 = scmp.ne.s32.totalorder %s249, %s251
    %p258 = scmp.eq.s32.totalorder %s70, 1
    %p259 = por %p257, %p258
    %p260 = scmp.ne.s32.totalorder %s251, %s252
    %p261 = scmp.eq.s32.totalorder %s70, 0
    %p262 = por %p260, %p261
    %p263 = scmp.ne.s32.totalorder %s251, %s252
    %p264 = scmp.eq.s32.totalorder %s71, 1
    %p265 = por %p263, %p264
    %p267 = scmp.ne.s32.totalorder %s252, %s266
    %p268 = scmp.eq.s32.totalorder %s71, 0
    %p269 = por %p267, %p268
    %s271 = sadd.s32 %s270, 1
    %p274 = scmp.eq.s32.totalorder %s65, 1
    %p275 = scmp.ne.s32.totalorder %s270, %s272
    %p276 = scmp.eq.s32.totalorder %s65, 0
    %p277 = por %p275, %p276
    %p278 = scmp.ne.s32.totalorder %s270, %s272
    %p279 = scmp.eq.s32.totalorder %s70, 1
    %p280 = por %p278, %p279
    %p281 = scmp.ne.s32.totalorder %s272, %s273
    %p282 = scmp.eq.s32.totalorder %s70, 0
    %p283 = por %p281, %p282
    %p284 = scmp.ne.s32.totalorder %s272, %s273
    %p285 = scmp.eq.s32.totalorder %s71, 1
    %p286 = por %p284, %p285
    %p288 = scmp.ne.s32.totalorder %s273, %s287
    %p289 = scmp.eq.s32.totalorder %s71, 0
    %p290 = por %p288, %p289
    %s292 = sadd.s32 %s291, 1
    %p295 = scmp.eq.s32.totalorder %s65, 1
    %p296 = scmp.ne.s32.totalorder %s291, %s293
    %p297 = scmp.eq.s32.totalorder %s65, 0
    %p298 = por %p296, %p297
    %p299 = scmp.ne.s32.totalorder %s291, %s293
    %p300 = scmp.eq.s32.totalorder %s70, 1
    %p301 = por %p299, %p300
    %p302 = scmp.ne.s32.totalorder %s293, %s294
    %p303 = scmp.eq.s32.totalorder %s70, 0
    %p304 = por %p302, %p303
    %p305 = scmp.ne.s32.totalorder %s293, %s294
    %p306 = scmp.eq.s32.totalorder %s71, 1
    %p307 = por %p305, %p306
    %p309 = scmp.ne.s32.totalorder %s294, %s308
    %p310 = scmp.eq.s32.totalorder %s71, 0
    %p311 = por %p309, %p310
    %s313 = sadd.s32 %s312, 1
    %p316 = scmp.eq.s32.totalorder %s65, 1
    %p317 = scmp.ne.s32.totalorder %s312, %s314
    %p318 = scmp.eq.s32.totalorder %s65, 0
    %p319 = por %p317, %p318
    %p320 = scmp.ne.s32.totalorder %s312, %s314
    %p321 = scmp.eq.s32.totalorder %s70, 1
    %p322 = por %p320, %p321
    %p323 = scmp.ne.s32.totalorder %s314, %s315
    %p324 = scmp.eq.s32.totalorder %s70, 0
    %p325 = por %p323, %p324
    %p326 = scmp.ne.s32.totalorder %s314, %s315
    %p327 = scmp.eq.s32.totalorder %s71, 1
    %p328 = por %p326, %p327
    %p330 = scmp.ne.s32.totalorder %s315, %s329
    %p331 = scmp.eq.s32.totalorder %s71, 0
    %p332 = por %p330, %p331
    %s334 = sadd.s32 %s333, 1
    %p337 = scmp.eq.s32.totalorder %s65, 1
    %p338 = scmp.ne.s32.totalorder %s333, %s335
    %p339 = scmp.eq.s32.totalorder %s65, 0
    %p340 = por %p338, %p339
    %p341 = scmp.ne.s32.totalorder %s333, %s335
    %p342 = scmp.eq.s32.totalorder %s70, 1
    %p343 = por %p341, %p342
    %p344 = scmp.ne.s32.totalorder %s335, %s336
    %p345 = scmp.eq.s32.totalorder %s70, 0
    %p346 = por %p344, %p345
    %p347 = scmp.ne.s32.totalorder %s335, %s336
    %p348 = scmp.eq.s32.totalorder %s71, 1
    %p349 = por %p347, %p348
    %p351 = scmp.ne.s32.totalorder %s336, %s350
    %p352 = scmp.eq.s32.totalorder %s71, 0
    %p353 = por %p351, %p352
    %s355 = sadd.s32 %s354, 1
    %p358 = scmp.eq.s32.totalorder %s65, 1
    %p359 = scmp.ne.s32.totalorder %s354, %s356
    %p360 = scmp.eq.s32.totalorder %s65, 0
    %p361 = por %p359, %p360
    %p362 = scmp.ne.s32.totalorder %s354, %s356
    %p363 = scmp.eq.s32.totalorder %s70, 1
    %p364 = por %p362, %p363
    %p365 = scmp.ne.s32.totalorder %s356, %s357
    %p366 = scmp.eq.s32.totalorder %s70, 0
    %p367 = por %p365, %p366
    %p368 = scmp.ne.s32.totalorder %s356, %s357
    %p369 = scmp.eq.s32.totalorder %s71, 1
    %p370 = por %p368, %p369
    %p372 = scmp.ne.s32.totalorder %s357, %s371
    %p373 = scmp.eq.s32.totalorder %s71, 0
    %p374 = por %p372, %p373
    %s376 = sadd.s32 %s375, 1
    %p379 = scmp.eq.s32.totalorder %s65, 1
    %p380 = scmp.ne.s32.totalorder %s375, %s377
    %p381 = scmp.eq.s32.totalorder %s65, 0
    %p382 = por %p380, %p381
    %p383 = scmp.ne.s32.totalorder %s375, %s377
    %p384 = scmp.eq.s32.totalorder %s70, 1
    %p385 = por %p383, %p384
    %p386 = scmp.ne.s32.totalorder %s377, %s378
    %p387 = scmp.eq.s32.totalorder %s70, 0
    %p388 = por %p386, %p387
    %p389 = scmp.ne.s32.totalorder %s377, %s378
    %p390 = scmp.eq.s32.totalorder %s71, 1
    %p391 = por %p389, %p390
    %p393 = scmp.ne.s32.totalorder %s378, %s392
    %p394 = scmp.eq.s32.totalorder %s71, 0
    %p395 = por %p393, %p394
    %s397 = sadd.s32 %s396, 1
    %p400 = scmp.eq.s32.totalorder %s65, 1
    %p401 = scmp.ne.s32.totalorder %s396, %s398
    %p402 = scmp.eq.s32.totalorder %s65, 0
    %p403 = por %p401, %p402
    %p404 = scmp.ne.s32.totalorder %s396, %s398
    %p405 = scmp.eq.s32.totalorder %s70, 1
    %p406 = por %p404, %p405
    %p407 = scmp.ne.s32.totalorder %s398, %s399
    %p408 = scmp.eq.s32.totalorder %s70, 0
    %p409 = por %p407, %p408
    %p410 = scmp.ne.s32.totalorder %s398, %s399
    %p411 = scmp.eq.s32.totalorder %s71, 1
    %p412 = por %p410, %p411
    %p414 = scmp.ne.s32.totalorder %s399, %s413
    %p415 = scmp.eq.s32.totalorder %s71, 0
    %p416 = por %p414, %p415
    %s418 = sadd.s32 %s417, 1
    %p421 = scmp.eq.s32.totalorder %s65, 1
    %p422 = scmp.ne.s32.totalorder %s417, %s419
    %p423 = scmp.eq.s32.totalorder %s65, 0
    %p424 = por %p422, %p423
    %p425 = scmp.ne.s32.totalorder %s417, %s419
    %p426 = scmp.eq.s32.totalorder %s70, 1
    %p427 = por %p425, %p426
    %p428 = scmp.ne.s32.totalorder %s419, %s420
    %p429 = scmp.eq.s32.totalorder %s70, 0
    %p430 = por %p428, %p429
    %p431 = scmp.ne.s32.totalorder %s419, %s420
    %p432 = scmp.eq.s32.totalorder %s71, 1
    %p433 = por %p431, %p432
    %p435 = scmp.ne.s32.totalorder %s420, %s434
    %p436 = scmp.eq.s32.totalorder %s71, 0
    %p437 = por %p435, %p436
    %s439 = sadd.s32 %s438, 1
    %p442 = scmp.eq.s32.totalorder %s65, 1
    %p443 = scmp.ne.s32.totalorder %s438, %s440
    %p444 = scmp.eq.s32.totalorder %s65, 0
    %p445 = por %p443, %p444
    %p446 = scmp.ne.s32.totalorder %s438, %s440
    %p447 = scmp.eq.s32.totalorder %s70, 1
    %p448 = por %p446, %p447
    %p449 = scmp.ne.s32.totalorder %s440, %s441
    %p450 = scmp.eq.s32.totalorder %s70, 0
    %p451 = por %p449, %p450
    %p452 = scmp.ne.s32.totalorder %s440, %s441
    %p453 = scmp.eq.s32.totalorder %s71, 1
    %p454 = por %p452, %p453
    %p456 = scmp.ne.s32.totalorder %s441, %s455
    %p457 = scmp.eq.s32.totalorder %s71, 0
    %p458 = por %p456, %p457
    %s460 = sadd.s32 %s459, 1
    %p463 = scmp.eq.s32.totalorder %s65, 1
    %p464 = scmp.ne.s32.totalorder %s459, %s461
    %p465 = scmp.eq.s32.totalorder %s65, 0
    %p466 = por %p464, %p465
    %p467 = scmp.ne.s32.totalorder %s459, %s461
    %p468 = scmp.eq.s32.totalorder %s70, 1
    %p469 = por %p467, %p468
    %p470 = scmp.ne.s32.totalorder %s461, %s462
    %p471 = scmp.eq.s32.totalorder %s70, 0
    %p472 = por %p470, %p471
    %p473 = scmp.ne.s32.totalorder %s461, %s462
    %p474 = scmp.eq.s32.totalorder %s71, 1
    %p475 = por %p473, %p474
    %p477 = scmp.ne.s32.totalorder %s462, %s476
    %p478 = scmp.eq.s32.totalorder %s71, 0
    %p479 = por %p477, %p478
    %s481 = sadd.s32 %s480, 1
    %p484 = scmp.eq.s32.totalorder %s65, 1
    %p485 = scmp.ne.s32.totalorder %s480, %s482
    %p486 = scmp.eq.s32.totalorder %s65, 0
    %p487 = por %p485, %p486
    %p488 = scmp.ne.s32.totalorder %s480, %s482
    %p489 = scmp.eq.s32.totalorder %s70, 1
    %p490 = por %p488, %p489
    %p491 = scmp.ne.s32.totalorder %s482, %s483
    %p492 = scmp.eq.s32.totalorder %s70, 0
    %p493 = por %p491, %p492
    %p494 = scmp.ne.s32.totalorder %s482, %s483
    %p495 = scmp.eq.s32.totalorder %s71, 1
    %p496 = por %p494, %p495
    %p498 = scmp.ne.s32.totalorder %s483, %s497
    %p499 = scmp.eq.s32.totalorder %s71, 0
    %p500 = por %p498, %p499
    %s502 = sadd.s32 %s501, 1
    %p505 = scmp.eq.s32.totalorder %s65, 1
    %p506 = scmp.ne.s32.totalorder %s501, %s503
    %p507 = scmp.eq.s32.totalorder %s65, 0
    %p508 = por %p506, %p507
    %p509 = scmp.ne.s32.totalorder %s501, %s503
    %p510 = scmp.eq.s32.totalorder %s70, 1
    %p511 = por %p509, %p510
    %p512 = scmp.ne.s32.totalorder %s503, %s504
    %p513 = scmp.eq.s32.totalorder %s70, 0
    %p514 = por %p512, %p513
    %p515 = scmp.ne.s32.totalorder %s503, %s504
    %p516 = scmp.eq.s32.totalorder %s71, 1
    %p517 = por %p515, %p516
    %p519 = scmp.ne.s32.totalorder %s504, %s518
    %p520 = scmp.eq.s32.totalorder %s71, 0
    %p521 = por %p519, %p520
    %s523 = sadd.s32 %s522, 1
    %p526 = scmp.eq.s32.totalorder %s65, 1
    %p527 = scmp.ne.s32.totalorder %s522, %s524
    %p528 = scmp.eq.s32.totalorder %s65, 0
    %p529 = por %p527, %p528
    %p530 = scmp.ne.s32.totalorder %s522, %s524
    %p531 = scmp.eq.s32.totalorder %s70, 1
    %p532 = por %p530, %p531
    %p533 = scmp.ne.s32.totalorder %s524, %s525
    %p534 = scmp.eq.s32.totalorder %s70, 0
    %p535 = por %p533, %p534
    %p536 = scmp.ne.s32.totalorder %s524, %s525
    %p537 = scmp.eq.s32.totalorder %s71, 1
    %p538 = por %p536, %p537
    %p540 = scmp.ne.s32.totalorder %s525, %s539
    %p541 = scmp.eq.s32.totalorder %s71, 0
    %p542 = por %p540, %p541
    %s544 = sadd.s32 %s543, 1
    %p547 = scmp.eq.s32.totalorder %s65, 1
    %p548 = scmp.ne.s32.totalorder %s543, %s545
    %p549 = scmp.eq.s32.totalorder %s65, 0
    %p550 = por %p548, %p549
    %p551 = scmp.ne.s32.totalorder %s543, %s545
    %p552 = scmp.eq.s32.totalorder %s70, 1
    %p553 = por %p551, %p552
    %p554 = scmp.ne.s32.totalorder %s545, %s546
    %p555 = scmp.eq.s32.totalorder %s70, 0
    %p556 = por %p554, %p555
    %p557 = scmp.ne.s32.totalorder %s545, %s546
    %p558 = scmp.eq.s32.totalorder %s71, 1
    %p559 = por %p557, %p558
    %p561 = scmp.ne.s32.totalorder %s546, %s560
    %p562 = scmp.eq.s32.totalorder %s71, 0
    %p563 = por %p561, %p562
    %s565 = sadd.s32 %s564, 1
    %p568 = scmp.eq.s32.totalorder %s65, 1
    %p569 = scmp.ne.s32.totalorder %s564, %s566
    %p570 = scmp.eq.s32.totalorder %s65, 0
    %p571 = por %p569, %p570
    %p572 = scmp.ne.s32.totalorder %s564, %s566
    %p573 = scmp.eq.s32.totalorder %s70, 1
    %p574 = por %p572, %p573
    %p575 = scmp.ne.s32.totalorder %s566, %s567
    %p576 = scmp.eq.s32.totalorder %s70, 0
    %p577 = por %p575, %p576
    %p578 = scmp.ne.s32.totalorder %s566, %s567
    %p579 = scmp.eq.s32.totalorder %s71, 1
    %p580 = por %p578, %p579
    %p582 = scmp.ne.s32.totalorder %s567, %s581
    %p583 = scmp.eq.s32.totalorder %s71, 0
    %p584 = por %p582, %p583
    %s586 = sadd.s32 %s585, 1
    %p589 = scmp.eq.s32.totalorder %s65, 1
    %p590 = scmp.ne.s32.totalorder %s585, %s587
    %p591 = scmp.eq.s32.totalorder %s65, 0
    %p592 = por %p590, %p591
    %p593 = scmp.ne.s32.totalorder %s585, %s587
    %p594 = scmp.eq.s32.totalorder %s70, 1
    %p595 = por %p593, %p594
    %p596 = scmp.ne.s32.totalorder %s587, %s588
    %p597 = scmp.eq.s32.totalorder %s70, 0
    %p598 = por %p596, %p597
    %p599 = scmp.ne.s32.totalorder %s587, %s588
    %p600 = scmp.eq.s32.totalorder %s71, 1
    %p601 = por %p599, %p600
    %p603 = scmp.ne.s32.totalorder %s588, %s602
    %p604 = scmp.eq.s32.totalorder %s71, 0
    %p605 = por %p603, %p604
    %s607 = sadd.s32 %s606, 1
    %p610 = scmp.eq.s32.totalorder %s65, 1
    %p611 = scmp.ne.s32.totalorder %s606, %s608
    %p612 = scmp.eq.s32.totalorder %s65, 0
    %p613 = por %p611, %p612
    %p614 = scmp.ne.s32.totalorder %s606, %s608
    %p615 = scmp.eq.s32.totalorder %s70, 1
    %p616 = por %p614, %p615
    %p617 = scmp.ne.s32.totalorder %s608, %s609
    %p618 = scmp.eq.s32.totalorder %s70, 0
    %p619 = por %p617, %p618
    %p620 = scmp.ne.s32.totalorder %s608, %s609
    %p621 = scmp.eq.s32.totalorder %s71, 1
    %p622 = por %p620, %p621
    %p624 = scmp.ne.s32.totalorder %s609, %s623
    %p625 = scmp.eq.s32.totalorder %s71, 0
    %p626 = por %p624, %p625
    %s628 = sadd.s32 %s627, 1
    %p631 = scmp.eq.s32.totalorder %s65, 1
    %p632 = scmp.ne.s32.totalorder %s627, %s629
    %p633 = scmp.eq.s32.totalorder %s65, 0
    %p634 = por %p632, %p633
    %p635 = scmp.ne.s32.totalorder %s627, %s629
    %p636 = scmp.eq.s32.totalorder %s70, 1
    %p637 = por %p635, %p636
    %p638 = scmp.ne.s32.totalorder %s629, %s630
    %p639 = scmp.eq.s32.totalorder %s70, 0
    %p640 = por %p638, %p639
    %p641 = scmp.ne.s32.totalorder %s629, %s630
    %p642 = scmp.eq.s32.totalorder %s71, 1
    %p643 = por %p641, %p642
    %p645 = scmp.ne.s32.totalorder %s630, %s644
    %p646 = scmp.eq.s32.totalorder %s71, 0
    %p647 = por %p645, %p646
    %s649 = sadd.s32 %s648, 1
    %p652 = scmp.eq.s32.totalorder %s65, 1
    %p653 = scmp.ne.s32.totalorder %s648, %s650
    %p654 = scmp.eq.s32.totalorder %s65, 0
    %p655 = por %p653, %p654
    %p656 = scmp.ne.s32.totalorder %s648, %s650
    %p657 = scmp.eq.s32.totalorder %s70, 1
    %p658 = por %p656, %p657
    %p659 = scmp.ne.s32.totalorder %s650, %s651
    %p660 = scmp.eq.s32.totalorder %s70, 0
    %p661 = por %p659, %p660
    %p662 = scmp.ne.s32.totalorder %s650, %s651
    %p663 = scmp.eq.s32.totalorder %s71, 1
    %p664 = por %p662, %p663
    %p666 = scmp.ne.s32.totalorder %s651, %s665
    %p667 = scmp.eq.s32.totalorder %s71, 0
    %p668 = por %p666, %p667
    %s670 = sadd.s32 %s669, 1
    %p673 = scmp.eq.s32.totalorder %s65, 1
    %p674 = scmp.ne.s32.totalorder %s669, %s671
    %p675 = scmp.eq.s32.totalorder %s65, 0
    %p676 = por %p674, %p675
    %p677 = scmp.ne.s32.totalorder %s669, %s671
    %p678 = scmp.eq.s32.totalorder %s70, 1
    %p679 = por %p677, %p678
    %p680 = scmp.ne.s32.totalorder %s671, %s672
    %p681 = scmp.eq.s32.totalorder %s70, 0
    %p682 = por %p680, %p681
    %p683 = scmp.ne.s32.totalorder %s671, %s672
    %p684 = scmp.eq.s32.totalorder %s71, 1
    %p685 = por %p683, %p684
    %p687 = scmp.ne.s32.totalorder %s672, %s686
    %p688 = scmp.eq.s32.totalorder %s71, 0
    %p689 = por %p687, %p688
    %s691 = sadd.s32 %s690, 1
    %p694 = scmp.eq.s32.totalorder %s65, 1
    %p695 = scmp.ne.s32.totalorder %s690, %s692
    %p696 = scmp.eq.s32.totalorder %s65, 0
    %p697 = por %p695, %p696
    %p698 = scmp.ne.s32.totalorder %s690, %s692
    %p699 = scmp.eq.s32.totalorder %s70, 1
    %p700 = por %p698, %p699
    %p701 = scmp.ne.s32.totalorder %s692, %s693
    %p702 = scmp.eq.s32.totalorder %s70, 0
    %p703 = por %p701, %p702
    %p704 = scmp.ne.s32.totalorder %s692, %s693
    %p705 = scmp.eq.s32.totalorder %s71, 1
    %p706 = por %p704, %p705
    %p708 = scmp.ne.s32.totalorder %s693, %s707
    %p709 = scmp.eq.s32.totalorder %s71, 0
    %p710 = por %p708, %p709
    %s711 = ssub.s32 %s72, %s84
    %s712 = ssub.s32 %s73, %s80
    %s713 = sor.u32 %s711, %s712
    %p714 = scmp.eq.s32.totalorder %s713, 0
    %s716 = sadd.s32 %s715, 1
    %s717 = scalar_select %p714, %s715, %s716
    %p720 = pneg %p714
    %p721 = scmp.eq.s32.totalorder %s65, 1
    %p722 = por %p720, %p721
    %p723 = scmp.ne.s32.totalorder %s715, %s718
    %p724 = scmp.eq.s32.totalorder %s65, 0
    %p725 = por %p723, %p724
    %p726 = scmp.ne.s32.totalorder %s715, %s718
    %p727 = scmp.eq.s32.totalorder %s70, 1
    %p728 = por %p726, %p727
    %p729 = scmp.ne.s32.totalorder %s718, %s719
    %p730 = scmp.eq.s32.totalorder %s70, 0
    %p731 = por %p729, %p730
    %p732 = scmp.ne.s32.totalorder %s718, %s719
    %p733 = scmp.eq.s32.totalorder %s71, 1
    %p734 = por %p732, %p733
    %p736 = scmp.ne.s32.totalorder %s719, %s735
    %p737 = scmp.eq.s32.totalorder %s71, 0
    %p738 = por %p736, %p737
    %p739 = scmp.le.s32.totalorder 1, %s65
    %p740 = scmp.lt.s32.totalorder %s65, 3
    %p741 = pnand %p739, %p740
    %p742 = pneg %p741
    // Predicated region
    $region9: #{denseformer_forward.10} parent=5 // pred_check
      _
    $region10: #{denseformer_forward.10} parent=5 // pred_check_branch
      %744 = sbr.rel (%p741) target = $region12
    $region11: #{denseformer_forward.10} parent=5 // pred_region
      %s745 = ssub.s32 %s65, 1
      // Predicated region
      $region13: #{denseformer_forward.10} parent=11 // pred_check
        %p746 = pneg %p178
      $region14: #{denseformer_forward.10} parent=11 // pred_check_branch
        %748 = sbr.rel (%p746) target = $region16
      $region15: #{denseformer_forward.10} parent=11 // pred_region
        _
      $region16: #{denseformer_forward.10} parent=11 // pred_fallthru
        _
      // Predicated region
      $region17: #{denseformer_forward.10} parent=11 // pred_check
        %p749 = pneg %p199
      $region18: #{denseformer_forward.10} parent=11 // pred_check_branch
        %751 = sbr.rel (%p749) target = $region20
      $region19: #{denseformer_forward.10} parent=11 // pred_region
        _
      $region20: #{denseformer_forward.10} parent=11 // pred_fallthru
        _
      // Predicated region
      $region21: #{denseformer_forward.10} parent=11 // pred_check
        %p752 = pneg %p220
      $region22: #{denseformer_forward.10} parent=11 // pred_check_branch
        %754 = sbr.rel (%p752) target = $region24
      $region23: #{denseformer_forward.10} parent=11 // pred_region
        _
      $region24: #{denseformer_forward.10} parent=11 // pred_fallthru
        _
      // Predicated region
      $region25: #{denseformer_forward.10} parent=11 // pred_check
        %p755 = pneg %p241
      $region26: #{denseformer_forward.10} parent=11 // pred_check_branch
        %757 = sbr.rel (%p755) target = $region28
      $region27: #{denseformer_forward.10} parent=11 // pred_region
        _
      $region28: #{denseformer_forward.10} parent=11 // pred_fallthru
        _
      // Predicated region
      $region29: #{denseformer_forward.10} parent=11 // pred_check
        %p758 = pneg %p262
      $region30: #{denseformer_forward.10} parent=11 // pred_check_branch
        %760 = sbr.rel (%p758) target = $region32
      $region31: #{denseformer_forward.10} parent=11 // pred_region
        _
      $region32: #{denseformer_forward.10} parent=11 // pred_fallthru
        _
      // Predicated region
      $region33: #{denseformer_forward.10} parent=11 // pred_check
        %p761 = pneg %p283
      $region34: #{denseformer_forward.10} parent=11 // pred_check_branch
        %763 = sbr.rel (%p761) target = $region36
      $region35: #{denseformer_forward.10} parent=11 // pred_region
        _
      $region36: #{denseformer_forward.10} parent=11 // pred_fallthru
        _
      // Predicated region
      $region37: #{denseformer_forward.10} parent=11 // pred_check
        %p764 = pneg %p304
      $region38: #{denseformer_forward.10} parent=11 // pred_check_branch
        %766 = sbr.rel (%p764) target = $region40
      $region39: #{denseformer_forward.10} parent=11 // pred_region
        _
      $region40: #{denseformer_forward.10} parent=11 // pred_fallthru
        _
      // Predicated region
      $region41: #{denseformer_forward.10} parent=11 // pred_check
        %p767 = pneg %p325
      $region42: #{denseformer_forward.10} parent=11 // pred_check_branch
        %769 = sbr.rel (%p767) target = $region44
      $region43: #{denseformer_forward.10} parent=11 // pred_region
        _
      $region44: #{denseformer_forward.10} parent=11 // pred_fallthru
        _
      // Predicated region
      $region45: #{denseformer_forward.10} parent=11 // pred_check
        %p770 = pneg %p346
      $region46: #{denseformer_forward.10} parent=11 // pred_check_branch
        %772 = sbr.rel (%p770) target = $region48
      $region47: #{denseformer_forward.10} parent=11 // pred_region
        _
      $region48: #{denseformer_forward.10} parent=11 // pred_fallthru
        _
      // Predicated region
      $region49: #{denseformer_forward.10} parent=11 // pred_check
        %p773 = pneg %p367
      $region50: #{denseformer_forward.10} parent=11 // pred_check_branch
        %775 = sbr.rel (%p773) target = $region52
      $region51: #{denseformer_forward.10} parent=11 // pred_region
        _
      $region52: #{denseformer_forward.10} parent=11 // pred_fallthru
        _
      // Predicated region
      $region53: #{denseformer_forward.10} parent=11 // pred_check
        %p776 = pneg %p388
      $region54: #{denseformer_forward.10} parent=11 // pred_check_branch
        %778 = sbr.rel (%p776) target = $region56
      $region55: #{denseformer_forward.10} parent=11 // pred_region
        _
      $region56: #{denseformer_forward.10} parent=11 // pred_fallthru
        _
      // Predicated region
      $region57: #{denseformer_forward.10} parent=11 // pred_check
        %p779 = pneg %p409
      $region58: #{denseformer_forward.10} parent=11 // pred_check_branch
        %781 = sbr.rel (%p779) target = $region60
      $region59: #{denseformer_forward.10} parent=11 // pred_region
        _
      $region60: #{denseformer_forward.10} parent=11 // pred_fallthru
        _
      // Predicated region
      $region61: #{denseformer_forward.10} parent=11 // pred_check
        %p782 = pneg %p430
      $region62: #{denseformer_forward.10} parent=11 // pred_check_branch
        %784 = sbr.rel (%p782) target = $region64
      $region63: #{denseformer_forward.10} parent=11 // pred_region
        _
      $region64: #{denseformer_forward.10} parent=11 // pred_fallthru
        _
      // Predicated region
      $region65: #{denseformer_forward.10} parent=11 // pred_check
        %p785 = pneg %p451
      $region66: #{denseformer_forward.10} parent=11 // pred_check_branch
        %787 = sbr.rel (%p785) target = $region68
      $region67: #{denseformer_forward.10} parent=11 // pred_region
        _
      $region68: #{denseformer_forward.10} parent=11 // pred_fallthru
        _
      // Predicated region
      $region69: #{denseformer_forward.10} parent=11 // pred_check
        %p788 = pneg %p472
      $region70: #{denseformer_forward.10} parent=11 // pred_check_branch
        %790 = sbr.rel (%p788) target = $region72
      $region71: #{denseformer_forward.10} parent=11 // pred_region
        _
      $region72: #{denseformer_forward.10} parent=11 // pred_fallthru
        _
      // Predicated region
      $region73: #{denseformer_forward.10} parent=11 // pred_check
        %p791 = pneg %p493
      $region74: #{denseformer_forward.10} parent=11 // pred_check_branch
        %793 = sbr.rel (%p791) target = $region76
      $region75: #{denseformer_forward.10} parent=11 // pred_region
        _
      $region76: #{denseformer_forward.10} parent=11 // pred_fallthru
        _
      // Predicated region
      $region77: #{denseformer_forward.10} parent=11 // pred_check
        %p794 = pneg %p514
      $region78: #{denseformer_forward.10} parent=11 // pred_check_branch
        %796 = sbr.rel (%p794) target = $region80
      $region79: #{denseformer_forward.10} parent=11 // pred_region
        _
      $region80: #{denseformer_forward.10} parent=11 // pred_fallthru
        _
      // Predicated region
      $region81: #{denseformer_forward.10} parent=11 // pred_check
        %p797 = pneg %p535
      $region82: #{denseformer_forward.10} parent=11 // pred_check_branch
        %799 = sbr.rel (%p797) target = $region84
      $region83: #{denseformer_forward.10} parent=11 // pred_region
        _
      $region84: #{denseformer_forward.10} parent=11 // pred_fallthru
        _
      // Predicated region
      $region85: #{denseformer_forward.10} parent=11 // pred_check
        %p800 = pneg %p556
      $region86: #{denseformer_forward.10} parent=11 // pred_check_branch
        %802 = sbr.rel (%p800) target = $region88
      $region87: #{denseformer_forward.10} parent=11 // pred_region
        _
      $region88: #{denseformer_forward.10} parent=11 // pred_fallthru
        _
      // Predicated region
      $region89: #{denseformer_forward.10} parent=11 // pred_check
        %p803 = pneg %p577
      $region90: #{denseformer_forward.10} parent=11 // pred_check_branch
        %805 = sbr.rel (%p803) target = $region92
      $region91: #{denseformer_forward.10} parent=11 // pred_region
        _
      $region92: #{denseformer_forward.10} parent=11 // pred_fallthru
        _
      // Predicated region
      $region93: #{denseformer_forward.10} parent=11 // pred_check
        %p806 = pneg %p598
      $region94: #{denseformer_forward.10} parent=11 // pred_check_branch
        %808 = sbr.rel (%p806) target = $region96
      $region95: #{denseformer_forward.10} parent=11 // pred_region
        _
      $region96: #{denseformer_forward.10} parent=11 // pred_fallthru
        _
      // Predicated region
      $region97: #{denseformer_forward.10} parent=11 // pred_check
        %p809 = pneg %p619
      $region98: #{denseformer_forward.10} parent=11 // pred_check_branch
        %811 = sbr.rel (%p809) target = $region100
      $region99: #{denseformer_forward.10} parent=11 // pred_region
        _
      $region100: #{denseformer_forward.10} parent=11 // pred_fallthru
        _
      // Predicated region
      $region101: #{denseformer_forward.10} parent=11 // pred_check
        %p812 = pneg %p640
      $region102: #{denseformer_forward.10} parent=11 // pred_check_branch
        %814 = sbr.rel (%p812) target = $region104
      $region103: #{denseformer_forward.10} parent=11 // pred_region
        _
      $region104: #{denseformer_forward.10} parent=11 // pred_fallthru
        _
      // Predicated region
      $region105: #{denseformer_forward.10} parent=11 // pred_check
        %p815 = pneg %p661
      $region106: #{denseformer_forward.10} parent=11 // pred_check_branch
        %817 = sbr.rel (%p815) target = $region108
      $region107: #{denseformer_forward.10} parent=11 // pred_region
        _
      $region108: #{denseformer_forward.10} parent=11 // pred_fallthru
        _
      // Predicated region
      $region109: #{denseformer_forward.10} parent=11 // pred_check
        %p818 = pneg %p682
      $region110: #{denseformer_forward.10} parent=11 // pred_check_branch
        %820 = sbr.rel (%p818) target = $region112
      $region111: #{denseformer_forward.10} parent=11 // pred_region
        _
      $region112: #{denseformer_forward.10} parent=11 // pred_fallthru
        _
      // Predicated region
      $region113: #{denseformer_forward.10} parent=11 // pred_check
        %p821 = pneg %p703
      $region114: #{denseformer_forward.10} parent=11 // pred_check_branch
        %823 = sbr.rel (%p821) target = $region116
      $region115: #{denseformer_forward.10} parent=11 // pred_region
        _
      $region116: #{denseformer_forward.10} parent=11 // pred_fallthru
        _
    $region12: #{denseformer_forward.10} parent=5 // pred_fallthru
      _
    %p824 = scmp.lt.s32.totalorder %s65, 2
    // Predicated region
    $region117: #{denseformer_forward.10} parent=5 // pred_check
      %p825 = pneg %p824
    $region118: #{denseformer_forward.10} parent=5 // pred_check_branch
      %827 = sbr.rel (%p825) target = $region120
    $region119: #{denseformer_forward.10} parent=5 // pred_region
      // Predicated region
      $region121: #{denseformer_forward.10} parent=119 // pred_check
        %p828 = pneg %p97
      $region122: #{denseformer_forward.10} parent=119 // pred_check_branch
        %830 = sbr.rel (%p828) target = $region124
      $region123: #{denseformer_forward.10} parent=119 // pred_region
        %p831 = scmp.lt.s32.totalorder %s72, 1
        %s832 = scalar_select %p831, %s72, 1
        %s833 = smul.addr %s832, 2
        %s834 = smul.addr %s833, 8
        %s835 = scalar_lea.vmem %s1, %s834
      $region124: #{denseformer_forward.10} parent=119 // pred_fallthru
        _
      // Predicated region
      $region125: #{denseformer_forward.10} parent=119 // pred_check
        %p836 = pneg %p125
      $region126: #{denseformer_forward.10} parent=119 // pred_check_branch
        %838 = sbr.rel (%p836) target = $region128
      $region127: #{denseformer_forward.10} parent=119 // pred_region
        %s839 = smul.u32 2, %s73
        %p840 = scmp.lt.s32.totalorder %s72, 1
        %s841 = scalar_select %p840, %s72, 1
        %p842 = scmp.lt.s32.totalorder %s839, 1
        %s843 = scalar_select %p842, %s839, 1
        %s844 = smul.addr %s841, 2
        %s845 = sadd.s32 %s843, %s844
        %s846 = smul.addr %s845, 8
        %s847 = scalar_lea.vmem %s3, %s846
        %s848 = smul.u32 2, %s73
      $region128: #{denseformer_forward.10} parent=119 // pred_fallthru
        _
      // Predicated region
      $region129: #{denseformer_forward.10} parent=119 // pred_check
        %p849 = pneg %p151
      $region130: #{denseformer_forward.10} parent=119 // pred_check_branch
        %851 = sbr.rel (%p849) target = $region132
      $region131: #{denseformer_forward.10} parent=119 // pred_region
        %p852 = scmp.lt.s32.totalorder %s72, 1
        %s853 = scalar_select %p852, %s72, 1
        %s854 = smul.addr %s853, 2
        %s855 = smul.addr %s854, 8
        %s856 = scalar_lea.vmem %s5, %s855
      $region132: #{denseformer_forward.10} parent=119 // pred_fallthru
        _
    $region120: #{denseformer_forward.10} parent=5 // pred_fallthru
      _
    %p857 = scmp.le.s32.totalorder 1, %s65
    %p858 = scmp.lt.s32.totalorder %s65, 3
    %p859 = pnand %p857, %p858
    %p860 = pneg %p859
    // Predicated region
    $region133: #{denseformer_forward.10} parent=5 // pred_check
      _
    $region134: #{denseformer_forward.10} parent=5 // pred_check_branch
      %862 = sbr.rel (%p859) target = $region136
    $region135: #{denseformer_forward.10} parent=5 // pred_region
      %s863 = ssub.s32 %s65, 1
      %p864 = scmp.lt.s32.totalorder %s74, 1
      %s865 = scalar_select %p864, %s74, 1
      %s866 = smul.addr %s865, 2
      %s867 = smul.addr %s866, 8
      %s868 = scalar_lea.vmem %s1, %s867
      %p869 = pneg %p103
      %p870 = pneg %p100
      %s871 = smul.u32 2, %s75
      %p872 = scmp.lt.s32.totalorder %s74, 1
      %s873 = scalar_select %p872, %s74, 1
      %p874 = scmp.lt.s32.totalorder %s871, 1
      %s875 = scalar_select %p874, %s871, 1
      %s876 = smul.addr %s873, 2
      %s877 = sadd.s32 %s875, %s876
      %s878 = smul.addr %s877, 8
      %s879 = scalar_lea.vmem %s3, %s878
      %p880 = pneg %p131
      %p881 = pneg %p128
      %p882 = scmp.lt.s32.totalorder %s74, 1
      %s883 = scalar_select %p882, %s74, 1
      %s884 = smul.addr %s883, 2
      %s885 = smul.addr %s884, 8
      %s886 = scalar_lea.vmem %s5, %s885
      %p887 = pneg %p157
      %p888 = pneg %p154
      %p889 = pneg %p178
      %p890 = pneg %p175
      %p891 = pneg %p199
      %p892 = pneg %p196
      %p893 = pneg %p220
      %p894 = pneg %p217
      %p895 = pneg %p241
      %p896 = pneg %p238
      %p897 = pneg %p262
      %p898 = pneg %p259
      %p899 = pneg %p283
      %p900 = pneg %p280
      %p901 = pneg %p304
      %p902 = pneg %p301
      %p903 = pneg %p325
      %p904 = pneg %p322
      %p905 = pneg %p346
      %p906 = pneg %p343
      %p907 = pneg %p367
      %p908 = pneg %p364
      %p909 = pneg %p388
      %p910 = pneg %p385
      %p911 = pneg %p409
      %p912 = pneg %p406
      %p913 = pneg %p430
      %p914 = pneg %p427
      %p915 = pneg %p451
      %p916 = pneg %p448
      %p917 = pneg %p472
      %p918 = pneg %p469
      %p919 = pneg %p493
      %p920 = pneg %p490
      %p921 = pneg %p514
      %p922 = pneg %p511
      %p923 = pneg %p535
      %p924 = pneg %p532
      %p925 = pneg %p556
      %p926 = pneg %p553
      %p927 = pneg %p577
      %p928 = pneg %p574
      %p929 = pneg %p598
      %p930 = pneg %p595
      %p931 = pneg %p619
      %p932 = pneg %p616
      %p933 = pneg %p640
      %p934 = pneg %p637
      %p935 = pneg %p661
      %p936 = pneg %p658
      %p937 = pneg %p682
      %p938 = pneg %p679
      %p939 = pneg %p703
      %p940 = pneg %p700
      %p941 = pneg %p731
      %p942 = pneg %p728
      %s943 = smul.u32 2, %s75
      %p944 = scmp.lt.s32.totalorder %s74, 1
      %s945 = scalar_select %p944, %s74, 1
      %p946 = scmp.lt.s32.totalorder %s943, 1
      %s947 = scalar_select %p946, %s943, 1
      %s948 = smul.addr %s945, 2
      %s949 = sadd.s32 %s947, %s948
      %s950 = smul.addr %s949, 8
      %s951 = scalar_lea.vmem %s59, %s950
      %p952 = scmp.lt.s32.totalorder %s74, 1
      %s953 = scalar_select %p952, %s74, 1
      %s954 = smul.addr %s953, 2
      %s955 = smul.addr %s954, 8
      %s956 = scalar_lea.vmem %s1, %s955
      %s957 = smul.u32 2, %s75
      %p958 = scmp.lt.s32.totalorder %s74, 1
      %s959 = scalar_select %p958, %s74, 1
      %p960 = scmp.lt.s32.totalorder %s957, 1
      %s961 = scalar_select %p960, %s957, 1
      %s962 = smul.addr %s959, 2
      %s963 = sadd.s32 %s961, %s962
      %s964 = smul.addr %s963, 8
      %s965 = scalar_lea.vmem %s3, %s964
      %s966 = smul.u32 2, %s75
      %p967 = scmp.lt.s32.totalorder %s74, 1
      %s968 = scalar_select %p967, %s74, 1
      %s969 = smul.addr %s968, 2
      %s970 = smul.addr %s969, 8
      %s971 = scalar_lea.vmem %s5, %s970
      %s972 = smul.u32 2, %s75
      %p973 = scmp.lt.s32.totalorder %s74, 1
      %s974 = scalar_select %p973, %s74, 1
      %p975 = scmp.lt.s32.totalorder %s972, 1
      %s976 = scalar_select %p975, %s972, 1
      %s977 = smul.addr %s974, 2
      %s978 = sadd.s32 %s976, %s977
      %s979 = smul.addr %s978, 8
      %s980 = scalar_lea.vmem %s59, %s979
      %s981 = smul.u32 2, %s75
      %p983 = scmp.eq.s32.totalorder %s75, 0
      // Predicated region
      $region137: #{denseformer_forward.10} parent=135 // pred_check
        %p984 = pneg %p983
      $region138: #{denseformer_forward.10} parent=135 // pred_check_branch
        %986 = sbr.rel (%p984) target = $region140
      $region139: #{denseformer_forward.10} parent=135 // pred_region
        %v987 = vld [vmem:[%s956] sm:$0xff]
        %v988 = vld [vmem:[%s956 + $0x8] sm:$0xff]
        %v989 = vld [vmem:[%s11] sm:$0xf]
        %v990 = vld [vmem:[%s11 + $0x4] sm:$0xf]
        %v991 = vld [vmem:[%s11 + $0x8] sm:$0xf]
        %v992 = vld [vmem:[%s11 + $0xc] sm:$0xf]
        %v993 = vpack.c.bf16 %v988, %v987
        %v994 = vld [vmem:[%s13] sm:$0x1]
        %v996 = vlaneseq
        %v997 = vshrl.u32 %v996, 7
        %v998 = vsub.s32 0, %v997
        %v999 = vrot.slane %v994, %v998
        %v1005 = vunpack.c.l.b16 %v989
        %v1006 = vunpack.c.l.b16 %v990
        %v1007 = vunpack.c.l.b16 %v991
        %v1008 = vunpack.c.l.b16 %v992
        %v1009 = vpack.c.b16 %v1006, %v1005
        %v1010 = vpack.c.b16 %v1008, %v1007
        %vm1013 = vcmask 261120
        %v1015 = vsel %vm1013, %v993, 0
        %1017 = vmatprep.subr.bf16.mxu0 0
        %1018 = vmatpush1.bf16.msra.mxu0 %v1009
        %1019 = vmatprep.subr.bf16.mxu0 0
        %1020 = vmatpush1.bf16.msra.mxu0 %v1010
        %1021 = vmatprep.subr.bf16.mxu0 0
        %1022 = vmatpush1.bf16.msra.mxu0 0
        %1023 = vmatprep.subr.bf16.mxu0 0
        %1024 = vmatpush1.bf16.msra.mxu0 0
        %1025 = vmatprep.subr.bf16.mxu0 0
        %1026 = vmatpush1.bf16.msra.mxu0 0
        %1027 = vmatprep.subr.bf16.mxu0 0
        %1028 = vmatpush1.bf16.msra.mxu0 0
        %1029 = vmatprep.subr.bf16.mxu0 0
        %1030 = vmatpush1.bf16.msra.mxu0 0
        %1031 = vmatprep.subr.bf16.mxu0 0
        %1032 = vmatpush1.bf16.msra.mxu0 0
        %1033 = vmatprep.subr.bf16.mxu0 0
        %1034 = vmatpush1.bf16.msra.mxu0 0
        %1035 = vmatprep.subr.bf16.mxu0 0
        %1036 = vmatpush1.bf16.msra.mxu0 0
        %1037 = vmatprep.subr.bf16.mxu0 0
        %1038 = vmatpush1.bf16.msra.mxu0 0
        %1039 = vmatprep.subr.bf16.mxu0 0
        %1040 = vmatpush1.bf16.msra.mxu0 0
        %1041 = vmatprep.subr.bf16.mxu0 0
        %1042 = vmatpush1.bf16.msra.mxu0 0
        %1043 = vmatprep.subr.bf16.mxu0 0
        %1044 = vmatpush1.bf16.msra.mxu0 0
        %1045 = vmatprep.subr.bf16.mxu0 0
        %1046 = vmatpush1.bf16.msra.mxu0 0
        %1047 = vmatprep.subr.bf16.mxu0 0
        %1048 = vmatpush1.bf16.msra.mxu0 0
        %1049 = vmatprep.mubr.bf16.mxu0 0
        %1050 = vmatmul.mubr.bf16.gmra.mrb[0].mxu0 %v1015
        %v1051 = vpop.f32.mrb[0].mxu0
        %v1052 = vadd.f32 %v999, %v1051
        %v1053 = vpop.f32.mrb[0].mxu0
        %v1054 = vpop.f32.mrb[0].mxu0
        %v1055 = vadd.f32 %v999, %v1054
        %v1056 = vpop.f32.mrb[0].mxu0
        %1057 = vdwg.mxu0
        %v1058 = vpack.c.bf16 %v1055, %v1052
        %1059 = vst.msk [vmem:[#allocation2] sm:$0xff] %vm1013, %v1058
        %v1060 = vld [vmem:[%s15] sm:$0xf]
        %v1061 = vld [vmem:[%s15 + $0x4] sm:$0xf]
        %v1062 = vld [vmem:[%s15 + $0x8] sm:$0xf]
        %v1063 = vld [vmem:[%s15 + $0xc] sm:$0xf]
        %v1064 = vld [vmem:[%s17] sm:$0x1]
        %v1066 = vlaneseq
        %v1067 = vshrl.u32 %v1066, 7
        %v1068 = vsub.s32 0, %v1067
        %v1069 = vrot.slane %v1064, %v1068
        %v1075 = vunpack.c.l.b16 %v1060
        %v1076 = vunpack.c.l.b16 %v1061
        %v1077 = vunpack.c.l.b16 %v1062
        %v1078 = vunpack.c.l.b16 %v1063
        %v1079 = vpack.c.b16 %v1076, %v1075
        %v1080 = vpack.c.b16 %v1078, %v1077
        %1083 = vmatprep.subr.bf16.mxu0 0
        %1084 = vmatpush1.bf16.msra.mxu0 %v1079
        %1085 = vmatprep.subr.bf16.mxu0 0
        %1086 = vmatpush1.bf16.msra.mxu0 %v1080
        %1087 = vmatprep.subr.bf16.mxu0 0
        %1088 = vmatpush1.bf16.msra.mxu0 0
        %1089 = vmatprep.subr.bf16.mxu0 0
        %1090 = vmatpush1.bf16.msra.mxu0 0
        %1091 = vmatprep.subr.bf16.mxu0 0
        %1092 = vmatpush1.bf16.msra.mxu0 0
        %1093 = vmatprep.subr.bf16.mxu0 0
        %1094 = vmatpush1.bf16.msra.mxu0 0
        %1095 = vmatprep.subr.bf16.mxu0 0
        %1096 = vmatpush1.bf16.msra.mxu0 0
        %1097 = vmatprep.subr.bf16.mxu0 0
        %1098 = vmatpush1.bf16.msra.mxu0 0
        %1099 = vmatprep.subr.bf16.mxu0 0
        %1100 = vmatpush1.bf16.msra.mxu0 0
        %1101 = vmatprep.subr.bf16.mxu0 0
        %1102 = vmatpush1.bf16.msra.mxu0 0
        %1103 = vmatprep.subr.bf16.mxu0 0
        %1104 = vmatpush1.bf16.msra.mxu0 0
        %1105 = vmatprep.subr.bf16.mxu0 0
        %1106 = vmatpush1.bf16.msra.mxu0 0
        %1107 = vmatprep.subr.bf16.mxu0 0
        %1108 = vmatpush1.bf16.msra.mxu0 0
        %1109 = vmatprep.subr.bf16.mxu0 0
        %1110 = vmatpush1.bf16.msra.mxu0 0
        %1111 = vmatprep.subr.bf16.mxu0 0
        %1112 = vmatpush1.bf16.msra.mxu0 0
        %1113 = vmatprep.subr.bf16.mxu0 0
        %1114 = vmatpush1.bf16.msra.mxu0 0
        %1115 = vmatprep.mubr.bf16.mxu0 0
        %1116 = vmatmul.mubr.bf16.gmra.mrb[0].mxu0 %v1015
        %v1117 = vpop.f32.mrb[0].mxu0
        %v1118 = vadd.f32 %v1069, %v1117
        %v1119 = vpop.f32.mrb[0].mxu0
        %v1120 = vpop.f32.mrb[0].mxu0
        %v1121 = vadd.f32 %v1069, %v1120
        %v1122 = vpop.f32.mrb[0].mxu0
        %1123 = vdwg.mxu0
        %v1124 = vpack.c.bf16 %v1121, %v1118
        %1125 = vst.msk [vmem:[#allocation3] sm:$0xff] %vm1013, %v1124
        %v1126 = vld [vmem:[%s971] sm:$0xff]
        %v1127 = vld [vmem:[%s971 + $0x8] sm:$0xff]
        %v1128 = vld [vmem:[%s31] sm:$0xf]
        %v1129 = vld [vmem:[%s31 + $0x4] sm:$0xf]
        %v1130 = vld [vmem:[%s31 + $0x8] sm:$0xf]
        %v1131 = vld [vmem:[%s31 + $0xc] sm:$0xf]
        %v1132 = vpack.c.bf16 %v1127, %v1126
        %v1133 = vld [vmem:[%s33] sm:$0x1]
        %v1135 = vlaneseq
        %v1136 = vshrl.u32 %v1135, 7
        %v1137 = vsub.s32 0, %v1136
        %v1138 = vrot.slane %v1133, %v1137
        %v1144 = vunpack.c.l.b16 %v1128
        %v1145 = vunpack.c.l.b16 %v1129
        %v1146 = vunpack.c.l.b16 %v1130
        %v1147 = vunpack.c.l.b16 %v1131
        %v1148 = vpack.c.b16 %v1145, %v1144
        %v1149 = vpack.c.b16 %v1147, %v1146
        %v1153 = vsel %vm1013, %v1132, 0
        %1155 = vmatprep.subr.bf16.mxu0 0
        %1156 = vmatpush1.bf16.msra.mxu0 %v1148
        %1157 = vmatprep.subr.bf16.mxu0 0
        %1158 = vmatpush1.bf16.msra.mxu0 %v1149
        %1159 = vmatprep.subr.bf16.mxu0 0
        %1160 = vmatpush1.bf16.msra.mxu0 0
        %1161 = vmatprep.subr.bf16.mxu0 0
        %1162 = vmatpush1.bf16.msra.mxu0 0
        %1163 = vmatprep.subr.bf16.mxu0 0
        %1164 = vmatpush1.bf16.msra.mxu0 0
        %1165 = vmatprep.subr.bf16.mxu0 0
        %1166 = vmatpush1.bf16.msra.mxu0 0
        %1167 = vmatprep.subr.bf16.mxu0 0
        %1168 = vmatpush1.bf16.msra.mxu0 0
        %1169 = vmatprep.subr.bf16.mxu0 0
        %1170 = vmatpush1.bf16.msra.mxu0 0
        %1171 = vmatprep.subr.bf16.mxu0 0
        %1172 = vmatpush1.bf16.msra.mxu0 0
        %1173 = vmatprep.subr.bf16.mxu0 0
        %1174 = vmatpush1.bf16.msra.mxu0 0
        %1175 = vmatprep.subr.bf16.mxu0 0
        %1176 = vmatpush1.bf16.msra.mxu0 0
        %1177 = vmatprep.subr.bf16.mxu0 0
        %1178 = vmatpush1.bf16.msra.mxu0 0
        %1179 = vmatprep.subr.bf16.mxu0 0
        %1180 = vmatpush1.bf16.msra.mxu0 0
        %1181 = vmatprep.subr.bf16.mxu0 0
        %1182 = vmatpush1.bf16.msra.mxu0 0
        %1183 = vmatprep.subr.bf16.mxu0 0
        %1184 = vmatpush1.bf16.msra.mxu0 0
        %1185 = vmatprep.subr.bf16.mxu0 0
        %1186 = vmatpush1.bf16.msra.mxu0 0
        %1187 = vmatprep.mubr.bf16.mxu0 0
        %1188 = vmatmul.mubr.bf16.gmra.mrb[0].mxu0 %v1153
        %v1189 = vpop.f32.mrb[0].mxu0
        %v1190 = vadd.f32 %v1138, %v1189
        %v1191 = vpop.f32.mrb[0].mxu0
        %v1192 = vpop.f32.mrb[0].mxu0
        %v1193 = vadd.f32 %v1138, %v1192
        %v1194 = vpop.f32.mrb[0].mxu0
        %1195 = vdwg.mxu0
        %v1196 = vpack.c.bf16 %v1193, %v1190
        %1197 = vst.msk [vmem:[#allocation4] sm:$0xff] %vm1013, %v1196
        %v1198 = vld [vmem:[%s35] sm:$0xf]
        %v1199 = vld [vmem:[%s35 + $0x4] sm:$0xf]
        %v1200 = vld [vmem:[%s35 + $0x8] sm:$0xf]
        %v1201 = vld [vmem:[%s35 + $0xc] sm:$0xf]
        %v1202 = vld [vmem:[%s37] sm:$0x1]
        %v1204 = vlaneseq
        %v1205 = vshrl.u32 %v1204, 7
        %v1206 = vsub.s32 0, %v1205
        %v1207 = vrot.slane %v1202, %v1206
        %v1213 = vunpack.c.l.b16 %v1198
        %v1214 = vunpack.c.l.b16 %v1199
        %v1215 = vunpack.c.l.b16 %v1200
        %v1216 = vunpack.c.l.b16 %v1201
        %v1217 = vpack.c.b16 %v1214, %v1213
        %v1218 = vpack.c.b16 %v1216, %v1215
        %1221 = vmatprep.subr.bf16.mxu0 0
        %1222 = vmatpush1.bf16.msra.mxu0 %v1217
        %1223 = vmatprep.subr.bf16.mxu0 0
        %1224 = vmatpush1.bf16.msra.mxu0 %v1218
        %1225 = vmatprep.subr.bf16.mxu0 0
        %1226 = vmatpush1.bf16.msra.mxu0 0
        %1227 = vmatprep.subr.bf16.mxu0 0
        %1228 = vmatpush1.bf16.msra.mxu0 0
        %1229 = vmatprep.subr.bf16.mxu0 0
        %1230 = vmatpush1.bf16.msra.mxu0 0
        %1231 = vmatprep.subr.bf16.mxu0 0
        %1232 = vmatpush1.bf16.msra.mxu0 0
        %1233 = vmatprep.subr.bf16.mxu0 0
        %1234 = vmatpush1.bf16.msra.mxu0 0
        %1235 = vmatprep.subr.bf16.mxu0 0
        %1236 = vmatpush1.bf16.msra.mxu0 0
        %1237 = vmatprep.subr.bf16.mxu0 0
        %1238 = vmatpush1.bf16.msra.mxu0 0
        %1239 = vmatprep.subr.bf16.mxu0 0
        %1240 = vmatpush1.bf16.msra.mxu0 0
        %1241 = vmatprep.subr.bf16.mxu0 0
        %1242 = vmatpush1.bf16.msra.mxu0 0
        %1243 = vmatprep.subr.bf16.mxu0 0
        %1244 = vmatpush1.bf16.msra.mxu0 0
        %1245 = vmatprep.subr.bf16.mxu0 0
        %1246 = vmatpush1.bf16.msra.mxu0 0
        %1247 = vmatprep.subr.bf16.mxu0 0
        %1248 = vmatpush1.bf16.msra.mxu0 0
        %1249 = vmatprep.subr.bf16.mxu0 0
        %1250 = vmatpush1.bf16.msra.mxu0 0
        %1251 = vmatprep.subr.bf16.mxu0 0
        %1252 = vmatpush1.bf16.msra.mxu0 0
        %1253 = vmatprep.mubr.bf16.mxu0 0
        %1254 = vmatmul.mubr.bf16.gmra.mrb[0].mxu0 %v1153
        %v1255 = vpop.f32.mrb[0].mxu0
        %v1256 = vadd.f32 %v1207, %v1255
        %v1257 = vpop.f32.mrb[0].mxu0
        %v1258 = vpop.f32.mrb[0].mxu0
        %v1259 = vadd.f32 %v1207, %v1258
        %v1260 = vpop.f32.mrb[0].mxu0
        %1261 = vdwg.mxu0
        %v1262 = vpack.c.bf16 %v1259, %v1256
        %1263 = vst.msk [vmem:[#allocation5] sm:$0xff] %vm1013, %v1262
      $region140: #{denseformer_forward.10} parent=135 // pred_fallthru
        _
      %v1264 = vld [vmem:[%s965] sm:$0xff]
      %v1265 = vld [vmem:[%s965 + $0x8] sm:$0xff]
      %v1266 = vld [vmem:[%s7] sm:$0xf]
      %v1267 = vld [vmem:[%s7 + $0x4] sm:$0xf]
      %v1268 = vld [vmem:[%s7 + $0x8] sm:$0xf]
      %v1269 = vld [vmem:[%s7 + $0xc] sm:$0xf]
      %v1270 = vpack.c.bf16 %v1265, %v1264
      %v1271 = vld [vmem:[%s9] sm:$0x1]
      %v1273 = vlaneseq
      %v1274 = vshrl.u32 %v1273, 7
      %v1275 = vsub.s32 0, %v1274
      %v1276 = vrot.slane %v1271, %v1275
      %v1282 = vunpack.c.l.b16 %v1266
      %v1283 = vunpack.c.l.b16 %v1267
      %v1284 = vunpack.c.l.b16 %v1268
      %v1285 = vunpack.c.l.b16 %v1269
      %v1286 = vpack.c.b16 %v1283, %v1282
      %v1287 = vpack.c.b16 %v1285, %v1284
      %vm1290 = vcmask 261120
      %v1292 = vsel %vm1290, %v1270, 0
      %1294 = vmatprep.subr.bf16.mxu0 0
      %1295 = vmatpush1.bf16.msra.mxu0 %v1286
      %1296 = vmatprep.subr.bf16.mxu0 0
      %1297 = vmatpush1.bf16.msra.mxu0 %v1287
      %1298 = vmatprep.subr.bf16.mxu0 0
      %1299 = vmatpush1.bf16.msra.mxu0 0
      %1300 = vmatprep.subr.bf16.mxu0 0
      %1301 = vmatpush1.bf16.msra.mxu0 0
      %1302 = vmatprep.subr.bf16.mxu0 0
      %1303 = vmatpush1.bf16.msra.mxu0 0
      %1304 = vmatprep.subr.bf16.mxu0 0
      %1305 = vmatpush1.bf16.msra.mxu0 0
      %1306 = vmatprep.subr.bf16.mxu0 0
      %1307 = vmatpush1.bf16.msra.mxu0 0
      %1308 = vmatprep.subr.bf16.mxu0 0
      %1309 = vmatpush1.bf16.msra.mxu0 0
      %1310 = vmatprep.subr.bf16.mxu0 0
      %1311 = vmatpush1.bf16.msra.mxu0 0
      %1312 = vmatprep.subr.bf16.mxu0 0
      %1313 = vmatpush1.bf16.msra.mxu0 0
      %1314 = vmatprep.subr.bf16.mxu0 0
      %1315 = vmatpush1.bf16.msra.mxu0 0
      %1316 = vmatprep.subr.bf16.mxu0 0
      %1317 = vmatpush1.bf16.msra.mxu0 0
      %1318 = vmatprep.subr.bf16.mxu0 0
      %1319 = vmatpush1.bf16.msra.mxu0 0
      %1320 = vmatprep.subr.bf16.mxu0 0
      %1321 = vmatpush1.bf16.msra.mxu0 0
      %1322 = vmatprep.subr.bf16.mxu0 0
      %1323 = vmatpush1.bf16.msra.mxu0 0
      %1324 = vmatprep.subr.bf16.mxu0 0
      %1325 = vmatpush1.bf16.msra.mxu0 0
      %1326 = vmatprep.mubr.bf16.mxu0 0
      %1327 = vmatmul.mubr.bf16.gmra.mrb[0].mxu0 %v1292
      %v1328 = vpop.f32.mrb[0].mxu0
      %v1329 = vadd.f32 %v1276, %v1328
      %v1330 = vpop.f32.mrb[0].mxu0
      %v1331 = vpop.f32.mrb[0].mxu0
      %v1332 = vadd.f32 %v1276, %v1331
      %v1333 = vpop.f32.mrb[0].mxu0
      %1334 = vdwg.mxu0
      %v1335 = vld [vmem:[#allocation2] sm:$0xff]
      %v1336 = vld [vmem:[#allocation3] sm:$0xff]
      %s1337 = smul.u32 %s75, 16
      %v1338 = vlaneseq
      %v1339 = vshrl.u32 %v1338, 7
      %v1340 = vadd.s32 %v1339, 8
      %v1341 = vstv %s1337
      %v1342 = vadd.s32 %v1339, %v1341
      %v1343 = vadd.s32 %v1340, %v1341
      %v1344 = vlaneseq
      %v1345 = vand.u32 %v1344, 127
      %vm1346 = vcmp.le.s32.totalorder %v1345, %v1342
      %vm1347 = vcmp.le.s32.totalorder %v1345, %v1343
      %v1348 = vpack.c.bf16 %v1332, %v1329
      %vm1349 = vcmask 64512
      %v1351 = vsel %vm1349, %v1348, 0
      %v1354 = vsel %vm1349, %v1335, 0
      %1356 = vmatprep.subr.bf16.mxu0 0
      %1357 = vmatpush1.bf16.xpose.msra.mxu0 %v1354
      %1358 = vmatprep.subr.bf16.mxu0 0
      %1359 = vmatpush1.bf16.xpose.msra.mxu0 0
      %1360 = vmatprep.subr.bf16.mxu0 0
      %1361 = vmatpush1.bf16.xpose.msra.mxu0 0
      %1362 = vmatprep.subr.bf16.mxu0 0
      %1363 = vmatpush1.bf16.xpose.msra.mxu0 0
      %1364 = vmatprep.subr.bf16.mxu0 0
      %1365 = vmatpush1.bf16.xpose.msra.mxu0 0
      %1366 = vmatprep.subr.bf16.mxu0 0
      %1367 = vmatpush1.bf16.xpose.msra.mxu0 0
      %1368 = vmatprep.subr.bf16.mxu0 0
      %1369 = vmatpush1.bf16.xpose.msra.mxu0 0
      %1370 = vmatprep.subr.bf16.mxu0 0
      %1371 = vmatpush1.bf16.xpose.msra.mxu0 0
      %1372 = vmatprep.subr.bf16.mxu0 0
      %1373 = vmatpush1.bf16.xpose.msra.mxu0 0
      %1374 = vmatprep.subr.bf16.mxu0 0
      %1375 = vmatpush1.bf16.xpose.msra.mxu0 0
      %1376 = vmatprep.subr.bf16.mxu0 0
      %1377 = vmatpush1.bf16.xpose.msra.mxu0 0
      %1378 = vmatprep.subr.bf16.mxu0 0
      %1379 = vmatpush1.bf16.xpose.msra.mxu0 0
      %1380 = vmatprep.subr.bf16.mxu0 0
      %1381 = vmatpush1.bf16.xpose.msra.mxu0 0
      %1382 = vmatprep.subr.bf16.mxu0 0
      %1383 = vmatpush1.bf16.xpose.msra.mxu0 0
      %1384 = vmatprep.subr.bf16.mxu0 0
      %1385 = vmatpush1.bf16.xpose.msra.mxu0 0
      %1386 = vmatprep.subr.bf16.mxu0 0
      %1387 = vmatpush1.bf16.xpose.msra.mxu0 0
      %1388 = vmatprep.mubr.bf16.mxu0 0
      %1389 = vmatmul.mubr.bf16.gmra.mrb[0].mxu0 %v1351
      %v1390 = vpop.f32.mrb[0].mxu0
      %v1391 = vadd.f32 0.0, %v1390
      %v1392 = vpop.f32.mrb[0].mxu0
      %v1393 = vpop.f32.mrb[0].mxu0
      %v1394 = vadd.f32 0.0, %v1393
      %v1395 = vpop.f32.mrb[0].mxu0
      %1396 = vdwg.mxu0
      %v1397 = vmul.f32 %v1391, 0.35355338
      %v1398 = vmul.f32 %v1394, 0.35355338
      %v1399 = vsel %vm1346, %v1397, -1e+30
      %v1400 = vsel %vm1347, %v1398, -1e+30
      %vm1401 = vcmask 130048
      %v1402 = vsel %vm1401, %v1399, -inf
      %1403 = vmax.xlane.f32.xlu0 %v1402
      %v1404 = vpop.xlane.xlu0 %1403
      %v1405 = vsel %vm1401, %v1400, -inf
      %1406 = vmax.xlane.f32.xlu0 %v1405
      %v1407 = vpop.xlane.xlu0 %1406
      %v1408 = vsub.f32 %v1399, %v1404
      %v1409 = vsub.f32 %v1400, %v1407
      %v1410 = vmul.f32 %v1408, 1.442695
      %v1411 = vpow.pop %v1410
      %v1412 = vmul.f32 %v1409, 1.442695
      %v1413 = vpow.pop %v1412
      %v1414 = vsel %vm1401, %v1411, 0.0
      %1415 = vadd.xlane.f32.xlu0 %v1414
      %v1416 = vpop.xlane.xlu0 %1415
      %v1417 = vsel %vm1401, %v1413, 0.0
      %1418 = vadd.xlane.f32.xlu0 %v1417
      %v1419 = vpop.xlane.xlu0 %1418
      %v1420 = vrcp.pop %v1416
      %v1421 = vrcp.pop %v1419
      %v1422 = vpack.c.bf16 %v1413, %v1411
      %v1424 = vsel %vm1401, %v1422, 0
      %1426 = vmatprep.subr.bf16.mxu0 0
      %1427 = vmatpush1.bf16.msra.mxu0 %v1336
      %1428 = vmatprep.subr.bf16.mxu0 0
      %1429 = vmatpush1.bf16.msra.mxu0 0
      %1430 = vmatprep.subr.bf16.mxu0 0
      %1431 = vmatpush1.bf16.msra.mxu0 0
      %1432 = vmatprep.subr.bf16.mxu0 0
      %1433 = vmatpush1.bf16.msra.mxu0 0
      %1434 = vmatprep.subr.bf16.mxu0 0
      %1435 = vmatpush1.bf16.msra.mxu0 0
      %1436 = vmatprep.subr.bf16.mxu0 0
      %1437 = vmatpush1.bf16.msra.mxu0 0
      %1438 = vmatprep.subr.bf16.mxu0 0
      %1439 = vmatpush1.bf16.msra.mxu0 0
      %1440 = vmatprep.subr.bf16.mxu0 0
      %1441 = vmatpush1.bf16.msra.mxu0 0
      %1442 = vmatprep.subr.bf16.mxu0 0
      %1443 = vmatpush1.bf16.msra.mxu0 0
      %1444 = vmatprep.subr.bf16.mxu0 0
      %1445 = vmatpush1.bf16.msra.mxu0 0
      %1446 = vmatprep.subr.bf16.mxu0 0
      %1447 = vmatpush1.bf16.msra.mxu0 0
      %1448 = vmatprep.subr.bf16.mxu0 0
      %1449 = vmatpush1.bf16.msra.mxu0 0
      %1450 = vmatprep.subr.bf16.mxu0 0
      %1451 = vmatpush1.bf16.msra.mxu0 0
      %1452 = vmatprep.subr.bf16.mxu0 0
      %1453 = vmatpush1.bf16.msra.mxu0 0
      %1454 = vmatprep.subr.bf16.mxu0 0
      %1455 = vmatpush1.bf16.msra.mxu0 0
      %1456 = vmatprep.subr.bf16.mxu0 0
      %1457 = vmatpush1.bf16.msra.mxu0 0
      %1458 = vmatprep.mubr.bf16.mxu0 0
      %1459 = vmatmul.mubr.bf16.gmra.mrb[0].mxu0 %v1424
      %v1460 = vpop.f32.mrb[0].mxu0
      %v1461 = vadd.f32 0.0, %v1460
      %v1462 = vpop.f32.mrb[0].mxu0
      %v1463 = vpop.f32.mrb[0].mxu0
      %v1464 = vadd.f32 0.0, %v1463
      %v1465 = vpop.f32.mrb[0].mxu0
      %1466 = vdwg.mxu0
      %v1467 = vmul.f32 %v1461, %v1420
      %v1468 = vmul.f32 %v1464, %v1421
      %1469 = vst.msk [vmem:[#allocation6] sm:$0xff] %vm1349, %v1467
      %1470 = vst.msk [vmem:[#allocation6 + $0x8] sm:$0xff] %vm1349, %v1468
      %1472 = vrot.lane.b32.xlu0 %v1348, 120
      %v1473 = vpop.permute.xlu0 %1472
      %1475 = vrot.lane.b32.xlu0 %v1335, 120
      %v1476 = vpop.permute.xlu0 %1475
      %v1478 = vsel %vm1349, %v1473, 0
      %v1481 = vsel %vm1349, %v1476, 0
      %1483 = vmatprep.subr.bf16.mxu0 0
      %1484 = vmatpush1.bf16.xpose.msra.mxu0 %v1481
      %1485 = vmatprep.subr.bf16.mxu0 0
      %1486 = vmatpush1.bf16.xpose.msra.mxu0 0
      %1487 = vmatprep.subr.bf16.mxu0 0
      %1488 = vmatpush1.bf16.xpose.msra.mxu0 0
      %1489 = vmatprep.subr.bf16.mxu0 0
      %1490 = vmatpush1.bf16.xpose.msra.mxu0 0
      %1491 = vmatprep.subr.bf16.mxu0 0
      %1492 = vmatpush1.bf16.xpose.msra.mxu0 0
      %1493 = vmatprep.subr.bf16.mxu0 0
      %1494 = vmatpush1.bf16.xpose.msra.mxu0 0
      %1495 = vmatprep.subr.bf16.mxu0 0
      %1496 = vmatpush1.bf16.xpose.msra.mxu0 0
      %1497 = vmatprep.subr.bf16.mxu0 0
      %1498 = vmatpush1.bf16.xpose.msra.mxu0 0
      %1499 = vmatprep.subr.bf16.mxu0 0
      %1500 = vmatpush1.bf16.xpose.msra.mxu0 0
      %1501 = vmatprep.subr.bf16.mxu0 0
      %1502 = vmatpush1.bf16.xpose.msra.mxu0 0
      %1503 = vmatprep.subr.bf16.mxu0 0
      %1504 = vmatpush1.bf16.xpose.msra.mxu0 0
      %1505 = vmatprep.subr.bf16.mxu0 0
      %1506 = vmatpush1.bf16.xpose.msra.mxu0 0
      %1507 = vmatprep.subr.bf16.mxu0 0
      %1508 = vmatpush1.bf16.xpose.msra.mxu0 0
      %1509 = vmatprep.subr.bf16.mxu0 0
      %1510 = vmatpush1.bf16.xpose.msra.mxu0 0
      %1511 = vmatprep.subr.bf16.mxu0 0
      %1512 = vmatpush1.bf16.xpose.msra.mxu0 0
      %1513 = vmatprep.subr.bf16.mxu0 0
      %1514 = vmatpush1.bf16.xpose.msra.mxu0 0
      %1515 = vmatprep.mubr.bf16.mxu0 0
      %1516 = vmatmul.mubr.bf16.gmra.mrb[0].mxu0 %v1478
      %v1517 = vpop.f32.mrb[0].mxu0
      %v1518 = vadd.f32 0.0, %v1517
      %v1519 = vpop.f32.mrb[0].mxu0
      %v1520 = vpop.f32.mrb[0].mxu0
      %v1521 = vadd.f32 0.0, %v1520
      %v1522 = vpop.f32.mrb[0].mxu0
      %1523 = vdwg.mxu0
      %v1524 = vmul.f32 %v1518, 0.35355338
      %v1525 = vmul.f32 %v1521, 0.35355338
      %v1526 = vsel %vm1346, %v1524, -1e+30
      %v1527 = vsel %vm1347, %v1525, -1e+30
      %v1528 = vsel %vm1401, %v1526, -inf
      %1529 = vmax.xlane.f32.xlu0 %v1528
      %v1530 = vpop.xlane.xlu0 %1529
      %v1531 = vsel %vm1401, %v1527, -inf
      %1532 = vmax.xlane.f32.xlu0 %v1531
      %v1533 = vpop.xlane.xlu0 %1532
      %v1534 = vsub.f32 %v1526, %v1530
      %v1535 = vsub.f32 %v1527, %v1533
      %v1536 = vmul.f32 %v1534, 1.442695
      %v1537 = vpow.pop %v1536
      %v1538 = vmul.f32 %v1535, 1.442695
      %v1539 = vpow.pop %v1538
      %v1540 = vsel %vm1401, %v1537, 0.0
      %1541 = vadd.xlane.f32.xlu0 %v1540
      %v1542 = vpop.xlane.xlu0 %1541
      %v1543 = vsel %vm1401, %v1539, 0.0
      %1544 = vadd.xlane.f32.xlu0 %v1543
      %v1545 = vpop.xlane.xlu0 %1544
      %v1546 = vrcp.pop %v1542
      %v1547 = vrcp.pop %v1545
      %v1548 = vpack.c.bf16 %v1539, %v1537
      %1550 = vrot.lane.b32.xlu0 %v1336, 120
      %v1551 = vpop.permute.xlu0 %1550
      %v1554 = vsel %vm1401, %v1548, 0
      %1556 = vmatprep.subr.bf16.mxu0 0
      %1557 = vmatpush1.bf16.msra.mxu0 %v1551
      %1558 = vmatprep.subr.bf16.mxu0 0
      %1559 = vmatpush1.bf16.msra.mxu0 0
      %1560 = vmatprep.subr.bf16.mxu0 0
      %1561 = vmatpush1.bf16.msra.mxu0 0
      %1562 = vmatprep.subr.bf16.mxu0 0
      %1563 = vmatpush1.bf16.msra.mxu0 0
      %1564 = vmatprep.subr.bf16.mxu0 0
      %1565 = vmatpush1.bf16.msra.mxu0 0
      %1566 = vmatprep.subr.bf16.mxu0 0
      %1567 = vmatpush1.bf16.msra.mxu0 0
      %1568 = vmatprep.subr.bf16.mxu0 0
      %1569 = vmatpush1.bf16.msra.mxu0 0
      %1570 = vmatprep.subr.bf16.mxu0 0
      %1571 = vmatpush1.bf16.msra.mxu0 0
      %1572 = vmatprep.subr.bf16.mxu0 0
      %1573 = vmatpush1.bf16.msra.mxu0 0
      %1574 = vmatprep.subr.bf16.mxu0 0
      %1575 = vmatpush1.bf16.msra.mxu0 0
      %1576 = vmatprep.subr.bf16.mxu0 0
      %1577 = vmatpush1.bf16.msra.mxu0 0
      %1578 = vmatprep.subr.bf16.mxu0 0
      %1579 = vmatpush1.bf16.msra.mxu0 0
      %1580 = vmatprep.subr.bf16.mxu0 0
      %1581 = vmatpush1.bf16.msra.mxu0 0
      %1582 = vmatprep.subr.bf16.mxu0 0
      %1583 = vmatpush1.bf16.msra.mxu0 0
      %1584 = vmatprep.subr.bf16.mxu0 0
      %1585 = vmatpush1.bf16.msra.mxu0 0
      %1586 = vmatprep.subr.bf16.mxu0 0
      %1587 = vmatpush1.bf16.msra.mxu0 0
      %1588 = vmatprep.mubr.bf16.mxu0 0
      %1589 = vmatmul.mubr.bf16.gmra.mrb[0].mxu0 %v1554
      %v1590 = vpop.f32.mrb[0].mxu0
      %v1591 = vadd.f32 0.0, %v1590
      %v1592 = vpop.f32.mrb[0].mxu0
      %v1593 = vpop.f32.mrb[0].mxu0
      %v1594 = vadd.f32 0.0, %v1593
      %v1595 = vpop.f32.mrb[0].mxu0
      %1596 = vdwg.mxu0
      %v1597 = vmul.f32 %v1591, %v1546
      %v1598 = vmul.f32 %v1594, %v1547
      %1601 = vrot.lane.b32.xlu0 %v1597, 8
      %v1602 = vpop.permute.xlu0 %1601
      %1603 = vrot.lane.b32.xlu0 %v1598, 8
      %v1604 = vpop.permute.xlu0 %1603
      %vm1607 = vcmask 130112
      %1608 = vst.msk [vmem:[#allocation6] sm:$0xff] %vm1607, %v1602
      %1609 = vst.msk [vmem:[#allocation6 + $0x8] sm:$0xff] %vm1607, %v1604
      %1610 = vrot.lane.b32.xlu0 %v1348, 112
      %v1611 = vpop.permute.xlu0 %1610
      %1612 = vrot.lane.b32.xlu0 %v1335, 112
      %v1613 = vpop.permute.xlu0 %1612
      %v1615 = vsel %vm1349, %v1611, 0
      %v1618 = vsel %vm1349, %v1613, 0
      %1620 = vmatprep.subr.bf16.mxu0 0
      %1621 = vmatpush1.bf16.xpose.msra.mxu0 %v1618
      %1622 = vmatprep.subr.bf16.mxu0 0
      %1623 = vmatpush1.bf16.xpose.msra.mxu0 0
      %1624 = vmatprep.subr.bf16.mxu0 0
      %1625 = vmatpush1.bf16.xpose.msra.mxu0 0
      %1626 = vmatprep.subr.bf16.mxu0 0
      %1627 = vmatpush1.bf16.xpose.msra.mxu0 0
      %1628 = vmatprep.subr.bf16.mxu0 0
      %1629 = vmatpush1.bf16.xpose.msra.mxu0 0
      %1630 = vmatprep.subr.bf16.mxu0 0
      %1631 = vmatpush1.bf16.xpose.msra.mxu0 0
      %1632 = vmatprep.subr.bf16.mxu0 0
      %1633 = vmatpush1.bf16.xpose.msra.mxu0 0
      %1634 = vmatprep.subr.bf16.mxu0 0
      %1635 = vmatpush1.bf16.xpose.msra.mxu0 0
      %1636 = vmatprep.subr.bf16.mxu0 0
      %1637 = vmatpush1.bf16.xpose.msra.mxu0 0
      %1638 = vmatprep.subr.bf16.mxu0 0
      %1639 = vmatpush1.bf16.xpose.msra.mxu0 0
      %1640 = vmatprep.subr.bf16.mxu0 0
      %1641 = vmatpush1.bf16.xpose.msra.mxu0 0
      %1642 = vmatprep.subr.bf16.mxu0 0
      %1643 = vmatpush1.bf16.xpose.msra.mxu0 0
      %1644 = vmatprep.subr.bf16.mxu0 0
      %1645 = vmatpush1.bf16.xpose.msra.mxu0 0
      %1646 = vmatprep.subr.bf16.mxu0 0
      %1647 = vmatpush1.bf16.xpose.msra.mxu0 0
      %1648 = vmatprep.subr.bf16.mxu0 0
      %1649 = vmatpush1.bf16.xpose.msra.mxu0 0
      %1650 = vmatprep.subr.bf16.mxu0 0
      %1651 = vmatpush1.bf16.xpose.msra.mxu0 0
      %1652 = vmatprep.mubr.bf16.mxu0 0
      %1653 = vmatmul.mubr.bf16.gmra.mrb[0].mxu0 %v1615
      %v1654 = vpop.f32.mrb[0].mxu0
      %v1655 = vadd.f32 0.0, %v1654
      %v1656 = vpop.f32.mrb[0].mxu0
      %v1657 = vpop.f32.mrb[0].mxu0
      %v1658 = vadd.f32 0.0, %v1657
      %v1659 = vpop.f32.mrb[0].mxu0
      %1660 = vdwg.mxu0
      %v1661 = vmul.f32 %v1655, 0.35355338
      %v1662 = vmul.f32 %v1658, 0.35355338
      %v1663 = vsel %vm1346, %v1661, -1e+30
      %v1664 = vsel %vm1347, %v1662, -1e+30
      %v1665 = vsel %vm1401, %v1663, -inf
      %1666 = vmax.xlane.f32.xlu0 %v1665
      %v1667 = vpop.xlane.xlu0 %1666
      %v1668 = vsel %vm1401, %v1664, -inf
      %1669 = vmax.xlane.f32.xlu0 %v1668
      %v1670 = vpop.xlane.xlu0 %1669
      %v1671 = vsub.f32 %v1663, %v1667
      %v1672 = vsub.f32 %v1664, %v1670
      %v1673 = vmul.f32 %v1671, 1.442695
      %v1674 = vpow.pop %v1673
      %v1675 = vmul.f32 %v1672, 1.442695
      %v1676 = vpow.pop %v1675
      %v1677 = vsel %vm1401, %v1674, 0.0
      %1678 = vadd.xlane.f32.xlu0 %v1677
      %v1679 = vpop.xlane.xlu0 %1678
      %v1680 = vsel %vm1401, %v1676, 0.0
      %1681 = vadd.xlane.f32.xlu0 %v1680
      %v1682 = vpop.xlane.xlu0 %1681
      %v1683 = vrcp.pop %v1679
      %v1684 = vrcp.pop %v1682
      %v1685 = vpack.c.bf16 %v1676, %v1674
      %1686 = vrot.lane.b32.xlu0 %v1336, 112
      %v1687 = vpop.permute.xlu0 %1686
      %v1690 = vsel %vm1401, %v1685, 0
      %1692 = vmatprep.subr.bf16.mxu0 0
      %1693 = vmatpush1.bf16.msra.mxu0 %v1687
      %1694 = vmatprep.subr.bf16.mxu0 0
      %1695 = vmatpush1.bf16.msra.mxu0 0
      %1696 = vmatprep.subr.bf16.mxu0 0
      %1697 = vmatpush1.bf16.msra.mxu0 0
      %1698 = vmatprep.subr.bf16.mxu0 0
      %1699 = vmatpush1.bf16.msra.mxu0 0
      %1700 = vmatprep.subr.bf16.mxu0 0
      %1701 = vmatpush1.bf16.msra.mxu0 0
      %1702 = vmatprep.subr.bf16.mxu0 0
      %1703 = vmatpush1.bf16.msra.mxu0 0
      %1704 = vmatprep.subr.bf16.mxu0 0
      %1705 = vmatpush1.bf16.msra.mxu0 0
      %1706 = vmatprep.subr.bf16.mxu0 0
      %1707 = vmatpush1.bf16.msra.mxu0 0
      %1708 = vmatprep.subr.bf16.mxu0 0
      %1709 = vmatpush1.bf16.msra.mxu0 0
      %1710 = vmatprep.subr.bf16.mxu0 0
      %1711 = vmatpush1.bf16.msra.mxu0 0
      %1712 = vmatprep.subr.bf16.mxu0 0
      %1713 = vmatpush1.bf16.msra.mxu0 0
      %1714 = vmatprep.subr.bf16.mxu0 0
      %1715 = vmatpush1.bf16.msra.mxu0 0
      %1716 = vmatprep.subr.bf16.mxu0 0
      %1717 = vmatpush1.bf16.msra.mxu0 0
      %1718 = vmatprep.subr.bf16.mxu0 0
      %1719 = vmatpush1.bf16.msra.mxu0 0
      %1720 = vmatprep.subr.bf16.mxu0 0
      %1721 = vmatpush1.bf16.msra.mxu0 0
      %1722 = vmatprep.subr.bf16.mxu0 0
      %1723 = vmatpush1.bf16.msra.mxu0 0
      %1724 = vmatprep.mubr.bf16.mxu0 0
      %1725 = vmatmul.mubr.bf16.gmra.mrb[0].mxu0 %v1690
      %v1726 = vpop.f32.mrb[0].mxu0
      %v1727 = vadd.f32 0.0, %v1726
      %v1728 = vpop.f32.mrb[0].mxu0
      %v1729 = vpop.f32.mrb[0].mxu0
      %v1730 = vadd.f32 0.0, %v1729
      %v1731 = vpop.f32.mrb[0].mxu0
      %1732 = vdwg.mxu0
      %v1733 = vmul.f32 %v1727, %v1683
      %v1734 = vmul.f32 %v1730, %v1684
      %1737 = vrot.lane.b32.xlu0 %v1733, 16
      %v1738 = vpop.permute.xlu0 %1737
      %1739 = vrot.lane.b32.xlu0 %v1734, 16
      %v1740 = vpop.permute.xlu0 %1739
      %vm1743 = vcmask 195712
      %1744 = vst.msk [vmem:[#allocation6] sm:$0xff] %vm1743, %v1738
      %1745 = vst.msk [vmem:[#allocation6 + $0x8] sm:$0xff] %vm1743, %v1740
      %1746 = vrot.lane.b32.xlu0 %v1348, 104
      %v1747 = vpop.permute.xlu0 %1746
      %1748 = vrot.lane.b32.xlu0 %v1335, 104
      %v1749 = vpop.permute.xlu0 %1748
      %v1751 = vsel %vm1349, %v1747, 0
      %v1754 = vsel %vm1349, %v1749, 0
      %1756 = vmatprep.subr.bf16.mxu0 0
      %1757 = vmatpush1.bf16.xpose.msra.mxu0 %v1754
      %1758 = vmatprep.subr.bf16.mxu0 0
      %1759 = vmatpush1.bf16.xpose.msra.mxu0 0
      %1760 = vmatprep.subr.bf16.mxu0 0
      %1761 = vmatpush1.bf16.xpose.msra.mxu0 0
      %1762 = vmatprep.subr.bf16.mxu0 0
      %1763 = vmatpush1.bf16.xpose.msra.mxu0 0
      %1764 = vmatprep.subr.bf16.mxu0 0
      %1765 = vmatpush1.bf16.xpose.msra.mxu0 0
      %1766 = vmatprep.subr.bf16.mxu0 0
      %1767 = vmatpush1.bf16.xpose.msra.mxu0 0
      %1768 = vmatprep.subr.bf16.mxu0 0
      %1769 = vmatpush1.bf16.xpose.msra.mxu0 0
      %1770 = vmatprep.subr.bf16.mxu0 0
      %1771 = vmatpush1.bf16.xpose.msra.mxu0 0
      %1772 = vmatprep.subr.bf16.mxu0 0
      %1773 = vmatpush1.bf16.xpose.msra.mxu0 0
      %1774 = vmatprep.subr.bf16.mxu0 0
      %1775 = vmatpush1.bf16.xpose.msra.mxu0 0
      %1776 = vmatprep.subr.bf16.mxu0 0
      %1777 = vmatpush1.bf16.xpose.msra.mxu0 0
      %1778 = vmatprep.subr.bf16.mxu0 0
      %1779 = vmatpush1.bf16.xpose.msra.mxu0 0
      %1780 = vmatprep.subr.bf16.mxu0 0
      %1781 = vmatpush1.bf16.xpose.msra.mxu0 0
      %1782 = vmatprep.subr.bf16.mxu0 0
      %1783 = vmatpush1.bf16.xpose.msra.mxu0 0
      %1784 = vmatprep.subr.bf16.mxu0 0
      %1785 = vmatpush1.bf16.xpose.msra.mxu0 0
      %1786 = vmatprep.subr.bf16.mxu0 0
      %1787 = vmatpush1.bf16.xpose.msra.mxu0 0
      %1788 = vmatprep.mubr.bf16.mxu0 0
      %1789 = vmatmul.mubr.bf16.gmra.mrb[0].mxu0 %v1751
      %v1790 = vpop.f32.mrb[0].mxu0
      %v1791 = vadd.f32 0.0, %v1790
      %v1792 = vpop.f32.mrb[0].mxu0
      %v1793 = vpop.f32.mrb[0].mxu0
      %v1794 = vadd.f32 0.0, %v1793
      %v1795 = vpop.f32.mrb[0].mxu0
      %1796 = vdwg.mxu0
      %v1797 = vmul.f32 %v1791, 0.35355338
      %v1798 = vmul.f32 %v1794, 0.35355338
      %v1799 = vsel %vm1346, %v1797, -1e+30
      %v1800 = vsel %vm1347, %v1798, -1e+30
      %v1801 = vsel %vm1401, %v1799, -inf
      %1802 = vmax.xlane.f32.xlu0 %v1801
      %v1803 = vpop.xlane.xlu0 %1802
      %v1804 = vsel %vm1401, %v1800, -inf
      %1805 = vmax.xlane.f32.xlu0 %v1804
      %v1806 = vpop.xlane.xlu0 %1805
      %v1807 = vsub.f32 %v1799, %v1803
      %v1808 = vsub.f32 %v1800, %v1806
      %v1809 = vmul.f32 %v1807, 1.442695
      %v1810 = vpow.pop %v1809
      %v1811 = vmul.f32 %v1808, 1.442695
      %v1812 = vpow.pop %v1811
      %v1813 = vsel %vm1401, %v1810, 0.0
      %1814 = vadd.xlane.f32.xlu0 %v1813
      %v1815 = vpop.xlane.xlu0 %1814
      %v1816 = vsel %vm1401, %v1812, 0.0
      %1817 = vadd.xlane.f32.xlu0 %v1816
      %v1818 = vpop.xlane.xlu0 %1817
      %v1819 = vrcp.pop %v1815
      %v1820 = vrcp.pop %v1818
      %v1821 = vpack.c.bf16 %v1812, %v1810
      %1822 = vrot.lane.b32.xlu0 %v1336, 104
      %v1823 = vpop.permute.xlu0 %1822
      %v1826 = vsel %vm1401, %v1821, 0
      %1828 = vmatprep.subr.bf16.mxu0 0
      %1829 = vmatpush1.bf16.msra.mxu0 %v1823
      %1830 = vmatprep.subr.bf16.mxu0 0
      %1831 = vmatpush1.bf16.msra.mxu0 0
      %1832 = vmatprep.subr.bf16.mxu0 0
      %1833 = vmatpush1.bf16.msra.mxu0 0
      %1834 = vmatprep.subr.bf16.mxu0 0
      %1835 = vmatpush1.bf16.msra.mxu0 0
      %1836 = vmatprep.subr.bf16.mxu0 0
      %1837 = vmatpush1.bf16.msra.mxu0 0
      %1838 = vmatprep.subr.bf16.mxu0 0
      %1839 = vmatpush1.bf16.msra.mxu0 0
      %1840 = vmatprep.subr.bf16.mxu0 0
      %1841 = vmatpush1.bf16.msra.mxu0 0
      %1842 = vmatprep.subr.bf16.mxu0 0
      %1843 = vmatpush1.bf16.msra.mxu0 0
      %1844 = vmatprep.subr.bf16.mxu0 0
      %1845 = vmatpush1.bf16.msra.mxu0 0
      %1846 = vmatprep.subr.bf16.mxu0 0
      %1847 = vmatpush1.bf16.msra.mxu0 0
      %1848 = vmatprep.subr.bf16.mxu0 0
      %1849 = vmatpush1.bf16.msra.mxu0 0
      %1850 = vmatprep.subr.bf16.mxu0 0
      %1851 = vmatpush1.bf16.msra.mxu0 0
      %1852 = vmatprep.subr.bf16.mxu0 0
      %1853 = vmatpush1.bf16.msra.mxu0 0
      %1854 = vmatprep.subr.bf16.mxu0 0
      %1855 = vmatpush1.bf16.msra.mxu0 0
      %1856 = vmatprep.subr.bf16.mxu0 0
      %1857 = vmatpush1.bf16.msra.mxu0 0
      %1858 = vmatprep.subr.bf16.mxu0 0
      %1859 = vmatpush1.bf16.msra.mxu0 0
      %1860 = vmatprep.mubr.bf16.mxu0 0
      %1861 = vmatmul.mubr.bf16.gmra.mrb[0].mxu0 %v1826
      %v1862 = vpop.f32.mrb[0].mxu0
      %v1863 = vadd.f32 0.0, %v1862
      %v1864 = vpop.f32.mrb[0].mxu0
      %v1865 = vpop.f32.mrb[0].mxu0
      %v1866 = vadd.f32 0.0, %v1865
      %v1867 = vpop.f32.mrb[0].mxu0
      %1868 = vdwg.mxu0
      %v1869 = vmul.f32 %v1863, %v1819
      %v1870 = vmul.f32 %v1866, %v1820
      %1873 = vrot.lane.b32.xlu0 %v1869, 24
      %v1874 = vpop.permute.xlu0 %1873
      %1875 = vrot.lane.b32.xlu0 %v1870, 24
      %v1876 = vpop.permute.xlu0 %1875
      %vm1879 = vcmask 261312
      %1880 = vst.msk [vmem:[#allocation6] sm:$0xff] %vm1879, %v1874
      %1881 = vst.msk [vmem:[#allocation6 + $0x8] sm:$0xff] %vm1879, %v1876
      %v1882 = vld [vmem:[#allocation6] sm:$0xff]
      %v1883 = vld [vmem:[#allocation6 + $0x8] sm:$0xff]
      %v1884 = vld [vmem:[%s19] sm:$0xf]
      %v1885 = vld [vmem:[%s19 + $0x4] sm:$0xf]
      %v1886 = vld [vmem:[%s19 + $0x8] sm:$0xf]
      %v1887 = vld [vmem:[%s19 + $0xc] sm:$0xf]
      %v1888 = vpack.c.bf16 %v1883, %v1882
      %v1893 = vunpack.c.l.b16 %v1884
      %v1894 = vunpack.c.l.b16 %v1885
      %v1895 = vunpack.c.l.b16 %v1886
      %v1896 = vunpack.c.l.b16 %v1887
      %v1897 = vpack.c.b16 %v1894, %v1893
      %v1898 = vpack.c.b16 %v1896, %v1895
      %v1902 = vsel %vm1290, %v1888, 0
      %1904 = vmatprep.subr.bf16.mxu0 0
      %1905 = vmatpush1.bf16.msra.mxu0 %v1897
      %1906 = vmatprep.subr.bf16.mxu0 0
      %1907 = vmatpush1.bf16.msra.mxu0 %v1898
      %1908 = vmatprep.subr.bf16.mxu0 0
      %1909 = vmatpush1.bf16.msra.mxu0 0
      %1910 = vmatprep.subr.bf16.mxu0 0
      %1911 = vmatpush1.bf16.msra.mxu0 0
      %1912 = vmatprep.subr.bf16.mxu0 0
      %1913 = vmatpush1.bf16.msra.mxu0 0
      %1914 = vmatprep.subr.bf16.mxu0 0
      %1915 = vmatpush1.bf16.msra.mxu0 0
      %1916 = vmatprep.subr.bf16.mxu0 0
      %1917 = vmatpush1.bf16.msra.mxu0 0
      %1918 = vmatprep.subr.bf16.mxu0 0
      %1919 = vmatpush1.bf16.msra.mxu0 0
      %1920 = vmatprep.subr.bf16.mxu0 0
      %1921 = vmatpush1.bf16.msra.mxu0 0
      %1922 = vmatprep.subr.bf16.mxu0 0
      %1923 = vmatpush1.bf16.msra.mxu0 0
      %1924 = vmatprep.subr.bf16.mxu0 0
      %1925 = vmatpush1.bf16.msra.mxu0 0
      %1926 = vmatprep.subr.bf16.mxu0 0
      %1927 = vmatpush1.bf16.msra.mxu0 0
      %1928 = vmatprep.subr.bf16.mxu0 0
      %1929 = vmatpush1.bf16.msra.mxu0 0
      %1930 = vmatprep.subr.bf16.mxu0 0
      %1931 = vmatpush1.bf16.msra.mxu0 0
      %1932 = vmatprep.subr.bf16.mxu0 0
      %1933 = vmatpush1.bf16.msra.mxu0 0
      %1934 = vmatprep.subr.bf16.mxu0 0
      %1935 = vmatpush1.bf16.msra.mxu0 0
      %1936 = vmatprep.mubr.bf16.mxu0 0
      %1937 = vmatmul.mubr.bf16.gmra.mrb[0].mxu0 %v1902
      %v1938 = vpop.f32.mrb[0].mxu0
      %v1939 = vadd.f32 0.0, %v1938
      %v1940 = vpop.f32.mrb[0].mxu0
      %v1941 = vpop.f32.mrb[0].mxu0
      %v1942 = vadd.f32 0.0, %v1941
      %v1943 = vpop.f32.mrb[0].mxu0
      %1944 = vdwg.mxu0
      %v1945 = vadd.f32 %v1264, %v1939
      %v1946 = vadd.f32 %v1265, %v1942
      %v1947 = vld [vmem:[%s21] sm:$0x1]
      %v1949 = vlaneseq
      %v1950 = vshrl.u32 %v1949, 7
      %v1951 = vsub.s32 0, %v1950
      %v1952 = vrot.slane %v1947, %v1951
      %v1954 = vadd.f32 %v1945, %v1952
      %v1955 = vadd.f32 %v1946, %v1952
      %v1956 = vld [vmem:[%s23] sm:$0x1]
      %v1957 = vld [vmem:[%s25] sm:$0x1]
      %v1958 = vsel %vm1290, %v1954, 0.0
      %1959 = vadd.xlane.f32.xlu0 %v1958
      %v1960 = vpop.xlane.xlu0 %1959
      %v1961 = vsel %vm1290, %v1955, 0.0
      %1962 = vadd.xlane.f32.xlu0 %v1961
      %v1963 = vpop.xlane.xlu0 %1962
      %v1964 = vrcp.pop 32.0
      %v1965 = vmul.f32 %v1960, %v1964
      %v1966 = vmul.f32 %v1963, %v1964
      %v1967 = vsub.f32 %v1954, %v1965
      %v1968 = vsub.f32 %v1955, %v1966
      %v1969 = vmul.f32 %v1967, %v1967
      %v1970 = vmul.f32 %v1968, %v1968
      %v1971 = vsel %vm1290, %v1969, 0.0
      %1972 = vadd.xlane.f32.xlu0 %v1971
      %v1973 = vpop.xlane.xlu0 %1972
      %v1974 = vsel %vm1290, %v1970, 0.0
      %1975 = vadd.xlane.f32.xlu0 %v1974
      %v1976 = vpop.xlane.xlu0 %1975
      %v1977 = vmul.f32 %v1973, %v1964
      %v1978 = vmul.f32 %v1976, %v1964
      %v1979 = vadd.f32 %v1977, 1e-05
      %v1980 = vadd.f32 %v1978, 1e-05
      %v1981 = vrsqrt.pop %v1979
      %v1982 = vrsqrt.pop %v1980
      %v1983 = vmul.f32 %v1967, %v1981
      %v1984 = vmul.f32 %v1968, %v1982
      %v1986 = vlaneseq
      %v1987 = vshrl.u32 %v1986, 7
      %v1988 = vsub.s32 0, %v1987
      %v1989 = vrot.slane %v1956, %v1988
      %v1991 = vmul.f32 %v1983, %v1989
      %v1992 = vmul.f32 %v1984, %v1989
      %v1994 = vlaneseq
      %v1995 = vshrl.u32 %v1994, 7
      %v1996 = vsub.s32 0, %v1995
      %v1997 = vrot.slane %v1957, %v1996
      %v1999 = vadd.f32 %v1991, %v1997
      %v2000 = vadd.f32 %v1992, %v1997
      %v2001 = vld [vmem:[%s27] sm:$0xf]
      %v2002 = vld [vmem:[%s27 + $0x4] sm:$0xf]
      %v2003 = vld [vmem:[%s27 + $0x8] sm:$0xf]
      %v2004 = vld [vmem:[%s27 + $0xc] sm:$0xf]
      %v2005 = vpack.c.bf16 %v2000, %v1999
      %v2006 = vld [vmem:[%s29] sm:$0x1]
      %v2008 = vlaneseq
      %v2009 = vshrl.u32 %v2008, 7
      %v2010 = vsub.s32 0, %v2009
      %v2011 = vrot.slane %v2006, %v2010
      %v2017 = vunpack.c.l.b16 %v2001
      %v2018 = vunpack.c.l.b16 %v2002
      %v2019 = vunpack.c.l.b16 %v2003
      %v2020 = vunpack.c.l.b16 %v2004
      %v2021 = vpack.c.b16 %v2018, %v2017
      %v2022 = vpack.c.b16 %v2020, %v2019
      %v2026 = vsel %vm1290, %v2005, 0
      %2028 = vmatprep.subr.bf16.mxu0 0
      %2029 = vmatpush1.bf16.msra.mxu0 %v2021
      %2030 = vmatprep.subr.bf16.mxu0 0
      %2031 = vmatpush1.bf16.msra.mxu0 %v2022
      %2032 = vmatprep.subr.bf16.mxu0 0
      %2033 = vmatpush1.bf16.msra.mxu0 0
      %2034 = vmatprep.subr.bf16.mxu0 0
      %2035 = vmatpush1.bf16.msra.mxu0 0
      %2036 = vmatprep.subr.bf16.mxu0 0
      %2037 = vmatpush1.bf16.msra.mxu0 0
      %2038 = vmatprep.subr.bf16.mxu0 0
      %2039 = vmatpush1.bf16.msra.mxu0 0
      %2040 = vmatprep.subr.bf16.mxu0 0
      %2041 = vmatpush1.bf16.msra.mxu0 0
      %2042 = vmatprep.subr.bf16.mxu0 0
      %2043 = vmatpush1.bf16.msra.mxu0 0
      %2044 = vmatprep.subr.bf16.mxu0 0
      %2045 = vmatpush1.bf16.msra.mxu0 0
      %2046 = vmatprep.subr.bf16.mxu0 0
      %2047 = vmatpush1.bf16.msra.mxu0 0
      %2048 = vmatprep.subr.bf16.mxu0 0
      %2049 = vmatpush1.bf16.msra.mxu0 0
      %2050 = vmatprep.subr.bf16.mxu0 0
      %2051 = vmatpush1.bf16.msra.mxu0 0
      %2052 = vmatprep.subr.bf16.mxu0 0
      %2053 = vmatpush1.bf16.msra.mxu0 0
      %2054 = vmatprep.subr.bf16.mxu0 0
      %2055 = vmatpush1.bf16.msra.mxu0 0
      %2056 = vmatprep.subr.bf16.mxu0 0
      %2057 = vmatpush1.bf16.msra.mxu0 0
      %2058 = vmatprep.subr.bf16.mxu0 0
      %2059 = vmatpush1.bf16.msra.mxu0 0
      %2060 = vmatprep.mubr.bf16.mxu0 0
      %2061 = vmatmul.mubr.bf16.gmra.mrb[0].mxu0 %v2026
      %v2062 = vpop.f32.mrb[0].mxu0
      %v2063 = vadd.f32 %v2011, %v2062
      %v2064 = vpop.f32.mrb[0].mxu0
      %v2065 = vpop.f32.mrb[0].mxu0
      %v2066 = vadd.f32 %v2011, %v2065
      %v2067 = vpop.f32.mrb[0].mxu0
      %2068 = vdwg.mxu0
      %v2069 = vld [vmem:[#allocation4] sm:$0xff]
      %v2070 = vld [vmem:[#allocation5] sm:$0xff]
      %v2071 = vpack.c.bf16 %v2066, %v2063
      %v2073 = vsel %vm1349, %v2071, 0
      %v2076 = vsel %vm1349, %v2069, 0
      %2078 = vmatprep.subr.bf16.mxu0 0
      %2079 = vmatpush1.bf16.xpose.msra.mxu0 %v2076
      %2080 = vmatprep.subr.bf16.mxu0 0
      %2081 = vmatpush1.bf16.xpose.msra.mxu0 0
      %2082 = vmatprep.subr.bf16.mxu0 0
      %2083 = vmatpush1.bf16.xpose.msra.mxu0 0
      %2084 = vmatprep.subr.bf16.mxu0 0
      %2085 = vmatpush1.bf16.xpose.msra.mxu0 0
      %2086 = vmatprep.subr.bf16.mxu0 0
      %2087 = vmatpush1.bf16.xpose.msra.mxu0 0
      %2088 = vmatprep.subr.bf16.mxu0 0
      %2089 = vmatpush1.bf16.xpose.msra.mxu0 0
      %2090 = vmatprep.subr.bf16.mxu0 0
      %2091 = vmatpush1.bf16.xpose.msra.mxu0 0
      %2092 = vmatprep.subr.bf16.mxu0 0
      %2093 = vmatpush1.bf16.xpose.msra.mxu0 0
      %2094 = vmatprep.subr.bf16.mxu0 0
      %2095 = vmatpush1.bf16.xpose.msra.mxu0 0
      %2096 = vmatprep.subr.bf16.mxu0 0
      %2097 = vmatpush1.bf16.xpose.msra.mxu0 0
      %2098 = vmatprep.subr.bf16.mxu0 0
      %2099 = vmatpush1.bf16.xpose.msra.mxu0 0
      %2100 = vmatprep.subr.bf16.mxu0 0
      %2101 = vmatpush1.bf16.xpose.msra.mxu0 0
      %2102 = vmatprep.subr.bf16.mxu0 0
      %2103 = vmatpush1.bf16.xpose.msra.mxu0 0
      %2104 = vmatprep.subr.bf16.mxu0 0
      %2105 = vmatpush1.bf16.xpose.msra.mxu0 0
      %2106 = vmatprep.subr.bf16.mxu0 0
      %2107 = vmatpush1.bf16.xpose.msra.mxu0 0
      %2108 = vmatprep.subr.bf16.mxu0 0
      %2109 = vmatpush1.bf16.xpose.msra.mxu0 0
      %2110 = vmatprep.mubr.bf16.mxu0 0
      %2111 = vmatmul.mubr.bf16.gmra.mrb[0].mxu0 %v2073
      %v2112 = vpop.f32.mrb[0].mxu0
      %v2113 = vadd.f32 0.0, %v2112
      %v2114 = vpop.f32.mrb[0].mxu0
      %v2115 = vpop.f32.mrb[0].mxu0
      %v2116 = vadd.f32 0.0, %v2115
      %v2117 = vpop.f32.mrb[0].mxu0
      %2118 = vdwg.mxu0
      %v2119 = vmul.f32 %v2113, 0.35355338
      %v2120 = vmul.f32 %v2116, 0.35355338
      %v2121 = vsel %vm1401, %v2119, -inf
      %2122 = vmax.xlane.f32.xlu0 %v2121
      %v2123 = vpop.xlane.xlu0 %2122
      %v2124 = vsel %vm1401, %v2120, -inf
      %2125 = vmax.xlane.f32.xlu0 %v2124
      %v2126 = vpop.xlane.xlu0 %2125
      %v2127 = vsub.f32 %v2119, %v2123
      %v2128 = vsub.f32 %v2120, %v2126
      %v2129 = vmul.f32 %v2127, 1.442695
      %v2130 = vpow.pop %v2129
      %v2131 = vmul.f32 %v2128, 1.442695
      %v2132 = vpow.pop %v2131
      %v2133 = vsel %vm1401, %v2130, 0.0
      %2134 = vadd.xlane.f32.xlu0 %v2133
      %v2135 = vpop.xlane.xlu0 %2134
      %v2136 = vsel %vm1401, %v2132, 0.0
      %2137 = vadd.xlane.f32.xlu0 %v2136
      %v2138 = vpop.xlane.xlu0 %2137
      %v2139 = vrcp.pop %v2135
      %v2140 = vrcp.pop %v2138
      %v2141 = vpack.c.bf16 %v2132, %v2130
      %v2143 = vsel %vm1401, %v2141, 0
      %2145 = vmatprep.subr.bf16.mxu0 0
      %2146 = vmatpush1.bf16.msra.mxu0 %v2070
      %2147 = vmatprep.subr.bf16.mxu0 0
      %2148 = vmatpush1.bf16.msra.mxu0 0
      %2149 = vmatprep.subr.bf16.mxu0 0
      %2150 = vmatpush1.bf16.msra.mxu0 0
      %2151 = vmatprep.subr.bf16.mxu0 0
      %2152 = vmatpush1.bf16.msra.mxu0 0
      %2153 = vmatprep.subr.bf16.mxu0 0
      %2154 = vmatpush1.bf16.msra.mxu0 0
      %2155 = vmatprep.subr.bf16.mxu0 0
      %2156 = vmatpush1.bf16.msra.mxu0 0
      %2157 = vmatprep.subr.bf16.mxu0 0
      %2158 = vmatpush1.bf16.msra.mxu0 0
      %2159 = vmatprep.subr.bf16.mxu0 0
      %2160 = vmatpush1.bf16.msra.mxu0 0
      %2161 = vmatprep.subr.bf16.mxu0 0
      %2162 = vmatpush1.bf16.msra.mxu0 0
      %2163 = vmatprep.subr.bf16.mxu0 0
      %2164 = vmatpush1.bf16.msra.mxu0 0
      %2165 = vmatprep.subr.bf16.mxu0 0
      %2166 = vmatpush1.bf16.msra.mxu0 0
      %2167 = vmatprep.subr.bf16.mxu0 0
      %2168 = vmatpush1.bf16.msra.mxu0 0
      %2169 = vmatprep.subr.bf16.mxu0 0
      %2170 = vmatpush1.bf16.msra.mxu0 0
      %2171 = vmatprep.subr.bf16.mxu0 0
      %2172 = vmatpush1.bf16.msra.mxu0 0
      %2173 = vmatprep.subr.bf16.mxu0 0
      %2174 = vmatpush1.bf16.msra.mxu0 0
      %2175 = vmatprep.subr.bf16.mxu0 0
      %2176 = vmatpush1.bf16.msra.mxu0 0
      %2177 = vmatprep.mubr.bf16.mxu0 0
      %2178 = vmatmul.mubr.bf16.gmra.mrb[0].mxu0 %v2143
      %v2179 = vpop.f32.mrb[0].mxu0
      %v2180 = vadd.f32 0.0, %v2179
      %v2181 = vpop.f32.mrb[0].mxu0
      %v2182 = vpop.f32.mrb[0].mxu0
      %v2183 = vadd.f32 0.0, %v2182
      %v2184 = vpop.f32.mrb[0].mxu0
      %2185 = vdwg.mxu0
      %v2186 = vmul.f32 %v2180, %v2139
      %v2187 = vmul.f32 %v2183, %v2140
      %2188 = vst.msk [vmem:[#allocation6] sm:$0xff] %vm1349, %v2186
      %2189 = vst.msk [vmem:[#allocation6 + $0x8] sm:$0xff] %vm1349, %v2187
      %2191 = vrot.lane.b32.xlu0 %v2071, 120
      %v2192 = vpop.permute.xlu0 %2191
      %2194 = vrot.lane.b32.xlu0 %v2069, 120
      %v2195 = vpop.permute.xlu0 %2194
      %v2197 = vsel %vm1349, %v2192, 0
      %v2200 = vsel %vm1349, %v2195, 0
      %2202 = vmatprep.subr.bf16.mxu0 0
      %2203 = vmatpush1.bf16.xpose.msra.mxu0 %v2200
      %2204 = vmatprep.subr.bf16.mxu0 0
      %2205 = vmatpush1.bf16.xpose.msra.mxu0 0
      %2206 = vmatprep.subr.bf16.mxu0 0
      %2207 = vmatpush1.bf16.xpose.msra.mxu0 0
      %2208 = vmatprep.subr.bf16.mxu0 0
      %2209 = vmatpush1.bf16.xpose.msra.mxu0 0
      %2210 = vmatprep.subr.bf16.mxu0 0
      %2211 = vmatpush1.bf16.xpose.msra.mxu0 0
      %2212 = vmatprep.subr.bf16.mxu0 0
      %2213 = vmatpush1.bf16.xpose.msra.mxu0 0
      %2214 = vmatprep.subr.bf16.mxu0 0
      %2215 = vmatpush1.bf16.xpose.msra.mxu0 0
      %2216 = vmatprep.subr.bf16.mxu0 0
      %2217 = vmatpush1.bf16.xpose.msra.mxu0 0
      %2218 = vmatprep.subr.bf16.mxu0 0
      %2219 = vmatpush1.bf16.xpose.msra.mxu0 0
      %2220 = vmatprep.subr.bf16.mxu0 0
      %2221 = vmatpush1.bf16.xpose.msra.mxu0 0
      %2222 = vmatprep.subr.bf16.mxu0 0
      %2223 = vmatpush1.bf16.xpose.msra.mxu0 0
      %2224 = vmatprep.subr.bf16.mxu0 0
      %2225 = vmatpush1.bf16.xpose.msra.mxu0 0
      %2226 = vmatprep.subr.bf16.mxu0 0
      %2227 = vmatpush1.bf16.xpose.msra.mxu0 0
      %2228 = vmatprep.subr.bf16.mxu0 0
      %2229 = vmatpush1.bf16.xpose.msra.mxu0 0
      %2230 = vmatprep.subr.bf16.mxu0 0
      %2231 = vmatpush1.bf16.xpose.msra.mxu0 0
      %2232 = vmatprep.subr.bf16.mxu0 0
      %2233 = vmatpush1.bf16.xpose.msra.mxu0 0
      %2234 = vmatprep.mubr.bf16.mxu0 0
      %2235 = vmatmul.mubr.bf16.gmra.mrb[0].mxu0 %v2197
      %v2236 = vpop.f32.mrb[0].mxu0
      %v2237 = vadd.f32 0.0, %v2236
      %v2238 = vpop.f32.mrb[0].mxu0
      %v2239 = vpop.f32.mrb[0].mxu0
      %v2240 = vadd.f32 0.0, %v2239
      %v2241 = vpop.f32.mrb[0].mxu0
      %2242 = vdwg.mxu0
      %v2243 = vmul.f32 %v2237, 0.35355338
      %v2244 = vmul.f32 %v2240, 0.35355338
      %v2245 = vsel %vm1401, %v2243, -inf
      %2246 = vmax.xlane.f32.xlu0 %v2245
      %v2247 = vpop.xlane.xlu0 %2246
      %v2248 = vsel %vm1401, %v2244, -inf
      %2249 = vmax.xlane.f32.xlu0 %v2248
      %v2250 = vpop.xlane.xlu0 %2249
      %v2251 = vsub.f32 %v2243, %v2247
      %v2252 = vsub.f32 %v2244, %v2250
      %v2253 = vmul.f32 %v2251, 1.442695
      %v2254 = vpow.pop %v2253
      %v2255 = vmul.f32 %v2252, 1.442695
      %v2256 = vpow.pop %v2255
      %v2257 = vsel %vm1401, %v2254, 0.0
      %2258 = vadd.xlane.f32.xlu0 %v2257
      %v2259 = vpop.xlane.xlu0 %2258
      %v2260 = vsel %vm1401, %v2256, 0.0
      %2261 = vadd.xlane.f32.xlu0 %v2260
      %v2262 = vpop.xlane.xlu0 %2261
      %v2263 = vrcp.pop %v2259
      %v2264 = vrcp.pop %v2262
      %v2265 = vpack.c.bf16 %v2256, %v2254
      %2267 = vrot.lane.b32.xlu0 %v2070, 120
      %v2268 = vpop.permute.xlu0 %2267
      %v2271 = vsel %vm1401, %v2265, 0
      %2273 = vmatprep.subr.bf16.mxu0 0
      %2274 = vmatpush1.bf16.msra.mxu0 %v2268
      %2275 = vmatprep.subr.bf16.mxu0 0
      %2276 = vmatpush1.bf16.msra.mxu0 0
      %2277 = vmatprep.subr.bf16.mxu0 0
      %2278 = vmatpush1.bf16.msra.mxu0 0
      %2279 = vmatprep.subr.bf16.mxu0 0
      %2280 = vmatpush1.bf16.msra.mxu0 0
      %2281 = vmatprep.subr.bf16.mxu0 0
      %2282 = vmatpush1.bf16.msra.mxu0 0
      %2283 = vmatprep.subr.bf16.mxu0 0
      %2284 = vmatpush1.bf16.msra.mxu0 0
      %2285 = vmatprep.subr.bf16.mxu0 0
      %2286 = vmatpush1.bf16.msra.mxu0 0
      %2287 = vmatprep.subr.bf16.mxu0 0
      %2288 = vmatpush1.bf16.msra.mxu0 0
      %2289 = vmatprep.subr.bf16.mxu0 0
      %2290 = vmatpush1.bf16.msra.mxu0 0
      %2291 = vmatprep.subr.bf16.mxu0 0
      %2292 = vmatpush1.bf16.msra.mxu0 0
      %2293 = vmatprep.subr.bf16.mxu0 0
      %2294 = vmatpush1.bf16.msra.mxu0 0
      %2295 = vmatprep.subr.bf16.mxu0 0
      %2296 = vmatpush1.bf16.msra.mxu0 0
      %2297 = vmatprep.subr.bf16.mxu0 0
      %2298 = vmatpush1.bf16.msra.mxu0 0
      %2299 = vmatprep.subr.bf16.mxu0 0
      %2300 = vmatpush1.bf16.msra.mxu0 0
      %2301 = vmatprep.subr.bf16.mxu0 0
      %2302 = vmatpush1.bf16.msra.mxu0 0
      %2303 = vmatprep.subr.bf16.mxu0 0
      %2304 = vmatpush1.bf16.msra.mxu0 0
      %2305 = vmatprep.mubr.bf16.mxu0 0
      %2306 = vmatmul.mubr.bf16.gmra.mrb[0].mxu0 %v2271
      %v2307 = vpop.f32.mrb[0].mxu0
      %v2308 = vadd.f32 0.0, %v2307
      %v2309 = vpop.f32.mrb[0].mxu0
      %v2310 = vpop.f32.mrb[0].mxu0
      %v2311 = vadd.f32 0.0, %v2310
      %v2312 = vpop.f32.mrb[0].mxu0
      %2313 = vdwg.mxu0
      %v2314 = vmul.f32 %v2308, %v2263
      %v2315 = vmul.f32 %v2311, %v2264
      %2318 = vrot.lane.b32.xlu0 %v2314, 8
      %v2319 = vpop.permute.xlu0 %2318
      %2320 = vrot.lane.b32.xlu0 %v2315, 8
      %v2321 = vpop.permute.xlu0 %2320
      %2324 = vst.msk [vmem:[#allocation6] sm:$0xff] %vm1607, %v2319
      %2325 = vst.msk [vmem:[#allocation6 + $0x8] sm:$0xff] %vm1607, %v2321
      %2326 = vrot.lane.b32.xlu0 %v2071, 112
      %v2327 = vpop.permute.xlu0 %2326
      %2328 = vrot.lane.b32.xlu0 %v2069, 112
      %v2329 = vpop.permute.xlu0 %2328
      %v2331 = vsel %vm1349, %v2327, 0
      %v2334 = vsel %vm1349, %v2329, 0
      %2336 = vmatprep.subr.bf16.mxu0 0
      %2337 = vmatpush1.bf16.xpose.msra.mxu0 %v2334
      %2338 = vmatprep.subr.bf16.mxu0 0
      %2339 = vmatpush1.bf16.xpose.msra.mxu0 0
      %2340 = vmatprep.subr.bf16.mxu0 0
      %2341 = vmatpush1.bf16.xpose.msra.mxu0 0
      %2342 = vmatprep.subr.bf16.mxu0 0
      %2343 = vmatpush1.bf16.xpose.msra.mxu0 0
      %2344 = vmatprep.subr.bf16.mxu0 0
      %2345 = vmatpush1.bf16.xpose.msra.mxu0 0
      %2346 = vmatprep.subr.bf16.mxu0 0
      %2347 = vmatpush1.bf16.xpose.msra.mxu0 0
      %2348 = vmatprep.subr.bf16.mxu0 0
      %2349 = vmatpush1.bf16.xpose.msra.mxu0 0
      %2350 = vmatprep.subr.bf16.mxu0 0
      %2351 = vmatpush1.bf16.xpose.msra.mxu0 0
      %2352 = vmatprep.subr.bf16.mxu0 0
      %2353 = vmatpush1.bf16.xpose.msra.mxu0 0
      %2354 = vmatprep.subr.bf16.mxu0 0
      %2355 = vmatpush1.bf16.xpose.msra.mxu0 0
      %2356 = vmatprep.subr.bf16.mxu0 0
      %2357 = vmatpush1.bf16.xpose.msra.mxu0 0
      %2358 = vmatprep.subr.bf16.mxu0 0
      %2359 = vmatpush1.bf16.xpose.msra.mxu0 0
      %2360 = vmatprep.subr.bf16.mxu0 0
      %2361 = vmatpush1.bf16.xpose.msra.mxu0 0
      %2362 = vmatprep.subr.bf16.mxu0 0
      %2363 = vmatpush1.bf16.xpose.msra.mxu0 0
      %2364 = vmatprep.subr.bf16.mxu0 0
      %2365 = vmatpush1.bf16.xpose.msra.mxu0 0
      %2366 = vmatprep.subr.bf16.mxu0 0
      %2367 = vmatpush1.bf16.xpose.msra.mxu0 0
      %2368 = vmatprep.mubr.bf16.mxu0 0
      %2369 = vmatmul.mubr.bf16.gmra.mrb[0].mxu0 %v2331
      %v2370 = vpop.f32.mrb[0].mxu0
      %v2371 = vadd.f32 0.0, %v2370
      %v2372 = vpop.f32.mrb[0].mxu0
      %v2373 = vpop.f32.mrb[0].mxu0
      %v2374 = vadd.f32 0.0, %v2373
      %v2375 = vpop.f32.mrb[0].mxu0
      %2376 = vdwg.mxu0
      %v2377 = vmul.f32 %v2371, 0.35355338
      %v2378 = vmul.f32 %v2374, 0.35355338
      %v2379 = vsel %vm1401, %v2377, -inf
      %2380 = vmax.xlane.f32.xlu0 %v2379
      %v2381 = vpop.xlane.xlu0 %2380
      %v2382 = vsel %vm1401, %v2378, -inf
      %2383 = vmax.xlane.f32.xlu0 %v2382
      %v2384 = vpop.xlane.xlu0 %2383
      %v2385 = vsub.f32 %v2377, %v2381
      %v2386 = vsub.f32 %v2378, %v2384
      %v2387 = vmul.f32 %v2385, 1.442695
      %v2388 = vpow.pop %v2387
      %v2389 = vmul.f32 %v2386, 1.442695
      %v2390 = vpow.pop %v2389
      %v2391 = vsel %vm1401, %v2388, 0.0
      %2392 = vadd.xlane.f32.xlu0 %v2391
      %v2393 = vpop.xlane.xlu0 %2392
      %v2394 = vsel %vm1401, %v2390, 0.0
      %2395 = vadd.xlane.f32.xlu0 %v2394
      %v2396 = vpop.xlane.xlu0 %2395
      %v2397 = vrcp.pop %v2393
      %v2398 = vrcp.pop %v2396
      %v2399 = vpack.c.bf16 %v2390, %v2388
      %2400 = vrot.lane.b32.xlu0 %v2070, 112
      %v2401 = vpop.permute.xlu0 %2400
      %v2404 = vsel %vm1401, %v2399, 0
      %2406 = vmatprep.subr.bf16.mxu0 0
      %2407 = vmatpush1.bf16.msra.mxu0 %v2401
      %2408 = vmatprep.subr.bf16.mxu0 0
      %2409 = vmatpush1.bf16.msra.mxu0 0
      %2410 = vmatprep.subr.bf16.mxu0 0
      %2411 = vmatpush1.bf16.msra.mxu0 0
      %2412 = vmatprep.subr.bf16.mxu0 0
      %2413 = vmatpush1.bf16.msra.mxu0 0
      %2414 = vmatprep.subr.bf16.mxu0 0
      %2415 = vmatpush1.bf16.msra.mxu0 0
      %2416 = vmatprep.subr.bf16.mxu0 0
      %2417 = vmatpush1.bf16.msra.mxu0 0
      %2418 = vmatprep.subr.bf16.mxu0 0
      %2419 = vmatpush1.bf16.msra.mxu0 0
      %2420 = vmatprep.subr.bf16.mxu0 0
      %2421 = vmatpush1.bf16.msra.mxu0 0
      %2422 = vmatprep.subr.bf16.mxu0 0
      %2423 = vmatpush1.bf16.msra.mxu0 0
      %2424 = vmatprep.subr.bf16.mxu0 0
      %2425 = vmatpush1.bf16.msra.mxu0 0
      %2426 = vmatprep.subr.bf16.mxu0 0
      %2427 = vmatpush1.bf16.msra.mxu0 0
      %2428 = vmatprep.subr.bf16.mxu0 0
      %2429 = vmatpush1.bf16.msra.mxu0 0
      %2430 = vmatprep.subr.bf16.mxu0 0
      %2431 = vmatpush1.bf16.msra.mxu0 0
      %2432 = vmatprep.subr.bf16.mxu0 0
      %2433 = vmatpush1.bf16.msra.mxu0 0
      %2434 = vmatprep.subr.bf16.mxu0 0
      %2435 = vmatpush1.bf16.msra.mxu0 0
      %2436 = vmatprep.subr.bf16.mxu0 0
      %2437 = vmatpush1.bf16.msra.mxu0 0
      %2438 = vmatprep.mubr.bf16.mxu0 0
      %2439 = vmatmul.mubr.bf16.gmra.mrb[0].mxu0 %v2404
      %v2440 = vpop.f32.mrb[0].mxu0
      %v2441 = vadd.f32 0.0, %v2440
      %v2442 = vpop.f32.mrb[0].mxu0
      %v2443 = vpop.f32.mrb[0].mxu0
      %v2444 = vadd.f32 0.0, %v2443
      %v2445 = vpop.f32.mrb[0].mxu0
      %2446 = vdwg.mxu0
      %v2447 = vmul.f32 %v2441, %v2397
      %v2448 = vmul.f32 %v2444, %v2398
      %2451 = vrot.lane.b32.xlu0 %v2447, 16
      %v2452 = vpop.permute.xlu0 %2451
      %2453 = vrot.lane.b32.xlu0 %v2448, 16
      %v2454 = vpop.permute.xlu0 %2453
      %2457 = vst.msk [vmem:[#allocation6] sm:$0xff] %vm1743, %v2452
      %2458 = vst.msk [vmem:[#allocation6 + $0x8] sm:$0xff] %vm1743, %v2454
      %2459 = vrot.lane.b32.xlu0 %v2071, 104
      %v2460 = vpop.permute.xlu0 %2459
      %2461 = vrot.lane.b32.xlu0 %v2069, 104
      %v2462 = vpop.permute.xlu0 %2461
      %v2464 = vsel %vm1349, %v2460, 0
      %v2467 = vsel %vm1349, %v2462, 0
      %2469 = vmatprep.subr.bf16.mxu0 0
      %2470 = vmatpush1.bf16.xpose.msra.mxu0 %v2467
      %2471 = vmatprep.subr.bf16.mxu0 0
      %2472 = vmatpush1.bf16.xpose.msra.mxu0 0
      %2473 = vmatprep.subr.bf16.mxu0 0
      %2474 = vmatpush1.bf16.xpose.msra.mxu0 0
      %2475 = vmatprep.subr.bf16.mxu0 0
      %2476 = vmatpush1.bf16.xpose.msra.mxu0 0
      %2477 = vmatprep.subr.bf16.mxu0 0
      %2478 = vmatpush1.bf16.xpose.msra.mxu0 0
      %2479 = vmatprep.subr.bf16.mxu0 0
      %2480 = vmatpush1.bf16.xpose.msra.mxu0 0
      %2481 = vmatprep.subr.bf16.mxu0 0
      %2482 = vmatpush1.bf16.xpose.msra.mxu0 0
      %2483 = vmatprep.subr.bf16.mxu0 0
      %2484 = vmatpush1.bf16.xpose.msra.mxu0 0
      %2485 = vmatprep.subr.bf16.mxu0 0
      %2486 = vmatpush1.bf16.xpose.msra.mxu0 0
      %2487 = vmatprep.subr.bf16.mxu0 0
      %2488 = vmatpush1.bf16.xpose.msra.mxu0 0
      %2489 = vmatprep.subr.bf16.mxu0 0
      %2490 = vmatpush1.bf16.xpose.msra.mxu0 0
      %2491 = vmatprep.subr.bf16.mxu0 0
      %2492 = vmatpush1.bf16.xpose.msra.mxu0 0
      %2493 = vmatprep.subr.bf16.mxu0 0
      %2494 = vmatpush1.bf16.xpose.msra.mxu0 0
      %2495 = vmatprep.subr.bf16.mxu0 0
      %2496 = vmatpush1.bf16.xpose.msra.mxu0 0
      %2497 = vmatprep.subr.bf16.mxu0 0
      %2498 = vmatpush1.bf16.xpose.msra.mxu0 0
      %2499 = vmatprep.subr.bf16.mxu0 0
      %2500 = vmatpush1.bf16.xpose.msra.mxu0 0
      %2501 = vmatprep.mubr.bf16.mxu0 0
      %2502 = vmatmul.mubr.bf16.gmra.mrb[0].mxu0 %v2464
      %v2503 = vpop.f32.mrb[0].mxu0
      %v2504 = vadd.f32 0.0, %v2503
      %v2505 = vpop.f32.mrb[0].mxu0
      %v2506 = vpop.f32.mrb[0].mxu0
      %v2507 = vadd.f32 0.0, %v2506
      %v2508 = vpop.f32.mrb[0].mxu0
      %2509 = vdwg.mxu0
      %v2510 = vmul.f32 %v2504, 0.35355338
      %v2511 = vmul.f32 %v2507, 0.35355338
      %v2512 = vsel %vm1401, %v2510, -inf
      %2513 = vmax.xlane.f32.xlu0 %v2512
      %v2514 = vpop.xlane.xlu0 %2513
      %v2515 = vsel %vm1401, %v2511, -inf
      %2516 = vmax.xlane.f32.xlu0 %v2515
      %v2517 = vpop.xlane.xlu0 %2516
      %v2518 = vsub.f32 %v2510, %v2514
      %v2519 = vsub.f32 %v2511, %v2517
      %v2520 = vmul.f32 %v2518, 1.442695
      %v2521 = vpow.pop %v2520
      %v2522 = vmul.f32 %v2519, 1.442695
      %v2523 = vpow.pop %v2522
      %v2524 = vsel %vm1401, %v2521, 0.0
      %2525 = vadd.xlane.f32.xlu0 %v2524
      %v2526 = vpop.xlane.xlu0 %2525
      %v2527 = vsel %vm1401, %v2523, 0.0
      %2528 = vadd.xlane.f32.xlu0 %v2527
      %v2529 = vpop.xlane.xlu0 %2528
      %v2530 = vrcp.pop %v2526
      %v2531 = vrcp.pop %v2529
      %v2532 = vpack.c.bf16 %v2523, %v2521
      %2533 = vrot.lane.b32.xlu0 %v2070, 104
      %v2534 = vpop.permute.xlu0 %2533
      %v2537 = vsel %vm1401, %v2532, 0
      %2539 = vmatprep.subr.bf16.mxu0 0
      %2540 = vmatpush1.bf16.msra.mxu0 %v2534
      %2541 = vmatprep.subr.bf16.mxu0 0
      %2542 = vmatpush1.bf16.msra.mxu0 0
      %2543 = vmatprep.subr.bf16.mxu0 0
      %2544 = vmatpush1.bf16.msra.mxu0 0
      %2545 = vmatprep.subr.bf16.mxu0 0
      %2546 = vmatpush1.bf16.msra.mxu0 0
      %2547 = vmatprep.subr.bf16.mxu0 0
      %2548 = vmatpush1.bf16.msra.mxu0 0
      %2549 = vmatprep.subr.bf16.mxu0 0
      %2550 = vmatpush1.bf16.msra.mxu0 0
      %2551 = vmatprep.subr.bf16.mxu0 0
      %2552 = vmatpush1.bf16.msra.mxu0 0
      %2553 = vmatprep.subr.bf16.mxu0 0
      %2554 = vmatpush1.bf16.msra.mxu0 0
      %2555 = vmatprep.subr.bf16.mxu0 0
      %2556 = vmatpush1.bf16.msra.mxu0 0
      %2557 = vmatprep.subr.bf16.mxu0 0
      %2558 = vmatpush1.bf16.msra.mxu0 0
      %2559 = vmatprep.subr.bf16.mxu0 0
      %2560 = vmatpush1.bf16.msra.mxu0 0
      %2561 = vmatprep.subr.bf16.mxu0 0
      %2562 = vmatpush1.bf16.msra.mxu0 0
      %2563 = vmatprep.subr.bf16.mxu0 0
      %2564 = vmatpush1.bf16.msra.mxu0 0
      %2565 = vmatprep.subr.bf16.mxu0 0
      %2566 = vmatpush1.bf16.msra.mxu0 0
      %2567 = vmatprep.subr.bf16.mxu0 0
      %2568 = vmatpush1.bf16.msra.mxu0 0
      %2569 = vmatprep.subr.bf16.mxu0 0
      %2570 = vmatpush1.bf16.msra.mxu0 0
      %2571 = vmatprep.mubr.bf16.mxu0 0
      %2572 = vmatmul.mubr.bf16.gmra.mrb[0].mxu0 %v2537
      %v2573 = vpop.f32.mrb[0].mxu0
      %v2574 = vadd.f32 0.0, %v2573
      %v2575 = vpop.f32.mrb[0].mxu0
      %v2576 = vpop.f32.mrb[0].mxu0
      %v2577 = vadd.f32 0.0, %v2576
      %v2578 = vpop.f32.mrb[0].mxu0
      %2579 = vdwg.mxu0
      %v2580 = vmul.f32 %v2574, %v2530
      %v2581 = vmul.f32 %v2577, %v2531
      %2584 = vrot.lane.b32.xlu0 %v2580, 24
      %v2585 = vpop.permute.xlu0 %2584
      %2586 = vrot.lane.b32.xlu0 %v2581, 24
      %v2587 = vpop.permute.xlu0 %2586
      %2590 = vst.msk [vmem:[#allocation6] sm:$0xff] %vm1879, %v2585
      %2591 = vst.msk [vmem:[#allocation6 + $0x8] sm:$0xff] %vm1879, %v2587
      %v2592 = vld [vmem:[#allocation6] sm:$0xff]
      %v2593 = vld [vmem:[#allocation6 + $0x8] sm:$0xff]
      %v2594 = vld [vmem:[%s39] sm:$0xf]
      %v2595 = vld [vmem:[%s39 + $0x4] sm:$0xf]
      %v2596 = vld [vmem:[%s39 + $0x8] sm:$0xf]
      %v2597 = vld [vmem:[%s39 + $0xc] sm:$0xf]
      %v2598 = vpack.c.bf16 %v2593, %v2592
      %v2603 = vunpack.c.l.b16 %v2594
      %v2604 = vunpack.c.l.b16 %v2595
      %v2605 = vunpack.c.l.b16 %v2596
      %v2606 = vunpack.c.l.b16 %v2597
      %v2607 = vpack.c.b16 %v2604, %v2603
      %v2608 = vpack.c.b16 %v2606, %v2605
      %v2612 = vsel %vm1290, %v2598, 0
      %2614 = vmatprep.subr.bf16.mxu0 0
      %2615 = vmatpush1.bf16.msra.mxu0 %v2607
      %2616 = vmatprep.subr.bf16.mxu0 0
      %2617 = vmatpush1.bf16.msra.mxu0 %v2608
      %2618 = vmatprep.subr.bf16.mxu0 0
      %2619 = vmatpush1.bf16.msra.mxu0 0
      %2620 = vmatprep.subr.bf16.mxu0 0
      %2621 = vmatpush1.bf16.msra.mxu0 0
      %2622 = vmatprep.subr.bf16.mxu0 0
      %2623 = vmatpush1.bf16.msra.mxu0 0
      %2624 = vmatprep.subr.bf16.mxu0 0
      %2625 = vmatpush1.bf16.msra.mxu0 0
      %2626 = vmatprep.subr.bf16.mxu0 0
      %2627 = vmatpush1.bf16.msra.mxu0 0
      %2628 = vmatprep.subr.bf16.mxu0 0
      %2629 = vmatpush1.bf16.msra.mxu0 0
      %2630 = vmatprep.subr.bf16.mxu0 0
      %2631 = vmatpush1.bf16.msra.mxu0 0
      %2632 = vmatprep.subr.bf16.mxu0 0
      %2633 = vmatpush1.bf16.msra.mxu0 0
      %2634 = vmatprep.subr.bf16.mxu0 0
      %2635 = vmatpush1.bf16.msra.mxu0 0
      %2636 = vmatprep.subr.bf16.mxu0 0
      %2637 = vmatpush1.bf16.msra.mxu0 0
      %2638 = vmatprep.subr.bf16.mxu0 0
      %2639 = vmatpush1.bf16.msra.mxu0 0
      %2640 = vmatprep.subr.bf16.mxu0 0
      %2641 = vmatpush1.bf16.msra.mxu0 0
      %2642 = vmatprep.subr.bf16.mxu0 0
      %2643 = vmatpush1.bf16.msra.mxu0 0
      %2644 = vmatprep.subr.bf16.mxu0 0
      %2645 = vmatpush1.bf16.msra.mxu0 0
      %2646 = vmatprep.mubr.bf16.mxu0 0
      %2647 = vmatmul.mubr.bf16.gmra.mrb[0].mxu0 %v2612
      %v2648 = vpop.f32.mrb[0].mxu0
      %v2649 = vadd.f32 0.0, %v2648
      %v2650 = vpop.f32.mrb[0].mxu0
      %v2651 = vpop.f32.mrb[0].mxu0
      %v2652 = vadd.f32 0.0, %v2651
      %v2653 = vpop.f32.mrb[0].mxu0
      %2654 = vdwg.mxu0
      %v2655 = vadd.f32 %v1999, %v2649
      %v2656 = vadd.f32 %v2000, %v2652
      %v2657 = vld [vmem:[%s41] sm:$0x1]
      %v2659 = vlaneseq
      %v2660 = vshrl.u32 %v2659, 7
      %v2661 = vsub.s32 0, %v2660
      %v2662 = vrot.slane %v2657, %v2661
      %v2664 = vadd.f32 %v2655, %v2662
      %v2665 = vadd.f32 %v2656, %v2662
      %v2666 = vld [vmem:[%s43] sm:$0x1]
      %v2667 = vld [vmem:[%s45] sm:$0x1]
      %v2668 = vsel %vm1290, %v2664, 0.0
      %2669 = vadd.xlane.f32.xlu0 %v2668
      %v2670 = vpop.xlane.xlu0 %2669
      %v2671 = vsel %vm1290, %v2665, 0.0
      %2672 = vadd.xlane.f32.xlu0 %v2671
      %v2673 = vpop.xlane.xlu0 %2672
      %v2674 = vmul.f32 %v2670, %v1964
      %v2675 = vmul.f32 %v2673, %v1964
      %v2676 = vsub.f32 %v2664, %v2674
      %v2677 = vsub.f32 %v2665, %v2675
      %v2678 = vmul.f32 %v2676, %v2676
      %v2679 = vmul.f32 %v2677, %v2677
      %v2680 = vsel %vm1290, %v2678, 0.0
      %2681 = vadd.xlane.f32.xlu0 %v2680
      %v2682 = vpop.xlane.xlu0 %2681
      %v2683 = vsel %vm1290, %v2679, 0.0
      %2684 = vadd.xlane.f32.xlu0 %v2683
      %v2685 = vpop.xlane.xlu0 %2684
      %v2686 = vmul.f32 %v2682, %v1964
      %v2687 = vmul.f32 %v2685, %v1964
      %v2688 = vadd.f32 %v2686, 1e-05
      %v2689 = vadd.f32 %v2687, 1e-05
      %v2690 = vrsqrt.pop %v2688
      %v2691 = vrsqrt.pop %v2689
      %v2692 = vmul.f32 %v2676, %v2690
      %v2693 = vmul.f32 %v2677, %v2691
      %v2695 = vlaneseq
      %v2696 = vshrl.u32 %v2695, 7
      %v2697 = vsub.s32 0, %v2696
      %v2698 = vrot.slane %v2666, %v2697
      %v2700 = vmul.f32 %v2692, %v2698
      %v2701 = vmul.f32 %v2693, %v2698
      %v2703 = vlaneseq
      %v2704 = vshrl.u32 %v2703, 7
      %v2705 = vsub.s32 0, %v2704
      %v2706 = vrot.slane %v2667, %v2705
      %v2708 = vadd.f32 %v2700, %v2706
      %v2709 = vadd.f32 %v2701, %v2706
      %v2710 = vld [vmem:[%s47] sm:$0xf]
      %v2711 = vld [vmem:[%s47 + $0x4] sm:$0xf]
      %v2712 = vld [vmem:[%s47 + $0x8] sm:$0xf]
      %v2713 = vld [vmem:[%s47 + $0xc] sm:$0xf]
      %v2714 = vpack.c.bf16 %v2709, %v2708
      %v2715 = vld [vmem:[%s49] sm:$0x1]
      %v2717 = vlaneseq
      %v2718 = vshrl.u32 %v2717, 7
      %v2719 = vsub.s32 0, %v2718
      %v2720 = vrot.slane %v2715, %v2719
      %v2726 = vunpack.c.l.b16 %v2710
      %v2727 = vunpack.c.l.b16 %v2711
      %v2728 = vunpack.c.l.b16 %v2712
      %v2729 = vunpack.c.l.b16 %v2713
      %v2730 = vpack.c.b16 %v2727, %v2726
      %v2731 = vpack.c.b16 %v2729, %v2728
      %v2735 = vsel %vm1290, %v2714, 0
      %2737 = vmatprep.subr.bf16.mxu0 0
      %2738 = vmatpush1.bf16.msra.mxu0 %v2730
      %2739 = vmatprep.subr.bf16.mxu0 0
      %2740 = vmatpush1.bf16.msra.mxu0 %v2731
      %2741 = vmatprep.subr.bf16.mxu0 0
      %2742 = vmatpush1.bf16.msra.mxu0 0
      %2743 = vmatprep.subr.bf16.mxu0 0
      %2744 = vmatpush1.bf16.msra.mxu0 0
      %2745 = vmatprep.subr.bf16.mxu0 0
      %2746 = vmatpush1.bf16.msra.mxu0 0
      %2747 = vmatprep.subr.bf16.mxu0 0
      %2748 = vmatpush1.bf16.msra.mxu0 0
      %2749 = vmatprep.subr.bf16.mxu0 0
      %2750 = vmatpush1.bf16.msra.mxu0 0
      %2751 = vmatprep.subr.bf16.mxu0 0
      %2752 = vmatpush1.bf16.msra.mxu0 0
      %2753 = vmatprep.subr.bf16.mxu0 0
      %2754 = vmatpush1.bf16.msra.mxu0 0
      %2755 = vmatprep.subr.bf16.mxu0 0
      %2756 = vmatpush1.bf16.msra.mxu0 0
      %2757 = vmatprep.subr.bf16.mxu0 0
      %2758 = vmatpush1.bf16.msra.mxu0 0
      %2759 = vmatprep.subr.bf16.mxu0 0
      %2760 = vmatpush1.bf16.msra.mxu0 0
      %2761 = vmatprep.subr.bf16.mxu0 0
      %2762 = vmatpush1.bf16.msra.mxu0 0
      %2763 = vmatprep.subr.bf16.mxu0 0
      %2764 = vmatpush1.bf16.msra.mxu0 0
      %2765 = vmatprep.subr.bf16.mxu0 0
      %2766 = vmatpush1.bf16.msra.mxu0 0
      %2767 = vmatprep.subr.bf16.mxu0 0
      %2768 = vmatpush1.bf16.msra.mxu0 0
      %2769 = vmatprep.mubr.bf16.mxu0 0
      %2770 = vmatmul.mubr.bf16.gmra.mrb[0].mxu0 %v2735
      %v2771 = vpop.f32.mrb[0].mxu0
      %v2772 = vadd.f32 %v2720, %v2771
      %v2773 = vpop.f32.mrb[0].mxu0
      %v2774 = vpop.f32.mrb[0].mxu0
      %v2775 = vadd.f32 %v2720, %v2774
      %v2776 = vpop.f32.mrb[0].mxu0
      %2777 = vdwg.mxu0
      %v2778 = vmul.f32 %v2772, 0.5
      %v2779 = vmul.f32 %v2775, 0.5
      %v2780 = vmul.f32 %v2772, 0.044715
      %v2781 = vmul.f32 %v2775, 0.044715
      %v2782 = vmul.f32 %v2780, %v2772
      %v2783 = vmul.f32 %v2781, %v2775
      %v2784 = vmul.f32 %v2782, %v2772
      %v2785 = vmul.f32 %v2783, %v2775
      %v2786 = vadd.f32 %v2772, %v2784
      %v2787 = vadd.f32 %v2775, %v2785
      %v2788 = vmul.f32 %v2786, 0.7978846
      %v2789 = vmul.f32 %v2787, 0.7978846
      %v2790 = vtanh.pop %v2788
      %v2791 = vtanh.pop %v2789
      %v2792 = vadd.f32 %v2790, 1.0
      %v2793 = vadd.f32 %v2791, 1.0
      %v2794 = vmul.f32 %v2778, %v2792
      %v2795 = vmul.f32 %v2779, %v2793
      %v2796 = vld [vmem:[%s51] sm:$0xf]
      %v2797 = vld [vmem:[%s51 + $0x4] sm:$0xf]
      %v2798 = vld [vmem:[%s51 + $0x8] sm:$0xf]
      %v2799 = vld [vmem:[%s51 + $0xc] sm:$0xf]
      %v2800 = vpack.c.bf16 %v2795, %v2794
      %v2801 = vld [vmem:[%s53] sm:$0x1]
      %v2803 = vlaneseq
      %v2804 = vshrl.u32 %v2803, 7
      %v2805 = vsub.s32 0, %v2804
      %v2806 = vrot.slane %v2801, %v2805
      %v2812 = vunpack.c.l.b16 %v2796
      %v2813 = vunpack.c.l.b16 %v2797
      %v2814 = vunpack.c.l.b16 %v2798
      %v2815 = vunpack.c.l.b16 %v2799
      %v2816 = vpack.c.b16 %v2813, %v2812
      %v2817 = vpack.c.b16 %v2815, %v2814
      %v2821 = vsel %vm1290, %v2800, 0
      %2823 = vmatprep.subr.bf16.mxu0 0
      %2824 = vmatpush1.bf16.msra.mxu0 %v2816
      %2825 = vmatprep.subr.bf16.mxu0 0
      %2826 = vmatpush1.bf16.msra.mxu0 %v2817
      %2827 = vmatprep.subr.bf16.mxu0 0
      %2828 = vmatpush1.bf16.msra.mxu0 0
      %2829 = vmatprep.subr.bf16.mxu0 0
      %2830 = vmatpush1.bf16.msra.mxu0 0
      %2831 = vmatprep.subr.bf16.mxu0 0
      %2832 = vmatpush1.bf16.msra.mxu0 0
      %2833 = vmatprep.subr.bf16.mxu0 0
      %2834 = vmatpush1.bf16.msra.mxu0 0
      %2835 = vmatprep.subr.bf16.mxu0 0
      %2836 = vmatpush1.bf16.msra.mxu0 0
      %2837 = vmatprep.subr.bf16.mxu0 0
      %2838 = vmatpush1.bf16.msra.mxu0 0
      %2839 = vmatprep.subr.bf16.mxu0 0
      %2840 = vmatpush1.bf16.msra.mxu0 0
      %2841 = vmatprep.subr.bf16.mxu0 0
      %2842 = vmatpush1.bf16.msra.mxu0 0
      %2843 = vmatprep.subr.bf16.mxu0 0
      %2844 = vmatpush1.bf16.msra.mxu0 0
      %2845 = vmatprep.subr.bf16.mxu0 0
      %2846 = vmatpush1.bf16.msra.mxu0 0
      %2847 = vmatprep.subr.bf16.mxu0 0
      %2848 = vmatpush1.bf16.msra.mxu0 0
      %2849 = vmatprep.subr.bf16.mxu0 0
      %2850 = vmatpush1.bf16.msra.mxu0 0
      %2851 = vmatprep.subr.bf16.mxu0 0
      %2852 = vmatpush1.bf16.msra.mxu0 0
      %2853 = vmatprep.subr.bf16.mxu0 0
      %2854 = vmatpush1.bf16.msra.mxu0 0
      %2855 = vmatprep.mubr.bf16.mxu0 0
      %2856 = vmatmul.mubr.bf16.gmra.mrb[0].mxu0 %v2821
      %v2857 = vpop.f32.mrb[0].mxu0
      %v2858 = vadd.f32 %v2806, %v2857
      %v2859 = vpop.f32.mrb[0].mxu0
      %v2860 = vpop.f32.mrb[0].mxu0
      %v2861 = vadd.f32 %v2806, %v2860
      %v2862 = vpop.f32.mrb[0].mxu0
      %2863 = vdwg.mxu0
      %v2864 = vadd.f32 %v2708, %v2858
      %v2865 = vadd.f32 %v2709, %v2861
      %v2866 = vld [vmem:[%s55] sm:$0x1]
      %v2867 = vld [vmem:[%s57] sm:$0x1]
      %v2868 = vsel %vm1290, %v2864, 0.0
      %2869 = vadd.xlane.f32.xlu0 %v2868
      %v2870 = vpop.xlane.xlu0 %2869
      %v2871 = vsel %vm1290, %v2865, 0.0
      %2872 = vadd.xlane.f32.xlu0 %v2871
      %v2873 = vpop.xlane.xlu0 %2872
      %v2874 = vmul.f32 %v2870, %v1964
      %v2875 = vmul.f32 %v2873, %v1964
      %v2876 = vsub.f32 %v2864, %v2874
      %v2877 = vsub.f32 %v2865, %v2875
      %v2878 = vmul.f32 %v2876, %v2876
      %v2879 = vmul.f32 %v2877, %v2877
      %v2880 = vsel %vm1290, %v2878, 0.0
      %2881 = vadd.xlane.f32.xlu0 %v2880
      %v2882 = vpop.xlane.xlu0 %2881
      %v2883 = vsel %vm1290, %v2879, 0.0
      %2884 = vadd.xlane.f32.xlu0 %v2883
      %v2885 = vpop.xlane.xlu0 %2884
      %v2886 = vmul.f32 %v2882, %v1964
      %v2887 = vmul.f32 %v2885, %v1964
      %v2888 = vadd.f32 %v2886, 1e-05
      %v2889 = vadd.f32 %v2887, 1e-05
      %v2890 = vrsqrt.pop %v2888
      %v2891 = vrsqrt.pop %v2889
      %v2892 = vmul.f32 %v2876, %v2890
      %v2893 = vmul.f32 %v2877, %v2891
      %v2895 = vlaneseq
      %v2896 = vshrl.u32 %v2895, 7
      %v2897 = vsub.s32 0, %v2896
      %v2898 = vrot.slane %v2866, %v2897
      %v2900 = vmul.f32 %v2892, %v2898
      %v2901 = vmul.f32 %v2893, %v2898
      %v2903 = vlaneseq
      %v2904 = vshrl.u32 %v2903, 7
      %v2905 = vsub.s32 0, %v2904
      %v2906 = vrot.slane %v2867, %v2905
      %v2908 = vadd.f32 %v2900, %v2906
      %v2909 = vadd.f32 %v2901, %v2906
      %2910 = vst.msk [vmem:[%s980] sm:$0xff] %vm1290, %v2908
      %2911 = vst.msk [vmem:[%s980 + $0x8] sm:$0xff] %vm1290, %v2909
      %s2912 = smul.u32 2, %s75
      %p2913 = scmp.lt.s32.totalorder %s74, 1
      %s2914 = scalar_select %p2913, %s74, 1
      %p2915 = scmp.lt.s32.totalorder %s2912, 1
      %s2916 = scalar_select %p2915, %s2912, 1
      %s2917 = smul.addr %s2914, 2
      %s2918 = sadd.s32 %s2916, %s2917
      %s2919 = smul.addr %s2918, 8
      %s2920 = scalar_lea.vmem %s59, %s2919
      // Predicated region
      $region141: #{denseformer_forward.10} parent=135 // pred_check
        %p2921 = pneg %p728
      $region142: #{denseformer_forward.10} parent=135 // pred_check_branch
        %2923 = sbr.rel (%p2921) target = $region144
      $region143: #{denseformer_forward.10} parent=135 // pred_region
        %s2924 = smul.u32 2, %s75
      $region144: #{denseformer_forward.10} parent=135 // pred_fallthru
        _
    $region136: #{denseformer_forward.10} parent=5 // pred_fallthru
      _
    %p2925 = scmp.le.s32.totalorder 2, %s65
    // Predicated region
    $region145: #{denseformer_forward.10} parent=5 // pred_check
      %p2926 = pneg %p2925
    $region146: #{denseformer_forward.10} parent=5 // pred_check_branch
      %2928 = sbr.rel (%p2926) target = $region148
    $region147: #{denseformer_forward.10} parent=5 // pred_region
      %s2929 = ssub.s32 %s65, 2
      // Predicated region
      $region149: #{denseformer_forward.10} parent=147 // pred_check
        %p2930 = pneg %p734
      $region150: #{denseformer_forward.10} parent=147 // pred_check_branch
        %2932 = sbr.rel (%p2930) target = $region152
      $region151: #{denseformer_forward.10} parent=147 // pred_region
        %s2933 = smul.u32 2, %s77
        %p2934 = scmp.lt.s32.totalorder %s76, 1
        %s2935 = scalar_select %p2934, %s76, 1
        %p2936 = scmp.lt.s32.totalorder %s2933, 1
        %s2937 = scalar_select %p2936, %s2933, 1
        %s2938 = smul.addr %s2935, 2
        %s2939 = sadd.s32 %s2937, %s2938
        %s2940 = smul.addr %s2939, 8
        %s2941 = scalar_lea.vmem %s59, %s2940
      $region152: #{denseformer_forward.10} parent=147 // pred_fallthru
        _
    $region148: #{denseformer_forward.10} parent=5 // pred_fallthru
      _
  $region6: #{denseformer_forward.10} parent=0 // loop_footer
    %s69 = sadd.s32 1, %s65
  $region7: #{denseformer_forward.10} parent=0 // loop_footer_branch
    %64 = sbr.rel target = $region3
  $region8: #{denseformer_forward.10} parent=0 // loop_exit
    _

</llo_original>
